<compile_context>
chip_gen: v6e
topology: v6e:2x2x1
jax: 0.10.0
libtpu: 0.0.40
codegen_flags: <defaults>
</compile_context>

<pallas_src>
import functools

import jax
import jax.numpy as jnp
from jax import lax
from jax.experimental import pallas as pl
from jax.experimental.pallas import tpu as pltpu


# ------------------------------ fused kernel --------------------------------
def _encoder_kernel(*refs, T, B, E, H, L):
    ids_ref = refs[0]                       # SMEM (T*B,) int32 (scalar prefetch)
    table_hbm = refs[1]                     # HBM  (V, E) f32  (memory_space=ANY)
    w_refs = refs[2:2 + 3 * L]              # per layer: (4,in,H), (4,H,H), (4,1,H)
    h_out_ref = refs[2 + 3 * L]             # VMEM (L, B, H)
    c_out_ref = refs[3 + 3 * L]             # VMEM (L, B, H)
    emb_buf = refs[4 + 3 * L]               # VMEM (T*B, E) scratch
    gsem = refs[5 + 3 * L]                  # DMA semaphores (T*B,)

    TB = T * B

    # ---- Embedding gather: one small DMA per token row; table stays in HBM ----
    copies = []
    for r in range(TB):
        cp = pltpu.make_async_copy(
            table_hbm.at[pl.ds(ids_ref[r], 1), :],
            emb_buf.at[pl.ds(r, 1), :],
            gsem.at[r])
        cp.start()
        copies.append(cp)
    for cp in copies:
        cp.wait()

    # Dropout(p) on embeddings: identity in eval mode.
    x_in = emb_buf[...]                     # (TB, E)

    for l in range(L):
        wih_ref, whh_ref, b_ref = w_refs[3 * l: 3 * l + 3]

        # Hoist the input projection out of the recurrence:
        # one (TB, in) x (in, H) matmul per gate, bias folded in.
        xp = [jnp.dot(x_in, wih_ref[k], preferred_element_type=jnp.float32)
              + b_ref[k] for k in range(4)]                    # 4 x (TB, H)
        whh = [whh_ref[k] for k in range(4)]                    # loop-invariant loads

        h = jnp.zeros((B, H), jnp.float32)
        c = jnp.zeros((B, H), jnp.float32)
        outs = []
        # Recurrence fully inside the kernel (statically unrolled: T is small
        # and static; for long sequences switch to lax.fori_loop over (T,B,H)
        # shaped scratch).
        for t in range(T):
            r0 = t * B
            i_g = jax.nn.sigmoid(
                xp[0][r0:r0 + B] +
                jnp.dot(h, whh[0], preferred_element_type=jnp.float32))
            f_g = jax.nn.sigmoid(
                xp[1][r0:r0 + B] +
                jnp.dot(h, whh[1], preferred_element_type=jnp.float32))
            g_g = jnp.tanh(
                xp[2][r0:r0 + B] +
                jnp.dot(h, whh[2], preferred_element_type=jnp.float32))
            o_g = jax.nn.sigmoid(
                xp[3][r0:r0 + B] +
                jnp.dot(h, whh[3], preferred_element_type=jnp.float32))
            c = f_g * c + i_g * g_g
            h = o_g * jnp.tanh(c)
            outs.append(h)

        # Only the final states leave the chip (the module returns (h_n, c_n)).
        h_out_ref[l] = h
        c_out_ref[l] = c

        if l + 1 < L:
            # Inter-layer dropout is identity in eval mode; activations stay on-chip.
            x_in = jnp.concatenate(outs, axis=0)                # (TB, H)


# ------------------------------ host wrapper ---------------------------------
def encoder_forward(params, x):
    """x: (T, B) int32 token ids -> (hidden, cell): each (num_layers, B, H)."""
    T, B = x.shape
    V, E = params["embedding"].shape
    L = len(params["layers"])
    H = params["layers"][0]["w_hh"].shape[-1]

    weights = []
    in_specs = [pl.BlockSpec(memory_space=pl.ANY)]   # embedding table stays in HBM
    for lp in params["layers"]:
        for name in ("w_ih", "w_hh", "b"):
            weights.append(lp[name])
            in_specs.append(pl.BlockSpec(lp[name].shape,
                                         lambda i, ids: (0, 0, 0)))

    grid_spec = pltpu.PrefetchScalarGridSpec(
        num_scalar_prefetch=1,                       # token ids -> SMEM
        grid=(1,),                                   # single launch; loops live inside
        in_specs=in_specs,
        out_specs=[
            pl.BlockSpec((L, B, H), lambda i, ids: (0, 0, 0)),
            pl.BlockSpec((L, B, H), lambda i, ids: (0, 0, 0)),
        ],
        scratch_shapes=[
            pltpu.VMEM((T * B, E), jnp.float32),     # gathered embeddings
            pltpu.SemaphoreType.DMA((T * B,)),       # one sem per gather row
        ],
    )

    kernel = functools.partial(_encoder_kernel, T=T, B=B, E=E, H=H, L=L)
    h_n, c_n = pl.pallas_call(
        kernel,
        out_shape=(jax.ShapeDtypeStruct((L, B, H), jnp.float32),
                   jax.ShapeDtypeStruct((L, B, H), jnp.float32)),
        grid_spec=grid_spec,
        compiler_params=pltpu.CompilerParams(
            dimension_semantics=("arbitrary",)),
    )(x.reshape(-1).astype(jnp.int32), params["embedding"], *weights)
    return h_n, c_n


# ------------------------------ params init ----------------------------------
def init_encoder_params(key, input_size, embedding_size, hidden_size, num_layers):
    keys = jax.random.split(key, 1 + 4 * num_layers)
    params = {"embedding": jax.random.normal(
        keys[0], (input_size, embedding_size), jnp.float32)}
    H = hidden_size
    k = 1.0 / jnp.sqrt(jnp.float32(H))
    layers = []
    for l in range(num_layers):
        in_dim = embedding_size if l == 0 else hidden_size
        kw = keys[1 + 4 * l: 1 + 4 * (l + 1)]
        w_ih = jax.random.uniform(kw[0], (4 * H, in_dim), jnp.float32, -k, k)
        w_hh = jax.random.uniform(kw[1], (4 * H, H), jnp.float32, -k, k)
        b_ih = jax.random.uniform(kw[2], (4 * H,), jnp.float32, -k, k)
        b_hh = jax.random.uniform(kw[3], (4 * H,), jnp.float32, -k, k)
        layers.append({
            # per-gate layout (PyTorch gate order i, f, g, o):
            "w_ih": jnp.transpose(w_ih.reshape(4, H, in_dim), (0, 2, 1)),  # (4, in, H)
            "w_hh": jnp.transpose(w_hh.reshape(4, H, H), (0, 2, 1)),       # (4, H, H)
            "b": (b_ih + b_hh).reshape(4, 1, H),                           # (4, 1, H)
        })
    params["layers"] = layers
    return params


# ------------------------------ JAX reference ---------------------------------
def encoder_reference(params, x):
    emb = params["embedding"][x]                     # (T, B, E)
    T, B, _ = emb.shape
    H = params["layers"][0]["w_hh"].shape[-1]
    h_all, c_all = [], []
    layer_in = emb
    for lp in params["layers"]:
        wih, whh, b = lp["w_ih"], lp["w_hh"], lp["b"]
        h = jnp.zeros((B, H), jnp.float32)
        c = jnp.zeros((B, H), jnp.float32)
        outs = []
        for t in range(T):
            x_t = layer_in[t]
            i = jax.nn.sigmoid(x_t @ wih[0] + h @ whh[0] + b[0])
            f = jax.nn.sigmoid(x_t @ wih[1] + h @ whh[1] + b[1])
            g = jnp.tanh(x_t @ wih[2] + h @ whh[2] + b[2])
            o = jax.nn.sigmoid(x_t @ wih[3] + h @ whh[3] + b[3])
            c = f * c + i * g
            h = o * jnp.tanh(c)
            outs.append(h)
        h_all.append(h)
        c_all.append(c)
        layer_in = jnp.stack(outs, axis=0)
    return jnp.stack(h_all, axis=0), jnp.stack(c_all, axis=0)


# ---------------------------------- main --------------------------------------
if __name__ == "__main__":
    input_size = 20        # vocab
    embedding_size = 16
    hidden_size = 32
    num_layers = 2
    seq_len = 8
    batch = 2

    key = jax.random.PRNGKey(0)
    k_param, k_ids = jax.random.split(key)
    params = init_encoder_params(k_param, input_size, embedding_size,
                                 hidden_size, num_layers)
    x = jax.random.randint(k_ids, (seq_len, batch), 0, input_size, jnp.int32)

    hidden, cell = encoder_forward(params, x)
    hidden, cell = jax.block_until_ready((hidden, cell))

    h_ref, c_ref = encoder_reference(params, x)
    assert hidden.shape == (num_layers, batch, hidden_size)
    assert cell.shape == (num_layers, batch, hidden_size)
    assert jnp.max(jnp.abs(hidden - h_ref)) < 2e-2
    assert jnp.max(jnp.abs(cell - c_ref)) < 2e-2

    print("KERNEL_OK")
</pallas_src>

<mosaic_0001>
module attributes {stable_mosaic.version = 11 : i64} {
  func.func @_encoder_kernel(%arg0: i32, %arg1: memref<16xi32, #tpu.memory_space<smem>>, %arg2: memref<20x16xf32, #tpu.memory_space<any>>, %arg3: memref<4x16x32xf32, #tpu.memory_space<vmem>>, %arg4: memref<4x32x32xf32, #tpu.memory_space<vmem>>, %arg5: memref<4x1x32xf32, #tpu.memory_space<vmem>>, %arg6: memref<4x32x32xf32, #tpu.memory_space<vmem>>, %arg7: memref<4x32x32xf32, #tpu.memory_space<vmem>>, %arg8: memref<4x1x32xf32, #tpu.memory_space<vmem>>, %arg9: memref<2x2x32xf32, #tpu.memory_space<vmem>>, %arg10: memref<2x2x32xf32, #tpu.memory_space<vmem>>, %arg11: memref<16x16xf32, #tpu.memory_space<vmem>>, %arg12: memref<16x!tpu.dma_semaphore, #tpu.memory_space<semaphore_mem>>) attributes {dimension_semantics = [#tpu.dimension_semantics<arbitrary>], iteration_bounds = array<i64: 1>, scalar_prefetch = 1 : i64, scratch_operands = 2 : i64, tpu.core_type = #tpu.core_type<tc>, window_params = [{}, {pipeline_mode = #tpu.pipeline_mode<synchronous>, transform_indices = @transform_1, window_bounds = array<i64: 4, 16, 32>}, {pipeline_mode = #tpu.pipeline_mode<synchronous>, transform_indices = @transform_2, window_bounds = array<i64: 4, 32, 32>}, {pipeline_mode = #tpu.pipeline_mode<synchronous>, transform_indices = @transform_3, window_bounds = array<i64: 4, 1, 32>}, {pipeline_mode = #tpu.pipeline_mode<synchronous>, transform_indices = @transform_4, window_bounds = array<i64: 4, 32, 32>}, {pipeline_mode = #tpu.pipeline_mode<synchronous>, transform_indices = @transform_5, window_bounds = array<i64: 4, 32, 32>}, {pipeline_mode = #tpu.pipeline_mode<synchronous>, transform_indices = @transform_6, window_bounds = array<i64: 4, 1, 32>}, {pipeline_mode = #tpu.pipeline_mode<synchronous>, transform_indices = @transform_7, window_bounds = array<i64: 2, 2, 32>}, {pipeline_mode = #tpu.pipeline_mode<synchronous>, transform_indices = @transform_8, window_bounds = array<i64: 2, 2, 32>}]} {
    %c0 = arith.constant 0 : index
    %0 = memref.load %arg1[%c0] : memref<16xi32, #tpu.memory_space<smem>>
    %c0_i32 = arith.constant 0 : i32
    %c0_i32_0 = arith.constant 0 : i32
    %1 = tpu.memref_slice %arg2[%0, %c0_i32_0] : memref<20x16xf32, #tpu.memory_space<any>> -> memref<1x16xf32, #tpu.memory_space<any>>
    %c0_i32_1 = arith.constant 0 : i32
    %c0_i32_2 = arith.constant 0 : i32
    %2 = tpu.memref_slice %arg11[%c0_i32_1, %c0_i32_2] : memref<16x16xf32, #tpu.memory_space<vmem>> -> memref<1x16xf32, #tpu.memory_space<vmem>>
    %3 = tpu.memref_slice %arg12[%c0_i32] : memref<16x!tpu.dma_semaphore, #tpu.memory_space<semaphore_mem>> -> memref<1x!tpu.dma_semaphore, #tpu.memory_space<semaphore_mem>>
    %4 = tpu.memref_squeeze %3 : memref<1x!tpu.dma_semaphore, #tpu.memory_space<semaphore_mem>> -> memref<!tpu.dma_semaphore, #tpu.memory_space<semaphore_mem>>
    tpu.enqueue_dma source(%1 : memref<1x16xf32, #tpu.memory_space<any>>) target(%2 : memref<1x16xf32, #tpu.memory_space<vmem>>) target_semaphore(%4 : memref<!tpu.dma_semaphore, #tpu.memory_space<semaphore_mem>>)
    %c1 = arith.constant 1 : index
    %5 = memref.load %arg1[%c1] : memref<16xi32, #tpu.memory_space<smem>>
    %c1_i32 = arith.constant 1 : i32
    %c0_i32_3 = arith.constant 0 : i32
    %6 = tpu.memref_slice %arg2[%5, %c0_i32_3] : memref<20x16xf32, #tpu.memory_space<any>> -> memref<1x16xf32, #tpu.memory_space<any>>
    %c1_i32_4 = arith.constant 1 : i32
    %c0_i32_5 = arith.constant 0 : i32
    %7 = tpu.memref_slice %arg11[%c1_i32_4, %c0_i32_5] : memref<16x16xf32, #tpu.memory_space<vmem>> -> memref<1x16xf32, #tpu.memory_space<vmem>>
    %8 = tpu.memref_slice %arg12[%c1_i32] : memref<16x!tpu.dma_semaphore, #tpu.memory_space<semaphore_mem>> -> memref<1x!tpu.dma_semaphore, #tpu.memory_space<semaphore_mem>>
    %9 = tpu.memref_squeeze %8 : memref<1x!tpu.dma_semaphore, #tpu.memory_space<semaphore_mem>> -> memref<!tpu.dma_semaphore, #tpu.memory_space<semaphore_mem>>
    tpu.enqueue_dma source(%6 : memref<1x16xf32, #tpu.memory_space<any>>) target(%7 : memref<1x16xf32, #tpu.memory_space<vmem>>) target_semaphore(%9 : memref<!tpu.dma_semaphore, #tpu.memory_space<semaphore_mem>>)
    %c2 = arith.constant 2 : index
    %10 = memref.load %arg1[%c2] : memref<16xi32, #tpu.memory_space<smem>>
    %c2_i32 = arith.constant 2 : i32
    %c0_i32_6 = arith.constant 0 : i32
    %11 = tpu.memref_slice %arg2[%10, %c0_i32_6] : memref<20x16xf32, #tpu.memory_space<any>> -> memref<1x16xf32, #tpu.memory_space<any>>
    %c2_i32_7 = arith.constant 2 : i32
    %c0_i32_8 = arith.constant 0 : i32
    %12 = tpu.memref_slice %arg11[%c2_i32_7, %c0_i32_8] : memref<16x16xf32, #tpu.memory_space<vmem>> -> memref<1x16xf32, #tpu.memory_space<vmem>>
    %13 = tpu.memref_slice %arg12[%c2_i32] : memref<16x!tpu.dma_semaphore, #tpu.memory_space<semaphore_mem>> -> memref<1x!tpu.dma_semaphore, #tpu.memory_space<semaphore_mem>>
    %14 = tpu.memref_squeeze %13 : memref<1x!tpu.dma_semaphore, #tpu.memory_space<semaphore_mem>> -> memref<!tpu.dma_semaphore, #tpu.memory_space<semaphore_mem>>
    tpu.enqueue_dma source(%11 : memref<1x16xf32, #tpu.memory_space<any>>) target(%12 : memref<1x16xf32, #tpu.memory_space<vmem>>) target_semaphore(%14 : memref<!tpu.dma_semaphore, #tpu.memory_space<semaphore_mem>>)
    %c3 = arith.constant 3 : index
    %15 = memref.load %arg1[%c3] : memref<16xi32, #tpu.memory_space<smem>>
    %c3_i32 = arith.constant 3 : i32
    %c0_i32_9 = arith.constant 0 : i32
    %16 = tpu.memref_slice %arg2[%15, %c0_i32_9] : memref<20x16xf32, #tpu.memory_space<any>> -> memref<1x16xf32, #tpu.memory_space<any>>
    %c3_i32_10 = arith.constant 3 : i32
    %c0_i32_11 = arith.constant 0 : i32
    %17 = tpu.memref_slice %arg11[%c3_i32_10, %c0_i32_11] : memref<16x16xf32, #tpu.memory_space<vmem>> -> memref<1x16xf32, #tpu.memory_space<vmem>>
    %18 = tpu.memref_slice %arg12[%c3_i32] : memref<16x!tpu.dma_semaphore, #tpu.memory_space<semaphore_mem>> -> memref<1x!tpu.dma_semaphore, #tpu.memory_space<semaphore_mem>>
    %19 = tpu.memref_squeeze %18 : memref<1x!tpu.dma_semaphore, #tpu.memory_space<semaphore_mem>> -> memref<!tpu.dma_semaphore, #tpu.memory_space<semaphore_mem>>
    tpu.enqueue_dma source(%16 : memref<1x16xf32, #tpu.memory_space<any>>) target(%17 : memref<1x16xf32, #tpu.memory_space<vmem>>) target_semaphore(%19 : memref<!tpu.dma_semaphore, #tpu.memory_space<semaphore_mem>>)
    %c4 = arith.constant 4 : index
    %20 = memref.load %arg1[%c4] : memref<16xi32, #tpu.memory_space<smem>>
    %c4_i32 = arith.constant 4 : i32
    %c0_i32_12 = arith.constant 0 : i32
    %21 = tpu.memref_slice %arg2[%20, %c0_i32_12] : memref<20x16xf32, #tpu.memory_space<any>> -> memref<1x16xf32, #tpu.memory_space<any>>
    %c4_i32_13 = arith.constant 4 : i32
    %c0_i32_14 = arith.constant 0 : i32
    %22 = tpu.memref_slice %arg11[%c4_i32_13, %c0_i32_14] : memref<16x16xf32, #tpu.memory_space<vmem>> -> memref<1x16xf32, #tpu.memory_space<vmem>>
    %23 = tpu.memref_slice %arg12[%c4_i32] : memref<16x!tpu.dma_semaphore, #tpu.memory_space<semaphore_mem>> -> memref<1x!tpu.dma_semaphore, #tpu.memory_space<semaphore_mem>>
    %24 = tpu.memref_squeeze %23 : memref<1x!tpu.dma_semaphore, #tpu.memory_space<semaphore_mem>> -> memref<!tpu.dma_semaphore, #tpu.memory_space<semaphore_mem>>
    tpu.enqueue_dma source(%21 : memref<1x16xf32, #tpu.memory_space<any>>) target(%22 : memref<1x16xf32, #tpu.memory_space<vmem>>) target_semaphore(%24 : memref<!tpu.dma_semaphore, #tpu.memory_space<semaphore_mem>>)
    %c5 = arith.constant 5 : index
    %25 = memref.load %arg1[%c5] : memref<16xi32, #tpu.memory_space<smem>>
    %c5_i32 = arith.constant 5 : i32
    %c0_i32_15 = arith.constant 0 : i32
    %26 = tpu.memref_slice %arg2[%25, %c0_i32_15] : memref<20x16xf32, #tpu.memory_space<any>> -> memref<1x16xf32, #tpu.memory_space<any>>
    %c5_i32_16 = arith.constant 5 : i32
    %c0_i32_17 = arith.constant 0 : i32
    %27 = tpu.memref_slice %arg11[%c5_i32_16, %c0_i32_17] : memref<16x16xf32, #tpu.memory_space<vmem>> -> memref<1x16xf32, #tpu.memory_space<vmem>>
    %28 = tpu.memref_slice %arg12[%c5_i32] : memref<16x!tpu.dma_semaphore, #tpu.memory_space<semaphore_mem>> -> memref<1x!tpu.dma_semaphore, #tpu.memory_space<semaphore_mem>>
    %29 = tpu.memref_squeeze %28 : memref<1x!tpu.dma_semaphore, #tpu.memory_space<semaphore_mem>> -> memref<!tpu.dma_semaphore, #tpu.memory_space<semaphore_mem>>
    tpu.enqueue_dma source(%26 : memref<1x16xf32, #tpu.memory_space<any>>) target(%27 : memref<1x16xf32, #tpu.memory_space<vmem>>) target_semaphore(%29 : memref<!tpu.dma_semaphore, #tpu.memory_space<semaphore_mem>>)
    %c6 = arith.constant 6 : index
    %30 = memref.load %arg1[%c6] : memref<16xi32, #tpu.memory_space<smem>>
    %c6_i32 = arith.constant 6 : i32
    %c0_i32_18 = arith.constant 0 : i32
    %31 = tpu.memref_slice %arg2[%30, %c0_i32_18] : memref<20x16xf32, #tpu.memory_space<any>> -> memref<1x16xf32, #tpu.memory_space<any>>
    %c6_i32_19 = arith.constant 6 : i32
    %c0_i32_20 = arith.constant 0 : i32
    %32 = tpu.memref_slice %arg11[%c6_i32_19, %c0_i32_20] : memref<16x16xf32, #tpu.memory_space<vmem>> -> memref<1x16xf32, #tpu.memory_space<vmem>>
    %33 = tpu.memref_slice %arg12[%c6_i32] : memref<16x!tpu.dma_semaphore, #tpu.memory_space<semaphore_mem>> -> memref<1x!tpu.dma_semaphore, #tpu.memory_space<semaphore_mem>>
    %34 = tpu.memref_squeeze %33 : memref<1x!tpu.dma_semaphore, #tpu.memory_space<semaphore_mem>> -> memref<!tpu.dma_semaphore, #tpu.memory_space<semaphore_mem>>
    tpu.enqueue_dma source(%31 : memref<1x16xf32, #tpu.memory_space<any>>) target(%32 : memref<1x16xf32, #tpu.memory_space<vmem>>) target_semaphore(%34 : memref<!tpu.dma_semaphore, #tpu.memory_space<semaphore_mem>>)
    %c7 = arith.constant 7 : index
    %35 = memref.load %arg1[%c7] : memref<16xi32, #tpu.memory_space<smem>>
    %c7_i32 = arith.constant 7 : i32
    %c0_i32_21 = arith.constant 0 : i32
    %36 = tpu.memref_slice %arg2[%35, %c0_i32_21] : memref<20x16xf32, #tpu.memory_space<any>> -> memref<1x16xf32, #tpu.memory_space<any>>
    %c7_i32_22 = arith.constant 7 : i32
    %c0_i32_23 = arith.constant 0 : i32
    %37 = tpu.memref_slice %arg11[%c7_i32_22, %c0_i32_23] : memref<16x16xf32, #tpu.memory_space<vmem>> -> memref<1x16xf32, #tpu.memory_space<vmem>>
    %38 = tpu.memref_slice %arg12[%c7_i32] : memref<16x!tpu.dma_semaphore, #tpu.memory_space<semaphore_mem>> -> memref<1x!tpu.dma_semaphore, #tpu.memory_space<semaphore_mem>>
    %39 = tpu.memref_squeeze %38 : memref<1x!tpu.dma_semaphore, #tpu.memory_space<semaphore_mem>> -> memref<!tpu.dma_semaphore, #tpu.memory_space<semaphore_mem>>
    tpu.enqueue_dma source(%36 : memref<1x16xf32, #tpu.memory_space<any>>) target(%37 : memref<1x16xf32, #tpu.memory_space<vmem>>) target_semaphore(%39 : memref<!tpu.dma_semaphore, #tpu.memory_space<semaphore_mem>>)
    %c8 = arith.constant 8 : index
    %40 = memref.load %arg1[%c8] : memref<16xi32, #tpu.memory_space<smem>>
    %c8_i32 = arith.constant 8 : i32
    %c0_i32_24 = arith.constant 0 : i32
    %41 = tpu.memref_slice %arg2[%40, %c0_i32_24] : memref<20x16xf32, #tpu.memory_space<any>> -> memref<1x16xf32, #tpu.memory_space<any>>
    %c8_i32_25 = arith.constant 8 : i32
    %c0_i32_26 = arith.constant 0 : i32
    %42 = tpu.memref_slice %arg11[%c8_i32_25, %c0_i32_26] : memref<16x16xf32, #tpu.memory_space<vmem>> -> memref<1x16xf32, #tpu.memory_space<vmem>>
    %43 = tpu.memref_slice %arg12[%c8_i32] : memref<16x!tpu.dma_semaphore, #tpu.memory_space<semaphore_mem>> -> memref<1x!tpu.dma_semaphore, #tpu.memory_space<semaphore_mem>>
    %44 = tpu.memref_squeeze %43 : memref<1x!tpu.dma_semaphore, #tpu.memory_space<semaphore_mem>> -> memref<!tpu.dma_semaphore, #tpu.memory_space<semaphore_mem>>
    tpu.enqueue_dma source(%41 : memref<1x16xf32, #tpu.memory_space<any>>) target(%42 : memref<1x16xf32, #tpu.memory_space<vmem>>) target_semaphore(%44 : memref<!tpu.dma_semaphore, #tpu.memory_space<semaphore_mem>>)
    %c9 = arith.constant 9 : index
    %45 = memref.load %arg1[%c9] : memref<16xi32, #tpu.memory_space<smem>>
    %c9_i32 = arith.constant 9 : i32
    %c0_i32_27 = arith.constant 0 : i32
    %46 = tpu.memref_slice %arg2[%45, %c0_i32_27] : memref<20x16xf32, #tpu.memory_space<any>> -> memref<1x16xf32, #tpu.memory_space<any>>
    %c9_i32_28 = arith.constant 9 : i32
    %c0_i32_29 = arith.constant 0 : i32
    %47 = tpu.memref_slice %arg11[%c9_i32_28, %c0_i32_29] : memref<16x16xf32, #tpu.memory_space<vmem>> -> memref<1x16xf32, #tpu.memory_space<vmem>>
    %48 = tpu.memref_slice %arg12[%c9_i32] : memref<16x!tpu.dma_semaphore, #tpu.memory_space<semaphore_mem>> -> memref<1x!tpu.dma_semaphore, #tpu.memory_space<semaphore_mem>>
    %49 = tpu.memref_squeeze %48 : memref<1x!tpu.dma_semaphore, #tpu.memory_space<semaphore_mem>> -> memref<!tpu.dma_semaphore, #tpu.memory_space<semaphore_mem>>
    tpu.enqueue_dma source(%46 : memref<1x16xf32, #tpu.memory_space<any>>) target(%47 : memref<1x16xf32, #tpu.memory_space<vmem>>) target_semaphore(%49 : memref<!tpu.dma_semaphore, #tpu.memory_space<semaphore_mem>>)
    %c10 = arith.constant 10 : index
    %50 = memref.load %arg1[%c10] : memref<16xi32, #tpu.memory_space<smem>>
    %c10_i32 = arith.constant 10 : i32
    %c0_i32_30 = arith.constant 0 : i32
    %51 = tpu.memref_slice %arg2[%50, %c0_i32_30] : memref<20x16xf32, #tpu.memory_space<any>> -> memref<1x16xf32, #tpu.memory_space<any>>
    %c10_i32_31 = arith.constant 10 : i32
    %c0_i32_32 = arith.constant 0 : i32
    %52 = tpu.memref_slice %arg11[%c10_i32_31, %c0_i32_32] : memref<16x16xf32, #tpu.memory_space<vmem>> -> memref<1x16xf32, #tpu.memory_space<vmem>>
    %53 = tpu.memref_slice %arg12[%c10_i32] : memref<16x!tpu.dma_semaphore, #tpu.memory_space<semaphore_mem>> -> memref<1x!tpu.dma_semaphore, #tpu.memory_space<semaphore_mem>>
    %54 = tpu.memref_squeeze %53 : memref<1x!tpu.dma_semaphore, #tpu.memory_space<semaphore_mem>> -> memref<!tpu.dma_semaphore, #tpu.memory_space<semaphore_mem>>
    tpu.enqueue_dma source(%51 : memref<1x16xf32, #tpu.memory_space<any>>) target(%52 : memref<1x16xf32, #tpu.memory_space<vmem>>) target_semaphore(%54 : memref<!tpu.dma_semaphore, #tpu.memory_space<semaphore_mem>>)
    %c11 = arith.constant 11 : index
    %55 = memref.load %arg1[%c11] : memref<16xi32, #tpu.memory_space<smem>>
    %c11_i32 = arith.constant 11 : i32
    %c0_i32_33 = arith.constant 0 : i32
    %56 = tpu.memref_slice %arg2[%55, %c0_i32_33] : memref<20x16xf32, #tpu.memory_space<any>> -> memref<1x16xf32, #tpu.memory_space<any>>
    %c11_i32_34 = arith.constant 11 : i32
    %c0_i32_35 = arith.constant 0 : i32
    %57 = tpu.memref_slice %arg11[%c11_i32_34, %c0_i32_35] : memref<16x16xf32, #tpu.memory_space<vmem>> -> memref<1x16xf32, #tpu.memory_space<vmem>>
    %58 = tpu.memref_slice %arg12[%c11_i32] : memref<16x!tpu.dma_semaphore, #tpu.memory_space<semaphore_mem>> -> memref<1x!tpu.dma_semaphore, #tpu.memory_space<semaphore_mem>>
    %59 = tpu.memref_squeeze %58 : memref<1x!tpu.dma_semaphore, #tpu.memory_space<semaphore_mem>> -> memref<!tpu.dma_semaphore, #tpu.memory_space<semaphore_mem>>
    tpu.enqueue_dma source(%56 : memref<1x16xf32, #tpu.memory_space<any>>) target(%57 : memref<1x16xf32, #tpu.memory_space<vmem>>) target_semaphore(%59 : memref<!tpu.dma_semaphore, #tpu.memory_space<semaphore_mem>>)
    %c12 = arith.constant 12 : index
    %60 = memref.load %arg1[%c12] : memref<16xi32, #tpu.memory_space<smem>>
    %c12_i32 = arith.constant 12 : i32
    %c0_i32_36 = arith.constant 0 : i32
    %61 = tpu.memref_slice %arg2[%60, %c0_i32_36] : memref<20x16xf32, #tpu.memory_space<any>> -> memref<1x16xf32, #tpu.memory_space<any>>
    %c12_i32_37 = arith.constant 12 : i32
    %c0_i32_38 = arith.constant 0 : i32
    %62 = tpu.memref_slice %arg11[%c12_i32_37, %c0_i32_38] : memref<16x16xf32, #tpu.memory_space<vmem>> -> memref<1x16xf32, #tpu.memory_space<vmem>>
    %63 = tpu.memref_slice %arg12[%c12_i32] : memref<16x!tpu.dma_semaphore, #tpu.memory_space<semaphore_mem>> -> memref<1x!tpu.dma_semaphore, #tpu.memory_space<semaphore_mem>>
    %64 = tpu.memref_squeeze %63 : memref<1x!tpu.dma_semaphore, #tpu.memory_space<semaphore_mem>> -> memref<!tpu.dma_semaphore, #tpu.memory_space<semaphore_mem>>
    tpu.enqueue_dma source(%61 : memref<1x16xf32, #tpu.memory_space<any>>) target(%62 : memref<1x16xf32, #tpu.memory_space<vmem>>) target_semaphore(%64 : memref<!tpu.dma_semaphore, #tpu.memory_space<semaphore_mem>>)
    %c13 = arith.constant 13 : index
    %65 = memref.load %arg1[%c13] : memref<16xi32, #tpu.memory_space<smem>>
    %c13_i32 = arith.constant 13 : i32
    %c0_i32_39 = arith.constant 0 : i32
    %66 = tpu.memref_slice %arg2[%65, %c0_i32_39] : memref<20x16xf32, #tpu.memory_space<any>> -> memref<1x16xf32, #tpu.memory_space<any>>
    %c13_i32_40 = arith.constant 13 : i32
    %c0_i32_41 = arith.constant 0 : i32
    %67 = tpu.memref_slice %arg11[%c13_i32_40, %c0_i32_41] : memref<16x16xf32, #tpu.memory_space<vmem>> -> memref<1x16xf32, #tpu.memory_space<vmem>>
    %68 = tpu.memref_slice %arg12[%c13_i32] : memref<16x!tpu.dma_semaphore, #tpu.memory_space<semaphore_mem>> -> memref<1x!tpu.dma_semaphore, #tpu.memory_space<semaphore_mem>>
    %69 = tpu.memref_squeeze %68 : memref<1x!tpu.dma_semaphore, #tpu.memory_space<semaphore_mem>> -> memref<!tpu.dma_semaphore, #tpu.memory_space<semaphore_mem>>
    tpu.enqueue_dma source(%66 : memref<1x16xf32, #tpu.memory_space<any>>) target(%67 : memref<1x16xf32, #tpu.memory_space<vmem>>) target_semaphore(%69 : memref<!tpu.dma_semaphore, #tpu.memory_space<semaphore_mem>>)
    %c14 = arith.constant 14 : index
    %70 = memref.load %arg1[%c14] : memref<16xi32, #tpu.memory_space<smem>>
    %c14_i32 = arith.constant 14 : i32
    %c0_i32_42 = arith.constant 0 : i32
    %71 = tpu.memref_slice %arg2[%70, %c0_i32_42] : memref<20x16xf32, #tpu.memory_space<any>> -> memref<1x16xf32, #tpu.memory_space<any>>
    %c14_i32_43 = arith.constant 14 : i32
    %c0_i32_44 = arith.constant 0 : i32
    %72 = tpu.memref_slice %arg11[%c14_i32_43, %c0_i32_44] : memref<16x16xf32, #tpu.memory_space<vmem>> -> memref<1x16xf32, #tpu.memory_space<vmem>>
    %73 = tpu.memref_slice %arg12[%c14_i32] : memref<16x!tpu.dma_semaphore, #tpu.memory_space<semaphore_mem>> -> memref<1x!tpu.dma_semaphore, #tpu.memory_space<semaphore_mem>>
    %74 = tpu.memref_squeeze %73 : memref<1x!tpu.dma_semaphore, #tpu.memory_space<semaphore_mem>> -> memref<!tpu.dma_semaphore, #tpu.memory_space<semaphore_mem>>
    tpu.enqueue_dma source(%71 : memref<1x16xf32, #tpu.memory_space<any>>) target(%72 : memref<1x16xf32, #tpu.memory_space<vmem>>) target_semaphore(%74 : memref<!tpu.dma_semaphore, #tpu.memory_space<semaphore_mem>>)
    %c15 = arith.constant 15 : index
    %75 = memref.load %arg1[%c15] : memref<16xi32, #tpu.memory_space<smem>>
    %c15_i32 = arith.constant 15 : i32
    %c0_i32_45 = arith.constant 0 : i32
    %76 = tpu.memref_slice %arg2[%75, %c0_i32_45] : memref<20x16xf32, #tpu.memory_space<any>> -> memref<1x16xf32, #tpu.memory_space<any>>
    %c15_i32_46 = arith.constant 15 : i32
    %c0_i32_47 = arith.constant 0 : i32
    %77 = tpu.memref_slice %arg11[%c15_i32_46, %c0_i32_47] : memref<16x16xf32, #tpu.memory_space<vmem>> -> memref<1x16xf32, #tpu.memory_space<vmem>>
    %78 = tpu.memref_slice %arg12[%c15_i32] : memref<16x!tpu.dma_semaphore, #tpu.memory_space<semaphore_mem>> -> memref<1x!tpu.dma_semaphore, #tpu.memory_space<semaphore_mem>>
    %79 = tpu.memref_squeeze %78 : memref<1x!tpu.dma_semaphore, #tpu.memory_space<semaphore_mem>> -> memref<!tpu.dma_semaphore, #tpu.memory_space<semaphore_mem>>
    tpu.enqueue_dma source(%76 : memref<1x16xf32, #tpu.memory_space<any>>) target(%77 : memref<1x16xf32, #tpu.memory_space<vmem>>) target_semaphore(%79 : memref<!tpu.dma_semaphore, #tpu.memory_space<semaphore_mem>>)
    %c0_i32_48 = arith.constant 0 : i32
    %c0_i32_49 = arith.constant 0 : i32
    %80 = tpu.memref_slice %arg2[%0, %c0_i32_49] : memref<20x16xf32, #tpu.memory_space<any>> -> memref<1x16xf32, #tpu.memory_space<any>>
    %c0_i32_50 = arith.constant 0 : i32
    %c0_i32_51 = arith.constant 0 : i32
    %81 = tpu.memref_slice %arg11[%c0_i32_50, %c0_i32_51] : memref<16x16xf32, #tpu.memory_space<vmem>> -> memref<1x16xf32, #tpu.memory_space<vmem>>
    %82 = tpu.memref_slice %arg12[%c0_i32_48] : memref<16x!tpu.dma_semaphore, #tpu.memory_space<semaphore_mem>> -> memref<1x!tpu.dma_semaphore, #tpu.memory_space<semaphore_mem>>
    %83 = tpu.memref_squeeze %82 : memref<1x!tpu.dma_semaphore, #tpu.memory_space<semaphore_mem>> -> memref<!tpu.dma_semaphore, #tpu.memory_space<semaphore_mem>>
    tpu.wait_dma2 semaphore(%83 : memref<!tpu.dma_semaphore, #tpu.memory_space<semaphore_mem>>) src(%80 : memref<1x16xf32, #tpu.memory_space<any>>) dst(%81 : memref<1x16xf32, #tpu.memory_space<vmem>>)
    %c1_i32_52 = arith.constant 1 : i32
    %c0_i32_53 = arith.constant 0 : i32
    %84 = tpu.memref_slice %arg2[%5, %c0_i32_53] : memref<20x16xf32, #tpu.memory_space<any>> -> memref<1x16xf32, #tpu.memory_space<any>>
    %c1_i32_54 = arith.constant 1 : i32
    %c0_i32_55 = arith.constant 0 : i32
    %85 = tpu.memref_slice %arg11[%c1_i32_54, %c0_i32_55] : memref<16x16xf32, #tpu.memory_space<vmem>> -> memref<1x16xf32, #tpu.memory_space<vmem>>
    %86 = tpu.memref_slice %arg12[%c1_i32_52] : memref<16x!tpu.dma_semaphore, #tpu.memory_space<semaphore_mem>> -> memref<1x!tpu.dma_semaphore, #tpu.memory_space<semaphore_mem>>
    %87 = tpu.memref_squeeze %86 : memref<1x!tpu.dma_semaphore, #tpu.memory_space<semaphore_mem>> -> memref<!tpu.dma_semaphore, #tpu.memory_space<semaphore_mem>>
    tpu.wait_dma2 semaphore(%87 : memref<!tpu.dma_semaphore, #tpu.memory_space<semaphore_mem>>) src(%84 : memref<1x16xf32, #tpu.memory_space<any>>) dst(%85 : memref<1x16xf32, #tpu.memory_space<vmem>>)
    %c2_i32_56 = arith.constant 2 : i32
    %c0_i32_57 = arith.constant 0 : i32
    %88 = tpu.memref_slice %arg2[%10, %c0_i32_57] : memref<20x16xf32, #tpu.memory_space<any>> -> memref<1x16xf32, #tpu.memory_space<any>>
    %c2_i32_58 = arith.constant 2 : i32
    %c0_i32_59 = arith.constant 0 : i32
    %89 = tpu.memref_slice %arg11[%c2_i32_58, %c0_i32_59] : memref<16x16xf32, #tpu.memory_space<vmem>> -> memref<1x16xf32, #tpu.memory_space<vmem>>
    %90 = tpu.memref_slice %arg12[%c2_i32_56] : memref<16x!tpu.dma_semaphore, #tpu.memory_space<semaphore_mem>> -> memref<1x!tpu.dma_semaphore, #tpu.memory_space<semaphore_mem>>
    %91 = tpu.memref_squeeze %90 : memref<1x!tpu.dma_semaphore, #tpu.memory_space<semaphore_mem>> -> memref<!tpu.dma_semaphore, #tpu.memory_space<semaphore_mem>>
    tpu.wait_dma2 semaphore(%91 : memref<!tpu.dma_semaphore, #tpu.memory_space<semaphore_mem>>) src(%88 : memref<1x16xf32, #tpu.memory_space<any>>) dst(%89 : memref<1x16xf32, #tpu.memory_space<vmem>>)
    %c3_i32_60 = arith.constant 3 : i32
    %c0_i32_61 = arith.constant 0 : i32
    %92 = tpu.memref_slice %arg2[%15, %c0_i32_61] : memref<20x16xf32, #tpu.memory_space<any>> -> memref<1x16xf32, #tpu.memory_space<any>>
    %c3_i32_62 = arith.constant 3 : i32
    %c0_i32_63 = arith.constant 0 : i32
    %93 = tpu.memref_slice %arg11[%c3_i32_62, %c0_i32_63] : memref<16x16xf32, #tpu.memory_space<vmem>> -> memref<1x16xf32, #tpu.memory_space<vmem>>
    %94 = tpu.memref_slice %arg12[%c3_i32_60] : memref<16x!tpu.dma_semaphore, #tpu.memory_space<semaphore_mem>> -> memref<1x!tpu.dma_semaphore, #tpu.memory_space<semaphore_mem>>
    %95 = tpu.memref_squeeze %94 : memref<1x!tpu.dma_semaphore, #tpu.memory_space<semaphore_mem>> -> memref<!tpu.dma_semaphore, #tpu.memory_space<semaphore_mem>>
    tpu.wait_dma2 semaphore(%95 : memref<!tpu.dma_semaphore, #tpu.memory_space<semaphore_mem>>) src(%92 : memref<1x16xf32, #tpu.memory_space<any>>) dst(%93 : memref<1x16xf32, #tpu.memory_space<vmem>>)
    %c4_i32_64 = arith.constant 4 : i32
    %c0_i32_65 = arith.constant 0 : i32
    %96 = tpu.memref_slice %arg2[%20, %c0_i32_65] : memref<20x16xf32, #tpu.memory_space<any>> -> memref<1x16xf32, #tpu.memory_space<any>>
    %c4_i32_66 = arith.constant 4 : i32
    %c0_i32_67 = arith.constant 0 : i32
    %97 = tpu.memref_slice %arg11[%c4_i32_66, %c0_i32_67] : memref<16x16xf32, #tpu.memory_space<vmem>> -> memref<1x16xf32, #tpu.memory_space<vmem>>
    %98 = tpu.memref_slice %arg12[%c4_i32_64] : memref<16x!tpu.dma_semaphore, #tpu.memory_space<semaphore_mem>> -> memref<1x!tpu.dma_semaphore, #tpu.memory_space<semaphore_mem>>
    %99 = tpu.memref_squeeze %98 : memref<1x!tpu.dma_semaphore, #tpu.memory_space<semaphore_mem>> -> memref<!tpu.dma_semaphore, #tpu.memory_space<semaphore_mem>>
    tpu.wait_dma2 semaphore(%99 : memref<!tpu.dma_semaphore, #tpu.memory_space<semaphore_mem>>) src(%96 : memref<1x16xf32, #tpu.memory_space<any>>) dst(%97 : memref<1x16xf32, #tpu.memory_space<vmem>>)
    %c5_i32_68 = arith.constant 5 : i32
    %c0_i32_69 = arith.constant 0 : i32
    %100 = tpu.memref_slice %arg2[%25, %c0_i32_69] : memref<20x16xf32, #tpu.memory_space<any>> -> memref<1x16xf32, #tpu.memory_space<any>>
    %c5_i32_70 = arith.constant 5 : i32
    %c0_i32_71 = arith.constant 0 : i32
    %101 = tpu.memref_slice %arg11[%c5_i32_70, %c0_i32_71] : memref<16x16xf32, #tpu.memory_space<vmem>> -> memref<1x16xf32, #tpu.memory_space<vmem>>
    %102 = tpu.memref_slice %arg12[%c5_i32_68] : memref<16x!tpu.dma_semaphore, #tpu.memory_space<semaphore_mem>> -> memref<1x!tpu.dma_semaphore, #tpu.memory_space<semaphore_mem>>
    %103 = tpu.memref_squeeze %102 : memref<1x!tpu.dma_semaphore, #tpu.memory_space<semaphore_mem>> -> memref<!tpu.dma_semaphore, #tpu.memory_space<semaphore_mem>>
    tpu.wait_dma2 semaphore(%103 : memref<!tpu.dma_semaphore, #tpu.memory_space<semaphore_mem>>) src(%100 : memref<1x16xf32, #tpu.memory_space<any>>) dst(%101 : memref<1x16xf32, #tpu.memory_space<vmem>>)
    %c6_i32_72 = arith.constant 6 : i32
    %c0_i32_73 = arith.constant 0 : i32
    %104 = tpu.memref_slice %arg2[%30, %c0_i32_73] : memref<20x16xf32, #tpu.memory_space<any>> -> memref<1x16xf32, #tpu.memory_space<any>>
    %c6_i32_74 = arith.constant 6 : i32
    %c0_i32_75 = arith.constant 0 : i32
    %105 = tpu.memref_slice %arg11[%c6_i32_74, %c0_i32_75] : memref<16x16xf32, #tpu.memory_space<vmem>> -> memref<1x16xf32, #tpu.memory_space<vmem>>
    %106 = tpu.memref_slice %arg12[%c6_i32_72] : memref<16x!tpu.dma_semaphore, #tpu.memory_space<semaphore_mem>> -> memref<1x!tpu.dma_semaphore, #tpu.memory_space<semaphore_mem>>
    %107 = tpu.memref_squeeze %106 : memref<1x!tpu.dma_semaphore, #tpu.memory_space<semaphore_mem>> -> memref<!tpu.dma_semaphore, #tpu.memory_space<semaphore_mem>>
    tpu.wait_dma2 semaphore(%107 : memref<!tpu.dma_semaphore, #tpu.memory_space<semaphore_mem>>) src(%104 : memref<1x16xf32, #tpu.memory_space<any>>) dst(%105 : memref<1x16xf32, #tpu.memory_space<vmem>>)
    %c7_i32_76 = arith.constant 7 : i32
    %c0_i32_77 = arith.constant 0 : i32
    %108 = tpu.memref_slice %arg2[%35, %c0_i32_77] : memref<20x16xf32, #tpu.memory_space<any>> -> memref<1x16xf32, #tpu.memory_space<any>>
    %c7_i32_78 = arith.constant 7 : i32
    %c0_i32_79 = arith.constant 0 : i32
    %109 = tpu.memref_slice %arg11[%c7_i32_78, %c0_i32_79] : memref<16x16xf32, #tpu.memory_space<vmem>> -> memref<1x16xf32, #tpu.memory_space<vmem>>
    %110 = tpu.memref_slice %arg12[%c7_i32_76] : memref<16x!tpu.dma_semaphore, #tpu.memory_space<semaphore_mem>> -> memref<1x!tpu.dma_semaphore, #tpu.memory_space<semaphore_mem>>
    %111 = tpu.memref_squeeze %110 : memref<1x!tpu.dma_semaphore, #tpu.memory_space<semaphore_mem>> -> memref<!tpu.dma_semaphore, #tpu.memory_space<semaphore_mem>>
    tpu.wait_dma2 semaphore(%111 : memref<!tpu.dma_semaphore, #tpu.memory_space<semaphore_mem>>) src(%108 : memref<1x16xf32, #tpu.memory_space<any>>) dst(%109 : memref<1x16xf32, #tpu.memory_space<vmem>>)
    %c8_i32_80 = arith.constant 8 : i32
    %c0_i32_81 = arith.constant 0 : i32
    %112 = tpu.memref_slice %arg2[%40, %c0_i32_81] : memref<20x16xf32, #tpu.memory_space<any>> -> memref<1x16xf32, #tpu.memory_space<any>>
    %c8_i32_82 = arith.constant 8 : i32
    %c0_i32_83 = arith.constant 0 : i32
    %113 = tpu.memref_slice %arg11[%c8_i32_82, %c0_i32_83] : memref<16x16xf32, #tpu.memory_space<vmem>> -> memref<1x16xf32, #tpu.memory_space<vmem>>
    %114 = tpu.memref_slice %arg12[%c8_i32_80] : memref<16x!tpu.dma_semaphore, #tpu.memory_space<semaphore_mem>> -> memref<1x!tpu.dma_semaphore, #tpu.memory_space<semaphore_mem>>
    %115 = tpu.memref_squeeze %114 : memref<1x!tpu.dma_semaphore, #tpu.memory_space<semaphore_mem>> -> memref<!tpu.dma_semaphore, #tpu.memory_space<semaphore_mem>>
    tpu.wait_dma2 semaphore(%115 : memref<!tpu.dma_semaphore, #tpu.memory_space<semaphore_mem>>) src(%112 : memref<1x16xf32, #tpu.memory_space<any>>) dst(%113 : memref<1x16xf32, #tpu.memory_space<vmem>>)
    %c9_i32_84 = arith.constant 9 : i32
    %c0_i32_85 = arith.constant 0 : i32
    %116 = tpu.memref_slice %arg2[%45, %c0_i32_85] : memref<20x16xf32, #tpu.memory_space<any>> -> memref<1x16xf32, #tpu.memory_space<any>>
    %c9_i32_86 = arith.constant 9 : i32
    %c0_i32_87 = arith.constant 0 : i32
    %117 = tpu.memref_slice %arg11[%c9_i32_86, %c0_i32_87] : memref<16x16xf32, #tpu.memory_space<vmem>> -> memref<1x16xf32, #tpu.memory_space<vmem>>
    %118 = tpu.memref_slice %arg12[%c9_i32_84] : memref<16x!tpu.dma_semaphore, #tpu.memory_space<semaphore_mem>> -> memref<1x!tpu.dma_semaphore, #tpu.memory_space<semaphore_mem>>
    %119 = tpu.memref_squeeze %118 : memref<1x!tpu.dma_semaphore, #tpu.memory_space<semaphore_mem>> -> memref<!tpu.dma_semaphore, #tpu.memory_space<semaphore_mem>>
    tpu.wait_dma2 semaphore(%119 : memref<!tpu.dma_semaphore, #tpu.memory_space<semaphore_mem>>) src(%116 : memref<1x16xf32, #tpu.memory_space<any>>) dst(%117 : memref<1x16xf32, #tpu.memory_space<vmem>>)
    %c10_i32_88 = arith.constant 10 : i32
    %c0_i32_89 = arith.constant 0 : i32
    %120 = tpu.memref_slice %arg2[%50, %c0_i32_89] : memref<20x16xf32, #tpu.memory_space<any>> -> memref<1x16xf32, #tpu.memory_space<any>>
    %c10_i32_90 = arith.constant 10 : i32
    %c0_i32_91 = arith.constant 0 : i32
    %121 = tpu.memref_slice %arg11[%c10_i32_90, %c0_i32_91] : memref<16x16xf32, #tpu.memory_space<vmem>> -> memref<1x16xf32, #tpu.memory_space<vmem>>
    %122 = tpu.memref_slice %arg12[%c10_i32_88] : memref<16x!tpu.dma_semaphore, #tpu.memory_space<semaphore_mem>> -> memref<1x!tpu.dma_semaphore, #tpu.memory_space<semaphore_mem>>
    %123 = tpu.memref_squeeze %122 : memref<1x!tpu.dma_semaphore, #tpu.memory_space<semaphore_mem>> -> memref<!tpu.dma_semaphore, #tpu.memory_space<semaphore_mem>>
    tpu.wait_dma2 semaphore(%123 : memref<!tpu.dma_semaphore, #tpu.memory_space<semaphore_mem>>) src(%120 : memref<1x16xf32, #tpu.memory_space<any>>) dst(%121 : memref<1x16xf32, #tpu.memory_space<vmem>>)
    %c11_i32_92 = arith.constant 11 : i32
    %c0_i32_93 = arith.constant 0 : i32
    %124 = tpu.memref_slice %arg2[%55, %c0_i32_93] : memref<20x16xf32, #tpu.memory_space<any>> -> memref<1x16xf32, #tpu.memory_space<any>>
    %c11_i32_94 = arith.constant 11 : i32
    %c0_i32_95 = arith.constant 0 : i32
    %125 = tpu.memref_slice %arg11[%c11_i32_94, %c0_i32_95] : memref<16x16xf32, #tpu.memory_space<vmem>> -> memref<1x16xf32, #tpu.memory_space<vmem>>
    %126 = tpu.memref_slice %arg12[%c11_i32_92] : memref<16x!tpu.dma_semaphore, #tpu.memory_space<semaphore_mem>> -> memref<1x!tpu.dma_semaphore, #tpu.memory_space<semaphore_mem>>
    %127 = tpu.memref_squeeze %126 : memref<1x!tpu.dma_semaphore, #tpu.memory_space<semaphore_mem>> -> memref<!tpu.dma_semaphore, #tpu.memory_space<semaphore_mem>>
    tpu.wait_dma2 semaphore(%127 : memref<!tpu.dma_semaphore, #tpu.memory_space<semaphore_mem>>) src(%124 : memref<1x16xf32, #tpu.memory_space<any>>) dst(%125 : memref<1x16xf32, #tpu.memory_space<vmem>>)
    %c12_i32_96 = arith.constant 12 : i32
    %c0_i32_97 = arith.constant 0 : i32
    %128 = tpu.memref_slice %arg2[%60, %c0_i32_97] : memref<20x16xf32, #tpu.memory_space<any>> -> memref<1x16xf32, #tpu.memory_space<any>>
    %c12_i32_98 = arith.constant 12 : i32
    %c0_i32_99 = arith.constant 0 : i32
    %129 = tpu.memref_slice %arg11[%c12_i32_98, %c0_i32_99] : memref<16x16xf32, #tpu.memory_space<vmem>> -> memref<1x16xf32, #tpu.memory_space<vmem>>
    %130 = tpu.memref_slice %arg12[%c12_i32_96] : memref<16x!tpu.dma_semaphore, #tpu.memory_space<semaphore_mem>> -> memref<1x!tpu.dma_semaphore, #tpu.memory_space<semaphore_mem>>
    %131 = tpu.memref_squeeze %130 : memref<1x!tpu.dma_semaphore, #tpu.memory_space<semaphore_mem>> -> memref<!tpu.dma_semaphore, #tpu.memory_space<semaphore_mem>>
    tpu.wait_dma2 semaphore(%131 : memref<!tpu.dma_semaphore, #tpu.memory_space<semaphore_mem>>) src(%128 : memref<1x16xf32, #tpu.memory_space<any>>) dst(%129 : memref<1x16xf32, #tpu.memory_space<vmem>>)
    %c13_i32_100 = arith.constant 13 : i32
    %c0_i32_101 = arith.constant 0 : i32
    %132 = tpu.memref_slice %arg2[%65, %c0_i32_101] : memref<20x16xf32, #tpu.memory_space<any>> -> memref<1x16xf32, #tpu.memory_space<any>>
    %c13_i32_102 = arith.constant 13 : i32
    %c0_i32_103 = arith.constant 0 : i32
    %133 = tpu.memref_slice %arg11[%c13_i32_102, %c0_i32_103] : memref<16x16xf32, #tpu.memory_space<vmem>> -> memref<1x16xf32, #tpu.memory_space<vmem>>
    %134 = tpu.memref_slice %arg12[%c13_i32_100] : memref<16x!tpu.dma_semaphore, #tpu.memory_space<semaphore_mem>> -> memref<1x!tpu.dma_semaphore, #tpu.memory_space<semaphore_mem>>
    %135 = tpu.memref_squeeze %134 : memref<1x!tpu.dma_semaphore, #tpu.memory_space<semaphore_mem>> -> memref<!tpu.dma_semaphore, #tpu.memory_space<semaphore_mem>>
    tpu.wait_dma2 semaphore(%135 : memref<!tpu.dma_semaphore, #tpu.memory_space<semaphore_mem>>) src(%132 : memref<1x16xf32, #tpu.memory_space<any>>) dst(%133 : memref<1x16xf32, #tpu.memory_space<vmem>>)
    %c14_i32_104 = arith.constant 14 : i32
    %c0_i32_105 = arith.constant 0 : i32
    %136 = tpu.memref_slice %arg2[%70, %c0_i32_105] : memref<20x16xf32, #tpu.memory_space<any>> -> memref<1x16xf32, #tpu.memory_space<any>>
    %c14_i32_106 = arith.constant 14 : i32
    %c0_i32_107 = arith.constant 0 : i32
    %137 = tpu.memref_slice %arg11[%c14_i32_106, %c0_i32_107] : memref<16x16xf32, #tpu.memory_space<vmem>> -> memref<1x16xf32, #tpu.memory_space<vmem>>
    %138 = tpu.memref_slice %arg12[%c14_i32_104] : memref<16x!tpu.dma_semaphore, #tpu.memory_space<semaphore_mem>> -> memref<1x!tpu.dma_semaphore, #tpu.memory_space<semaphore_mem>>
    %139 = tpu.memref_squeeze %138 : memref<1x!tpu.dma_semaphore, #tpu.memory_space<semaphore_mem>> -> memref<!tpu.dma_semaphore, #tpu.memory_space<semaphore_mem>>
    tpu.wait_dma2 semaphore(%139 : memref<!tpu.dma_semaphore, #tpu.memory_space<semaphore_mem>>) src(%136 : memref<1x16xf32, #tpu.memory_space<any>>) dst(%137 : memref<1x16xf32, #tpu.memory_space<vmem>>)
    %c15_i32_108 = arith.constant 15 : i32
    %c0_i32_109 = arith.constant 0 : i32
    %140 = tpu.memref_slice %arg2[%75, %c0_i32_109] : memref<20x16xf32, #tpu.memory_space<any>> -> memref<1x16xf32, #tpu.memory_space<any>>
    %c15_i32_110 = arith.constant 15 : i32
    %c0_i32_111 = arith.constant 0 : i32
    %141 = tpu.memref_slice %arg11[%c15_i32_110, %c0_i32_111] : memref<16x16xf32, #tpu.memory_space<vmem>> -> memref<1x16xf32, #tpu.memory_space<vmem>>
    %142 = tpu.memref_slice %arg12[%c15_i32_108] : memref<16x!tpu.dma_semaphore, #tpu.memory_space<semaphore_mem>> -> memref<1x!tpu.dma_semaphore, #tpu.memory_space<semaphore_mem>>
    %143 = tpu.memref_squeeze %142 : memref<1x!tpu.dma_semaphore, #tpu.memory_space<semaphore_mem>> -> memref<!tpu.dma_semaphore, #tpu.memory_space<semaphore_mem>>
    tpu.wait_dma2 semaphore(%143 : memref<!tpu.dma_semaphore, #tpu.memory_space<semaphore_mem>>) src(%140 : memref<1x16xf32, #tpu.memory_space<any>>) dst(%141 : memref<1x16xf32, #tpu.memory_space<vmem>>)
    %c0_112 = arith.constant 0 : index
    %c0_113 = arith.constant 0 : index
    %144 = vector.load %arg11[%c0_112, %c0_113] : memref<16x16xf32, #tpu.memory_space<vmem>>, vector<16x16xf32>
    %c0_114 = arith.constant 0 : index
    %c0_115 = arith.constant 0 : index
    %c0_116 = arith.constant 0 : index
    %145 = vector.load %arg3[%c0_114, %c0_115, %c0_116] : memref<4x16x32xf32, #tpu.memory_space<vmem>>, vector<1x16x32xf32>
    %146 = vector.shape_cast %145 : vector<1x16x32xf32> to vector<16x32xf32>
    %cst = arith.constant dense<0.000000e+00> : vector<16x32xf32>
    %147 = tpu.matmul %144, %146, %cst {dimension_numbers = #tpu.dot_dimension_numbers<[1], [0], [0], [1], [0, 0, 1, 1], [], []>} : vector<16x16xf32>, vector<16x32xf32>, vector<16x32xf32> -> vector<16x32xf32>
    %c0_117 = arith.constant 0 : index
    %c0_118 = arith.constant 0 : index
    %c0_119 = arith.constant 0 : index
    %148 = vector.load %arg5[%c0_117, %c0_118, %c0_119] : memref<4x1x32xf32, #tpu.memory_space<vmem>>, vector<1x1x32xf32>
    %149 = vector.shape_cast %148 : vector<1x1x32xf32> to vector<1x32xf32>
    %150 = vector.broadcast %149 : vector<1x32xf32> to vector<16x32xf32>
    %151 = arith.addf %147, %150 : vector<16x32xf32>
    %c1_120 = arith.constant 1 : index
    %c0_121 = arith.constant 0 : index
    %c0_122 = arith.constant 0 : index
    %152 = vector.load %arg3[%c1_120, %c0_121, %c0_122] : memref<4x16x32xf32, #tpu.memory_space<vmem>>, vector<1x16x32xf32>
    %153 = vector.shape_cast %152 : vector<1x16x32xf32> to vector<16x32xf32>
    %cst_123 = arith.constant dense<0.000000e+00> : vector<16x32xf32>
    %154 = tpu.matmul %144, %153, %cst_123 {dimension_numbers = #tpu.dot_dimension_numbers<[1], [0], [0], [1], [0, 0, 1, 1], [], []>} : vector<16x16xf32>, vector<16x32xf32>, vector<16x32xf32> -> vector<16x32xf32>
    %c1_124 = arith.constant 1 : index
    %c0_125 = arith.constant 0 : index
    %c0_126 = arith.constant 0 : index
    %155 = vector.load %arg5[%c1_124, %c0_125, %c0_126] : memref<4x1x32xf32, #tpu.memory_space<vmem>>, vector<1x1x32xf32>
    %156 = vector.shape_cast %155 : vector<1x1x32xf32> to vector<1x32xf32>
    %157 = vector.broadcast %156 : vector<1x32xf32> to vector<16x32xf32>
    %158 = arith.addf %154, %157 : vector<16x32xf32>
    %c2_127 = arith.constant 2 : index
    %c0_128 = arith.constant 0 : index
    %c0_129 = arith.constant 0 : index
    %159 = vector.load %arg3[%c2_127, %c0_128, %c0_129] : memref<4x16x32xf32, #tpu.memory_space<vmem>>, vector<1x16x32xf32>
    %160 = vector.shape_cast %159 : vector<1x16x32xf32> to vector<16x32xf32>
    %cst_130 = arith.constant dense<0.000000e+00> : vector<16x32xf32>
    %161 = tpu.matmul %144, %160, %cst_130 {dimension_numbers = #tpu.dot_dimension_numbers<[1], [0], [0], [1], [0, 0, 1, 1], [], []>} : vector<16x16xf32>, vector<16x32xf32>, vector<16x32xf32> -> vector<16x32xf32>
    %c2_131 = arith.constant 2 : index
    %c0_132 = arith.constant 0 : index
    %c0_133 = arith.constant 0 : index
    %162 = vector.load %arg5[%c2_131, %c0_132, %c0_133] : memref<4x1x32xf32, #tpu.memory_space<vmem>>, vector<1x1x32xf32>
    %163 = vector.shape_cast %162 : vector<1x1x32xf32> to vector<1x32xf32>
    %164 = vector.broadcast %163 : vector<1x32xf32> to vector<16x32xf32>
    %165 = arith.addf %161, %164 : vector<16x32xf32>
    %c3_134 = arith.constant 3 : index
    %c0_135 = arith.constant 0 : index
    %c0_136 = arith.constant 0 : index
    %166 = vector.load %arg3[%c3_134, %c0_135, %c0_136] : memref<4x16x32xf32, #tpu.memory_space<vmem>>, vector<1x16x32xf32>
    %167 = vector.shape_cast %166 : vector<1x16x32xf32> to vector<16x32xf32>
    %cst_137 = arith.constant dense<0.000000e+00> : vector<16x32xf32>
    %168 = tpu.matmul %144, %167, %cst_137 {dimension_numbers = #tpu.dot_dimension_numbers<[1], [0], [0], [1], [0, 0, 1, 1], [], []>} : vector<16x16xf32>, vector<16x32xf32>, vector<16x32xf32> -> vector<16x32xf32>
    %c3_138 = arith.constant 3 : index
    %c0_139 = arith.constant 0 : index
    %c0_140 = arith.constant 0 : index
    %169 = vector.load %arg5[%c3_138, %c0_139, %c0_140] : memref<4x1x32xf32, #tpu.memory_space<vmem>>, vector<1x1x32xf32>
    %170 = vector.shape_cast %169 : vector<1x1x32xf32> to vector<1x32xf32>
    %171 = vector.broadcast %170 : vector<1x32xf32> to vector<16x32xf32>
    %172 = arith.addf %168, %171 : vector<16x32xf32>
    %c0_141 = arith.constant 0 : index
    %c0_142 = arith.constant 0 : index
    %c0_143 = arith.constant 0 : index
    %173 = vector.load %arg4[%c0_141, %c0_142, %c0_143] : memref<4x32x32xf32, #tpu.memory_space<vmem>>, vector<1x32x32xf32>
    %174 = vector.shape_cast %173 : vector<1x32x32xf32> to vector<32x32xf32>
    %c1_144 = arith.constant 1 : index
    %c0_145 = arith.constant 0 : index
    %c0_146 = arith.constant 0 : index
    %175 = vector.load %arg4[%c1_144, %c0_145, %c0_146] : memref<4x32x32xf32, #tpu.memory_space<vmem>>, vector<1x32x32xf32>
    %176 = vector.shape_cast %175 : vector<1x32x32xf32> to vector<32x32xf32>
    %c2_147 = arith.constant 2 : index
    %c0_148 = arith.constant 0 : index
    %c0_149 = arith.constant 0 : index
    %177 = vector.load %arg4[%c2_147, %c0_148, %c0_149] : memref<4x32x32xf32, #tpu.memory_space<vmem>>, vector<1x32x32xf32>
    %178 = vector.shape_cast %177 : vector<1x32x32xf32> to vector<32x32xf32>
    %c3_150 = arith.constant 3 : index
    %c0_151 = arith.constant 0 : index
    %c0_152 = arith.constant 0 : index
    %179 = vector.load %arg4[%c3_150, %c0_151, %c0_152] : memref<4x32x32xf32, #tpu.memory_space<vmem>>, vector<1x32x32xf32>
    %180 = vector.shape_cast %179 : vector<1x32x32xf32> to vector<32x32xf32>
    %cst_153 = arith.constant 0.000000e+00 : f32
    %181 = vector.broadcast %cst_153 : f32 to vector<2x32xf32>
    %cst_154 = arith.constant 0.000000e+00 : f32
    %182 = vector.broadcast %cst_154 : f32 to vector<2x32xf32>
    %183 = vector.extract_strided_slice %151 {offsets = [0, 0], sizes = [2, 32], strides = [1, 1]} : vector<16x32xf32> to vector<2x32xf32>
    %cst_155 = arith.constant dense<0.000000e+00> : vector<2x32xf32>
    %184 = tpu.matmul %181, %174, %cst_155 {dimension_numbers = #tpu.dot_dimension_numbers<[1], [0], [0], [1], [0, 0, 1, 1], [], []>} : vector<2x32xf32>, vector<32x32xf32>, vector<2x32xf32> -> vector<2x32xf32>
    %185 = arith.addf %183, %184 : vector<2x32xf32>
    %186 = arith.negf %185 : vector<2x32xf32>
    %187 = math.exp %186 : vector<2x32xf32>
    %cst_156 = arith.constant 1.000000e+00 : f32
    %188 = vector.broadcast %cst_156 : f32 to vector<2x32xf32>
    %189 = arith.addf %188, %187 : vector<2x32xf32>
    %190 = arith.divf %188, %189 : vector<2x32xf32>
    %191 = vector.extract_strided_slice %158 {offsets = [0, 0], sizes = [2, 32], strides = [1, 1]} : vector<16x32xf32> to vector<2x32xf32>
    %cst_157 = arith.constant dense<0.000000e+00> : vector<2x32xf32>
    %192 = tpu.matmul %181, %176, %cst_157 {dimension_numbers = #tpu.dot_dimension_numbers<[1], [0], [0], [1], [0, 0, 1, 1], [], []>} : vector<2x32xf32>, vector<32x32xf32>, vector<2x32xf32> -> vector<2x32xf32>
    %193 = arith.addf %191, %192 : vector<2x32xf32>
    %194 = arith.negf %193 : vector<2x32xf32>
    %195 = math.exp %194 : vector<2x32xf32>
    %cst_158 = arith.constant 1.000000e+00 : f32
    %196 = vector.broadcast %cst_158 : f32 to vector<2x32xf32>
    %197 = arith.addf %196, %195 : vector<2x32xf32>
    %198 = arith.divf %196, %197 : vector<2x32xf32>
    %199 = vector.extract_strided_slice %165 {offsets = [0, 0], sizes = [2, 32], strides = [1, 1]} : vector<16x32xf32> to vector<2x32xf32>
    %cst_159 = arith.constant dense<0.000000e+00> : vector<2x32xf32>
    %200 = tpu.matmul %181, %178, %cst_159 {dimension_numbers = #tpu.dot_dimension_numbers<[1], [0], [0], [1], [0, 0, 1, 1], [], []>} : vector<2x32xf32>, vector<32x32xf32>, vector<2x32xf32> -> vector<2x32xf32>
    %201 = arith.addf %199, %200 : vector<2x32xf32>
    %202 = math.tanh %201 : vector<2x32xf32>
    %203 = vector.extract_strided_slice %172 {offsets = [0, 0], sizes = [2, 32], strides = [1, 1]} : vector<16x32xf32> to vector<2x32xf32>
    %cst_160 = arith.constant dense<0.000000e+00> : vector<2x32xf32>
    %204 = tpu.matmul %181, %180, %cst_160 {dimension_numbers = #tpu.dot_dimension_numbers<[1], [0], [0], [1], [0, 0, 1, 1], [], []>} : vector<2x32xf32>, vector<32x32xf32>, vector<2x32xf32> -> vector<2x32xf32>
    %205 = arith.addf %203, %204 : vector<2x32xf32>
    %206 = arith.negf %205 : vector<2x32xf32>
    %207 = math.exp %206 : vector<2x32xf32>
    %cst_161 = arith.constant 1.000000e+00 : f32
    %208 = vector.broadcast %cst_161 : f32 to vector<2x32xf32>
    %209 = arith.addf %208, %207 : vector<2x32xf32>
    %210 = arith.divf %208, %209 : vector<2x32xf32>
    %211 = arith.mulf %198, %182 : vector<2x32xf32>
    %212 = arith.mulf %190, %202 : vector<2x32xf32>
    %213 = arith.addf %211, %212 : vector<2x32xf32>
    %214 = math.tanh %213 : vector<2x32xf32>
    %215 = arith.mulf %210, %214 : vector<2x32xf32>
    %216 = vector.extract_strided_slice %151 {offsets = [2, 0], sizes = [2, 32], strides = [1, 1]} : vector<16x32xf32> to vector<2x32xf32>
    %cst_162 = arith.constant dense<0.000000e+00> : vector<2x32xf32>
    %217 = tpu.matmul %215, %174, %cst_162 {dimension_numbers = #tpu.dot_dimension_numbers<[1], [0], [0], [1], [0, 0, 1, 1], [], []>} : vector<2x32xf32>, vector<32x32xf32>, vector<2x32xf32> -> vector<2x32xf32>
    %218 = arith.addf %216, %217 : vector<2x32xf32>
    %219 = arith.negf %218 : vector<2x32xf32>
    %220 = math.exp %219 : vector<2x32xf32>
    %cst_163 = arith.constant 1.000000e+00 : f32
    %221 = vector.broadcast %cst_163 : f32 to vector<2x32xf32>
    %222 = arith.addf %221, %220 : vector<2x32xf32>
    %223 = arith.divf %221, %222 : vector<2x32xf32>
    %224 = vector.extract_strided_slice %158 {offsets = [2, 0], sizes = [2, 32], strides = [1, 1]} : vector<16x32xf32> to vector<2x32xf32>
    %cst_164 = arith.constant dense<0.000000e+00> : vector<2x32xf32>
    %225 = tpu.matmul %215, %176, %cst_164 {dimension_numbers = #tpu.dot_dimension_numbers<[1], [0], [0], [1], [0, 0, 1, 1], [], []>} : vector<2x32xf32>, vector<32x32xf32>, vector<2x32xf32> -> vector<2x32xf32>
    %226 = arith.addf %224, %225 : vector<2x32xf32>
    %227 = arith.negf %226 : vector<2x32xf32>
    %228 = math.exp %227 : vector<2x32xf32>
    %cst_165 = arith.constant 1.000000e+00 : f32
    %229 = vector.broadcast %cst_165 : f32 to vector<2x32xf32>
    %230 = arith.addf %229, %228 : vector<2x32xf32>
    %231 = arith.divf %229, %230 : vector<2x32xf32>
    %232 = vector.extract_strided_slice %165 {offsets = [2, 0], sizes = [2, 32], strides = [1, 1]} : vector<16x32xf32> to vector<2x32xf32>
    %cst_166 = arith.constant dense<0.000000e+00> : vector<2x32xf32>
    %233 = tpu.matmul %215, %178, %cst_166 {dimension_numbers = #tpu.dot_dimension_numbers<[1], [0], [0], [1], [0, 0, 1, 1], [], []>} : vector<2x32xf32>, vector<32x32xf32>, vector<2x32xf32> -> vector<2x32xf32>
    %234 = arith.addf %232, %233 : vector<2x32xf32>
    %235 = math.tanh %234 : vector<2x32xf32>
    %236 = vector.extract_strided_slice %172 {offsets = [2, 0], sizes = [2, 32], strides = [1, 1]} : vector<16x32xf32> to vector<2x32xf32>
    %cst_167 = arith.constant dense<0.000000e+00> : vector<2x32xf32>
    %237 = tpu.matmul %215, %180, %cst_167 {dimension_numbers = #tpu.dot_dimension_numbers<[1], [0], [0], [1], [0, 0, 1, 1], [], []>} : vector<2x32xf32>, vector<32x32xf32>, vector<2x32xf32> -> vector<2x32xf32>
    %238 = arith.addf %236, %237 : vector<2x32xf32>
    %239 = arith.negf %238 : vector<2x32xf32>
    %240 = math.exp %239 : vector<2x32xf32>
    %cst_168 = arith.constant 1.000000e+00 : f32
    %241 = vector.broadcast %cst_168 : f32 to vector<2x32xf32>
    %242 = arith.addf %241, %240 : vector<2x32xf32>
    %243 = arith.divf %241, %242 : vector<2x32xf32>
    %244 = arith.mulf %231, %213 : vector<2x32xf32>
    %245 = arith.mulf %223, %235 : vector<2x32xf32>
    %246 = arith.addf %244, %245 : vector<2x32xf32>
    %247 = math.tanh %246 : vector<2x32xf32>
    %248 = arith.mulf %243, %247 : vector<2x32xf32>
    %249 = vector.extract_strided_slice %151 {offsets = [4, 0], sizes = [2, 32], strides = [1, 1]} : vector<16x32xf32> to vector<2x32xf32>
    %cst_169 = arith.constant dense<0.000000e+00> : vector<2x32xf32>
    %250 = tpu.matmul %248, %174, %cst_169 {dimension_numbers = #tpu.dot_dimension_numbers<[1], [0], [0], [1], [0, 0, 1, 1], [], []>} : vector<2x32xf32>, vector<32x32xf32>, vector<2x32xf32> -> vector<2x32xf32>
    %251 = arith.addf %249, %250 : vector<2x32xf32>
    %252 = arith.negf %251 : vector<2x32xf32>
    %253 = math.exp %252 : vector<2x32xf32>
    %cst_170 = arith.constant 1.000000e+00 : f32
    %254 = vector.broadcast %cst_170 : f32 to vector<2x32xf32>
    %255 = arith.addf %254, %253 : vector<2x32xf32>
    %256 = arith.divf %254, %255 : vector<2x32xf32>
    %257 = vector.extract_strided_slice %158 {offsets = [4, 0], sizes = [2, 32], strides = [1, 1]} : vector<16x32xf32> to vector<2x32xf32>
    %cst_171 = arith.constant dense<0.000000e+00> : vector<2x32xf32>
    %258 = tpu.matmul %248, %176, %cst_171 {dimension_numbers = #tpu.dot_dimension_numbers<[1], [0], [0], [1], [0, 0, 1, 1], [], []>} : vector<2x32xf32>, vector<32x32xf32>, vector<2x32xf32> -> vector<2x32xf32>
    %259 = arith.addf %257, %258 : vector<2x32xf32>
    %260 = arith.negf %259 : vector<2x32xf32>
    %261 = math.exp %260 : vector<2x32xf32>
    %cst_172 = arith.constant 1.000000e+00 : f32
    %262 = vector.broadcast %cst_172 : f32 to vector<2x32xf32>
    %263 = arith.addf %262, %261 : vector<2x32xf32>
    %264 = arith.divf %262, %263 : vector<2x32xf32>
    %265 = vector.extract_strided_slice %165 {offsets = [4, 0], sizes = [2, 32], strides = [1, 1]} : vector<16x32xf32> to vector<2x32xf32>
    %cst_173 = arith.constant dense<0.000000e+00> : vector<2x32xf32>
    %266 = tpu.matmul %248, %178, %cst_173 {dimension_numbers = #tpu.dot_dimension_numbers<[1], [0], [0], [1], [0, 0, 1, 1], [], []>} : vector<2x32xf32>, vector<32x32xf32>, vector<2x32xf32> -> vector<2x32xf32>
    %267 = arith.addf %265, %266 : vector<2x32xf32>
    %268 = math.tanh %267 : vector<2x32xf32>
    %269 = vector.extract_strided_slice %172 {offsets = [4, 0], sizes = [2, 32], strides = [1, 1]} : vector<16x32xf32> to vector<2x32xf32>
    %cst_174 = arith.constant dense<0.000000e+00> : vector<2x32xf32>
    %270 = tpu.matmul %248, %180, %cst_174 {dimension_numbers = #tpu.dot_dimension_numbers<[1], [0], [0], [1], [0, 0, 1, 1], [], []>} : vector<2x32xf32>, vector<32x32xf32>, vector<2x32xf32> -> vector<2x32xf32>
    %271 = arith.addf %269, %270 : vector<2x32xf32>
    %272 = arith.negf %271 : vector<2x32xf32>
    %273 = math.exp %272 : vector<2x32xf32>
    %cst_175 = arith.constant 1.000000e+00 : f32
    %274 = vector.broadcast %cst_175 : f32 to vector<2x32xf32>
    %275 = arith.addf %274, %273 : vector<2x32xf32>
    %276 = arith.divf %274, %275 : vector<2x32xf32>
    %277 = arith.mulf %264, %246 : vector<2x32xf32>
    %278 = arith.mulf %256, %268 : vector<2x32xf32>
    %279 = arith.addf %277, %278 : vector<2x32xf32>
    %280 = math.tanh %279 : vector<2x32xf32>
    %281 = arith.mulf %276, %280 : vector<2x32xf32>
    %282 = vector.extract_strided_slice %151 {offsets = [6, 0], sizes = [2, 32], strides = [1, 1]} : vector<16x32xf32> to vector<2x32xf32>
    %cst_176 = arith.constant dense<0.000000e+00> : vector<2x32xf32>
    %283 = tpu.matmul %281, %174, %cst_176 {dimension_numbers = #tpu.dot_dimension_numbers<[1], [0], [0], [1], [0, 0, 1, 1], [], []>} : vector<2x32xf32>, vector<32x32xf32>, vector<2x32xf32> -> vector<2x32xf32>
    %284 = arith.addf %282, %283 : vector<2x32xf32>
    %285 = arith.negf %284 : vector<2x32xf32>
    %286 = math.exp %285 : vector<2x32xf32>
    %cst_177 = arith.constant 1.000000e+00 : f32
    %287 = vector.broadcast %cst_177 : f32 to vector<2x32xf32>
    %288 = arith.addf %287, %286 : vector<2x32xf32>
    %289 = arith.divf %287, %288 : vector<2x32xf32>
    %290 = vector.extract_strided_slice %158 {offsets = [6, 0], sizes = [2, 32], strides = [1, 1]} : vector<16x32xf32> to vector<2x32xf32>
    %cst_178 = arith.constant dense<0.000000e+00> : vector<2x32xf32>
    %291 = tpu.matmul %281, %176, %cst_178 {dimension_numbers = #tpu.dot_dimension_numbers<[1], [0], [0], [1], [0, 0, 1, 1], [], []>} : vector<2x32xf32>, vector<32x32xf32>, vector<2x32xf32> -> vector<2x32xf32>
    %292 = arith.addf %290, %291 : vector<2x32xf32>
    %293 = arith.negf %292 : vector<2x32xf32>
    %294 = math.exp %293 : vector<2x32xf32>
    %cst_179 = arith.constant 1.000000e+00 : f32
    %295 = vector.broadcast %cst_179 : f32 to vector<2x32xf32>
    %296 = arith.addf %295, %294 : vector<2x32xf32>
    %297 = arith.divf %295, %296 : vector<2x32xf32>
    %298 = vector.extract_strided_slice %165 {offsets = [6, 0], sizes = [2, 32], strides = [1, 1]} : vector<16x32xf32> to vector<2x32xf32>
    %cst_180 = arith.constant dense<0.000000e+00> : vector<2x32xf32>
    %299 = tpu.matmul %281, %178, %cst_180 {dimension_numbers = #tpu.dot_dimension_numbers<[1], [0], [0], [1], [0, 0, 1, 1], [], []>} : vector<2x32xf32>, vector<32x32xf32>, vector<2x32xf32> -> vector<2x32xf32>
    %300 = arith.addf %298, %299 : vector<2x32xf32>
    %301 = math.tanh %300 : vector<2x32xf32>
    %302 = vector.extract_strided_slice %172 {offsets = [6, 0], sizes = [2, 32], strides = [1, 1]} : vector<16x32xf32> to vector<2x32xf32>
    %cst_181 = arith.constant dense<0.000000e+00> : vector<2x32xf32>
    %303 = tpu.matmul %281, %180, %cst_181 {dimension_numbers = #tpu.dot_dimension_numbers<[1], [0], [0], [1], [0, 0, 1, 1], [], []>} : vector<2x32xf32>, vector<32x32xf32>, vector<2x32xf32> -> vector<2x32xf32>
    %304 = arith.addf %302, %303 : vector<2x32xf32>
    %305 = arith.negf %304 : vector<2x32xf32>
    %306 = math.exp %305 : vector<2x32xf32>
    %cst_182 = arith.constant 1.000000e+00 : f32
    %307 = vector.broadcast %cst_182 : f32 to vector<2x32xf32>
    %308 = arith.addf %307, %306 : vector<2x32xf32>
    %309 = arith.divf %307, %308 : vector<2x32xf32>
    %310 = arith.mulf %297, %279 : vector<2x32xf32>
    %311 = arith.mulf %289, %301 : vector<2x32xf32>
    %312 = arith.addf %310, %311 : vector<2x32xf32>
    %313 = math.tanh %312 : vector<2x32xf32>
    %314 = arith.mulf %309, %313 : vector<2x32xf32>
    %315 = vector.extract_strided_slice %151 {offsets = [8, 0], sizes = [2, 32], strides = [1, 1]} : vector<16x32xf32> to vector<2x32xf32>
    %cst_183 = arith.constant dense<0.000000e+00> : vector<2x32xf32>
    %316 = tpu.matmul %314, %174, %cst_183 {dimension_numbers = #tpu.dot_dimension_numbers<[1], [0], [0], [1], [0, 0, 1, 1], [], []>} : vector<2x32xf32>, vector<32x32xf32>, vector<2x32xf32> -> vector<2x32xf32>
    %317 = arith.addf %315, %316 : vector<2x32xf32>
    %318 = arith.negf %317 : vector<2x32xf32>
    %319 = math.exp %318 : vector<2x32xf32>
    %cst_184 = arith.constant 1.000000e+00 : f32
    %320 = vector.broadcast %cst_184 : f32 to vector<2x32xf32>
    %321 = arith.addf %320, %319 : vector<2x32xf32>
    %322 = arith.divf %320, %321 : vector<2x32xf32>
    %323 = vector.extract_strided_slice %158 {offsets = [8, 0], sizes = [2, 32], strides = [1, 1]} : vector<16x32xf32> to vector<2x32xf32>
    %cst_185 = arith.constant dense<0.000000e+00> : vector<2x32xf32>
    %324 = tpu.matmul %314, %176, %cst_185 {dimension_numbers = #tpu.dot_dimension_numbers<[1], [0], [0], [1], [0, 0, 1, 1], [], []>} : vector<2x32xf32>, vector<32x32xf32>, vector<2x32xf32> -> vector<2x32xf32>
    %325 = arith.addf %323, %324 : vector<2x32xf32>
    %326 = arith.negf %325 : vector<2x32xf32>
    %327 = math.exp %326 : vector<2x32xf32>
    %cst_186 = arith.constant 1.000000e+00 : f32
    %328 = vector.broadcast %cst_186 : f32 to vector<2x32xf32>
    %329 = arith.addf %328, %327 : vector<2x32xf32>
    %330 = arith.divf %328, %329 : vector<2x32xf32>
    %331 = vector.extract_strided_slice %165 {offsets = [8, 0], sizes = [2, 32], strides = [1, 1]} : vector<16x32xf32> to vector<2x32xf32>
    %cst_187 = arith.constant dense<0.000000e+00> : vector<2x32xf32>
    %332 = tpu.matmul %314, %178, %cst_187 {dimension_numbers = #tpu.dot_dimension_numbers<[1], [0], [0], [1], [0, 0, 1, 1], [], []>} : vector<2x32xf32>, vector<32x32xf32>, vector<2x32xf32> -> vector<2x32xf32>
    %333 = arith.addf %331, %332 : vector<2x32xf32>
    %334 = math.tanh %333 : vector<2x32xf32>
    %335 = vector.extract_strided_slice %172 {offsets = [8, 0], sizes = [2, 32], strides = [1, 1]} : vector<16x32xf32> to vector<2x32xf32>
    %cst_188 = arith.constant dense<0.000000e+00> : vector<2x32xf32>
    %336 = tpu.matmul %314, %180, %cst_188 {dimension_numbers = #tpu.dot_dimension_numbers<[1], [0], [0], [1], [0, 0, 1, 1], [], []>} : vector<2x32xf32>, vector<32x32xf32>, vector<2x32xf32> -> vector<2x32xf32>
    %337 = arith.addf %335, %336 : vector<2x32xf32>
    %338 = arith.negf %337 : vector<2x32xf32>
    %339 = math.exp %338 : vector<2x32xf32>
    %cst_189 = arith.constant 1.000000e+00 : f32
    %340 = vector.broadcast %cst_189 : f32 to vector<2x32xf32>
    %341 = arith.addf %340, %339 : vector<2x32xf32>
    %342 = arith.divf %340, %341 : vector<2x32xf32>
    %343 = arith.mulf %330, %312 : vector<2x32xf32>
    %344 = arith.mulf %322, %334 : vector<2x32xf32>
    %345 = arith.addf %343, %344 : vector<2x32xf32>
    %346 = math.tanh %345 : vector<2x32xf32>
    %347 = arith.mulf %342, %346 : vector<2x32xf32>
    %348 = vector.extract_strided_slice %151 {offsets = [10, 0], sizes = [2, 32], strides = [1, 1]} : vector<16x32xf32> to vector<2x32xf32>
    %cst_190 = arith.constant dense<0.000000e+00> : vector<2x32xf32>
    %349 = tpu.matmul %347, %174, %cst_190 {dimension_numbers = #tpu.dot_dimension_numbers<[1], [0], [0], [1], [0, 0, 1, 1], [], []>} : vector<2x32xf32>, vector<32x32xf32>, vector<2x32xf32> -> vector<2x32xf32>
    %350 = arith.addf %348, %349 : vector<2x32xf32>
    %351 = arith.negf %350 : vector<2x32xf32>
    %352 = math.exp %351 : vector<2x32xf32>
    %cst_191 = arith.constant 1.000000e+00 : f32
    %353 = vector.broadcast %cst_191 : f32 to vector<2x32xf32>
    %354 = arith.addf %353, %352 : vector<2x32xf32>
    %355 = arith.divf %353, %354 : vector<2x32xf32>
    %356 = vector.extract_strided_slice %158 {offsets = [10, 0], sizes = [2, 32], strides = [1, 1]} : vector<16x32xf32> to vector<2x32xf32>
    %cst_192 = arith.constant dense<0.000000e+00> : vector<2x32xf32>
    %357 = tpu.matmul %347, %176, %cst_192 {dimension_numbers = #tpu.dot_dimension_numbers<[1], [0], [0], [1], [0, 0, 1, 1], [], []>} : vector<2x32xf32>, vector<32x32xf32>, vector<2x32xf32> -> vector<2x32xf32>
    %358 = arith.addf %356, %357 : vector<2x32xf32>
    %359 = arith.negf %358 : vector<2x32xf32>
    %360 = math.exp %359 : vector<2x32xf32>
    %cst_193 = arith.constant 1.000000e+00 : f32
    %361 = vector.broadcast %cst_193 : f32 to vector<2x32xf32>
    %362 = arith.addf %361, %360 : vector<2x32xf32>
    %363 = arith.divf %361, %362 : vector<2x32xf32>
    %364 = vector.extract_strided_slice %165 {offsets = [10, 0], sizes = [2, 32], strides = [1, 1]} : vector<16x32xf32> to vector<2x32xf32>
    %cst_194 = arith.constant dense<0.000000e+00> : vector<2x32xf32>
    %365 = tpu.matmul %347, %178, %cst_194 {dimension_numbers = #tpu.dot_dimension_numbers<[1], [0], [0], [1], [0, 0, 1, 1], [], []>} : vector<2x32xf32>, vector<32x32xf32>, vector<2x32xf32> -> vector<2x32xf32>
    %366 = arith.addf %364, %365 : vector<2x32xf32>
    %367 = math.tanh %366 : vector<2x32xf32>
    %368 = vector.extract_strided_slice %172 {offsets = [10, 0], sizes = [2, 32], strides = [1, 1]} : vector<16x32xf32> to vector<2x32xf32>
    %cst_195 = arith.constant dense<0.000000e+00> : vector<2x32xf32>
    %369 = tpu.matmul %347, %180, %cst_195 {dimension_numbers = #tpu.dot_dimension_numbers<[1], [0], [0], [1], [0, 0, 1, 1], [], []>} : vector<2x32xf32>, vector<32x32xf32>, vector<2x32xf32> -> vector<2x32xf32>
    %370 = arith.addf %368, %369 : vector<2x32xf32>
    %371 = arith.negf %370 : vector<2x32xf32>
    %372 = math.exp %371 : vector<2x32xf32>
    %cst_196 = arith.constant 1.000000e+00 : f32
    %373 = vector.broadcast %cst_196 : f32 to vector<2x32xf32>
    %374 = arith.addf %373, %372 : vector<2x32xf32>
    %375 = arith.divf %373, %374 : vector<2x32xf32>
    %376 = arith.mulf %363, %345 : vector<2x32xf32>
    %377 = arith.mulf %355, %367 : vector<2x32xf32>
    %378 = arith.addf %376, %377 : vector<2x32xf32>
    %379 = math.tanh %378 : vector<2x32xf32>
    %380 = arith.mulf %375, %379 : vector<2x32xf32>
    %381 = vector.extract_strided_slice %151 {offsets = [12, 0], sizes = [2, 32], strides = [1, 1]} : vector<16x32xf32> to vector<2x32xf32>
    %cst_197 = arith.constant dense<0.000000e+00> : vector<2x32xf32>
    %382 = tpu.matmul %380, %174, %cst_197 {dimension_numbers = #tpu.dot_dimension_numbers<[1], [0], [0], [1], [0, 0, 1, 1], [], []>} : vector<2x32xf32>, vector<32x32xf32>, vector<2x32xf32> -> vector<2x32xf32>
    %383 = arith.addf %381, %382 : vector<2x32xf32>
    %384 = arith.negf %383 : vector<2x32xf32>
    %385 = math.exp %384 : vector<2x32xf32>
    %cst_198 = arith.constant 1.000000e+00 : f32
    %386 = vector.broadcast %cst_198 : f32 to vector<2x32xf32>
    %387 = arith.addf %386, %385 : vector<2x32xf32>
    %388 = arith.divf %386, %387 : vector<2x32xf32>
    %389 = vector.extract_strided_slice %158 {offsets = [12, 0], sizes = [2, 32], strides = [1, 1]} : vector<16x32xf32> to vector<2x32xf32>
    %cst_199 = arith.constant dense<0.000000e+00> : vector<2x32xf32>
    %390 = tpu.matmul %380, %176, %cst_199 {dimension_numbers = #tpu.dot_dimension_numbers<[1], [0], [0], [1], [0, 0, 1, 1], [], []>} : vector<2x32xf32>, vector<32x32xf32>, vector<2x32xf32> -> vector<2x32xf32>
    %391 = arith.addf %389, %390 : vector<2x32xf32>
    %392 = arith.negf %391 : vector<2x32xf32>
    %393 = math.exp %392 : vector<2x32xf32>
    %cst_200 = arith.constant 1.000000e+00 : f32
    %394 = vector.broadcast %cst_200 : f32 to vector<2x32xf32>
    %395 = arith.addf %394, %393 : vector<2x32xf32>
    %396 = arith.divf %394, %395 : vector<2x32xf32>
    %397 = vector.extract_strided_slice %165 {offsets = [12, 0], sizes = [2, 32], strides = [1, 1]} : vector<16x32xf32> to vector<2x32xf32>
    %cst_201 = arith.constant dense<0.000000e+00> : vector<2x32xf32>
    %398 = tpu.matmul %380, %178, %cst_201 {dimension_numbers = #tpu.dot_dimension_numbers<[1], [0], [0], [1], [0, 0, 1, 1], [], []>} : vector<2x32xf32>, vector<32x32xf32>, vector<2x32xf32> -> vector<2x32xf32>
    %399 = arith.addf %397, %398 : vector<2x32xf32>
    %400 = math.tanh %399 : vector<2x32xf32>
    %401 = vector.extract_strided_slice %172 {offsets = [12, 0], sizes = [2, 32], strides = [1, 1]} : vector<16x32xf32> to vector<2x32xf32>
    %cst_202 = arith.constant dense<0.000000e+00> : vector<2x32xf32>
    %402 = tpu.matmul %380, %180, %cst_202 {dimension_numbers = #tpu.dot_dimension_numbers<[1], [0], [0], [1], [0, 0, 1, 1], [], []>} : vector<2x32xf32>, vector<32x32xf32>, vector<2x32xf32> -> vector<2x32xf32>
    %403 = arith.addf %401, %402 : vector<2x32xf32>
    %404 = arith.negf %403 : vector<2x32xf32>
    %405 = math.exp %404 : vector<2x32xf32>
    %cst_203 = arith.constant 1.000000e+00 : f32
    %406 = vector.broadcast %cst_203 : f32 to vector<2x32xf32>
    %407 = arith.addf %406, %405 : vector<2x32xf32>
    %408 = arith.divf %406, %407 : vector<2x32xf32>
    %409 = arith.mulf %396, %378 : vector<2x32xf32>
    %410 = arith.mulf %388, %400 : vector<2x32xf32>
    %411 = arith.addf %409, %410 : vector<2x32xf32>
    %412 = math.tanh %411 : vector<2x32xf32>
    %413 = arith.mulf %408, %412 : vector<2x32xf32>
    %414 = vector.extract_strided_slice %151 {offsets = [14, 0], sizes = [2, 32], strides = [1, 1]} : vector<16x32xf32> to vector<2x32xf32>
    %cst_204 = arith.constant dense<0.000000e+00> : vector<2x32xf32>
    %415 = tpu.matmul %413, %174, %cst_204 {dimension_numbers = #tpu.dot_dimension_numbers<[1], [0], [0], [1], [0, 0, 1, 1], [], []>} : vector<2x32xf32>, vector<32x32xf32>, vector<2x32xf32> -> vector<2x32xf32>
    %416 = arith.addf %414, %415 : vector<2x32xf32>
    %417 = arith.negf %416 : vector<2x32xf32>
    %418 = math.exp %417 : vector<2x32xf32>
    %cst_205 = arith.constant 1.000000e+00 : f32
    %419 = vector.broadcast %cst_205 : f32 to vector<2x32xf32>
    %420 = arith.addf %419, %418 : vector<2x32xf32>
    %421 = arith.divf %419, %420 : vector<2x32xf32>
    %422 = vector.extract_strided_slice %158 {offsets = [14, 0], sizes = [2, 32], strides = [1, 1]} : vector<16x32xf32> to vector<2x32xf32>
    %cst_206 = arith.constant dense<0.000000e+00> : vector<2x32xf32>
    %423 = tpu.matmul %413, %176, %cst_206 {dimension_numbers = #tpu.dot_dimension_numbers<[1], [0], [0], [1], [0, 0, 1, 1], [], []>} : vector<2x32xf32>, vector<32x32xf32>, vector<2x32xf32> -> vector<2x32xf32>
    %424 = arith.addf %422, %423 : vector<2x32xf32>
    %425 = arith.negf %424 : vector<2x32xf32>
    %426 = math.exp %425 : vector<2x32xf32>
    %cst_207 = arith.constant 1.000000e+00 : f32
    %427 = vector.broadcast %cst_207 : f32 to vector<2x32xf32>
    %428 = arith.addf %427, %426 : vector<2x32xf32>
    %429 = arith.divf %427, %428 : vector<2x32xf32>
    %430 = vector.extract_strided_slice %165 {offsets = [14, 0], sizes = [2, 32], strides = [1, 1]} : vector<16x32xf32> to vector<2x32xf32>
    %cst_208 = arith.constant dense<0.000000e+00> : vector<2x32xf32>
    %431 = tpu.matmul %413, %178, %cst_208 {dimension_numbers = #tpu.dot_dimension_numbers<[1], [0], [0], [1], [0, 0, 1, 1], [], []>} : vector<2x32xf32>, vector<32x32xf32>, vector<2x32xf32> -> vector<2x32xf32>
    %432 = arith.addf %430, %431 : vector<2x32xf32>
    %433 = math.tanh %432 : vector<2x32xf32>
    %434 = vector.extract_strided_slice %172 {offsets = [14, 0], sizes = [2, 32], strides = [1, 1]} : vector<16x32xf32> to vector<2x32xf32>
    %cst_209 = arith.constant dense<0.000000e+00> : vector<2x32xf32>
    %435 = tpu.matmul %413, %180, %cst_209 {dimension_numbers = #tpu.dot_dimension_numbers<[1], [0], [0], [1], [0, 0, 1, 1], [], []>} : vector<2x32xf32>, vector<32x32xf32>, vector<2x32xf32> -> vector<2x32xf32>
    %436 = arith.addf %434, %435 : vector<2x32xf32>
    %437 = arith.negf %436 : vector<2x32xf32>
    %438 = math.exp %437 : vector<2x32xf32>
    %cst_210 = arith.constant 1.000000e+00 : f32
    %439 = vector.broadcast %cst_210 : f32 to vector<2x32xf32>
    %440 = arith.addf %439, %438 : vector<2x32xf32>
    %441 = arith.divf %439, %440 : vector<2x32xf32>
    %442 = arith.mulf %429, %411 : vector<2x32xf32>
    %443 = arith.mulf %421, %433 : vector<2x32xf32>
    %444 = arith.addf %442, %443 : vector<2x32xf32>
    %445 = math.tanh %444 : vector<2x32xf32>
    %446 = arith.mulf %441, %445 : vector<2x32xf32>
    %c0_211 = arith.constant 0 : index
    %c0_212 = arith.constant 0 : index
    %c0_213 = arith.constant 0 : index
    %447 = vector.load %arg9[%c0_211, %c0_212, %c0_213] : memref<2x2x32xf32, #tpu.memory_space<vmem>>, vector<1x2x32xf32>
    %448 = vector.shape_cast %447 : vector<1x2x32xf32> to vector<2x32xf32>
    %449 = vector.shape_cast %446 : vector<2x32xf32> to vector<1x2x32xf32>
    tpu.vector_store %arg9[%c0_211, %c0_212, %c0_213], %449 {strides = array<i32>} : memref<2x2x32xf32, #tpu.memory_space<vmem>>, vector<1x2x32xf32>,
    %c0_214 = arith.constant 0 : index
    %c0_215 = arith.constant 0 : index
    %c0_216 = arith.constant 0 : index
    %450 = vector.load %arg10[%c0_214, %c0_215, %c0_216] : memref<2x2x32xf32, #tpu.memory_space<vmem>>, vector<1x2x32xf32>
    %451 = vector.shape_cast %450 : vector<1x2x32xf32> to vector<2x32xf32>
    %452 = vector.shape_cast %444 : vector<2x32xf32> to vector<1x2x32xf32>
    tpu.vector_store %arg10[%c0_214, %c0_215, %c0_216], %452 {strides = array<i32>} : memref<2x2x32xf32, #tpu.memory_space<vmem>>, vector<1x2x32xf32>,
    %453 = tpu.concatenate %215, %248, %281, %314, %347, %380, %413, %446 in 0 : vector<2x32xf32>, vector<2x32xf32>, vector<2x32xf32>, vector<2x32xf32>, vector<2x32xf32>, vector<2x32xf32>, vector<2x32xf32>, vector<2x32xf32> -> vector<16x32xf32>
    %c0_217 = arith.constant 0 : index
    %c0_218 = arith.constant 0 : index
    %c0_219 = arith.constant 0 : index
    %454 = vector.load %arg6[%c0_217, %c0_218, %c0_219] : memref<4x32x32xf32, #tpu.memory_space<vmem>>, vector<1x32x32xf32>
    %455 = vector.shape_cast %454 : vector<1x32x32xf32> to vector<32x32xf32>
    %cst_220 = arith.constant dense<0.000000e+00> : vector<16x32xf32>
    %456 = tpu.matmul %453, %455, %cst_220 {dimension_numbers = #tpu.dot_dimension_numbers<[1], [0], [0], [1], [0, 0, 1, 1], [], []>} : vector<16x32xf32>, vector<32x32xf32>, vector<16x32xf32> -> vector<16x32xf32>
    %c0_221 = arith.constant 0 : index
    %c0_222 = arith.constant 0 : index
    %c0_223 = arith.constant 0 : index
    %457 = vector.load %arg8[%c0_221, %c0_222, %c0_223] : memref<4x1x32xf32, #tpu.memory_space<vmem>>, vector<1x1x32xf32>
    %458 = vector.shape_cast %457 : vector<1x1x32xf32> to vector<1x32xf32>
    %459 = vector.broadcast %458 : vector<1x32xf32> to vector<16x32xf32>
    %460 = arith.addf %456, %459 : vector<16x32xf32>
    %c1_224 = arith.constant 1 : index
    %c0_225 = arith.constant 0 : index
    %c0_226 = arith.constant 0 : index
    %461 = vector.load %arg6[%c1_224, %c0_225, %c0_226] : memref<4x32x32xf32, #tpu.memory_space<vmem>>, vector<1x32x32xf32>
    %462 = vector.shape_cast %461 : vector<1x32x32xf32> to vector<32x32xf32>
    %cst_227 = arith.constant dense<0.000000e+00> : vector<16x32xf32>
    %463 = tpu.matmul %453, %462, %cst_227 {dimension_numbers = #tpu.dot_dimension_numbers<[1], [0], [0], [1], [0, 0, 1, 1], [], []>} : vector<16x32xf32>, vector<32x32xf32>, vector<16x32xf32> -> vector<16x32xf32>
    %c1_228 = arith.constant 1 : index
    %c0_229 = arith.constant 0 : index
    %c0_230 = arith.constant 0 : index
    %464 = vector.load %arg8[%c1_228, %c0_229, %c0_230] : memref<4x1x32xf32, #tpu.memory_space<vmem>>, vector<1x1x32xf32>
    %465 = vector.shape_cast %464 : vector<1x1x32xf32> to vector<1x32xf32>
    %466 = vector.broadcast %465 : vector<1x32xf32> to vector<16x32xf32>
    %467 = arith.addf %463, %466 : vector<16x32xf32>
    %c2_231 = arith.constant 2 : index
    %c0_232 = arith.constant 0 : index
    %c0_233 = arith.constant 0 : index
    %468 = vector.load %arg6[%c2_231, %c0_232, %c0_233] : memref<4x32x32xf32, #tpu.memory_space<vmem>>, vector<1x32x32xf32>
    %469 = vector.shape_cast %468 : vector<1x32x32xf32> to vector<32x32xf32>
    %cst_234 = arith.constant dense<0.000000e+00> : vector<16x32xf32>
    %470 = tpu.matmul %453, %469, %cst_234 {dimension_numbers = #tpu.dot_dimension_numbers<[1], [0], [0], [1], [0, 0, 1, 1], [], []>} : vector<16x32xf32>, vector<32x32xf32>, vector<16x32xf32> -> vector<16x32xf32>
    %c2_235 = arith.constant 2 : index
    %c0_236 = arith.constant 0 : index
    %c0_237 = arith.constant 0 : index
    %471 = vector.load %arg8[%c2_235, %c0_236, %c0_237] : memref<4x1x32xf32, #tpu.memory_space<vmem>>, vector<1x1x32xf32>
    %472 = vector.shape_cast %471 : vector<1x1x32xf32> to vector<1x32xf32>
    %473 = vector.broadcast %472 : vector<1x32xf32> to vector<16x32xf32>
    %474 = arith.addf %470, %473 : vector<16x32xf32>
    %c3_238 = arith.constant 3 : index
    %c0_239 = arith.constant 0 : index
    %c0_240 = arith.constant 0 : index
    %475 = vector.load %arg6[%c3_238, %c0_239, %c0_240] : memref<4x32x32xf32, #tpu.memory_space<vmem>>, vector<1x32x32xf32>
    %476 = vector.shape_cast %475 : vector<1x32x32xf32> to vector<32x32xf32>
    %cst_241 = arith.constant dense<0.000000e+00> : vector<16x32xf32>
    %477 = tpu.matmul %453, %476, %cst_241 {dimension_numbers = #tpu.dot_dimension_numbers<[1], [0], [0], [1], [0, 0, 1, 1], [], []>} : vector<16x32xf32>, vector<32x32xf32>, vector<16x32xf32> -> vector<16x32xf32>
    %c3_242 = arith.constant 3 : index
    %c0_243 = arith.constant 0 : index
    %c0_244 = arith.constant 0 : index
    %478 = vector.load %arg8[%c3_242, %c0_243, %c0_244] : memref<4x1x32xf32, #tpu.memory_space<vmem>>, vector<1x1x32xf32>
    %479 = vector.shape_cast %478 : vector<1x1x32xf32> to vector<1x32xf32>
    %480 = vector.broadcast %479 : vector<1x32xf32> to vector<16x32xf32>
    %481 = arith.addf %477, %480 : vector<16x32xf32>
    %c0_245 = arith.constant 0 : index
    %c0_246 = arith.constant 0 : index
    %c0_247 = arith.constant 0 : index
    %482 = vector.load %arg7[%c0_245, %c0_246, %c0_247] : memref<4x32x32xf32, #tpu.memory_space<vmem>>, vector<1x32x32xf32>
    %483 = vector.shape_cast %482 : vector<1x32x32xf32> to vector<32x32xf32>
    %c1_248 = arith.constant 1 : index
    %c0_249 = arith.constant 0 : index
    %c0_250 = arith.constant 0 : index
    %484 = vector.load %arg7[%c1_248, %c0_249, %c0_250] : memref<4x32x32xf32, #tpu.memory_space<vmem>>, vector<1x32x32xf32>
    %485 = vector.shape_cast %484 : vector<1x32x32xf32> to vector<32x32xf32>
    %c2_251 = arith.constant 2 : index
    %c0_252 = arith.constant 0 : index
    %c0_253 = arith.constant 0 : index
    %486 = vector.load %arg7[%c2_251, %c0_252, %c0_253] : memref<4x32x32xf32, #tpu.memory_space<vmem>>, vector<1x32x32xf32>
    %487 = vector.shape_cast %486 : vector<1x32x32xf32> to vector<32x32xf32>
    %c3_254 = arith.constant 3 : index
    %c0_255 = arith.constant 0 : index
    %c0_256 = arith.constant 0 : index
    %488 = vector.load %arg7[%c3_254, %c0_255, %c0_256] : memref<4x32x32xf32, #tpu.memory_space<vmem>>, vector<1x32x32xf32>
    %489 = vector.shape_cast %488 : vector<1x32x32xf32> to vector<32x32xf32>
    %cst_257 = arith.constant 0.000000e+00 : f32
    %490 = vector.broadcast %cst_257 : f32 to vector<2x32xf32>
    %cst_258 = arith.constant 0.000000e+00 : f32
    %491 = vector.broadcast %cst_258 : f32 to vector<2x32xf32>
    %492 = vector.extract_strided_slice %460 {offsets = [0, 0], sizes = [2, 32], strides = [1, 1]} : vector<16x32xf32> to vector<2x32xf32>
    %cst_259 = arith.constant dense<0.000000e+00> : vector<2x32xf32>
    %493 = tpu.matmul %490, %483, %cst_259 {dimension_numbers = #tpu.dot_dimension_numbers<[1], [0], [0], [1], [0, 0, 1, 1], [], []>} : vector<2x32xf32>, vector<32x32xf32>, vector<2x32xf32> -> vector<2x32xf32>
    %494 = arith.addf %492, %493 : vector<2x32xf32>
    %495 = arith.negf %494 : vector<2x32xf32>
    %496 = math.exp %495 : vector<2x32xf32>
    %cst_260 = arith.constant 1.000000e+00 : f32
    %497 = vector.broadcast %cst_260 : f32 to vector<2x32xf32>
    %498 = arith.addf %497, %496 : vector<2x32xf32>
    %499 = arith.divf %497, %498 : vector<2x32xf32>
    %500 = vector.extract_strided_slice %467 {offsets = [0, 0], sizes = [2, 32], strides = [1, 1]} : vector<16x32xf32> to vector<2x32xf32>
    %cst_261 = arith.constant dense<0.000000e+00> : vector<2x32xf32>
    %501 = tpu.matmul %490, %485, %cst_261 {dimension_numbers = #tpu.dot_dimension_numbers<[1], [0], [0], [1], [0, 0, 1, 1], [], []>} : vector<2x32xf32>, vector<32x32xf32>, vector<2x32xf32> -> vector<2x32xf32>
    %502 = arith.addf %500, %501 : vector<2x32xf32>
    %503 = arith.negf %502 : vector<2x32xf32>
    %504 = math.exp %503 : vector<2x32xf32>
    %cst_262 = arith.constant 1.000000e+00 : f32
    %505 = vector.broadcast %cst_262 : f32 to vector<2x32xf32>
    %506 = arith.addf %505, %504 : vector<2x32xf32>
    %507 = arith.divf %505, %506 : vector<2x32xf32>
    %508 = vector.extract_strided_slice %474 {offsets = [0, 0], sizes = [2, 32], strides = [1, 1]} : vector<16x32xf32> to vector<2x32xf32>
    %cst_263 = arith.constant dense<0.000000e+00> : vector<2x32xf32>
    %509 = tpu.matmul %490, %487, %cst_263 {dimension_numbers = #tpu.dot_dimension_numbers<[1], [0], [0], [1], [0, 0, 1, 1], [], []>} : vector<2x32xf32>, vector<32x32xf32>, vector<2x32xf32> -> vector<2x32xf32>
    %510 = arith.addf %508, %509 : vector<2x32xf32>
    %511 = math.tanh %510 : vector<2x32xf32>
    %512 = vector.extract_strided_slice %481 {offsets = [0, 0], sizes = [2, 32], strides = [1, 1]} : vector<16x32xf32> to vector<2x32xf32>
    %cst_264 = arith.constant dense<0.000000e+00> : vector<2x32xf32>
    %513 = tpu.matmul %490, %489, %cst_264 {dimension_numbers = #tpu.dot_dimension_numbers<[1], [0], [0], [1], [0, 0, 1, 1], [], []>} : vector<2x32xf32>, vector<32x32xf32>, vector<2x32xf32> -> vector<2x32xf32>
    %514 = arith.addf %512, %513 : vector<2x32xf32>
    %515 = arith.negf %514 : vector<2x32xf32>
    %516 = math.exp %515 : vector<2x32xf32>
    %cst_265 = arith.constant 1.000000e+00 : f32
    %517 = vector.broadcast %cst_265 : f32 to vector<2x32xf32>
    %518 = arith.addf %517, %516 : vector<2x32xf32>
    %519 = arith.divf %517, %518 : vector<2x32xf32>
    %520 = arith.mulf %507, %491 : vector<2x32xf32>
    %521 = arith.mulf %499, %511 : vector<2x32xf32>
    %522 = arith.addf %520, %521 : vector<2x32xf32>
    %523 = math.tanh %522 : vector<2x32xf32>
    %524 = arith.mulf %519, %523 : vector<2x32xf32>
    %525 = vector.extract_strided_slice %460 {offsets = [2, 0], sizes = [2, 32], strides = [1, 1]} : vector<16x32xf32> to vector<2x32xf32>
    %cst_266 = arith.constant dense<0.000000e+00> : vector<2x32xf32>
    %526 = tpu.matmul %524, %483, %cst_266 {dimension_numbers = #tpu.dot_dimension_numbers<[1], [0], [0], [1], [0, 0, 1, 1], [], []>} : vector<2x32xf32>, vector<32x32xf32>, vector<2x32xf32> -> vector<2x32xf32>
    %527 = arith.addf %525, %526 : vector<2x32xf32>
    %528 = arith.negf %527 : vector<2x32xf32>
    %529 = math.exp %528 : vector<2x32xf32>
    %cst_267 = arith.constant 1.000000e+00 : f32
    %530 = vector.broadcast %cst_267 : f32 to vector<2x32xf32>
    %531 = arith.addf %530, %529 : vector<2x32xf32>
    %532 = arith.divf %530, %531 : vector<2x32xf32>
    %533 = vector.extract_strided_slice %467 {offsets = [2, 0], sizes = [2, 32], strides = [1, 1]} : vector<16x32xf32> to vector<2x32xf32>
    %cst_268 = arith.constant dense<0.000000e+00> : vector<2x32xf32>
    %534 = tpu.matmul %524, %485, %cst_268 {dimension_numbers = #tpu.dot_dimension_numbers<[1], [0], [0], [1], [0, 0, 1, 1], [], []>} : vector<2x32xf32>, vector<32x32xf32>, vector<2x32xf32> -> vector<2x32xf32>
    %535 = arith.addf %533, %534 : vector<2x32xf32>
    %536 = arith.negf %535 : vector<2x32xf32>
    %537 = math.exp %536 : vector<2x32xf32>
    %cst_269 = arith.constant 1.000000e+00 : f32
    %538 = vector.broadcast %cst_269 : f32 to vector<2x32xf32>
    %539 = arith.addf %538, %537 : vector<2x32xf32>
    %540 = arith.divf %538, %539 : vector<2x32xf32>
    %541 = vector.extract_strided_slice %474 {offsets = [2, 0], sizes = [2, 32], strides = [1, 1]} : vector<16x32xf32> to vector<2x32xf32>
    %cst_270 = arith.constant dense<0.000000e+00> : vector<2x32xf32>
    %542 = tpu.matmul %524, %487, %cst_270 {dimension_numbers = #tpu.dot_dimension_numbers<[1], [0], [0], [1], [0, 0, 1, 1], [], []>} : vector<2x32xf32>, vector<32x32xf32>, vector<2x32xf32> -> vector<2x32xf32>
    %543 = arith.addf %541, %542 : vector<2x32xf32>
    %544 = math.tanh %543 : vector<2x32xf32>
    %545 = vector.extract_strided_slice %481 {offsets = [2, 0], sizes = [2, 32], strides = [1, 1]} : vector<16x32xf32> to vector<2x32xf32>
    %cst_271 = arith.constant dense<0.000000e+00> : vector<2x32xf32>
    %546 = tpu.matmul %524, %489, %cst_271 {dimension_numbers = #tpu.dot_dimension_numbers<[1], [0], [0], [1], [0, 0, 1, 1], [], []>} : vector<2x32xf32>, vector<32x32xf32>, vector<2x32xf32> -> vector<2x32xf32>
    %547 = arith.addf %545, %546 : vector<2x32xf32>
    %548 = arith.negf %547 : vector<2x32xf32>
    %549 = math.exp %548 : vector<2x32xf32>
    %cst_272 = arith.constant 1.000000e+00 : f32
    %550 = vector.broadcast %cst_272 : f32 to vector<2x32xf32>
    %551 = arith.addf %550, %549 : vector<2x32xf32>
    %552 = arith.divf %550, %551 : vector<2x32xf32>
    %553 = arith.mulf %540, %522 : vector<2x32xf32>
    %554 = arith.mulf %532, %544 : vector<2x32xf32>
    %555 = arith.addf %553, %554 : vector<2x32xf32>
    %556 = math.tanh %555 : vector<2x32xf32>
    %557 = arith.mulf %552, %556 : vector<2x32xf32>
    %558 = vector.extract_strided_slice %460 {offsets = [4, 0], sizes = [2, 32], strides = [1, 1]} : vector<16x32xf32> to vector<2x32xf32>
    %cst_273 = arith.constant dense<0.000000e+00> : vector<2x32xf32>
    %559 = tpu.matmul %557, %483, %cst_273 {dimension_numbers = #tpu.dot_dimension_numbers<[1], [0], [0], [1], [0, 0, 1, 1], [], []>} : vector<2x32xf32>, vector<32x32xf32>, vector<2x32xf32> -> vector<2x32xf32>
    %560 = arith.addf %558, %559 : vector<2x32xf32>
    %561 = arith.negf %560 : vector<2x32xf32>
    %562 = math.exp %561 : vector<2x32xf32>
    %cst_274 = arith.constant 1.000000e+00 : f32
    %563 = vector.broadcast %cst_274 : f32 to vector<2x32xf32>
    %564 = arith.addf %563, %562 : vector<2x32xf32>
    %565 = arith.divf %563, %564 : vector<2x32xf32>
    %566 = vector.extract_strided_slice %467 {offsets = [4, 0], sizes = [2, 32], strides = [1, 1]} : vector<16x32xf32> to vector<2x32xf32>
    %cst_275 = arith.constant dense<0.000000e+00> : vector<2x32xf32>
    %567 = tpu.matmul %557, %485, %cst_275 {dimension_numbers = #tpu.dot_dimension_numbers<[1], [0], [0], [1], [0, 0, 1, 1], [], []>} : vector<2x32xf32>, vector<32x32xf32>, vector<2x32xf32> -> vector<2x32xf32>
    %568 = arith.addf %566, %567 : vector<2x32xf32>
    %569 = arith.negf %568 : vector<2x32xf32>
    %570 = math.exp %569 : vector<2x32xf32>
    %cst_276 = arith.constant 1.000000e+00 : f32
    %571 = vector.broadcast %cst_276 : f32 to vector<2x32xf32>
    %572 = arith.addf %571, %570 : vector<2x32xf32>
    %573 = arith.divf %571, %572 : vector<2x32xf32>
    %574 = vector.extract_strided_slice %474 {offsets = [4, 0], sizes = [2, 32], strides = [1, 1]} : vector<16x32xf32> to vector<2x32xf32>
    %cst_277 = arith.constant dense<0.000000e+00> : vector<2x32xf32>
    %575 = tpu.matmul %557, %487, %cst_277 {dimension_numbers = #tpu.dot_dimension_numbers<[1], [0], [0], [1], [0, 0, 1, 1], [], []>} : vector<2x32xf32>, vector<32x32xf32>, vector<2x32xf32> -> vector<2x32xf32>
    %576 = arith.addf %574, %575 : vector<2x32xf32>
    %577 = math.tanh %576 : vector<2x32xf32>
    %578 = vector.extract_strided_slice %481 {offsets = [4, 0], sizes = [2, 32], strides = [1, 1]} : vector<16x32xf32> to vector<2x32xf32>
    %cst_278 = arith.constant dense<0.000000e+00> : vector<2x32xf32>
    %579 = tpu.matmul %557, %489, %cst_278 {dimension_numbers = #tpu.dot_dimension_numbers<[1], [0], [0], [1], [0, 0, 1, 1], [], []>} : vector<2x32xf32>, vector<32x32xf32>, vector<2x32xf32> -> vector<2x32xf32>
    %580 = arith.addf %578, %579 : vector<2x32xf32>
    %581 = arith.negf %580 : vector<2x32xf32>
    %582 = math.exp %581 : vector<2x32xf32>
    %cst_279 = arith.constant 1.000000e+00 : f32
    %583 = vector.broadcast %cst_279 : f32 to vector<2x32xf32>
    %584 = arith.addf %583, %582 : vector<2x32xf32>
    %585 = arith.divf %583, %584 : vector<2x32xf32>
    %586 = arith.mulf %573, %555 : vector<2x32xf32>
    %587 = arith.mulf %565, %577 : vector<2x32xf32>
    %588 = arith.addf %586, %587 : vector<2x32xf32>
    %589 = math.tanh %588 : vector<2x32xf32>
    %590 = arith.mulf %585, %589 : vector<2x32xf32>
    %591 = vector.extract_strided_slice %460 {offsets = [6, 0], sizes = [2, 32], strides = [1, 1]} : vector<16x32xf32> to vector<2x32xf32>
    %cst_280 = arith.constant dense<0.000000e+00> : vector<2x32xf32>
    %592 = tpu.matmul %590, %483, %cst_280 {dimension_numbers = #tpu.dot_dimension_numbers<[1], [0], [0], [1], [0, 0, 1, 1], [], []>} : vector<2x32xf32>, vector<32x32xf32>, vector<2x32xf32> -> vector<2x32xf32>
    %593 = arith.addf %591, %592 : vector<2x32xf32>
    %594 = arith.negf %593 : vector<2x32xf32>
    %595 = math.exp %594 : vector<2x32xf32>
    %cst_281 = arith.constant 1.000000e+00 : f32
    %596 = vector.broadcast %cst_281 : f32 to vector<2x32xf32>
    %597 = arith.addf %596, %595 : vector<2x32xf32>
    %598 = arith.divf %596, %597 : vector<2x32xf32>
    %599 = vector.extract_strided_slice %467 {offsets = [6, 0], sizes = [2, 32], strides = [1, 1]} : vector<16x32xf32> to vector<2x32xf32>
    %cst_282 = arith.constant dense<0.000000e+00> : vector<2x32xf32>
    %600 = tpu.matmul %590, %485, %cst_282 {dimension_numbers = #tpu.dot_dimension_numbers<[1], [0], [0], [1], [0, 0, 1, 1], [], []>} : vector<2x32xf32>, vector<32x32xf32>, vector<2x32xf32> -> vector<2x32xf32>
    %601 = arith.addf %599, %600 : vector<2x32xf32>
    %602 = arith.negf %601 : vector<2x32xf32>
    %603 = math.exp %602 : vector<2x32xf32>
    %cst_283 = arith.constant 1.000000e+00 : f32
    %604 = vector.broadcast %cst_283 : f32 to vector<2x32xf32>
    %605 = arith.addf %604, %603 : vector<2x32xf32>
    %606 = arith.divf %604, %605 : vector<2x32xf32>
    %607 = vector.extract_strided_slice %474 {offsets = [6, 0], sizes = [2, 32], strides = [1, 1]} : vector<16x32xf32> to vector<2x32xf32>
    %cst_284 = arith.constant dense<0.000000e+00> : vector<2x32xf32>
    %608 = tpu.matmul %590, %487, %cst_284 {dimension_numbers = #tpu.dot_dimension_numbers<[1], [0], [0], [1], [0, 0, 1, 1], [], []>} : vector<2x32xf32>, vector<32x32xf32>, vector<2x32xf32> -> vector<2x32xf32>
    %609 = arith.addf %607, %608 : vector<2x32xf32>
    %610 = math.tanh %609 : vector<2x32xf32>
    %611 = vector.extract_strided_slice %481 {offsets = [6, 0], sizes = [2, 32], strides = [1, 1]} : vector<16x32xf32> to vector<2x32xf32>
    %cst_285 = arith.constant dense<0.000000e+00> : vector<2x32xf32>
    %612 = tpu.matmul %590, %489, %cst_285 {dimension_numbers = #tpu.dot_dimension_numbers<[1], [0], [0], [1], [0, 0, 1, 1], [], []>} : vector<2x32xf32>, vector<32x32xf32>, vector<2x32xf32> -> vector<2x32xf32>
    %613 = arith.addf %611, %612 : vector<2x32xf32>
    %614 = arith.negf %613 : vector<2x32xf32>
    %615 = math.exp %614 : vector<2x32xf32>
    %cst_286 = arith.constant 1.000000e+00 : f32
    %616 = vector.broadcast %cst_286 : f32 to vector<2x32xf32>
    %617 = arith.addf %616, %615 : vector<2x32xf32>
    %618 = arith.divf %616, %617 : vector<2x32xf32>
    %619 = arith.mulf %606, %588 : vector<2x32xf32>
    %620 = arith.mulf %598, %610 : vector<2x32xf32>
    %621 = arith.addf %619, %620 : vector<2x32xf32>
    %622 = math.tanh %621 : vector<2x32xf32>
    %623 = arith.mulf %618, %622 : vector<2x32xf32>
    %624 = vector.extract_strided_slice %460 {offsets = [8, 0], sizes = [2, 32], strides = [1, 1]} : vector<16x32xf32> to vector<2x32xf32>
    %cst_287 = arith.constant dense<0.000000e+00> : vector<2x32xf32>
    %625 = tpu.matmul %623, %483, %cst_287 {dimension_numbers = #tpu.dot_dimension_numbers<[1], [0], [0], [1], [0, 0, 1, 1], [], []>} : vector<2x32xf32>, vector<32x32xf32>, vector<2x32xf32> -> vector<2x32xf32>
    %626 = arith.addf %624, %625 : vector<2x32xf32>
    %627 = arith.negf %626 : vector<2x32xf32>
    %628 = math.exp %627 : vector<2x32xf32>
    %cst_288 = arith.constant 1.000000e+00 : f32
    %629 = vector.broadcast %cst_288 : f32 to vector<2x32xf32>
    %630 = arith.addf %629, %628 : vector<2x32xf32>
    %631 = arith.divf %629, %630 : vector<2x32xf32>
    %632 = vector.extract_strided_slice %467 {offsets = [8, 0], sizes = [2, 32], strides = [1, 1]} : vector<16x32xf32> to vector<2x32xf32>
    %cst_289 = arith.constant dense<0.000000e+00> : vector<2x32xf32>
    %633 = tpu.matmul %623, %485, %cst_289 {dimension_numbers = #tpu.dot_dimension_numbers<[1], [0], [0], [1], [0, 0, 1, 1], [], []>} : vector<2x32xf32>, vector<32x32xf32>, vector<2x32xf32> -> vector<2x32xf32>
    %634 = arith.addf %632, %633 : vector<2x32xf32>
    %635 = arith.negf %634 : vector<2x32xf32>
    %636 = math.exp %635 : vector<2x32xf32>
    %cst_290 = arith.constant 1.000000e+00 : f32
    %637 = vector.broadcast %cst_290 : f32 to vector<2x32xf32>
    %638 = arith.addf %637, %636 : vector<2x32xf32>
    %639 = arith.divf %637, %638 : vector<2x32xf32>
    %640 = vector.extract_strided_slice %474 {offsets = [8, 0], sizes = [2, 32], strides = [1, 1]} : vector<16x32xf32> to vector<2x32xf32>
    %cst_291 = arith.constant dense<0.000000e+00> : vector<2x32xf32>
    %641 = tpu.matmul %623, %487, %cst_291 {dimension_numbers = #tpu.dot_dimension_numbers<[1], [0], [0], [1], [0, 0, 1, 1], [], []>} : vector<2x32xf32>, vector<32x32xf32>, vector<2x32xf32> -> vector<2x32xf32>
    %642 = arith.addf %640, %641 : vector<2x32xf32>
    %643 = math.tanh %642 : vector<2x32xf32>
    %644 = vector.extract_strided_slice %481 {offsets = [8, 0], sizes = [2, 32], strides = [1, 1]} : vector<16x32xf32> to vector<2x32xf32>
    %cst_292 = arith.constant dense<0.000000e+00> : vector<2x32xf32>
    %645 = tpu.matmul %623, %489, %cst_292 {dimension_numbers = #tpu.dot_dimension_numbers<[1], [0], [0], [1], [0, 0, 1, 1], [], []>} : vector<2x32xf32>, vector<32x32xf32>, vector<2x32xf32> -> vector<2x32xf32>
    %646 = arith.addf %644, %645 : vector<2x32xf32>
    %647 = arith.negf %646 : vector<2x32xf32>
    %648 = math.exp %647 : vector<2x32xf32>
    %cst_293 = arith.constant 1.000000e+00 : f32
    %649 = vector.broadcast %cst_293 : f32 to vector<2x32xf32>
    %650 = arith.addf %649, %648 : vector<2x32xf32>
    %651 = arith.divf %649, %650 : vector<2x32xf32>
    %652 = arith.mulf %639, %621 : vector<2x32xf32>
    %653 = arith.mulf %631, %643 : vector<2x32xf32>
    %654 = arith.addf %652, %653 : vector<2x32xf32>
    %655 = math.tanh %654 : vector<2x32xf32>
    %656 = arith.mulf %651, %655 : vector<2x32xf32>
    %657 = vector.extract_strided_slice %460 {offsets = [10, 0], sizes = [2, 32], strides = [1, 1]} : vector<16x32xf32> to vector<2x32xf32>
    %cst_294 = arith.constant dense<0.000000e+00> : vector<2x32xf32>
    %658 = tpu.matmul %656, %483, %cst_294 {dimension_numbers = #tpu.dot_dimension_numbers<[1], [0], [0], [1], [0, 0, 1, 1], [], []>} : vector<2x32xf32>, vector<32x32xf32>, vector<2x32xf32> -> vector<2x32xf32>
    %659 = arith.addf %657, %658 : vector<2x32xf32>
    %660 = arith.negf %659 : vector<2x32xf32>
    %661 = math.exp %660 : vector<2x32xf32>
    %cst_295 = arith.constant 1.000000e+00 : f32
    %662 = vector.broadcast %cst_295 : f32 to vector<2x32xf32>
    %663 = arith.addf %662, %661 : vector<2x32xf32>
    %664 = arith.divf %662, %663 : vector<2x32xf32>
    %665 = vector.extract_strided_slice %467 {offsets = [10, 0], sizes = [2, 32], strides = [1, 1]} : vector<16x32xf32> to vector<2x32xf32>
    %cst_296 = arith.constant dense<0.000000e+00> : vector<2x32xf32>
    %666 = tpu.matmul %656, %485, %cst_296 {dimension_numbers = #tpu.dot_dimension_numbers<[1], [0], [0], [1], [0, 0, 1, 1], [], []>} : vector<2x32xf32>, vector<32x32xf32>, vector<2x32xf32> -> vector<2x32xf32>
    %667 = arith.addf %665, %666 : vector<2x32xf32>
    %668 = arith.negf %667 : vector<2x32xf32>
    %669 = math.exp %668 : vector<2x32xf32>
    %cst_297 = arith.constant 1.000000e+00 : f32
    %670 = vector.broadcast %cst_297 : f32 to vector<2x32xf32>
    %671 = arith.addf %670, %669 : vector<2x32xf32>
    %672 = arith.divf %670, %671 : vector<2x32xf32>
    %673 = vector.extract_strided_slice %474 {offsets = [10, 0], sizes = [2, 32], strides = [1, 1]} : vector<16x32xf32> to vector<2x32xf32>
    %cst_298 = arith.constant dense<0.000000e+00> : vector<2x32xf32>
    %674 = tpu.matmul %656, %487, %cst_298 {dimension_numbers = #tpu.dot_dimension_numbers<[1], [0], [0], [1], [0, 0, 1, 1], [], []>} : vector<2x32xf32>, vector<32x32xf32>, vector<2x32xf32> -> vector<2x32xf32>
    %675 = arith.addf %673, %674 : vector<2x32xf32>
    %676 = math.tanh %675 : vector<2x32xf32>
    %677 = vector.extract_strided_slice %481 {offsets = [10, 0], sizes = [2, 32], strides = [1, 1]} : vector<16x32xf32> to vector<2x32xf32>
    %cst_299 = arith.constant dense<0.000000e+00> : vector<2x32xf32>
    %678 = tpu.matmul %656, %489, %cst_299 {dimension_numbers = #tpu.dot_dimension_numbers<[1], [0], [0], [1], [0, 0, 1, 1], [], []>} : vector<2x32xf32>, vector<32x32xf32>, vector<2x32xf32> -> vector<2x32xf32>
    %679 = arith.addf %677, %678 : vector<2x32xf32>
    %680 = arith.negf %679 : vector<2x32xf32>
    %681 = math.exp %680 : vector<2x32xf32>
    %cst_300 = arith.constant 1.000000e+00 : f32
    %682 = vector.broadcast %cst_300 : f32 to vector<2x32xf32>
    %683 = arith.addf %682, %681 : vector<2x32xf32>
    %684 = arith.divf %682, %683 : vector<2x32xf32>
    %685 = arith.mulf %672, %654 : vector<2x32xf32>
    %686 = arith.mulf %664, %676 : vector<2x32xf32>
    %687 = arith.addf %685, %686 : vector<2x32xf32>
    %688 = math.tanh %687 : vector<2x32xf32>
    %689 = arith.mulf %684, %688 : vector<2x32xf32>
    %690 = vector.extract_strided_slice %460 {offsets = [12, 0], sizes = [2, 32], strides = [1, 1]} : vector<16x32xf32> to vector<2x32xf32>
    %cst_301 = arith.constant dense<0.000000e+00> : vector<2x32xf32>
    %691 = tpu.matmul %689, %483, %cst_301 {dimension_numbers = #tpu.dot_dimension_numbers<[1], [0], [0], [1], [0, 0, 1, 1], [], []>} : vector<2x32xf32>, vector<32x32xf32>, vector<2x32xf32> -> vector<2x32xf32>
    %692 = arith.addf %690, %691 : vector<2x32xf32>
    %693 = arith.negf %692 : vector<2x32xf32>
    %694 = math.exp %693 : vector<2x32xf32>
    %cst_302 = arith.constant 1.000000e+00 : f32
    %695 = vector.broadcast %cst_302 : f32 to vector<2x32xf32>
    %696 = arith.addf %695, %694 : vector<2x32xf32>
    %697 = arith.divf %695, %696 : vector<2x32xf32>
    %698 = vector.extract_strided_slice %467 {offsets = [12, 0], sizes = [2, 32], strides = [1, 1]} : vector<16x32xf32> to vector<2x32xf32>
    %cst_303 = arith.constant dense<0.000000e+00> : vector<2x32xf32>
    %699 = tpu.matmul %689, %485, %cst_303 {dimension_numbers = #tpu.dot_dimension_numbers<[1], [0], [0], [1], [0, 0, 1, 1], [], []>} : vector<2x32xf32>, vector<32x32xf32>, vector<2x32xf32> -> vector<2x32xf32>
    %700 = arith.addf %698, %699 : vector<2x32xf32>
    %701 = arith.negf %700 : vector<2x32xf32>
    %702 = math.exp %701 : vector<2x32xf32>
    %cst_304 = arith.constant 1.000000e+00 : f32
    %703 = vector.broadcast %cst_304 : f32 to vector<2x32xf32>
    %704 = arith.addf %703, %702 : vector<2x32xf32>
    %705 = arith.divf %703, %704 : vector<2x32xf32>
    %706 = vector.extract_strided_slice %474 {offsets = [12, 0], sizes = [2, 32], strides = [1, 1]} : vector<16x32xf32> to vector<2x32xf32>
    %cst_305 = arith.constant dense<0.000000e+00> : vector<2x32xf32>
    %707 = tpu.matmul %689, %487, %cst_305 {dimension_numbers = #tpu.dot_dimension_numbers<[1], [0], [0], [1], [0, 0, 1, 1], [], []>} : vector<2x32xf32>, vector<32x32xf32>, vector<2x32xf32> -> vector<2x32xf32>
    %708 = arith.addf %706, %707 : vector<2x32xf32>
    %709 = math.tanh %708 : vector<2x32xf32>
    %710 = vector.extract_strided_slice %481 {offsets = [12, 0], sizes = [2, 32], strides = [1, 1]} : vector<16x32xf32> to vector<2x32xf32>
    %cst_306 = arith.constant dense<0.000000e+00> : vector<2x32xf32>
    %711 = tpu.matmul %689, %489, %cst_306 {dimension_numbers = #tpu.dot_dimension_numbers<[1], [0], [0], [1], [0, 0, 1, 1], [], []>} : vector<2x32xf32>, vector<32x32xf32>, vector<2x32xf32> -> vector<2x32xf32>
    %712 = arith.addf %710, %711 : vector<2x32xf32>
    %713 = arith.negf %712 : vector<2x32xf32>
    %714 = math.exp %713 : vector<2x32xf32>
    %cst_307 = arith.constant 1.000000e+00 : f32
    %715 = vector.broadcast %cst_307 : f32 to vector<2x32xf32>
    %716 = arith.addf %715, %714 : vector<2x32xf32>
    %717 = arith.divf %715, %716 : vector<2x32xf32>
    %718 = arith.mulf %705, %687 : vector<2x32xf32>
    %719 = arith.mulf %697, %709 : vector<2x32xf32>
    %720 = arith.addf %718, %719 : vector<2x32xf32>
    %721 = math.tanh %720 : vector<2x32xf32>
    %722 = arith.mulf %717, %721 : vector<2x32xf32>
    %723 = vector.extract_strided_slice %460 {offsets = [14, 0], sizes = [2, 32], strides = [1, 1]} : vector<16x32xf32> to vector<2x32xf32>
    %cst_308 = arith.constant dense<0.000000e+00> : vector<2x32xf32>
    %724 = tpu.matmul %722, %483, %cst_308 {dimension_numbers = #tpu.dot_dimension_numbers<[1], [0], [0], [1], [0, 0, 1, 1], [], []>} : vector<2x32xf32>, vector<32x32xf32>, vector<2x32xf32> -> vector<2x32xf32>
    %725 = arith.addf %723, %724 : vector<2x32xf32>
    %726 = arith.negf %725 : vector<2x32xf32>
    %727 = math.exp %726 : vector<2x32xf32>
    %cst_309 = arith.constant 1.000000e+00 : f32
    %728 = vector.broadcast %cst_309 : f32 to vector<2x32xf32>
    %729 = arith.addf %728, %727 : vector<2x32xf32>
    %730 = arith.divf %728, %729 : vector<2x32xf32>
    %731 = vector.extract_strided_slice %467 {offsets = [14, 0], sizes = [2, 32], strides = [1, 1]} : vector<16x32xf32> to vector<2x32xf32>
    %cst_310 = arith.constant dense<0.000000e+00> : vector<2x32xf32>
    %732 = tpu.matmul %722, %485, %cst_310 {dimension_numbers = #tpu.dot_dimension_numbers<[1], [0], [0], [1], [0, 0, 1, 1], [], []>} : vector<2x32xf32>, vector<32x32xf32>, vector<2x32xf32> -> vector<2x32xf32>
    %733 = arith.addf %731, %732 : vector<2x32xf32>
    %734 = arith.negf %733 : vector<2x32xf32>
    %735 = math.exp %734 : vector<2x32xf32>
    %cst_311 = arith.constant 1.000000e+00 : f32
    %736 = vector.broadcast %cst_311 : f32 to vector<2x32xf32>
    %737 = arith.addf %736, %735 : vector<2x32xf32>
    %738 = arith.divf %736, %737 : vector<2x32xf32>
    %739 = vector.extract_strided_slice %474 {offsets = [14, 0], sizes = [2, 32], strides = [1, 1]} : vector<16x32xf32> to vector<2x32xf32>
    %cst_312 = arith.constant dense<0.000000e+00> : vector<2x32xf32>
    %740 = tpu.matmul %722, %487, %cst_312 {dimension_numbers = #tpu.dot_dimension_numbers<[1], [0], [0], [1], [0, 0, 1, 1], [], []>} : vector<2x32xf32>, vector<32x32xf32>, vector<2x32xf32> -> vector<2x32xf32>
    %741 = arith.addf %739, %740 : vector<2x32xf32>
    %742 = math.tanh %741 : vector<2x32xf32>
    %743 = vector.extract_strided_slice %481 {offsets = [14, 0], sizes = [2, 32], strides = [1, 1]} : vector<16x32xf32> to vector<2x32xf32>
    %cst_313 = arith.constant dense<0.000000e+00> : vector<2x32xf32>
    %744 = tpu.matmul %722, %489, %cst_313 {dimension_numbers = #tpu.dot_dimension_numbers<[1], [0], [0], [1], [0, 0, 1, 1], [], []>} : vector<2x32xf32>, vector<32x32xf32>, vector<2x32xf32> -> vector<2x32xf32>
    %745 = arith.addf %743, %744 : vector<2x32xf32>
    %746 = arith.negf %745 : vector<2x32xf32>
    %747 = math.exp %746 : vector<2x32xf32>
    %cst_314 = arith.constant 1.000000e+00 : f32
    %748 = vector.broadcast %cst_314 : f32 to vector<2x32xf32>
    %749 = arith.addf %748, %747 : vector<2x32xf32>
    %750 = arith.divf %748, %749 : vector<2x32xf32>
    %751 = arith.mulf %738, %720 : vector<2x32xf32>
    %752 = arith.mulf %730, %742 : vector<2x32xf32>
    %753 = arith.addf %751, %752 : vector<2x32xf32>
    %754 = math.tanh %753 : vector<2x32xf32>
    %755 = arith.mulf %750, %754 : vector<2x32xf32>
    %c1_315 = arith.constant 1 : index
    %c0_316 = arith.constant 0 : index
    %c0_317 = arith.constant 0 : index
    %756 = vector.load %arg9[%c1_315, %c0_316, %c0_317] : memref<2x2x32xf32, #tpu.memory_space<vmem>>, vector<1x2x32xf32>
    %757 = vector.shape_cast %756 : vector<1x2x32xf32> to vector<2x32xf32>
    %758 = vector.shape_cast %755 : vector<2x32xf32> to vector<1x2x32xf32>
    tpu.vector_store %arg9[%c1_315, %c0_316, %c0_317], %758 {strides = array<i32>} : memref<2x2x32xf32, #tpu.memory_space<vmem>>, vector<1x2x32xf32>,
    %c1_318 = arith.constant 1 : index
    %c0_319 = arith.constant 0 : index
    %c0_320 = arith.constant 0 : index
    %759 = vector.load %arg10[%c1_318, %c0_319, %c0_320] : memref<2x2x32xf32, #tpu.memory_space<vmem>>, vector<1x2x32xf32>
    %760 = vector.shape_cast %759 : vector<1x2x32xf32> to vector<2x32xf32>
    %761 = vector.shape_cast %753 : vector<2x32xf32> to vector<1x2x32xf32>
    tpu.vector_store %arg10[%c1_318, %c0_319, %c0_320], %761 {strides = array<i32>} : memref<2x2x32xf32, #tpu.memory_space<vmem>>, vector<1x2x32xf32>,
    return
  }
  func.func @transform_1(%arg0: i32, %arg1: memref<16xi32, #tpu.memory_space<smem>>) -> (i32, i32, i32) {
    %c0_i32 = arith.constant 0 : i32
    %c0_i32_0 = arith.constant 0 : i32
    %c0_i32_1 = arith.constant 0 : i32
    %c0_i32_2 = arith.constant 0 : i32
    return %c0_i32, %c0_i32_0, %c0_i32_1 : i32, i32, i32
  }
  func.func @transform_2(%arg0: i32, %arg1: memref<16xi32, #tpu.memory_space<smem>>) -> (i32, i32, i32) {
    %c0_i32 = arith.constant 0 : i32
    %c0_i32_0 = arith.constant 0 : i32
    %c0_i32_1 = arith.constant 0 : i32
    %c0_i32_2 = arith.constant 0 : i32
    return %c0_i32, %c0_i32_0, %c0_i32_1 : i32, i32, i32
  }
  func.func @transform_3(%arg0: i32, %arg1: memref<16xi32, #tpu.memory_space<smem>>) -> (i32, i32, i32) {
    %c0_i32 = arith.constant 0 : i32
    %c0_i32_0 = arith.constant 0 : i32
    %c0_i32_1 = arith.constant 0 : i32
    %c0_i32_2 = arith.constant 0 : i32
    return %c0_i32, %c0_i32_0, %c0_i32_1 : i32, i32, i32
  }
  func.func @transform_4(%arg0: i32, %arg1: memref<16xi32, #tpu.memory_space<smem>>) -> (i32, i32, i32) {
    %c0_i32 = arith.constant 0 : i32
    %c0_i32_0 = arith.constant 0 : i32
    %c0_i32_1 = arith.constant 0 : i32
    %c0_i32_2 = arith.constant 0 : i32
    return %c0_i32, %c0_i32_0, %c0_i32_1 : i32, i32, i32
  }
  func.func @transform_5(%arg0: i32, %arg1: memref<16xi32, #tpu.memory_space<smem>>) -> (i32, i32, i32) {
    %c0_i32 = arith.constant 0 : i32
    %c0_i32_0 = arith.constant 0 : i32
    %c0_i32_1 = arith.constant 0 : i32
    %c0_i32_2 = arith.constant 0 : i32
    return %c0_i32, %c0_i32_0, %c0_i32_1 : i32, i32, i32
  }
  func.func @transform_6(%arg0: i32, %arg1: memref<16xi32, #tpu.memory_space<smem>>) -> (i32, i32, i32) {
    %c0_i32 = arith.constant 0 : i32
    %c0_i32_0 = arith.constant 0 : i32
    %c0_i32_1 = arith.constant 0 : i32
    %c0_i32_2 = arith.constant 0 : i32
    return %c0_i32, %c0_i32_0, %c0_i32_1 : i32, i32, i32
  }
  func.func @transform_7(%arg0: i32, %arg1: memref<16xi32, #tpu.memory_space<smem>>) -> (i32, i32, i32) {
    %c0_i32 = arith.constant 0 : i32
    %c0_i32_0 = arith.constant 0 : i32
    %c0_i32_1 = arith.constant 0 : i32
    %c0_i32_2 = arith.constant 0 : i32
    return %c0_i32, %c0_i32_0, %c0_i32_1 : i32, i32, i32
  }
  func.func @transform_8(%arg0: i32, %arg1: memref<16xi32, #tpu.memory_space<smem>>) -> (i32, i32, i32) {
    %c0_i32 = arith.constant 0 : i32
    %c0_i32_0 = arith.constant 0 : i32
    %c0_i32_1 = arith.constant 0 : i32
    %c0_i32_2 = arith.constant 0 : i32
    return %c0_i32, %c0_i32_0, %c0_i32_1 : i32, i32, i32
  }
}

</mosaic_0001>

<llo_original>
// kernel: tpu_custom_call.1
$region0: #{tpu_custom_call.1}
  #allocation0 [shape = 'u32[]', space=smem, size = 0x4, offset = 0x4, fixed_abs, tag = 'smem constant byte address 0x4 - core index']
  #allocation1 [shape = 'u32[144,128]{1,0:T(1,128)}', space=vmem, size = 0x12000, scoped, tag = 'internal scratch']
  #allocation2 [shape = 'f32[16,16]{1,0:T(8,128)}', space=vmem, size = 0x2000, scoped, tag = 'scratch operand']
  #allocation3 [shape = 's32[16]{0}', space=sflag, size = 0x40, scoped, tag = 'scratch operand']
  #allocation4 [shape = 's32[1]{0}', space=sflag, size = 0x4, scoped, tag = 'scoped memory for tpu_custom_call.1']
  #allocation5 [shape = 'u8[512]{0}', space=smem, size = 0x200, scoped, tag = 'prefetched SMEM operand 0']
  #allocation17 [shape = 's32[]', space=sflag, size = 0x4, offset = 0, fixed_abs, tag = 'sflag constant byte address 0x0 - dummy sync flag']
  #allocation18 [shape = 's32[]', space=sflag, size = 0x4, offset = 0, fixed_abs, tag = 'sflag constant byte address 0x0 - dummy sync flag']
  #allocation19 [shape = 's32[]', space=sflag, size = 0x4, offset = 0, fixed_abs, tag = 'sflag constant byte address 0x0 - dummy sync flag']
  #allocation20 [shape = 's32[]', space=sflag, size = 0x4, offset = 0, fixed_abs, tag = 'sflag constant byte address 0x0 - dummy sync flag']
  #allocation21 [shape = 's32[]', space=sflag, size = 0x4, offset = 0, fixed_abs, tag = 'sflag constant byte address 0x0 - dummy sync flag']
  #allocation22 [shape = 's32[]', space=sflag, size = 0x4, offset = 0, fixed_abs, tag = 'sflag constant byte address 0x0 - dummy sync flag']
  #allocation23 [shape = 's32[]', space=sflag, size = 0x4, offset = 0, fixed_abs, tag = 'sflag constant byte address 0x0 - dummy sync flag']
  #allocation24 [shape = 's32[]', space=sflag, size = 0x4, offset = 0, fixed_abs, tag = 'sflag constant byte address 0x0 - dummy sync flag']
  #allocation25 [shape = 's32[]', space=sflag, size = 0x4, offset = 0, fixed_abs, tag = 'sflag constant byte address 0x0 - dummy sync flag']
  #allocation26 [shape = 's32[]', space=sflag, size = 0x4, offset = 0, fixed_abs, tag = 'sflag constant byte address 0x0 - dummy sync flag']
  #allocation27 [shape = 's32[]', space=sflag, size = 0x4, offset = 0, fixed_abs, tag = 'sflag constant byte address 0x0 - dummy sync flag']
  #allocation28 [shape = 's32[]', space=sflag, size = 0x4, offset = 0, fixed_abs, tag = 'sflag constant byte address 0x0 - dummy sync flag']
  #allocation29 [shape = 's32[]', space=sflag, size = 0x4, offset = 0, fixed_abs, tag = 'sflag constant byte address 0x0 - dummy sync flag']
  #allocation30 [shape = 's32[]', space=sflag, size = 0x4, offset = 0, fixed_abs, tag = 'sflag constant byte address 0x0 - dummy sync flag']
  #allocation31 [shape = 's32[]', space=sflag, size = 0x4, offset = 0, fixed_abs, tag = 'sflag constant byte address 0x0 - dummy sync flag']
  #allocation32 [shape = 's32[]', space=sflag, size = 0x4, offset = 0, fixed_abs, tag = 'sflag constant byte address 0x0 - dummy sync flag']
  %s0 = inlined_call_operand.vmem [shape: s32[16], index: 0, kind: input, shape index: {}]
  %s1 = inlined_call_operand.vmem [shape: f32[20,16], index: 1, kind: input, shape index: {}]
  %s2 = inlined_call_operand.hbm [shape: f32[4,16,32], index: 2, kind: input, shape index: {}]
  %s3 = inlined_call_operand.hbm [shape: f32[4,32,32], index: 3, kind: input, shape index: {}]
  %s4 = inlined_call_operand.vmem [shape: f32[4,1,32], index: 4, kind: input, shape index: {}]
  %s5 = inlined_call_operand.hbm [shape: f32[4,32,32], index: 5, kind: input, shape index: {}]
  %s6 = inlined_call_operand.hbm [shape: f32[4,32,32], index: 6, kind: input, shape index: {}]
  %s7 = inlined_call_operand.vmem [shape: f32[4,1,32], index: 7, kind: input, shape index: {}]
  %s8 = inlined_call_operand.hbm [shape: f32[2,2,32], index: 8, kind: output, shape index: {0}]
  %s9 = inlined_call_operand.hbm [shape: f32[2,2,32], index: 9, kind: output, shape index: {1}]
  %10 = xla_tuple %s8, %s9
  %s11 = sld [smem:[#allocation0]]
  $region538: #{tpu_custom_call.1} parent=0
    _
  %s13 = ssub.s32 1, %s11
  %s14 = scalar_select 0, %s13, %s11
  %s15 = sshll.u32 %s0, 4
  %s16 = int_to_ptr.vmem [resolvable:$true] %s15
  %18 = dma.vmem_to_smem %s16, 16, [#allocation5], [#allocation4]
  %19 = dma.done [#allocation4], 16
  %20 = sfence
  $region1: #{tpu_custom_call.1} parent=0
    #allocation6 [shape = 'u8[32768]{0}', space=vmem, size = 0x8000, scoped, tag = 'input window, operand 2, single buffered']
    #allocation7 [shape = 's32[1]{0}', space=sflag, size = 0x4, scoped, tag = 'scoped memory for tpu_custom_call.1']
    #allocation8 [shape = 's32[1]{0}', space=sflag, size = 0x4, scoped, tag = 'scoped memory for tpu_custom_call.1']
    #allocation9 [shape = 'u8[65536]{0}', space=vmem, size = 0x10000, scoped, tag = 'input window, operand 3, single buffered']
    #allocation10 [shape = 's32[1]{0}', space=sflag, size = 0x4, scoped, tag = 'scoped memory for tpu_custom_call.1']
    #allocation11 [shape = 'u8[65536]{0}', space=vmem, size = 0x10000, scoped, tag = 'input window, operand 5, single buffered']
    #allocation12 [shape = 'u8[65536]{0}', space=vmem, size = 0x10000, scoped, tag = 'input window, operand 6, single buffered']
    #allocation13 [shape = 's32[1]{0}', space=sflag, size = 0x4, scoped, tag = 'scoped memory for tpu_custom_call.1']
    #allocation14 [shape = 'u8[2048]{0}', space=vmem, size = 0x800, scoped, tag = 'output window, operand 0, single buffered']
    #allocation15 [shape = 'u8[2048]{0}', space=vmem, size = 0x800, scoped, tag = 'output window, operand 1, single buffered']
    #allocation16 [shape = 's32[1]{0}', space=sflag, size = 0x4, scoped, tag = 'scoped memory for tpu_custom_call.1']
    %21 = vsyncpa [#allocation7], 0
    %22 = vsyncpa [#allocation10], 0
    %23 = vsyncpa [#allocation13], 0
    %24 = vsyncpa [#allocation8], 0
    %25 = vsyncpa [#allocation16], 0
    // Predicated region
    $region2: #{tpu_custom_call.1} parent=1 // pred_check
      _
    $region3: #{tpu_custom_call.1} parent=1 // pred_check_branch
      %27 = sbr.rel (0) target = $region5
    $region4: #{tpu_custom_call.1} parent=1 // pred_region
      %s29 = ssub.s32 1024, 1024
      %30 = vsyncadd [#allocation7], %s29
      %s31 = sshll.u32 [#allocation6], 4
      %s32 = int_to_ptr.vmem [resolvable:$true] %s31
      %37 = dma.hbm_to_vmem [thread:$0]  %s2, 1024, %s32, [#allocation7], 128, 128, 8
    $region5: #{tpu_custom_call.1} parent=1 // pred_fallthru
      _
    // Predicated region
    $region6: #{tpu_custom_call.1} parent=1 // pred_check
      _
    $region7: #{tpu_custom_call.1} parent=1 // pred_check_branch
      %39 = sbr.rel (0) target = $region9
    $region8: #{tpu_custom_call.1} parent=1 // pred_region
      %s41 = ssub.s32 2048, 2048
      %42 = vsyncadd [#allocation10], %s41
      %s43 = sshll.u32 [#allocation9], 4
      %s44 = int_to_ptr.vmem [resolvable:$true] %s43
      %49 = dma.hbm_to_vmem [thread:$0]  %s3, 2048, %s44, [#allocation10], 128, 128, 8
    $region9: #{tpu_custom_call.1} parent=1 // pred_fallthru
      _
    // Predicated region
    $region10: #{tpu_custom_call.1} parent=1 // pred_check
      _
    $region11: #{tpu_custom_call.1} parent=1 // pred_check_branch
      %51 = sbr.rel (0) target = $region13
    $region12: #{tpu_custom_call.1} parent=1 // pred_region
      _
    $region13: #{tpu_custom_call.1} parent=1 // pred_fallthru
      _
    // Predicated region
    $region14: #{tpu_custom_call.1} parent=1 // pred_check
      _
    $region15: #{tpu_custom_call.1} parent=1 // pred_check_branch
      %53 = sbr.rel (0) target = $region17
    $region16: #{tpu_custom_call.1} parent=1 // pred_region
      %s55 = ssub.s32 2048, 2048
      %56 = vsyncadd [#allocation10], %s55
      %s57 = sshll.u32 [#allocation11], 4
      %s58 = int_to_ptr.vmem [resolvable:$true] %s57
      %63 = dma.hbm_to_vmem [thread:$0]  %s5, 2048, %s58, [#allocation10], 128, 128, 8
    $region17: #{tpu_custom_call.1} parent=1 // pred_fallthru
      _
    // Predicated region
    $region18: #{tpu_custom_call.1} parent=1 // pred_check
      _
    $region19: #{tpu_custom_call.1} parent=1 // pred_check_branch
      %65 = sbr.rel (0) target = $region21
    $region20: #{tpu_custom_call.1} parent=1 // pred_region
      %s67 = ssub.s32 2048, 2048
      %68 = vsyncadd [#allocation13], %s67
      %s69 = sshll.u32 [#allocation12], 4
      %s70 = int_to_ptr.vmem [resolvable:$true] %s69
      %75 = dma.hbm_to_vmem [thread:$0]  %s6, 2048, %s70, [#allocation13], 128, 128, 8
    $region21: #{tpu_custom_call.1} parent=1 // pred_fallthru
      _
    // Predicated region
    $region22: #{tpu_custom_call.1} parent=1 // pred_check
      _
    $region23: #{tpu_custom_call.1} parent=1 // pred_check_branch
      %77 = sbr.rel (0) target = $region25
    $region24: #{tpu_custom_call.1} parent=1 // pred_region
      _
    $region25: #{tpu_custom_call.1} parent=1 // pred_fallthru
      _
    // Predicated region
    $region26: #{tpu_custom_call.1} parent=1 // pred_check
      _
    $region27: #{tpu_custom_call.1} parent=1 // pred_check_branch
      %79 = sbr.rel (0) target = $region29
    $region28: #{tpu_custom_call.1} parent=1 // pred_region
      %80 = dma.done [#allocation7], 1024
    $region29: #{tpu_custom_call.1} parent=1 // pred_fallthru
      _
    // Predicated region
    $region30: #{tpu_custom_call.1} parent=1 // pred_check
      _
    $region31: #{tpu_custom_call.1} parent=1 // pred_check_branch
      %82 = sbr.rel (0) target = $region33
    $region32: #{tpu_custom_call.1} parent=1 // pred_region
      %83 = dma.done [#allocation10], 2048
    $region33: #{tpu_custom_call.1} parent=1 // pred_fallthru
      _
    // Predicated region
    $region34: #{tpu_custom_call.1} parent=1 // pred_check
      _
    $region35: #{tpu_custom_call.1} parent=1 // pred_check_branch
      %85 = sbr.rel (0) target = $region37
    $region36: #{tpu_custom_call.1} parent=1 // pred_region
      %86 = dma.done [#allocation10], 2048
    $region37: #{tpu_custom_call.1} parent=1 // pred_fallthru
      _
    // Predicated region
    $region38: #{tpu_custom_call.1} parent=1 // pred_check
      _
    $region39: #{tpu_custom_call.1} parent=1 // pred_check_branch
      %88 = sbr.rel (0) target = $region41
    $region40: #{tpu_custom_call.1} parent=1 // pred_region
      %89 = dma.done [#allocation13], 2048
    $region41: #{tpu_custom_call.1} parent=1 // pred_fallthru
      _
    %s90 = sld [smem:[#allocation5]]
    %s91 = scalar_lea.vmem %s1, %s90
    %p93 = scmp.lt.u32.totalorder 1, 8
    %p94 = pneg %p93
    // Predicated region
    $region42: #{tpu_custom_call.1} parent=1 // pred_check
      _
    $region43: #{tpu_custom_call.1} parent=1 // pred_check_branch
      %96 = sbr.rel (%p93) target = $region45
    $region44: #{tpu_custom_call.1} parent=1 // pred_region
      %s112 = sand.u32 1, 7
      %p113 = scmp.eq.s32.totalorder %s112, 0
      %p114 = pneg %p113
      // Predicated region
      $region57: #{tpu_custom_call.1} parent=44 // pred_check
        _
      $region58: #{tpu_custom_call.1} parent=44 // pred_check_branch
        %116 = sbr.rel (%p113) target = $region60
      $region59: #{tpu_custom_call.1} parent=44 // pred_region
        %s117 = sand.u32 1, 7
        %s118 = ssub.s32 1, %s117
        %s119 = scalar_lea.vmem %s91, %s118
        %s120 = ssub.s32 1, %s117
        %s121 = scalar_lea.vmem [#allocation2], %s120
        %s122 = sshll.u32 1, %s117
        %s123 = ssub.s32 %s122, 1
        loop: start=0, step=1, limit=1
        $region61: #{tpu_custom_call.1} parent=59 // loop_pre_header
          _
        $region62: #{tpu_custom_call.1} parent=59 // loop_header
          %s125 = sphi 0, %s129
          %p126 = scmp.ge.s32.totalorder %s125, 1
          %s130 = sphi %s119, %s119
          %s131 = sphi %s121, %s121
        $region63: #{tpu_custom_call.1} parent=59 // loop_header_branch
          %128 = sbr.rel (%p126) target = $region67
        $region64: #{tpu_custom_call.1} parent=59 // loop_body
          %v132 = vld [vmem:[%s130] sm:%s123]
          %133 = vst [vmem:[%s131] sm:%s123] %v132
        $region65: #{tpu_custom_call.1} parent=59 // loop_footer
          %s129 = sadd.s32 1, %s125
        $region66: #{tpu_custom_call.1} parent=59 // loop_footer_branch
          %124 = sbr.rel target = $region62
        $region67: #{tpu_custom_call.1} parent=59 // loop_exit
          _
      $region60: #{tpu_custom_call.1} parent=44 // pred_fallthru
        _
    $region45: #{tpu_custom_call.1} parent=1 // pred_fallthru
      _
    // Predicated region
    $region46: #{tpu_custom_call.1} parent=1 // pred_check
      %p97 = pneg %p93
    $region47: #{tpu_custom_call.1} parent=1 // pred_check_branch
      %99 = sbr.rel (%p97) target = $region49
    $region48: #{tpu_custom_call.1} parent=1 // pred_region
      %s100 = sshll.u32 1, 1
      %s101 = ssub.s32 %s100, 1
      loop: start=0, step=1, limit=1
      $region50: #{tpu_custom_call.1} parent=48 // loop_pre_header
        _
      $region51: #{tpu_custom_call.1} parent=48 // loop_header
        %s103 = sphi 0, %s107
        %p104 = scmp.ge.s32.totalorder %s103, 1
        %s108 = sphi %s91, %s91
        %s109 = sphi [#allocation2], [#allocation2]
      $region52: #{tpu_custom_call.1} parent=48 // loop_header_branch
        %106 = sbr.rel (%p104) target = $region56
      $region53: #{tpu_custom_call.1} parent=48 // loop_body
        %v110 = vld [vmem:[%s108] sm:%s101]
        %111 = vst [vmem:[%s109] sm:%s101] %v110
      $region54: #{tpu_custom_call.1} parent=48 // loop_footer
        %s107 = sadd.s32 1, %s103
      $region55: #{tpu_custom_call.1} parent=48 // loop_footer_branch
        %102 = sbr.rel target = $region51
      $region56: #{tpu_custom_call.1} parent=48 // loop_exit
        _
    $region49: #{tpu_custom_call.1} parent=1 // pred_fallthru
      _
    // Predicated region
    $region68: #{tpu_custom_call.1} parent=1 // pred_check
      _
    $region69: #{tpu_custom_call.1} parent=1 // pred_check_branch
      %136 = sbr.rel (0) target = $region71
    $region70: #{tpu_custom_call.1} parent=1 // pred_region
      %137 = vsyncadd [#allocation3], 16
    $region71: #{tpu_custom_call.1} parent=1 // pred_fallthru
      _
    %s138 = sld [smem:[#allocation5 + $0x1]]
    %s139 = scalar_lea.vmem %s1, %s138
    %s140 = scalar_lea.vmem [#allocation2], 1
    %s141 = scalar_lea.sflag [#allocation3], 1
    %p143 = scmp.lt.u32.totalorder 1, 8
    %p144 = pneg %p143
    // Predicated region
    $region72: #{tpu_custom_call.1} parent=1 // pred_check
      _
    $region73: #{tpu_custom_call.1} parent=1 // pred_check_branch
      %146 = sbr.rel (%p143) target = $region75
    $region74: #{tpu_custom_call.1} parent=1 // pred_region
      %s162 = sand.u32 1, 7
      %p163 = scmp.eq.s32.totalorder %s162, 0
      %p164 = pneg %p163
      // Predicated region
      $region87: #{tpu_custom_call.1} parent=74 // pred_check
        _
      $region88: #{tpu_custom_call.1} parent=74 // pred_check_branch
        %166 = sbr.rel (%p163) target = $region90
      $region89: #{tpu_custom_call.1} parent=74 // pred_region
        %s167 = sand.u32 1, 7
        %s168 = ssub.s32 1, %s167
        %s169 = scalar_lea.vmem %s139, %s168
        %s170 = ssub.s32 1, %s167
        %s171 = scalar_lea.vmem %s140, %s170 [#allocation2]
        %s172 = sshll.u32 1, %s167
        %s173 = ssub.s32 %s172, 1
        loop: start=0, step=1, limit=1
        $region91: #{tpu_custom_call.1} parent=89 // loop_pre_header
          _
        $region92: #{tpu_custom_call.1} parent=89 // loop_header
          %s175 = sphi 0, %s179
          %p176 = scmp.ge.s32.totalorder %s175, 1
          %s180 = sphi %s169, %s169
          %s181 = sphi %s171, %s171
        $region93: #{tpu_custom_call.1} parent=89 // loop_header_branch
          %178 = sbr.rel (%p176) target = $region97
        $region94: #{tpu_custom_call.1} parent=89 // loop_body
          %v182 = vld [vmem:[%s180] sm:%s173]
          %183 = vst [vmem:[%s181] sm:%s173] %v182
        $region95: #{tpu_custom_call.1} parent=89 // loop_footer
          %s179 = sadd.s32 1, %s175
        $region96: #{tpu_custom_call.1} parent=89 // loop_footer_branch
          %174 = sbr.rel target = $region92
        $region97: #{tpu_custom_call.1} parent=89 // loop_exit
          _
      $region90: #{tpu_custom_call.1} parent=74 // pred_fallthru
        _
    $region75: #{tpu_custom_call.1} parent=1 // pred_fallthru
      _
    // Predicated region
    $region76: #{tpu_custom_call.1} parent=1 // pred_check
      %p147 = pneg %p143
    $region77: #{tpu_custom_call.1} parent=1 // pred_check_branch
      %149 = sbr.rel (%p147) target = $region79
    $region78: #{tpu_custom_call.1} parent=1 // pred_region
      %s150 = sshll.u32 1, 1
      %s151 = ssub.s32 %s150, 1
      loop: start=0, step=1, limit=1
      $region80: #{tpu_custom_call.1} parent=78 // loop_pre_header
        _
      $region81: #{tpu_custom_call.1} parent=78 // loop_header
        %s153 = sphi 0, %s157
        %p154 = scmp.ge.s32.totalorder %s153, 1
        %s158 = sphi %s139, %s139
        %s159 = sphi %s140, %s140
      $region82: #{tpu_custom_call.1} parent=78 // loop_header_branch
        %156 = sbr.rel (%p154) target = $region86
      $region83: #{tpu_custom_call.1} parent=78 // loop_body
        %v160 = vld [vmem:[%s158] sm:%s151]
        %161 = vst [vmem:[%s159] sm:%s151] %v160
      $region84: #{tpu_custom_call.1} parent=78 // loop_footer
        %s157 = sadd.s32 1, %s153
      $region85: #{tpu_custom_call.1} parent=78 // loop_footer_branch
        %152 = sbr.rel target = $region81
      $region86: #{tpu_custom_call.1} parent=78 // loop_exit
        _
    $region79: #{tpu_custom_call.1} parent=1 // pred_fallthru
      _
    // Predicated region
    $region98: #{tpu_custom_call.1} parent=1 // pred_check
      _
    $region99: #{tpu_custom_call.1} parent=1 // pred_check_branch
      %186 = sbr.rel (0) target = $region101
    $region100: #{tpu_custom_call.1} parent=1 // pred_region
      %187 = vsyncadd %s141, 16
    $region101: #{tpu_custom_call.1} parent=1 // pred_fallthru
      _
    %s188 = sld [smem:[#allocation5 + $0x2]]
    %s189 = scalar_lea.vmem %s1, %s188
    %s190 = scalar_lea.vmem [#allocation2], 2
    %s191 = scalar_lea.sflag [#allocation3], 2
    %p193 = scmp.lt.u32.totalorder 1, 8
    %p194 = pneg %p193
    // Predicated region
    $region102: #{tpu_custom_call.1} parent=1 // pred_check
      _
    $region103: #{tpu_custom_call.1} parent=1 // pred_check_branch
      %196 = sbr.rel (%p193) target = $region105
    $region104: #{tpu_custom_call.1} parent=1 // pred_region
      %s212 = sand.u32 1, 7
      %p213 = scmp.eq.s32.totalorder %s212, 0
      %p214 = pneg %p213
      // Predicated region
      $region117: #{tpu_custom_call.1} parent=104 // pred_check
        _
      $region118: #{tpu_custom_call.1} parent=104 // pred_check_branch
        %216 = sbr.rel (%p213) target = $region120
      $region119: #{tpu_custom_call.1} parent=104 // pred_region
        %s217 = sand.u32 1, 7
        %s218 = ssub.s32 1, %s217
        %s219 = scalar_lea.vmem %s189, %s218
        %s220 = ssub.s32 1, %s217
        %s221 = scalar_lea.vmem %s190, %s220 [#allocation2]
        %s222 = sshll.u32 1, %s217
        %s223 = ssub.s32 %s222, 1
        loop: start=0, step=1, limit=1
        $region121: #{tpu_custom_call.1} parent=119 // loop_pre_header
          _
        $region122: #{tpu_custom_call.1} parent=119 // loop_header
          %s225 = sphi 0, %s229
          %p226 = scmp.ge.s32.totalorder %s225, 1
          %s230 = sphi %s219, %s219
          %s231 = sphi %s221, %s221
        $region123: #{tpu_custom_call.1} parent=119 // loop_header_branch
          %228 = sbr.rel (%p226) target = $region127
        $region124: #{tpu_custom_call.1} parent=119 // loop_body
          %v232 = vld [vmem:[%s230] sm:%s223]
          %233 = vst [vmem:[%s231] sm:%s223] %v232
        $region125: #{tpu_custom_call.1} parent=119 // loop_footer
          %s229 = sadd.s32 1, %s225
        $region126: #{tpu_custom_call.1} parent=119 // loop_footer_branch
          %224 = sbr.rel target = $region122
        $region127: #{tpu_custom_call.1} parent=119 // loop_exit
          _
      $region120: #{tpu_custom_call.1} parent=104 // pred_fallthru
        _
    $region105: #{tpu_custom_call.1} parent=1 // pred_fallthru
      _
    // Predicated region
    $region106: #{tpu_custom_call.1} parent=1 // pred_check
      %p197 = pneg %p193
    $region107: #{tpu_custom_call.1} parent=1 // pred_check_branch
      %199 = sbr.rel (%p197) target = $region109
    $region108: #{tpu_custom_call.1} parent=1 // pred_region
      %s200 = sshll.u32 1, 1
      %s201 = ssub.s32 %s200, 1
      loop: start=0, step=1, limit=1
      $region110: #{tpu_custom_call.1} parent=108 // loop_pre_header
        _
      $region111: #{tpu_custom_call.1} parent=108 // loop_header
        %s203 = sphi 0, %s207
        %p204 = scmp.ge.s32.totalorder %s203, 1
        %s208 = sphi %s189, %s189
        %s209 = sphi %s190, %s190
      $region112: #{tpu_custom_call.1} parent=108 // loop_header_branch
        %206 = sbr.rel (%p204) target = $region116
      $region113: #{tpu_custom_call.1} parent=108 // loop_body
        %v210 = vld [vmem:[%s208] sm:%s201]
        %211 = vst [vmem:[%s209] sm:%s201] %v210
      $region114: #{tpu_custom_call.1} parent=108 // loop_footer
        %s207 = sadd.s32 1, %s203
      $region115: #{tpu_custom_call.1} parent=108 // loop_footer_branch
        %202 = sbr.rel target = $region111
      $region116: #{tpu_custom_call.1} parent=108 // loop_exit
        _
    $region109: #{tpu_custom_call.1} parent=1 // pred_fallthru
      _
    // Predicated region
    $region128: #{tpu_custom_call.1} parent=1 // pred_check
      _
    $region129: #{tpu_custom_call.1} parent=1 // pred_check_branch
      %236 = sbr.rel (0) target = $region131
    $region130: #{tpu_custom_call.1} parent=1 // pred_region
      %237 = vsyncadd %s191, 16
    $region131: #{tpu_custom_call.1} parent=1 // pred_fallthru
      _
    %s238 = sld [smem:[#allocation5 + $0x3]]
    %s239 = scalar_lea.vmem %s1, %s238
    %s240 = scalar_lea.vmem [#allocation2], 3
    %s241 = scalar_lea.sflag [#allocation3], 3
    %p243 = scmp.lt.u32.totalorder 1, 8
    %p244 = pneg %p243
    // Predicated region
    $region132: #{tpu_custom_call.1} parent=1 // pred_check
      _
    $region133: #{tpu_custom_call.1} parent=1 // pred_check_branch
      %246 = sbr.rel (%p243) target = $region135
    $region134: #{tpu_custom_call.1} parent=1 // pred_region
      %s262 = sand.u32 1, 7
      %p263 = scmp.eq.s32.totalorder %s262, 0
      %p264 = pneg %p263
      // Predicated region
      $region147: #{tpu_custom_call.1} parent=134 // pred_check
        _
      $region148: #{tpu_custom_call.1} parent=134 // pred_check_branch
        %266 = sbr.rel (%p263) target = $region150
      $region149: #{tpu_custom_call.1} parent=134 // pred_region
        %s267 = sand.u32 1, 7
        %s268 = ssub.s32 1, %s267
        %s269 = scalar_lea.vmem %s239, %s268
        %s270 = ssub.s32 1, %s267
        %s271 = scalar_lea.vmem %s240, %s270 [#allocation2]
        %s272 = sshll.u32 1, %s267
        %s273 = ssub.s32 %s272, 1
        loop: start=0, step=1, limit=1
        $region151: #{tpu_custom_call.1} parent=149 // loop_pre_header
          _
        $region152: #{tpu_custom_call.1} parent=149 // loop_header
          %s275 = sphi 0, %s279
          %p276 = scmp.ge.s32.totalorder %s275, 1
          %s280 = sphi %s269, %s269
          %s281 = sphi %s271, %s271
        $region153: #{tpu_custom_call.1} parent=149 // loop_header_branch
          %278 = sbr.rel (%p276) target = $region157
        $region154: #{tpu_custom_call.1} parent=149 // loop_body
          %v282 = vld [vmem:[%s280] sm:%s273]
          %283 = vst [vmem:[%s281] sm:%s273] %v282
        $region155: #{tpu_custom_call.1} parent=149 // loop_footer
          %s279 = sadd.s32 1, %s275
        $region156: #{tpu_custom_call.1} parent=149 // loop_footer_branch
          %274 = sbr.rel target = $region152
        $region157: #{tpu_custom_call.1} parent=149 // loop_exit
          _
      $region150: #{tpu_custom_call.1} parent=134 // pred_fallthru
        _
    $region135: #{tpu_custom_call.1} parent=1 // pred_fallthru
      _
    // Predicated region
    $region136: #{tpu_custom_call.1} parent=1 // pred_check
      %p247 = pneg %p243
    $region137: #{tpu_custom_call.1} parent=1 // pred_check_branch
      %249 = sbr.rel (%p247) target = $region139
    $region138: #{tpu_custom_call.1} parent=1 // pred_region
      %s250 = sshll.u32 1, 1
      %s251 = ssub.s32 %s250, 1
      loop: start=0, step=1, limit=1
      $region140: #{tpu_custom_call.1} parent=138 // loop_pre_header
        _
      $region141: #{tpu_custom_call.1} parent=138 // loop_header
        %s253 = sphi 0, %s257
        %p254 = scmp.ge.s32.totalorder %s253, 1
        %s258 = sphi %s239, %s239
        %s259 = sphi %s240, %s240
      $region142: #{tpu_custom_call.1} parent=138 // loop_header_branch
        %256 = sbr.rel (%p254) target = $region146
      $region143: #{tpu_custom_call.1} parent=138 // loop_body
        %v260 = vld [vmem:[%s258] sm:%s251]
        %261 = vst [vmem:[%s259] sm:%s251] %v260
      $region144: #{tpu_custom_call.1} parent=138 // loop_footer
        %s257 = sadd.s32 1, %s253
      $region145: #{tpu_custom_call.1} parent=138 // loop_footer_branch
        %252 = sbr.rel target = $region141
      $region146: #{tpu_custom_call.1} parent=138 // loop_exit
        _
    $region139: #{tpu_custom_call.1} parent=1 // pred_fallthru
      _
    // Predicated region
    $region158: #{tpu_custom_call.1} parent=1 // pred_check
      _
    $region159: #{tpu_custom_call.1} parent=1 // pred_check_branch
      %286 = sbr.rel (0) target = $region161
    $region160: #{tpu_custom_call.1} parent=1 // pred_region
      %287 = vsyncadd %s241, 16
    $region161: #{tpu_custom_call.1} parent=1 // pred_fallthru
      _
    %s288 = sld [smem:[#allocation5 + $0x4]]
    %s289 = scalar_lea.vmem %s1, %s288
    %s290 = scalar_lea.vmem [#allocation2], 4
    %s291 = scalar_lea.sflag [#allocation3], 4
    %p293 = scmp.lt.u32.totalorder 1, 8
    %p294 = pneg %p293
    // Predicated region
    $region162: #{tpu_custom_call.1} parent=1 // pred_check
      _
    $region163: #{tpu_custom_call.1} parent=1 // pred_check_branch
      %296 = sbr.rel (%p293) target = $region165
    $region164: #{tpu_custom_call.1} parent=1 // pred_region
      %s312 = sand.u32 1, 7
      %p313 = scmp.eq.s32.totalorder %s312, 0
      %p314 = pneg %p313
      // Predicated region
      $region177: #{tpu_custom_call.1} parent=164 // pred_check
        _
      $region178: #{tpu_custom_call.1} parent=164 // pred_check_branch
        %316 = sbr.rel (%p313) target = $region180
      $region179: #{tpu_custom_call.1} parent=164 // pred_region
        %s317 = sand.u32 1, 7
        %s318 = ssub.s32 1, %s317
        %s319 = scalar_lea.vmem %s289, %s318
        %s320 = ssub.s32 1, %s317
        %s321 = scalar_lea.vmem %s290, %s320 [#allocation2]
        %s322 = sshll.u32 1, %s317
        %s323 = ssub.s32 %s322, 1
        loop: start=0, step=1, limit=1
        $region181: #{tpu_custom_call.1} parent=179 // loop_pre_header
          _
        $region182: #{tpu_custom_call.1} parent=179 // loop_header
          %s325 = sphi 0, %s329
          %p326 = scmp.ge.s32.totalorder %s325, 1
          %s330 = sphi %s319, %s319
          %s331 = sphi %s321, %s321
        $region183: #{tpu_custom_call.1} parent=179 // loop_header_branch
          %328 = sbr.rel (%p326) target = $region187
        $region184: #{tpu_custom_call.1} parent=179 // loop_body
          %v332 = vld [vmem:[%s330] sm:%s323]
          %333 = vst [vmem:[%s331] sm:%s323] %v332
        $region185: #{tpu_custom_call.1} parent=179 // loop_footer
          %s329 = sadd.s32 1, %s325
        $region186: #{tpu_custom_call.1} parent=179 // loop_footer_branch
          %324 = sbr.rel target = $region182
        $region187: #{tpu_custom_call.1} parent=179 // loop_exit
          _
      $region180: #{tpu_custom_call.1} parent=164 // pred_fallthru
        _
    $region165: #{tpu_custom_call.1} parent=1 // pred_fallthru
      _
    // Predicated region
    $region166: #{tpu_custom_call.1} parent=1 // pred_check
      %p297 = pneg %p293
    $region167: #{tpu_custom_call.1} parent=1 // pred_check_branch
      %299 = sbr.rel (%p297) target = $region169
    $region168: #{tpu_custom_call.1} parent=1 // pred_region
      %s300 = sshll.u32 1, 1
      %s301 = ssub.s32 %s300, 1
      loop: start=0, step=1, limit=1
      $region170: #{tpu_custom_call.1} parent=168 // loop_pre_header
        _
      $region171: #{tpu_custom_call.1} parent=168 // loop_header
        %s303 = sphi 0, %s307
        %p304 = scmp.ge.s32.totalorder %s303, 1
        %s308 = sphi %s289, %s289
        %s309 = sphi %s290, %s290
      $region172: #{tpu_custom_call.1} parent=168 // loop_header_branch
        %306 = sbr.rel (%p304) target = $region176
      $region173: #{tpu_custom_call.1} parent=168 // loop_body
        %v310 = vld [vmem:[%s308] sm:%s301]
        %311 = vst [vmem:[%s309] sm:%s301] %v310
      $region174: #{tpu_custom_call.1} parent=168 // loop_footer
        %s307 = sadd.s32 1, %s303
      $region175: #{tpu_custom_call.1} parent=168 // loop_footer_branch
        %302 = sbr.rel target = $region171
      $region176: #{tpu_custom_call.1} parent=168 // loop_exit
        _
    $region169: #{tpu_custom_call.1} parent=1 // pred_fallthru
      _
    // Predicated region
    $region188: #{tpu_custom_call.1} parent=1 // pred_check
      _
    $region189: #{tpu_custom_call.1} parent=1 // pred_check_branch
      %336 = sbr.rel (0) target = $region191
    $region190: #{tpu_custom_call.1} parent=1 // pred_region
      %337 = vsyncadd %s291, 16
    $region191: #{tpu_custom_call.1} parent=1 // pred_fallthru
      _
    %s338 = sld [smem:[#allocation5 + $0x5]]
    %s339 = scalar_lea.vmem %s1, %s338
    %s340 = scalar_lea.vmem [#allocation2], 5
    %s341 = scalar_lea.sflag [#allocation3], 5
    %p343 = scmp.lt.u32.totalorder 1, 8
    %p344 = pneg %p343
    // Predicated region
    $region192: #{tpu_custom_call.1} parent=1 // pred_check
      _
    $region193: #{tpu_custom_call.1} parent=1 // pred_check_branch
      %346 = sbr.rel (%p343) target = $region195
    $region194: #{tpu_custom_call.1} parent=1 // pred_region
      %s362 = sand.u32 1, 7
      %p363 = scmp.eq.s32.totalorder %s362, 0
      %p364 = pneg %p363
      // Predicated region
      $region207: #{tpu_custom_call.1} parent=194 // pred_check
        _
      $region208: #{tpu_custom_call.1} parent=194 // pred_check_branch
        %366 = sbr.rel (%p363) target = $region210
      $region209: #{tpu_custom_call.1} parent=194 // pred_region
        %s367 = sand.u32 1, 7
        %s368 = ssub.s32 1, %s367
        %s369 = scalar_lea.vmem %s339, %s368
        %s370 = ssub.s32 1, %s367
        %s371 = scalar_lea.vmem %s340, %s370 [#allocation2]
        %s372 = sshll.u32 1, %s367
        %s373 = ssub.s32 %s372, 1
        loop: start=0, step=1, limit=1
        $region211: #{tpu_custom_call.1} parent=209 // loop_pre_header
          _
        $region212: #{tpu_custom_call.1} parent=209 // loop_header
          %s375 = sphi 0, %s379
          %p376 = scmp.ge.s32.totalorder %s375, 1
          %s380 = sphi %s369, %s369
          %s381 = sphi %s371, %s371
        $region213: #{tpu_custom_call.1} parent=209 // loop_header_branch
          %378 = sbr.rel (%p376) target = $region217
        $region214: #{tpu_custom_call.1} parent=209 // loop_body
          %v382 = vld [vmem:[%s380] sm:%s373]
          %383 = vst [vmem:[%s381] sm:%s373] %v382
        $region215: #{tpu_custom_call.1} parent=209 // loop_footer
          %s379 = sadd.s32 1, %s375
        $region216: #{tpu_custom_call.1} parent=209 // loop_footer_branch
          %374 = sbr.rel target = $region212
        $region217: #{tpu_custom_call.1} parent=209 // loop_exit
          _
      $region210: #{tpu_custom_call.1} parent=194 // pred_fallthru
        _
    $region195: #{tpu_custom_call.1} parent=1 // pred_fallthru
      _
    // Predicated region
    $region196: #{tpu_custom_call.1} parent=1 // pred_check
      %p347 = pneg %p343
    $region197: #{tpu_custom_call.1} parent=1 // pred_check_branch
      %349 = sbr.rel (%p347) target = $region199
    $region198: #{tpu_custom_call.1} parent=1 // pred_region
      %s350 = sshll.u32 1, 1
      %s351 = ssub.s32 %s350, 1
      loop: start=0, step=1, limit=1
      $region200: #{tpu_custom_call.1} parent=198 // loop_pre_header
        _
      $region201: #{tpu_custom_call.1} parent=198 // loop_header
        %s353 = sphi 0, %s357
        %p354 = scmp.ge.s32.totalorder %s353, 1
        %s358 = sphi %s339, %s339
        %s359 = sphi %s340, %s340
      $region202: #{tpu_custom_call.1} parent=198 // loop_header_branch
        %356 = sbr.rel (%p354) target = $region206
      $region203: #{tpu_custom_call.1} parent=198 // loop_body
        %v360 = vld [vmem:[%s358] sm:%s351]
        %361 = vst [vmem:[%s359] sm:%s351] %v360
      $region204: #{tpu_custom_call.1} parent=198 // loop_footer
        %s357 = sadd.s32 1, %s353
      $region205: #{tpu_custom_call.1} parent=198 // loop_footer_branch
        %352 = sbr.rel target = $region201
      $region206: #{tpu_custom_call.1} parent=198 // loop_exit
        _
    $region199: #{tpu_custom_call.1} parent=1 // pred_fallthru
      _
    // Predicated region
    $region218: #{tpu_custom_call.1} parent=1 // pred_check
      _
    $region219: #{tpu_custom_call.1} parent=1 // pred_check_branch
      %386 = sbr.rel (0) target = $region221
    $region220: #{tpu_custom_call.1} parent=1 // pred_region
      %387 = vsyncadd %s341, 16
    $region221: #{tpu_custom_call.1} parent=1 // pred_fallthru
      _
    %s388 = sld [smem:[#allocation5 + $0x6]]
    %s389 = scalar_lea.vmem %s1, %s388
    %s390 = scalar_lea.vmem [#allocation2], 6
    %s391 = scalar_lea.sflag [#allocation3], 6
    %p393 = scmp.lt.u32.totalorder 1, 8
    %p394 = pneg %p393
    // Predicated region
    $region222: #{tpu_custom_call.1} parent=1 // pred_check
      _
    $region223: #{tpu_custom_call.1} parent=1 // pred_check_branch
      %396 = sbr.rel (%p393) target = $region225
    $region224: #{tpu_custom_call.1} parent=1 // pred_region
      %s412 = sand.u32 1, 7
      %p413 = scmp.eq.s32.totalorder %s412, 0
      %p414 = pneg %p413
      // Predicated region
      $region237: #{tpu_custom_call.1} parent=224 // pred_check
        _
      $region238: #{tpu_custom_call.1} parent=224 // pred_check_branch
        %416 = sbr.rel (%p413) target = $region240
      $region239: #{tpu_custom_call.1} parent=224 // pred_region
        %s417 = sand.u32 1, 7
        %s418 = ssub.s32 1, %s417
        %s419 = scalar_lea.vmem %s389, %s418
        %s420 = ssub.s32 1, %s417
        %s421 = scalar_lea.vmem %s390, %s420 [#allocation2]
        %s422 = sshll.u32 1, %s417
        %s423 = ssub.s32 %s422, 1
        loop: start=0, step=1, limit=1
        $region241: #{tpu_custom_call.1} parent=239 // loop_pre_header
          _
        $region242: #{tpu_custom_call.1} parent=239 // loop_header
          %s425 = sphi 0, %s429
          %p426 = scmp.ge.s32.totalorder %s425, 1
          %s430 = sphi %s419, %s419
          %s431 = sphi %s421, %s421
        $region243: #{tpu_custom_call.1} parent=239 // loop_header_branch
          %428 = sbr.rel (%p426) target = $region247
        $region244: #{tpu_custom_call.1} parent=239 // loop_body
          %v432 = vld [vmem:[%s430] sm:%s423]
          %433 = vst [vmem:[%s431] sm:%s423] %v432
        $region245: #{tpu_custom_call.1} parent=239 // loop_footer
          %s429 = sadd.s32 1, %s425
        $region246: #{tpu_custom_call.1} parent=239 // loop_footer_branch
          %424 = sbr.rel target = $region242
        $region247: #{tpu_custom_call.1} parent=239 // loop_exit
          _
      $region240: #{tpu_custom_call.1} parent=224 // pred_fallthru
        _
    $region225: #{tpu_custom_call.1} parent=1 // pred_fallthru
      _
    // Predicated region
    $region226: #{tpu_custom_call.1} parent=1 // pred_check
      %p397 = pneg %p393
    $region227: #{tpu_custom_call.1} parent=1 // pred_check_branch
      %399 = sbr.rel (%p397) target = $region229
    $region228: #{tpu_custom_call.1} parent=1 // pred_region
      %s400 = sshll.u32 1, 1
      %s401 = ssub.s32 %s400, 1
      loop: start=0, step=1, limit=1
      $region230: #{tpu_custom_call.1} parent=228 // loop_pre_header
        _
      $region231: #{tpu_custom_call.1} parent=228 // loop_header
        %s403 = sphi 0, %s407
        %p404 = scmp.ge.s32.totalorder %s403, 1
        %s408 = sphi %s389, %s389
        %s409 = sphi %s390, %s390
      $region232: #{tpu_custom_call.1} parent=228 // loop_header_branch
        %406 = sbr.rel (%p404) target = $region236
      $region233: #{tpu_custom_call.1} parent=228 // loop_body
        %v410 = vld [vmem:[%s408] sm:%s401]
        %411 = vst [vmem:[%s409] sm:%s401] %v410
      $region234: #{tpu_custom_call.1} parent=228 // loop_footer
        %s407 = sadd.s32 1, %s403
      $region235: #{tpu_custom_call.1} parent=228 // loop_footer_branch
        %402 = sbr.rel target = $region231
      $region236: #{tpu_custom_call.1} parent=228 // loop_exit
        _
    $region229: #{tpu_custom_call.1} parent=1 // pred_fallthru
      _
    // Predicated region
    $region248: #{tpu_custom_call.1} parent=1 // pred_check
      _
    $region249: #{tpu_custom_call.1} parent=1 // pred_check_branch
      %436 = sbr.rel (0) target = $region251
    $region250: #{tpu_custom_call.1} parent=1 // pred_region
      %437 = vsyncadd %s391, 16
    $region251: #{tpu_custom_call.1} parent=1 // pred_fallthru
      _
    %s438 = sld [smem:[#allocation5 + $0x7]]
    %s439 = scalar_lea.vmem %s1, %s438
    %s440 = scalar_lea.vmem [#allocation2], 7
    %s441 = scalar_lea.sflag [#allocation3], 7
    %p443 = scmp.lt.u32.totalorder 1, 8
    %p444 = pneg %p443
    // Predicated region
    $region252: #{tpu_custom_call.1} parent=1 // pred_check
      _
    $region253: #{tpu_custom_call.1} parent=1 // pred_check_branch
      %446 = sbr.rel (%p443) target = $region255
    $region254: #{tpu_custom_call.1} parent=1 // pred_region
      %s462 = sand.u32 1, 7
      %p463 = scmp.eq.s32.totalorder %s462, 0
      %p464 = pneg %p463
      // Predicated region
      $region267: #{tpu_custom_call.1} parent=254 // pred_check
        _
      $region268: #{tpu_custom_call.1} parent=254 // pred_check_branch
        %466 = sbr.rel (%p463) target = $region270
      $region269: #{tpu_custom_call.1} parent=254 // pred_region
        %s467 = sand.u32 1, 7
        %s468 = ssub.s32 1, %s467
        %s469 = scalar_lea.vmem %s439, %s468
        %s470 = ssub.s32 1, %s467
        %s471 = scalar_lea.vmem %s440, %s470 [#allocation2]
        %s472 = sshll.u32 1, %s467
        %s473 = ssub.s32 %s472, 1
        loop: start=0, step=1, limit=1
        $region271: #{tpu_custom_call.1} parent=269 // loop_pre_header
          _
        $region272: #{tpu_custom_call.1} parent=269 // loop_header
          %s475 = sphi 0, %s479
          %p476 = scmp.ge.s32.totalorder %s475, 1
          %s480 = sphi %s469, %s469
          %s481 = sphi %s471, %s471
        $region273: #{tpu_custom_call.1} parent=269 // loop_header_branch
          %478 = sbr.rel (%p476) target = $region277
        $region274: #{tpu_custom_call.1} parent=269 // loop_body
          %v482 = vld [vmem:[%s480] sm:%s473]
          %483 = vst [vmem:[%s481] sm:%s473] %v482
        $region275: #{tpu_custom_call.1} parent=269 // loop_footer
          %s479 = sadd.s32 1, %s475
        $region276: #{tpu_custom_call.1} parent=269 // loop_footer_branch
          %474 = sbr.rel target = $region272
        $region277: #{tpu_custom_call.1} parent=269 // loop_exit
          _
      $region270: #{tpu_custom_call.1} parent=254 // pred_fallthru
        _
    $region255: #{tpu_custom_call.1} parent=1 // pred_fallthru
      _
    // Predicated region
    $region256: #{tpu_custom_call.1} parent=1 // pred_check
      %p447 = pneg %p443
    $region257: #{tpu_custom_call.1} parent=1 // pred_check_branch
      %449 = sbr.rel (%p447) target = $region259
    $region258: #{tpu_custom_call.1} parent=1 // pred_region
      %s450 = sshll.u32 1, 1
      %s451 = ssub.s32 %s450, 1
      loop: start=0, step=1, limit=1
      $region260: #{tpu_custom_call.1} parent=258 // loop_pre_header
        _
      $region261: #{tpu_custom_call.1} parent=258 // loop_header
        %s453 = sphi 0, %s457
        %p454 = scmp.ge.s32.totalorder %s453, 1
        %s458 = sphi %s439, %s439
        %s459 = sphi %s440, %s440
      $region262: #{tpu_custom_call.1} parent=258 // loop_header_branch
        %456 = sbr.rel (%p454) target = $region266
      $region263: #{tpu_custom_call.1} parent=258 // loop_body
        %v460 = vld [vmem:[%s458] sm:%s451]
        %461 = vst [vmem:[%s459] sm:%s451] %v460
      $region264: #{tpu_custom_call.1} parent=258 // loop_footer
        %s457 = sadd.s32 1, %s453
      $region265: #{tpu_custom_call.1} parent=258 // loop_footer_branch
        %452 = sbr.rel target = $region261
      $region266: #{tpu_custom_call.1} parent=258 // loop_exit
        _
    $region259: #{tpu_custom_call.1} parent=1 // pred_fallthru
      _
    // Predicated region
    $region278: #{tpu_custom_call.1} parent=1 // pred_check
      _
    $region279: #{tpu_custom_call.1} parent=1 // pred_check_branch
      %486 = sbr.rel (0) target = $region281
    $region280: #{tpu_custom_call.1} parent=1 // pred_region
      %487 = vsyncadd %s441, 16
    $region281: #{tpu_custom_call.1} parent=1 // pred_fallthru
      _
    %s488 = sld [smem:[#allocation5 + $0x8]]
    %s489 = scalar_lea.vmem %s1, %s488
    %s490 = scalar_lea.vmem [#allocation2], 8
    %s491 = scalar_lea.sflag [#allocation3], 8
    %p493 = scmp.lt.u32.totalorder 1, 8
    %p494 = pneg %p493
    // Predicated region
    $region282: #{tpu_custom_call.1} parent=1 // pred_check
      _
    $region283: #{tpu_custom_call.1} parent=1 // pred_check_branch
      %496 = sbr.rel (%p493) target = $region285
    $region284: #{tpu_custom_call.1} parent=1 // pred_region
      %s512 = sand.u32 1, 7
      %p513 = scmp.eq.s32.totalorder %s512, 0
      %p514 = pneg %p513
      // Predicated region
      $region297: #{tpu_custom_call.1} parent=284 // pred_check
        _
      $region298: #{tpu_custom_call.1} parent=284 // pred_check_branch
        %516 = sbr.rel (%p513) target = $region300
      $region299: #{tpu_custom_call.1} parent=284 // pred_region
        %s517 = sand.u32 1, 7
        %s518 = ssub.s32 1, %s517
        %s519 = scalar_lea.vmem %s489, %s518
        %s520 = ssub.s32 1, %s517
        %s521 = scalar_lea.vmem %s490, %s520 [#allocation2]
        %s522 = sshll.u32 1, %s517
        %s523 = ssub.s32 %s522, 1
        loop: start=0, step=1, limit=1
        $region301: #{tpu_custom_call.1} parent=299 // loop_pre_header
          _
        $region302: #{tpu_custom_call.1} parent=299 // loop_header
          %s525 = sphi 0, %s529
          %p526 = scmp.ge.s32.totalorder %s525, 1
          %s530 = sphi %s519, %s519
          %s531 = sphi %s521, %s521
        $region303: #{tpu_custom_call.1} parent=299 // loop_header_branch
          %528 = sbr.rel (%p526) target = $region307
        $region304: #{tpu_custom_call.1} parent=299 // loop_body
          %v532 = vld [vmem:[%s530] sm:%s523]
          %533 = vst [vmem:[%s531] sm:%s523] %v532
        $region305: #{tpu_custom_call.1} parent=299 // loop_footer
          %s529 = sadd.s32 1, %s525
        $region306: #{tpu_custom_call.1} parent=299 // loop_footer_branch
          %524 = sbr.rel target = $region302
        $region307: #{tpu_custom_call.1} parent=299 // loop_exit
          _
      $region300: #{tpu_custom_call.1} parent=284 // pred_fallthru
        _
    $region285: #{tpu_custom_call.1} parent=1 // pred_fallthru
      _
    // Predicated region
    $region286: #{tpu_custom_call.1} parent=1 // pred_check
      %p497 = pneg %p493
    $region287: #{tpu_custom_call.1} parent=1 // pred_check_branch
      %499 = sbr.rel (%p497) target = $region289
    $region288: #{tpu_custom_call.1} parent=1 // pred_region
      %s500 = sshll.u32 1, 1
      %s501 = ssub.s32 %s500, 1
      loop: start=0, step=1, limit=1
      $region290: #{tpu_custom_call.1} parent=288 // loop_pre_header
        _
      $region291: #{tpu_custom_call.1} parent=288 // loop_header
        %s503 = sphi 0, %s507
        %p504 = scmp.ge.s32.totalorder %s503, 1
        %s508 = sphi %s489, %s489
        %s509 = sphi %s490, %s490
      $region292: #{tpu_custom_call.1} parent=288 // loop_header_branch
        %506 = sbr.rel (%p504) target = $region296
      $region293: #{tpu_custom_call.1} parent=288 // loop_body
        %v510 = vld [vmem:[%s508] sm:%s501]
        %511 = vst [vmem:[%s509] sm:%s501] %v510
      $region294: #{tpu_custom_call.1} parent=288 // loop_footer
        %s507 = sadd.s32 1, %s503
      $region295: #{tpu_custom_call.1} parent=288 // loop_footer_branch
        %502 = sbr.rel target = $region291
      $region296: #{tpu_custom_call.1} parent=288 // loop_exit
        _
    $region289: #{tpu_custom_call.1} parent=1 // pred_fallthru
      _
    // Predicated region
    $region308: #{tpu_custom_call.1} parent=1 // pred_check
      _
    $region309: #{tpu_custom_call.1} parent=1 // pred_check_branch
      %536 = sbr.rel (0) target = $region311
    $region310: #{tpu_custom_call.1} parent=1 // pred_region
      %537 = vsyncadd %s491, 16
    $region311: #{tpu_custom_call.1} parent=1 // pred_fallthru
      _
    %s538 = sld [smem:[#allocation5 + $0x9]]
    %s539 = scalar_lea.vmem %s1, %s538
    %s540 = scalar_lea.vmem [#allocation2], 9
    %s541 = scalar_lea.sflag [#allocation3], 9
    %p543 = scmp.lt.u32.totalorder 1, 8
    %p544 = pneg %p543
    // Predicated region
    $region312: #{tpu_custom_call.1} parent=1 // pred_check
      _
    $region313: #{tpu_custom_call.1} parent=1 // pred_check_branch
      %546 = sbr.rel (%p543) target = $region315
    $region314: #{tpu_custom_call.1} parent=1 // pred_region
      %s562 = sand.u32 1, 7
      %p563 = scmp.eq.s32.totalorder %s562, 0
      %p564 = pneg %p563
      // Predicated region
      $region327: #{tpu_custom_call.1} parent=314 // pred_check
        _
      $region328: #{tpu_custom_call.1} parent=314 // pred_check_branch
        %566 = sbr.rel (%p563) target = $region330
      $region329: #{tpu_custom_call.1} parent=314 // pred_region
        %s567 = sand.u32 1, 7
        %s568 = ssub.s32 1, %s567
        %s569 = scalar_lea.vmem %s539, %s568
        %s570 = ssub.s32 1, %s567
        %s571 = scalar_lea.vmem %s540, %s570 [#allocation2]
        %s572 = sshll.u32 1, %s567
        %s573 = ssub.s32 %s572, 1
        loop: start=0, step=1, limit=1
        $region331: #{tpu_custom_call.1} parent=329 // loop_pre_header
          _
        $region332: #{tpu_custom_call.1} parent=329 // loop_header
          %s575 = sphi 0, %s579
          %p576 = scmp.ge.s32.totalorder %s575, 1
          %s580 = sphi %s569, %s569
          %s581 = sphi %s571, %s571
        $region333: #{tpu_custom_call.1} parent=329 // loop_header_branch
          %578 = sbr.rel (%p576) target = $region337
        $region334: #{tpu_custom_call.1} parent=329 // loop_body
          %v582 = vld [vmem:[%s580] sm:%s573]
          %583 = vst [vmem:[%s581] sm:%s573] %v582
        $region335: #{tpu_custom_call.1} parent=329 // loop_footer
          %s579 = sadd.s32 1, %s575
        $region336: #{tpu_custom_call.1} parent=329 // loop_footer_branch
          %574 = sbr.rel target = $region332
        $region337: #{tpu_custom_call.1} parent=329 // loop_exit
          _
      $region330: #{tpu_custom_call.1} parent=314 // pred_fallthru
        _
    $region315: #{tpu_custom_call.1} parent=1 // pred_fallthru
      _
    // Predicated region
    $region316: #{tpu_custom_call.1} parent=1 // pred_check
      %p547 = pneg %p543
    $region317: #{tpu_custom_call.1} parent=1 // pred_check_branch
      %549 = sbr.rel (%p547) target = $region319
    $region318: #{tpu_custom_call.1} parent=1 // pred_region
      %s550 = sshll.u32 1, 1
      %s551 = ssub.s32 %s550, 1
      loop: start=0, step=1, limit=1
      $region320: #{tpu_custom_call.1} parent=318 // loop_pre_header
        _
      $region321: #{tpu_custom_call.1} parent=318 // loop_header
        %s553 = sphi 0, %s557
        %p554 = scmp.ge.s32.totalorder %s553, 1
        %s558 = sphi %s539, %s539
        %s559 = sphi %s540, %s540
      $region322: #{tpu_custom_call.1} parent=318 // loop_header_branch
        %556 = sbr.rel (%p554) target = $region326
      $region323: #{tpu_custom_call.1} parent=318 // loop_body
        %v560 = vld [vmem:[%s558] sm:%s551]
        %561 = vst [vmem:[%s559] sm:%s551] %v560
      $region324: #{tpu_custom_call.1} parent=318 // loop_footer
        %s557 = sadd.s32 1, %s553
      $region325: #{tpu_custom_call.1} parent=318 // loop_footer_branch
        %552 = sbr.rel target = $region321
      $region326: #{tpu_custom_call.1} parent=318 // loop_exit
        _
    $region319: #{tpu_custom_call.1} parent=1 // pred_fallthru
      _
    // Predicated region
    $region338: #{tpu_custom_call.1} parent=1 // pred_check
      _
    $region339: #{tpu_custom_call.1} parent=1 // pred_check_branch
      %586 = sbr.rel (0) target = $region341
    $region340: #{tpu_custom_call.1} parent=1 // pred_region
      %587 = vsyncadd %s541, 16
    $region341: #{tpu_custom_call.1} parent=1 // pred_fallthru
      _
    %s588 = sld [smem:[#allocation5 + $0xa]]
    %s589 = scalar_lea.vmem %s1, %s588
    %s590 = scalar_lea.vmem [#allocation2], 10
    %s591 = scalar_lea.sflag [#allocation3], 10
    %p593 = scmp.lt.u32.totalorder 1, 8
    %p594 = pneg %p593
    // Predicated region
    $region342: #{tpu_custom_call.1} parent=1 // pred_check
      _
    $region343: #{tpu_custom_call.1} parent=1 // pred_check_branch
      %596 = sbr.rel (%p593) target = $region345
    $region344: #{tpu_custom_call.1} parent=1 // pred_region
      %s612 = sand.u32 1, 7
      %p613 = scmp.eq.s32.totalorder %s612, 0
      %p614 = pneg %p613
      // Predicated region
      $region357: #{tpu_custom_call.1} parent=344 // pred_check
        _
      $region358: #{tpu_custom_call.1} parent=344 // pred_check_branch
        %616 = sbr.rel (%p613) target = $region360
      $region359: #{tpu_custom_call.1} parent=344 // pred_region
        %s617 = sand.u32 1, 7
        %s618 = ssub.s32 1, %s617
        %s619 = scalar_lea.vmem %s589, %s618
        %s620 = ssub.s32 1, %s617
        %s621 = scalar_lea.vmem %s590, %s620 [#allocation2]
        %s622 = sshll.u32 1, %s617
        %s623 = ssub.s32 %s622, 1
        loop: start=0, step=1, limit=1
        $region361: #{tpu_custom_call.1} parent=359 // loop_pre_header
          _
        $region362: #{tpu_custom_call.1} parent=359 // loop_header
          %s625 = sphi 0, %s629
          %p626 = scmp.ge.s32.totalorder %s625, 1
          %s630 = sphi %s619, %s619
          %s631 = sphi %s621, %s621
        $region363: #{tpu_custom_call.1} parent=359 // loop_header_branch
          %628 = sbr.rel (%p626) target = $region367
        $region364: #{tpu_custom_call.1} parent=359 // loop_body
          %v632 = vld [vmem:[%s630] sm:%s623]
          %633 = vst [vmem:[%s631] sm:%s623] %v632
        $region365: #{tpu_custom_call.1} parent=359 // loop_footer
          %s629 = sadd.s32 1, %s625
        $region366: #{tpu_custom_call.1} parent=359 // loop_footer_branch
          %624 = sbr.rel target = $region362
        $region367: #{tpu_custom_call.1} parent=359 // loop_exit
          _
      $region360: #{tpu_custom_call.1} parent=344 // pred_fallthru
        _
    $region345: #{tpu_custom_call.1} parent=1 // pred_fallthru
      _
    // Predicated region
    $region346: #{tpu_custom_call.1} parent=1 // pred_check
      %p597 = pneg %p593
    $region347: #{tpu_custom_call.1} parent=1 // pred_check_branch
      %599 = sbr.rel (%p597) target = $region349
    $region348: #{tpu_custom_call.1} parent=1 // pred_region
      %s600 = sshll.u32 1, 1
      %s601 = ssub.s32 %s600, 1
      loop: start=0, step=1, limit=1
      $region350: #{tpu_custom_call.1} parent=348 // loop_pre_header
        _
      $region351: #{tpu_custom_call.1} parent=348 // loop_header
        %s603 = sphi 0, %s607
        %p604 = scmp.ge.s32.totalorder %s603, 1
        %s608 = sphi %s589, %s589
        %s609 = sphi %s590, %s590
      $region352: #{tpu_custom_call.1} parent=348 // loop_header_branch
        %606 = sbr.rel (%p604) target = $region356
      $region353: #{tpu_custom_call.1} parent=348 // loop_body
        %v610 = vld [vmem:[%s608] sm:%s601]
        %611 = vst [vmem:[%s609] sm:%s601] %v610
      $region354: #{tpu_custom_call.1} parent=348 // loop_footer
        %s607 = sadd.s32 1, %s603
      $region355: #{tpu_custom_call.1} parent=348 // loop_footer_branch
        %602 = sbr.rel target = $region351
      $region356: #{tpu_custom_call.1} parent=348 // loop_exit
        _
    $region349: #{tpu_custom_call.1} parent=1 // pred_fallthru
      _
    // Predicated region
    $region368: #{tpu_custom_call.1} parent=1 // pred_check
      _
    $region369: #{tpu_custom_call.1} parent=1 // pred_check_branch
      %636 = sbr.rel (0) target = $region371
    $region370: #{tpu_custom_call.1} parent=1 // pred_region
      %637 = vsyncadd %s591, 16
    $region371: #{tpu_custom_call.1} parent=1 // pred_fallthru
      _
    %s638 = sld [smem:[#allocation5 + $0xb]]
    %s639 = scalar_lea.vmem %s1, %s638
    %s640 = scalar_lea.vmem [#allocation2], 11
    %s641 = scalar_lea.sflag [#allocation3], 11
    %p643 = scmp.lt.u32.totalorder 1, 8
    %p644 = pneg %p643
    // Predicated region
    $region372: #{tpu_custom_call.1} parent=1 // pred_check
      _
    $region373: #{tpu_custom_call.1} parent=1 // pred_check_branch
      %646 = sbr.rel (%p643) target = $region375
    $region374: #{tpu_custom_call.1} parent=1 // pred_region
      %s662 = sand.u32 1, 7
      %p663 = scmp.eq.s32.totalorder %s662, 0
      %p664 = pneg %p663
      // Predicated region
      $region387: #{tpu_custom_call.1} parent=374 // pred_check
        _
      $region388: #{tpu_custom_call.1} parent=374 // pred_check_branch
        %666 = sbr.rel (%p663) target = $region390
      $region389: #{tpu_custom_call.1} parent=374 // pred_region
        %s667 = sand.u32 1, 7
        %s668 = ssub.s32 1, %s667
        %s669 = scalar_lea.vmem %s639, %s668
        %s670 = ssub.s32 1, %s667
        %s671 = scalar_lea.vmem %s640, %s670 [#allocation2]
        %s672 = sshll.u32 1, %s667
        %s673 = ssub.s32 %s672, 1
        loop: start=0, step=1, limit=1
        $region391: #{tpu_custom_call.1} parent=389 // loop_pre_header
          _
        $region392: #{tpu_custom_call.1} parent=389 // loop_header
          %s675 = sphi 0, %s679
          %p676 = scmp.ge.s32.totalorder %s675, 1
          %s680 = sphi %s669, %s669
          %s681 = sphi %s671, %s671
        $region393: #{tpu_custom_call.1} parent=389 // loop_header_branch
          %678 = sbr.rel (%p676) target = $region397
        $region394: #{tpu_custom_call.1} parent=389 // loop_body
          %v682 = vld [vmem:[%s680] sm:%s673]
          %683 = vst [vmem:[%s681] sm:%s673] %v682
        $region395: #{tpu_custom_call.1} parent=389 // loop_footer
          %s679 = sadd.s32 1, %s675
        $region396: #{tpu_custom_call.1} parent=389 // loop_footer_branch
          %674 = sbr.rel target = $region392
        $region397: #{tpu_custom_call.1} parent=389 // loop_exit
          _
      $region390: #{tpu_custom_call.1} parent=374 // pred_fallthru
        _
    $region375: #{tpu_custom_call.1} parent=1 // pred_fallthru
      _
    // Predicated region
    $region376: #{tpu_custom_call.1} parent=1 // pred_check
      %p647 = pneg %p643
    $region377: #{tpu_custom_call.1} parent=1 // pred_check_branch
      %649 = sbr.rel (%p647) target = $region379
    $region378: #{tpu_custom_call.1} parent=1 // pred_region
      %s650 = sshll.u32 1, 1
      %s651 = ssub.s32 %s650, 1
      loop: start=0, step=1, limit=1
      $region380: #{tpu_custom_call.1} parent=378 // loop_pre_header
        _
      $region381: #{tpu_custom_call.1} parent=378 // loop_header
        %s653 = sphi 0, %s657
        %p654 = scmp.ge.s32.totalorder %s653, 1
        %s658 = sphi %s639, %s639
        %s659 = sphi %s640, %s640
      $region382: #{tpu_custom_call.1} parent=378 // loop_header_branch
        %656 = sbr.rel (%p654) target = $region386
      $region383: #{tpu_custom_call.1} parent=378 // loop_body
        %v660 = vld [vmem:[%s658] sm:%s651]
        %661 = vst [vmem:[%s659] sm:%s651] %v660
      $region384: #{tpu_custom_call.1} parent=378 // loop_footer
        %s657 = sadd.s32 1, %s653
      $region385: #{tpu_custom_call.1} parent=378 // loop_footer_branch
        %652 = sbr.rel target = $region381
      $region386: #{tpu_custom_call.1} parent=378 // loop_exit
        _
    $region379: #{tpu_custom_call.1} parent=1 // pred_fallthru
      _
    // Predicated region
    $region398: #{tpu_custom_call.1} parent=1 // pred_check
      _
    $region399: #{tpu_custom_call.1} parent=1 // pred_check_branch
      %686 = sbr.rel (0) target = $region401
    $region400: #{tpu_custom_call.1} parent=1 // pred_region
      %687 = vsyncadd %s641, 16
    $region401: #{tpu_custom_call.1} parent=1 // pred_fallthru
      _
    %s688 = sld [smem:[#allocation5 + $0xc]]
    %s689 = scalar_lea.vmem %s1, %s688
    %s690 = scalar_lea.vmem [#allocation2], 12
    %s691 = scalar_lea.sflag [#allocation3], 12
    %p693 = scmp.lt.u32.totalorder 1, 8
    %p694 = pneg %p693
    // Predicated region
    $region402: #{tpu_custom_call.1} parent=1 // pred_check
      _
    $region403: #{tpu_custom_call.1} parent=1 // pred_check_branch
      %696 = sbr.rel (%p693) target = $region405
    $region404: #{tpu_custom_call.1} parent=1 // pred_region
      %s712 = sand.u32 1, 7
      %p713 = scmp.eq.s32.totalorder %s712, 0
      %p714 = pneg %p713
      // Predicated region
      $region417: #{tpu_custom_call.1} parent=404 // pred_check
        _
      $region418: #{tpu_custom_call.1} parent=404 // pred_check_branch
        %716 = sbr.rel (%p713) target = $region420
      $region419: #{tpu_custom_call.1} parent=404 // pred_region
        %s717 = sand.u32 1, 7
        %s718 = ssub.s32 1, %s717
        %s719 = scalar_lea.vmem %s689, %s718
        %s720 = ssub.s32 1, %s717
        %s721 = scalar_lea.vmem %s690, %s720 [#allocation2]
        %s722 = sshll.u32 1, %s717
        %s723 = ssub.s32 %s722, 1
        loop: start=0, step=1, limit=1
        $region421: #{tpu_custom_call.1} parent=419 // loop_pre_header
          _
        $region422: #{tpu_custom_call.1} parent=419 // loop_header
          %s725 = sphi 0, %s729
          %p726 = scmp.ge.s32.totalorder %s725, 1
          %s730 = sphi %s719, %s719
          %s731 = sphi %s721, %s721
        $region423: #{tpu_custom_call.1} parent=419 // loop_header_branch
          %728 = sbr.rel (%p726) target = $region427
        $region424: #{tpu_custom_call.1} parent=419 // loop_body
          %v732 = vld [vmem:[%s730] sm:%s723]
          %733 = vst [vmem:[%s731] sm:%s723] %v732
        $region425: #{tpu_custom_call.1} parent=419 // loop_footer
          %s729 = sadd.s32 1, %s725
        $region426: #{tpu_custom_call.1} parent=419 // loop_footer_branch
          %724 = sbr.rel target = $region422
        $region427: #{tpu_custom_call.1} parent=419 // loop_exit
          _
      $region420: #{tpu_custom_call.1} parent=404 // pred_fallthru
        _
    $region405: #{tpu_custom_call.1} parent=1 // pred_fallthru
      _
    // Predicated region
    $region406: #{tpu_custom_call.1} parent=1 // pred_check
      %p697 = pneg %p693
    $region407: #{tpu_custom_call.1} parent=1 // pred_check_branch
      %699 = sbr.rel (%p697) target = $region409
    $region408: #{tpu_custom_call.1} parent=1 // pred_region
      %s700 = sshll.u32 1, 1
      %s701 = ssub.s32 %s700, 1
      loop: start=0, step=1, limit=1
      $region410: #{tpu_custom_call.1} parent=408 // loop_pre_header
        _
      $region411: #{tpu_custom_call.1} parent=408 // loop_header
        %s703 = sphi 0, %s707
        %p704 = scmp.ge.s32.totalorder %s703, 1
        %s708 = sphi %s689, %s689
        %s709 = sphi %s690, %s690
      $region412: #{tpu_custom_call.1} parent=408 // loop_header_branch
        %706 = sbr.rel (%p704) target = $region416
      $region413: #{tpu_custom_call.1} parent=408 // loop_body
        %v710 = vld [vmem:[%s708] sm:%s701]
        %711 = vst [vmem:[%s709] sm:%s701] %v710
      $region414: #{tpu_custom_call.1} parent=408 // loop_footer
        %s707 = sadd.s32 1, %s703
      $region415: #{tpu_custom_call.1} parent=408 // loop_footer_branch
        %702 = sbr.rel target = $region411
      $region416: #{tpu_custom_call.1} parent=408 // loop_exit
        _
    $region409: #{tpu_custom_call.1} parent=1 // pred_fallthru
      _
    // Predicated region
    $region428: #{tpu_custom_call.1} parent=1 // pred_check
      _
    $region429: #{tpu_custom_call.1} parent=1 // pred_check_branch
      %736 = sbr.rel (0) target = $region431
    $region430: #{tpu_custom_call.1} parent=1 // pred_region
      %737 = vsyncadd %s691, 16
    $region431: #{tpu_custom_call.1} parent=1 // pred_fallthru
      _
    %s738 = sld [smem:[#allocation5 + $0xd]]
    %s739 = scalar_lea.vmem %s1, %s738
    %s740 = scalar_lea.vmem [#allocation2], 13
    %s741 = scalar_lea.sflag [#allocation3], 13
    %p743 = scmp.lt.u32.totalorder 1, 8
    %p744 = pneg %p743
    // Predicated region
    $region432: #{tpu_custom_call.1} parent=1 // pred_check
      _
    $region433: #{tpu_custom_call.1} parent=1 // pred_check_branch
      %746 = sbr.rel (%p743) target = $region435
    $region434: #{tpu_custom_call.1} parent=1 // pred_region
      %s762 = sand.u32 1, 7
      %p763 = scmp.eq.s32.totalorder %s762, 0
      %p764 = pneg %p763
      // Predicated region
      $region447: #{tpu_custom_call.1} parent=434 // pred_check
        _
      $region448: #{tpu_custom_call.1} parent=434 // pred_check_branch
        %766 = sbr.rel (%p763) target = $region450
      $region449: #{tpu_custom_call.1} parent=434 // pred_region
        %s767 = sand.u32 1, 7
        %s768 = ssub.s32 1, %s767
        %s769 = scalar_lea.vmem %s739, %s768
        %s770 = ssub.s32 1, %s767
        %s771 = scalar_lea.vmem %s740, %s770 [#allocation2]
        %s772 = sshll.u32 1, %s767
        %s773 = ssub.s32 %s772, 1
        loop: start=0, step=1, limit=1
        $region451: #{tpu_custom_call.1} parent=449 // loop_pre_header
          _
        $region452: #{tpu_custom_call.1} parent=449 // loop_header
          %s775 = sphi 0, %s779
          %p776 = scmp.ge.s32.totalorder %s775, 1
          %s780 = sphi %s769, %s769
          %s781 = sphi %s771, %s771
        $region453: #{tpu_custom_call.1} parent=449 // loop_header_branch
          %778 = sbr.rel (%p776) target = $region457
        $region454: #{tpu_custom_call.1} parent=449 // loop_body
          %v782 = vld [vmem:[%s780] sm:%s773]
          %783 = vst [vmem:[%s781] sm:%s773] %v782
        $region455: #{tpu_custom_call.1} parent=449 // loop_footer
          %s779 = sadd.s32 1, %s775
        $region456: #{tpu_custom_call.1} parent=449 // loop_footer_branch
          %774 = sbr.rel target = $region452
        $region457: #{tpu_custom_call.1} parent=449 // loop_exit
          _
      $region450: #{tpu_custom_call.1} parent=434 // pred_fallthru
        _
    $region435: #{tpu_custom_call.1} parent=1 // pred_fallthru
      _
    // Predicated region
    $region436: #{tpu_custom_call.1} parent=1 // pred_check
      %p747 = pneg %p743
    $region437: #{tpu_custom_call.1} parent=1 // pred_check_branch
      %749 = sbr.rel (%p747) target = $region439
    $region438: #{tpu_custom_call.1} parent=1 // pred_region
      %s750 = sshll.u32 1, 1
      %s751 = ssub.s32 %s750, 1
      loop: start=0, step=1, limit=1
      $region440: #{tpu_custom_call.1} parent=438 // loop_pre_header
        _
      $region441: #{tpu_custom_call.1} parent=438 // loop_header
        %s753 = sphi 0, %s757
        %p754 = scmp.ge.s32.totalorder %s753, 1
        %s758 = sphi %s739, %s739
        %s759 = sphi %s740, %s740
      $region442: #{tpu_custom_call.1} parent=438 // loop_header_branch
        %756 = sbr.rel (%p754) target = $region446
      $region443: #{tpu_custom_call.1} parent=438 // loop_body
        %v760 = vld [vmem:[%s758] sm:%s751]
        %761 = vst [vmem:[%s759] sm:%s751] %v760
      $region444: #{tpu_custom_call.1} parent=438 // loop_footer
        %s757 = sadd.s32 1, %s753
      $region445: #{tpu_custom_call.1} parent=438 // loop_footer_branch
        %752 = sbr.rel target = $region441
      $region446: #{tpu_custom_call.1} parent=438 // loop_exit
        _
    $region439: #{tpu_custom_call.1} parent=1 // pred_fallthru
      _
    // Predicated region
    $region458: #{tpu_custom_call.1} parent=1 // pred_check
      _
    $region459: #{tpu_custom_call.1} parent=1 // pred_check_branch
      %786 = sbr.rel (0) target = $region461
    $region460: #{tpu_custom_call.1} parent=1 // pred_region
      %787 = vsyncadd %s741, 16
    $region461: #{tpu_custom_call.1} parent=1 // pred_fallthru
      _
    %s788 = sld [smem:[#allocation5 + $0xe]]
    %s789 = scalar_lea.vmem %s1, %s788
    %s790 = scalar_lea.vmem [#allocation2], 14
    %s791 = scalar_lea.sflag [#allocation3], 14
    %p793 = scmp.lt.u32.totalorder 1, 8
    %p794 = pneg %p793
    // Predicated region
    $region462: #{tpu_custom_call.1} parent=1 // pred_check
      _
    $region463: #{tpu_custom_call.1} parent=1 // pred_check_branch
      %796 = sbr.rel (%p793) target = $region465
    $region464: #{tpu_custom_call.1} parent=1 // pred_region
      %s812 = sand.u32 1, 7
      %p813 = scmp.eq.s32.totalorder %s812, 0
      %p814 = pneg %p813
      // Predicated region
      $region477: #{tpu_custom_call.1} parent=464 // pred_check
        _
      $region478: #{tpu_custom_call.1} parent=464 // pred_check_branch
        %816 = sbr.rel (%p813) target = $region480
      $region479: #{tpu_custom_call.1} parent=464 // pred_region
        %s817 = sand.u32 1, 7
        %s818 = ssub.s32 1, %s817
        %s819 = scalar_lea.vmem %s789, %s818
        %s820 = ssub.s32 1, %s817
        %s821 = scalar_lea.vmem %s790, %s820 [#allocation2]
        %s822 = sshll.u32 1, %s817
        %s823 = ssub.s32 %s822, 1
        loop: start=0, step=1, limit=1
        $region481: #{tpu_custom_call.1} parent=479 // loop_pre_header
          _
        $region482: #{tpu_custom_call.1} parent=479 // loop_header
          %s825 = sphi 0, %s829
          %p826 = scmp.ge.s32.totalorder %s825, 1
          %s830 = sphi %s819, %s819
          %s831 = sphi %s821, %s821
        $region483: #{tpu_custom_call.1} parent=479 // loop_header_branch
          %828 = sbr.rel (%p826) target = $region487
        $region484: #{tpu_custom_call.1} parent=479 // loop_body
          %v832 = vld [vmem:[%s830] sm:%s823]
          %833 = vst [vmem:[%s831] sm:%s823] %v832
        $region485: #{tpu_custom_call.1} parent=479 // loop_footer
          %s829 = sadd.s32 1, %s825
        $region486: #{tpu_custom_call.1} parent=479 // loop_footer_branch
          %824 = sbr.rel target = $region482
        $region487: #{tpu_custom_call.1} parent=479 // loop_exit
          _
      $region480: #{tpu_custom_call.1} parent=464 // pred_fallthru
        _
    $region465: #{tpu_custom_call.1} parent=1 // pred_fallthru
      _
    // Predicated region
    $region466: #{tpu_custom_call.1} parent=1 // pred_check
      %p797 = pneg %p793
    $region467: #{tpu_custom_call.1} parent=1 // pred_check_branch
      %799 = sbr.rel (%p797) target = $region469
    $region468: #{tpu_custom_call.1} parent=1 // pred_region
      %s800 = sshll.u32 1, 1
      %s801 = ssub.s32 %s800, 1
      loop: start=0, step=1, limit=1
      $region470: #{tpu_custom_call.1} parent=468 // loop_pre_header
        _
      $region471: #{tpu_custom_call.1} parent=468 // loop_header
        %s803 = sphi 0, %s807
        %p804 = scmp.ge.s32.totalorder %s803, 1
        %s808 = sphi %s789, %s789
        %s809 = sphi %s790, %s790
      $region472: #{tpu_custom_call.1} parent=468 // loop_header_branch
        %806 = sbr.rel (%p804) target = $region476
      $region473: #{tpu_custom_call.1} parent=468 // loop_body
        %v810 = vld [vmem:[%s808] sm:%s801]
        %811 = vst [vmem:[%s809] sm:%s801] %v810
      $region474: #{tpu_custom_call.1} parent=468 // loop_footer
        %s807 = sadd.s32 1, %s803
      $region475: #{tpu_custom_call.1} parent=468 // loop_footer_branch
        %802 = sbr.rel target = $region471
      $region476: #{tpu_custom_call.1} parent=468 // loop_exit
        _
    $region469: #{tpu_custom_call.1} parent=1 // pred_fallthru
      _
    // Predicated region
    $region488: #{tpu_custom_call.1} parent=1 // pred_check
      _
    $region489: #{tpu_custom_call.1} parent=1 // pred_check_branch
      %836 = sbr.rel (0) target = $region491
    $region490: #{tpu_custom_call.1} parent=1 // pred_region
      %837 = vsyncadd %s791, 16
    $region491: #{tpu_custom_call.1} parent=1 // pred_fallthru
      _
    %s838 = sld [smem:[#allocation5 + $0xf]]
    %s839 = scalar_lea.vmem %s1, %s838
    %s840 = scalar_lea.vmem [#allocation2], 15
    %s841 = scalar_lea.sflag [#allocation3], 15
    %p843 = scmp.lt.u32.totalorder 1, 8
    %p844 = pneg %p843
    // Predicated region
    $region492: #{tpu_custom_call.1} parent=1 // pred_check
      _
    $region493: #{tpu_custom_call.1} parent=1 // pred_check_branch
      %846 = sbr.rel (%p843) target = $region495
    $region494: #{tpu_custom_call.1} parent=1 // pred_region
      %s862 = sand.u32 1, 7
      %p863 = scmp.eq.s32.totalorder %s862, 0
      %p864 = pneg %p863
      // Predicated region
      $region507: #{tpu_custom_call.1} parent=494 // pred_check
        _
      $region508: #{tpu_custom_call.1} parent=494 // pred_check_branch
        %866 = sbr.rel (%p863) target = $region510
      $region509: #{tpu_custom_call.1} parent=494 // pred_region
        %s867 = sand.u32 1, 7
        %s868 = ssub.s32 1, %s867
        %s869 = scalar_lea.vmem %s839, %s868
        %s870 = ssub.s32 1, %s867
        %s871 = scalar_lea.vmem %s840, %s870 [#allocation2]
        %s872 = sshll.u32 1, %s867
        %s873 = ssub.s32 %s872, 1
        loop: start=0, step=1, limit=1
        $region511: #{tpu_custom_call.1} parent=509 // loop_pre_header
          _
        $region512: #{tpu_custom_call.1} parent=509 // loop_header
          %s875 = sphi 0, %s879
          %p876 = scmp.ge.s32.totalorder %s875, 1
          %s880 = sphi %s869, %s869
          %s881 = sphi %s871, %s871
        $region513: #{tpu_custom_call.1} parent=509 // loop_header_branch
          %878 = sbr.rel (%p876) target = $region517
        $region514: #{tpu_custom_call.1} parent=509 // loop_body
          %v882 = vld [vmem:[%s880] sm:%s873]
          %883 = vst [vmem:[%s881] sm:%s873] %v882
        $region515: #{tpu_custom_call.1} parent=509 // loop_footer
          %s879 = sadd.s32 1, %s875
        $region516: #{tpu_custom_call.1} parent=509 // loop_footer_branch
          %874 = sbr.rel target = $region512
        $region517: #{tpu_custom_call.1} parent=509 // loop_exit
          _
      $region510: #{tpu_custom_call.1} parent=494 // pred_fallthru
        _
    $region495: #{tpu_custom_call.1} parent=1 // pred_fallthru
      _
    // Predicated region
    $region496: #{tpu_custom_call.1} parent=1 // pred_check
      %p847 = pneg %p843
    $region497: #{tpu_custom_call.1} parent=1 // pred_check_branch
      %849 = sbr.rel (%p847) target = $region499
    $region498: #{tpu_custom_call.1} parent=1 // pred_region
      %s850 = sshll.u32 1, 1
      %s851 = ssub.s32 %s850, 1
      loop: start=0, step=1, limit=1
      $region500: #{tpu_custom_call.1} parent=498 // loop_pre_header
        _
      $region501: #{tpu_custom_call.1} parent=498 // loop_header
        %s853 = sphi 0, %s857
        %p854 = scmp.ge.s32.totalorder %s853, 1
        %s858 = sphi %s839, %s839
        %s859 = sphi %s840, %s840
      $region502: #{tpu_custom_call.1} parent=498 // loop_header_branch
        %856 = sbr.rel (%p854) target = $region506
      $region503: #{tpu_custom_call.1} parent=498 // loop_body
        %v860 = vld [vmem:[%s858] sm:%s851]
        %861 = vst [vmem:[%s859] sm:%s851] %v860
      $region504: #{tpu_custom_call.1} parent=498 // loop_footer
        %s857 = sadd.s32 1, %s853
      $region505: #{tpu_custom_call.1} parent=498 // loop_footer_branch
        %852 = sbr.rel target = $region501
      $region506: #{tpu_custom_call.1} parent=498 // loop_exit
        _
    $region499: #{tpu_custom_call.1} parent=1 // pred_fallthru
      _
    // Predicated region
    $region518: #{tpu_custom_call.1} parent=1 // pred_check
      _
    $region519: #{tpu_custom_call.1} parent=1 // pred_check_branch
      %886 = sbr.rel (0) target = $region521
    $region520: #{tpu_custom_call.1} parent=1 // pred_region
      %887 = vsyncadd %s841, 16
    $region521: #{tpu_custom_call.1} parent=1 // pred_fallthru
      _
    %s888 = smul.u32 1, 1
    %s889 = sshll.u32 %s888, 4
    %890 = dma.done [#allocation3], %s889
    %s891 = sshll.u32 %s888, 4
    %892 = dma.done %s141, %s891
    %s893 = sshll.u32 %s888, 4
    %894 = dma.done %s191, %s893
    %s895 = sshll.u32 %s888, 4
    %896 = dma.done %s241, %s895
    %s897 = sshll.u32 %s888, 4
    %898 = dma.done %s291, %s897
    %s899 = sshll.u32 %s888, 4
    %900 = dma.done %s341, %s899
    %s901 = sshll.u32 %s888, 4
    %902 = dma.done %s391, %s901
    %s903 = sshll.u32 %s888, 4
    %904 = dma.done %s441, %s903
    %s905 = sshll.u32 %s888, 4
    %906 = dma.done %s491, %s905
    %s907 = sshll.u32 %s888, 4
    %908 = dma.done %s541, %s907
    %s909 = sshll.u32 %s888, 4
    %910 = dma.done %s591, %s909
    %s911 = sshll.u32 %s888, 4
    %912 = dma.done %s641, %s911
    %s913 = sshll.u32 %s888, 4
    %914 = dma.done %s691, %s913
    %s915 = sshll.u32 %s888, 4
    %916 = dma.done %s741, %s915
    %s917 = sshll.u32 %s888, 4
    %918 = dma.done %s791, %s917
    %s919 = sshll.u32 %s888, 4
    %920 = dma.done %s841, %s919
    %v921 = vld [vmem:[#allocation2] sm:$0xff]
    %v922 = vld [vmem:[#allocation2 + $0x8] sm:$0xff]
    %v923 = vld [vmem:[#allocation6] sm:$0xff]
    %v924 = vld [vmem:[#allocation6 + $0x8] sm:$0xff]
    %v925 = vld [vmem:[%s4] sm:$0x1]
    %v927 = vlaneseq
    %v928 = vshrl.u32 %v927, 7
    %v929 = vsub.s32 0, %v928
    %v930 = vrot.slane %v925, %v929
    %vm932 = vcmask 130048
    %v934 = vsel %vm932, %v921, 0
    %v937 = vsel %vm932, %v922, 0
    %939 = vmatprep.subr.mxu0 0.0
    %940 = vmatpush1.msra.mxu0 0.0
    %941 = vmatprep.subr.mxu0 0.0
    %942 = vmatpush1.msra.mxu0 0.0
    %943 = vmatprep.subr.mxu0 0.0
    %944 = vmatpush1.msra.mxu0 0.0
    %945 = vmatprep.subr.mxu0 0.0
    %946 = vmatpush1.msra.mxu0 0.0
    %947 = vmatprep.subr.mxu0 0.0
    %948 = vmatpush1.msra.mxu0 0.0
    %949 = vmatprep.subr.mxu0 0.0
    %950 = vmatpush1.msra.mxu0 0.0
    %951 = vmatprep.subr.mxu0 0.0
    %952 = vmatpush1.msra.mxu0 0.0
    %953 = vmatprep.subr.mxu0 0.0
    %954 = vmatpush1.msra.mxu0 0.0
    %955 = vmatprep.subr.mxu0 0.0
    %956 = vmatpush1.msra.mxu0 0.0
    %957 = vmatprep.subr.mxu0 0.0
    %958 = vmatpush1.msra.mxu0 0.0
    %959 = vmatprep.subr.mxu0 0.0
    %960 = vmatpush1.msra.mxu0 0.0
    %961 = vmatprep.subr.mxu0 0.0
    %962 = vmatpush1.msra.mxu0 0.0
    %963 = vmatprep.subr.mxu0 0.0
    %964 = vmatpush1.msra.mxu0 0.0
    %965 = vmatprep.subr.mxu0 0.0
    %966 = vmatpush1.msra.mxu0 0.0
    %967 = vmatprep.subr.mxu0 0.0
    %968 = vmatpush1.msra.mxu0 %v924
    %969 = vmatprep.subr.mxu0 0.0
    %970 = vmatpush1.msra.mxu0 %v923
    %971 = vmatprep.subr.mxu0 0.0
    %972 = vmatpush2.msra.mxu0 0.0
    %973 = vmatprep.subr.mxu0 0.0
    %974 = vmatpush2.msra.mxu0 0.0
    %975 = vmatprep.subr.mxu0 0.0
    %976 = vmatpush2.msra.mxu0 0.0
    %977 = vmatprep.subr.mxu0 0.0
    %978 = vmatpush2.msra.mxu0 0.0
    %979 = vmatprep.subr.mxu0 0.0
    %980 = vmatpush2.msra.mxu0 0.0
    %981 = vmatprep.subr.mxu0 0.0
    %982 = vmatpush2.msra.mxu0 0.0
    %983 = vmatprep.subr.mxu0 0.0
    %984 = vmatpush2.msra.mxu0 0.0
    %985 = vmatprep.subr.mxu0 0.0
    %986 = vmatpush2.msra.mxu0 0.0
    %987 = vmatprep.subr.mxu0 0.0
    %988 = vmatpush2.msra.mxu0 0.0
    %989 = vmatprep.subr.mxu0 0.0
    %990 = vmatpush2.msra.mxu0 0.0
    %991 = vmatprep.subr.mxu0 0.0
    %992 = vmatpush2.msra.mxu0 0.0
    %993 = vmatprep.subr.mxu0 0.0
    %994 = vmatpush2.msra.mxu0 0.0
    %995 = vmatprep.subr.mxu0 0.0
    %996 = vmatpush2.msra.mxu0 0.0
    %997 = vmatprep.subr.mxu0 0.0
    %998 = vmatpush2.msra.mxu0 0.0
    %999 = vmatprep.subr.mxu0 0.0
    %1000 = vmatpush2.msra.mxu0 0.0
    %1001 = vmatprep.subr.mxu0 0.0
    %1002 = vmatpush2.msra.mxu0 0.0
    %1003 = vmatprep.mubr.f32.mxu0 0.0
    %1004 = vmatmul.mubr.f32.gmra.mxu0 %v934
    %v1005 = vpop.f32.mrf.mxu0
    %v1006 = vadd.f32 %v930, %v1005
    %v1007 = vpop.f32.mrf.mxu0
    %1008 = vmatprep.mubr.f32.mxu0 0.0
    %1009 = vmatmul.mubr.f32.gmra.mxu0 %v937
    %v1010 = vpop.f32.mrf.mxu0
    %v1011 = vadd.f32 %v930, %v1010
    %v1012 = vpop.f32.mrf.mxu0
    %1013 = vdwg.mxu0
    %s1014 = scalar_lea.vmem [#allocation6], 16
    %v1015 = vld [vmem:[%s1014] sm:$0xff]
    %v1016 = vld [vmem:[%s1014 + $0x8] sm:$0xff]
    %s1017 = scalar_lea.vmem %s4, 1
    %v1018 = vld [vmem:[%s1017] sm:$0x1]
    %v1020 = vlaneseq
    %v1021 = vshrl.u32 %v1020, 7
    %v1022 = vsub.s32 0, %v1021
    %v1023 = vrot.slane %v1018, %v1022
    %1025 = vmatprep.subr.mxu0 0.0
    %1026 = vmatpush1.msra.mxu0 0.0
    %1027 = vmatprep.subr.mxu0 0.0
    %1028 = vmatpush1.msra.mxu0 0.0
    %1029 = vmatprep.subr.mxu0 0.0
    %1030 = vmatpush1.msra.mxu0 0.0
    %1031 = vmatprep.subr.mxu0 0.0
    %1032 = vmatpush1.msra.mxu0 0.0
    %1033 = vmatprep.subr.mxu0 0.0
    %1034 = vmatpush1.msra.mxu0 0.0
    %1035 = vmatprep.subr.mxu0 0.0
    %1036 = vmatpush1.msra.mxu0 0.0
    %1037 = vmatprep.subr.mxu0 0.0
    %1038 = vmatpush1.msra.mxu0 0.0
    %1039 = vmatprep.subr.mxu0 0.0
    %1040 = vmatpush1.msra.mxu0 0.0
    %1041 = vmatprep.subr.mxu0 0.0
    %1042 = vmatpush1.msra.mxu0 0.0
    %1043 = vmatprep.subr.mxu0 0.0
    %1044 = vmatpush1.msra.mxu0 0.0
    %1045 = vmatprep.subr.mxu0 0.0
    %1046 = vmatpush1.msra.mxu0 0.0
    %1047 = vmatprep.subr.mxu0 0.0
    %1048 = vmatpush1.msra.mxu0 0.0
    %1049 = vmatprep.subr.mxu0 0.0
    %1050 = vmatpush1.msra.mxu0 0.0
    %1051 = vmatprep.subr.mxu0 0.0
    %1052 = vmatpush1.msra.mxu0 0.0
    %1053 = vmatprep.subr.mxu0 0.0
    %1054 = vmatpush1.msra.mxu0 %v1016
    %1055 = vmatprep.subr.mxu0 0.0
    %1056 = vmatpush1.msra.mxu0 %v1015
    %1057 = vmatprep.subr.mxu0 0.0
    %1058 = vmatpush2.msra.mxu0 0.0
    %1059 = vmatprep.subr.mxu0 0.0
    %1060 = vmatpush2.msra.mxu0 0.0
    %1061 = vmatprep.subr.mxu0 0.0
    %1062 = vmatpush2.msra.mxu0 0.0
    %1063 = vmatprep.subr.mxu0 0.0
    %1064 = vmatpush2.msra.mxu0 0.0
    %1065 = vmatprep.subr.mxu0 0.0
    %1066 = vmatpush2.msra.mxu0 0.0
    %1067 = vmatprep.subr.mxu0 0.0
    %1068 = vmatpush2.msra.mxu0 0.0
    %1069 = vmatprep.subr.mxu0 0.0
    %1070 = vmatpush2.msra.mxu0 0.0
    %1071 = vmatprep.subr.mxu0 0.0
    %1072 = vmatpush2.msra.mxu0 0.0
    %1073 = vmatprep.subr.mxu0 0.0
    %1074 = vmatpush2.msra.mxu0 0.0
    %1075 = vmatprep.subr.mxu0 0.0
    %1076 = vmatpush2.msra.mxu0 0.0
    %1077 = vmatprep.subr.mxu0 0.0
    %1078 = vmatpush2.msra.mxu0 0.0
    %1079 = vmatprep.subr.mxu0 0.0
    %1080 = vmatpush2.msra.mxu0 0.0
    %1081 = vmatprep.subr.mxu0 0.0
    %1082 = vmatpush2.msra.mxu0 0.0
    %1083 = vmatprep.subr.mxu0 0.0
    %1084 = vmatpush2.msra.mxu0 0.0
    %1085 = vmatprep.subr.mxu0 0.0
    %1086 = vmatpush2.msra.mxu0 0.0
    %1087 = vmatprep.subr.mxu0 0.0
    %1088 = vmatpush2.msra.mxu0 0.0
    %1089 = vmatprep.mubr.f32.mxu0 0.0
    %1090 = vmatmul.mubr.f32.gmra.mxu0 %v934
    %v1091 = vpop.f32.mrf.mxu0
    %v1092 = vadd.f32 %v1023, %v1091
    %v1093 = vpop.f32.mrf.mxu0
    %1094 = vmatprep.mubr.f32.mxu0 0.0
    %1095 = vmatmul.mubr.f32.gmra.mxu0 %v937
    %v1096 = vpop.f32.mrf.mxu0
    %v1097 = vadd.f32 %v1023, %v1096
    %v1098 = vpop.f32.mrf.mxu0
    %1099 = vdwg.mxu0
    %s1100 = scalar_lea.vmem [#allocation6], 32
    %v1101 = vld [vmem:[%s1100] sm:$0xff]
    %v1102 = vld [vmem:[%s1100 + $0x8] sm:$0xff]
    %s1103 = scalar_lea.vmem %s4, 2
    %v1104 = vld [vmem:[%s1103] sm:$0x1]
    %v1106 = vlaneseq
    %v1107 = vshrl.u32 %v1106, 7
    %v1108 = vsub.s32 0, %v1107
    %v1109 = vrot.slane %v1104, %v1108
    %1111 = vmatprep.subr.mxu0 0.0
    %1112 = vmatpush1.msra.mxu0 0.0
    %1113 = vmatprep.subr.mxu0 0.0
    %1114 = vmatpush1.msra.mxu0 0.0
    %1115 = vmatprep.subr.mxu0 0.0
    %1116 = vmatpush1.msra.mxu0 0.0
    %1117 = vmatprep.subr.mxu0 0.0
    %1118 = vmatpush1.msra.mxu0 0.0
    %1119 = vmatprep.subr.mxu0 0.0
    %1120 = vmatpush1.msra.mxu0 0.0
    %1121 = vmatprep.subr.mxu0 0.0
    %1122 = vmatpush1.msra.mxu0 0.0
    %1123 = vmatprep.subr.mxu0 0.0
    %1124 = vmatpush1.msra.mxu0 0.0
    %1125 = vmatprep.subr.mxu0 0.0
    %1126 = vmatpush1.msra.mxu0 0.0
    %1127 = vmatprep.subr.mxu0 0.0
    %1128 = vmatpush1.msra.mxu0 0.0
    %1129 = vmatprep.subr.mxu0 0.0
    %1130 = vmatpush1.msra.mxu0 0.0
    %1131 = vmatprep.subr.mxu0 0.0
    %1132 = vmatpush1.msra.mxu0 0.0
    %1133 = vmatprep.subr.mxu0 0.0
    %1134 = vmatpush1.msra.mxu0 0.0
    %1135 = vmatprep.subr.mxu0 0.0
    %1136 = vmatpush1.msra.mxu0 0.0
    %1137 = vmatprep.subr.mxu0 0.0
    %1138 = vmatpush1.msra.mxu0 0.0
    %1139 = vmatprep.subr.mxu0 0.0
    %1140 = vmatpush1.msra.mxu0 %v1102
    %1141 = vmatprep.subr.mxu0 0.0
    %1142 = vmatpush1.msra.mxu0 %v1101
    %1143 = vmatprep.subr.mxu0 0.0
    %1144 = vmatpush2.msra.mxu0 0.0
    %1145 = vmatprep.subr.mxu0 0.0
    %1146 = vmatpush2.msra.mxu0 0.0
    %1147 = vmatprep.subr.mxu0 0.0
    %1148 = vmatpush2.msra.mxu0 0.0
    %1149 = vmatprep.subr.mxu0 0.0
    %1150 = vmatpush2.msra.mxu0 0.0
    %1151 = vmatprep.subr.mxu0 0.0
    %1152 = vmatpush2.msra.mxu0 0.0
    %1153 = vmatprep.subr.mxu0 0.0
    %1154 = vmatpush2.msra.mxu0 0.0
    %1155 = vmatprep.subr.mxu0 0.0
    %1156 = vmatpush2.msra.mxu0 0.0
    %1157 = vmatprep.subr.mxu0 0.0
    %1158 = vmatpush2.msra.mxu0 0.0
    %1159 = vmatprep.subr.mxu0 0.0
    %1160 = vmatpush2.msra.mxu0 0.0
    %1161 = vmatprep.subr.mxu0 0.0
    %1162 = vmatpush2.msra.mxu0 0.0
    %1163 = vmatprep.subr.mxu0 0.0
    %1164 = vmatpush2.msra.mxu0 0.0
    %1165 = vmatprep.subr.mxu0 0.0
    %1166 = vmatpush2.msra.mxu0 0.0
    %1167 = vmatprep.subr.mxu0 0.0
    %1168 = vmatpush2.msra.mxu0 0.0
    %1169 = vmatprep.subr.mxu0 0.0
    %1170 = vmatpush2.msra.mxu0 0.0
    %1171 = vmatprep.subr.mxu0 0.0
    %1172 = vmatpush2.msra.mxu0 0.0
    %1173 = vmatprep.subr.mxu0 0.0
    %1174 = vmatpush2.msra.mxu0 0.0
    %1175 = vmatprep.mubr.f32.mxu0 0.0
    %1176 = vmatmul.mubr.f32.gmra.mxu0 %v934
    %v1177 = vpop.f32.mrf.mxu0
    %v1178 = vadd.f32 %v1109, %v1177
    %v1179 = vpop.f32.mrf.mxu0
    %1180 = vmatprep.mubr.f32.mxu0 0.0
    %1181 = vmatmul.mubr.f32.gmra.mxu0 %v937
    %v1182 = vpop.f32.mrf.mxu0
    %v1183 = vadd.f32 %v1109, %v1182
    %v1184 = vpop.f32.mrf.mxu0
    %1185 = vdwg.mxu0
    %s1186 = scalar_lea.vmem [#allocation6], 48
    %v1187 = vld [vmem:[%s1186] sm:$0xff]
    %v1188 = vld [vmem:[%s1186 + $0x8] sm:$0xff]
    %s1189 = scalar_lea.vmem %s4, 3
    %v1190 = vld [vmem:[%s1189] sm:$0x1]
    %v1192 = vlaneseq
    %v1193 = vshrl.u32 %v1192, 7
    %v1194 = vsub.s32 0, %v1193
    %v1195 = vrot.slane %v1190, %v1194
    %1197 = vmatprep.subr.mxu0 0.0
    %1198 = vmatpush1.msra.mxu0 0.0
    %1199 = vmatprep.subr.mxu0 0.0
    %1200 = vmatpush1.msra.mxu0 0.0
    %1201 = vmatprep.subr.mxu0 0.0
    %1202 = vmatpush1.msra.mxu0 0.0
    %1203 = vmatprep.subr.mxu0 0.0
    %1204 = vmatpush1.msra.mxu0 0.0
    %1205 = vmatprep.subr.mxu0 0.0
    %1206 = vmatpush1.msra.mxu0 0.0
    %1207 = vmatprep.subr.mxu0 0.0
    %1208 = vmatpush1.msra.mxu0 0.0
    %1209 = vmatprep.subr.mxu0 0.0
    %1210 = vmatpush1.msra.mxu0 0.0
    %1211 = vmatprep.subr.mxu0 0.0
    %1212 = vmatpush1.msra.mxu0 0.0
    %1213 = vmatprep.subr.mxu0 0.0
    %1214 = vmatpush1.msra.mxu0 0.0
    %1215 = vmatprep.subr.mxu0 0.0
    %1216 = vmatpush1.msra.mxu0 0.0
    %1217 = vmatprep.subr.mxu0 0.0
    %1218 = vmatpush1.msra.mxu0 0.0
    %1219 = vmatprep.subr.mxu0 0.0
    %1220 = vmatpush1.msra.mxu0 0.0
    %1221 = vmatprep.subr.mxu0 0.0
    %1222 = vmatpush1.msra.mxu0 0.0
    %1223 = vmatprep.subr.mxu0 0.0
    %1224 = vmatpush1.msra.mxu0 0.0
    %1225 = vmatprep.subr.mxu0 0.0
    %1226 = vmatpush1.msra.mxu0 %v1188
    %1227 = vmatprep.subr.mxu0 0.0
    %1228 = vmatpush1.msra.mxu0 %v1187
    %1229 = vmatprep.subr.mxu0 0.0
    %1230 = vmatpush2.msra.mxu0 0.0
    %1231 = vmatprep.subr.mxu0 0.0
    %1232 = vmatpush2.msra.mxu0 0.0
    %1233 = vmatprep.subr.mxu0 0.0
    %1234 = vmatpush2.msra.mxu0 0.0
    %1235 = vmatprep.subr.mxu0 0.0
    %1236 = vmatpush2.msra.mxu0 0.0
    %1237 = vmatprep.subr.mxu0 0.0
    %1238 = vmatpush2.msra.mxu0 0.0
    %1239 = vmatprep.subr.mxu0 0.0
    %1240 = vmatpush2.msra.mxu0 0.0
    %1241 = vmatprep.subr.mxu0 0.0
    %1242 = vmatpush2.msra.mxu0 0.0
    %1243 = vmatprep.subr.mxu0 0.0
    %1244 = vmatpush2.msra.mxu0 0.0
    %1245 = vmatprep.subr.mxu0 0.0
    %1246 = vmatpush2.msra.mxu0 0.0
    %1247 = vmatprep.subr.mxu0 0.0
    %1248 = vmatpush2.msra.mxu0 0.0
    %1249 = vmatprep.subr.mxu0 0.0
    %1250 = vmatpush2.msra.mxu0 0.0
    %1251 = vmatprep.subr.mxu0 0.0
    %1252 = vmatpush2.msra.mxu0 0.0
    %1253 = vmatprep.subr.mxu0 0.0
    %1254 = vmatpush2.msra.mxu0 0.0
    %1255 = vmatprep.subr.mxu0 0.0
    %1256 = vmatpush2.msra.mxu0 0.0
    %1257 = vmatprep.subr.mxu0 0.0
    %1258 = vmatpush2.msra.mxu0 0.0
    %1259 = vmatprep.subr.mxu0 0.0
    %1260 = vmatpush2.msra.mxu0 0.0
    %1261 = vmatprep.mubr.f32.mxu0 0.0
    %1262 = vmatmul.mubr.f32.gmra.mxu0 %v934
    %v1263 = vpop.f32.mrf.mxu0
    %v1264 = vadd.f32 %v1195, %v1263
    %v1265 = vpop.f32.mrf.mxu0
    %1266 = vmatprep.mubr.f32.mxu0 0.0
    %1267 = vmatmul.mubr.f32.gmra.mxu0 %v937
    %v1268 = vpop.f32.mrf.mxu0
    %v1269 = vadd.f32 %v1195, %v1268
    %v1270 = vpop.f32.mrf.mxu0
    %1271 = vdwg.mxu0
    %v1272 = vld [vmem:[#allocation9] sm:$0xff]
    %v1273 = vld [vmem:[#allocation9 + $0x8] sm:$0xff]
    %v1274 = vld [vmem:[#allocation9 + $0x10] sm:$0xff]
    %v1275 = vld [vmem:[#allocation9 + $0x18] sm:$0xff]
    %s1276 = scalar_lea.vmem [#allocation9], 32
    %v1277 = vld [vmem:[%s1276] sm:$0xff]
    %v1278 = vld [vmem:[%s1276 + $0x8] sm:$0xff]
    %v1279 = vld [vmem:[%s1276 + $0x10] sm:$0xff]
    %v1280 = vld [vmem:[%s1276 + $0x18] sm:$0xff]
    %s1281 = scalar_lea.vmem [#allocation9], 64
    %v1282 = vld [vmem:[%s1281] sm:$0xff]
    %v1283 = vld [vmem:[%s1281 + $0x8] sm:$0xff]
    %v1284 = vld [vmem:[%s1281 + $0x10] sm:$0xff]
    %v1285 = vld [vmem:[%s1281 + $0x18] sm:$0xff]
    %s1286 = scalar_lea.vmem [#allocation9], 96
    %v1287 = vld [vmem:[%s1286] sm:$0xff]
    %v1288 = vld [vmem:[%s1286 + $0x8] sm:$0xff]
    %v1289 = vld [vmem:[%s1286 + $0x10] sm:$0xff]
    %v1290 = vld [vmem:[%s1286 + $0x18] sm:$0xff]
    %vm1291 = vcmask 261120
    %v1293 = vsel %vm1291, 0.0, 0
    %1295 = vmatprep.subr.mxu0 0.0
    %1296 = vmatpush1.msra.mxu0 0.0
    %1297 = vmatprep.subr.mxu0 0.0
    %1298 = vmatpush1.msra.mxu0 0.0
    %1299 = vmatprep.subr.mxu0 0.0
    %1300 = vmatpush1.msra.mxu0 0.0
    %1301 = vmatprep.subr.mxu0 0.0
    %1302 = vmatpush1.msra.mxu0 0.0
    %1303 = vmatprep.subr.mxu0 0.0
    %1304 = vmatpush1.msra.mxu0 0.0
    %1305 = vmatprep.subr.mxu0 0.0
    %1306 = vmatpush1.msra.mxu0 0.0
    %1307 = vmatprep.subr.mxu0 0.0
    %1308 = vmatpush1.msra.mxu0 0.0
    %1309 = vmatprep.subr.mxu0 0.0
    %1310 = vmatpush1.msra.mxu0 0.0
    %1311 = vmatprep.subr.mxu0 0.0
    %1312 = vmatpush1.msra.mxu0 0.0
    %1313 = vmatprep.subr.mxu0 0.0
    %1314 = vmatpush1.msra.mxu0 0.0
    %1315 = vmatprep.subr.mxu0 0.0
    %1316 = vmatpush1.msra.mxu0 0.0
    %1317 = vmatprep.subr.mxu0 0.0
    %1318 = vmatpush1.msra.mxu0 0.0
    %1319 = vmatprep.subr.mxu0 0.0
    %1320 = vmatpush1.msra.mxu0 %v1275
    %1321 = vmatprep.subr.mxu0 0.0
    %1322 = vmatpush1.msra.mxu0 %v1274
    %1323 = vmatprep.subr.mxu0 0.0
    %1324 = vmatpush1.msra.mxu0 %v1273
    %1325 = vmatprep.subr.mxu0 0.0
    %1326 = vmatpush1.msra.mxu0 %v1272
    %1327 = vmatprep.subr.mxu0 0.0
    %1328 = vmatpush2.msra.mxu0 0.0
    %1329 = vmatprep.subr.mxu0 0.0
    %1330 = vmatpush2.msra.mxu0 0.0
    %1331 = vmatprep.subr.mxu0 0.0
    %1332 = vmatpush2.msra.mxu0 0.0
    %1333 = vmatprep.subr.mxu0 0.0
    %1334 = vmatpush2.msra.mxu0 0.0
    %1335 = vmatprep.subr.mxu0 0.0
    %1336 = vmatpush2.msra.mxu0 0.0
    %1337 = vmatprep.subr.mxu0 0.0
    %1338 = vmatpush2.msra.mxu0 0.0
    %1339 = vmatprep.subr.mxu0 0.0
    %1340 = vmatpush2.msra.mxu0 0.0
    %1341 = vmatprep.subr.mxu0 0.0
    %1342 = vmatpush2.msra.mxu0 0.0
    %1343 = vmatprep.subr.mxu0 0.0
    %1344 = vmatpush2.msra.mxu0 0.0
    %1345 = vmatprep.subr.mxu0 0.0
    %1346 = vmatpush2.msra.mxu0 0.0
    %1347 = vmatprep.subr.mxu0 0.0
    %1348 = vmatpush2.msra.mxu0 0.0
    %1349 = vmatprep.subr.mxu0 0.0
    %1350 = vmatpush2.msra.mxu0 0.0
    %1351 = vmatprep.subr.mxu0 0.0
    %1352 = vmatpush2.msra.mxu0 0.0
    %1353 = vmatprep.subr.mxu0 0.0
    %1354 = vmatpush2.msra.mxu0 0.0
    %1355 = vmatprep.subr.mxu0 0.0
    %1356 = vmatpush2.msra.mxu0 0.0
    %1357 = vmatprep.subr.mxu0 0.0
    %1358 = vmatpush2.msra.mxu0 0.0
    %1359 = vmatprep.mubr.f32.mxu0 0.0
    %1360 = vmatmul.mubr.f32.gmra.mxu0 %v1293
    %v1361 = vpop.f32.mrf.mxu0
    %v1362 = vadd.f32 0.0, %v1361
    %v1363 = vpop.f32.mrf.mxu0
    %1364 = vdwg.mxu0
    %v1365 = vadd.f32 %v1006, %v1362
    %v1366 = vxor.u32 %v1365, 2147483648
    %v1367 = vmul.f32 %v1366, 1.442695
    %v1368 = vpow.pop %v1367
    %v1369 = vadd.f32 %v1368, 1.0
    %v1370 = vrcp.pop %v1369
    %v1371 = vmul.f32 1.0, %v1370
    %1372 = vmatprep.subr.mxu0 0.0
    %1373 = vmatpush1.msra.mxu0 0.0
    %1374 = vmatprep.subr.mxu0 0.0
    %1375 = vmatpush1.msra.mxu0 0.0
    %1376 = vmatprep.subr.mxu0 0.0
    %1377 = vmatpush1.msra.mxu0 0.0
    %1378 = vmatprep.subr.mxu0 0.0
    %1379 = vmatpush1.msra.mxu0 0.0
    %1380 = vmatprep.subr.mxu0 0.0
    %1381 = vmatpush1.msra.mxu0 0.0
    %1382 = vmatprep.subr.mxu0 0.0
    %1383 = vmatpush1.msra.mxu0 0.0
    %1384 = vmatprep.subr.mxu0 0.0
    %1385 = vmatpush1.msra.mxu0 0.0
    %1386 = vmatprep.subr.mxu0 0.0
    %1387 = vmatpush1.msra.mxu0 0.0
    %1388 = vmatprep.subr.mxu0 0.0
    %1389 = vmatpush1.msra.mxu0 0.0
    %1390 = vmatprep.subr.mxu0 0.0
    %1391 = vmatpush1.msra.mxu0 0.0
    %1392 = vmatprep.subr.mxu0 0.0
    %1393 = vmatpush1.msra.mxu0 0.0
    %1394 = vmatprep.subr.mxu0 0.0
    %1395 = vmatpush1.msra.mxu0 0.0
    %1396 = vmatprep.subr.mxu0 0.0
    %1397 = vmatpush1.msra.mxu0 %v1280
    %1398 = vmatprep.subr.mxu0 0.0
    %1399 = vmatpush1.msra.mxu0 %v1279
    %1400 = vmatprep.subr.mxu0 0.0
    %1401 = vmatpush1.msra.mxu0 %v1278
    %1402 = vmatprep.subr.mxu0 0.0
    %1403 = vmatpush1.msra.mxu0 %v1277
    %1404 = vmatprep.subr.mxu0 0.0
    %1405 = vmatpush2.msra.mxu0 0.0
    %1406 = vmatprep.subr.mxu0 0.0
    %1407 = vmatpush2.msra.mxu0 0.0
    %1408 = vmatprep.subr.mxu0 0.0
    %1409 = vmatpush2.msra.mxu0 0.0
    %1410 = vmatprep.subr.mxu0 0.0
    %1411 = vmatpush2.msra.mxu0 0.0
    %1412 = vmatprep.subr.mxu0 0.0
    %1413 = vmatpush2.msra.mxu0 0.0
    %1414 = vmatprep.subr.mxu0 0.0
    %1415 = vmatpush2.msra.mxu0 0.0
    %1416 = vmatprep.subr.mxu0 0.0
    %1417 = vmatpush2.msra.mxu0 0.0
    %1418 = vmatprep.subr.mxu0 0.0
    %1419 = vmatpush2.msra.mxu0 0.0
    %1420 = vmatprep.subr.mxu0 0.0
    %1421 = vmatpush2.msra.mxu0 0.0
    %1422 = vmatprep.subr.mxu0 0.0
    %1423 = vmatpush2.msra.mxu0 0.0
    %1424 = vmatprep.subr.mxu0 0.0
    %1425 = vmatpush2.msra.mxu0 0.0
    %1426 = vmatprep.subr.mxu0 0.0
    %1427 = vmatpush2.msra.mxu0 0.0
    %1428 = vmatprep.subr.mxu0 0.0
    %1429 = vmatpush2.msra.mxu0 0.0
    %1430 = vmatprep.subr.mxu0 0.0
    %1431 = vmatpush2.msra.mxu0 0.0
    %1432 = vmatprep.subr.mxu0 0.0
    %1433 = vmatpush2.msra.mxu0 0.0
    %1434 = vmatprep.subr.mxu0 0.0
    %1435 = vmatpush2.msra.mxu0 0.0
    %1436 = vmatprep.mubr.f32.mxu0 0.0
    %1437 = vmatmul.mubr.f32.gmra.mxu0 %v1293
    %v1438 = vpop.f32.mrf.mxu0
    %v1439 = vadd.f32 0.0, %v1438
    %v1440 = vpop.f32.mrf.mxu0
    %1441 = vdwg.mxu0
    %v1442 = vadd.f32 %v1092, %v1439
    %v1443 = vxor.u32 %v1442, 2147483648
    %v1444 = vmul.f32 %v1443, 1.442695
    %v1445 = vpow.pop %v1444
    %v1446 = vadd.f32 %v1445, 1.0
    %v1447 = vrcp.pop %v1446
    %v1448 = vmul.f32 1.0, %v1447
    %1449 = vmatprep.subr.mxu0 0.0
    %1450 = vmatpush1.msra.mxu0 0.0
    %1451 = vmatprep.subr.mxu0 0.0
    %1452 = vmatpush1.msra.mxu0 0.0
    %1453 = vmatprep.subr.mxu0 0.0
    %1454 = vmatpush1.msra.mxu0 0.0
    %1455 = vmatprep.subr.mxu0 0.0
    %1456 = vmatpush1.msra.mxu0 0.0
    %1457 = vmatprep.subr.mxu0 0.0
    %1458 = vmatpush1.msra.mxu0 0.0
    %1459 = vmatprep.subr.mxu0 0.0
    %1460 = vmatpush1.msra.mxu0 0.0
    %1461 = vmatprep.subr.mxu0 0.0
    %1462 = vmatpush1.msra.mxu0 0.0
    %1463 = vmatprep.subr.mxu0 0.0
    %1464 = vmatpush1.msra.mxu0 0.0
    %1465 = vmatprep.subr.mxu0 0.0
    %1466 = vmatpush1.msra.mxu0 0.0
    %1467 = vmatprep.subr.mxu0 0.0
    %1468 = vmatpush1.msra.mxu0 0.0
    %1469 = vmatprep.subr.mxu0 0.0
    %1470 = vmatpush1.msra.mxu0 0.0
    %1471 = vmatprep.subr.mxu0 0.0
    %1472 = vmatpush1.msra.mxu0 0.0
    %1473 = vmatprep.subr.mxu0 0.0
    %1474 = vmatpush1.msra.mxu0 %v1285
    %1475 = vmatprep.subr.mxu0 0.0
    %1476 = vmatpush1.msra.mxu0 %v1284
    %1477 = vmatprep.subr.mxu0 0.0
    %1478 = vmatpush1.msra.mxu0 %v1283
    %1479 = vmatprep.subr.mxu0 0.0
    %1480 = vmatpush1.msra.mxu0 %v1282
    %1481 = vmatprep.subr.mxu0 0.0
    %1482 = vmatpush2.msra.mxu0 0.0
    %1483 = vmatprep.subr.mxu0 0.0
    %1484 = vmatpush2.msra.mxu0 0.0
    %1485 = vmatprep.subr.mxu0 0.0
    %1486 = vmatpush2.msra.mxu0 0.0
    %1487 = vmatprep.subr.mxu0 0.0
    %1488 = vmatpush2.msra.mxu0 0.0
    %1489 = vmatprep.subr.mxu0 0.0
    %1490 = vmatpush2.msra.mxu0 0.0
    %1491 = vmatprep.subr.mxu0 0.0
    %1492 = vmatpush2.msra.mxu0 0.0
    %1493 = vmatprep.subr.mxu0 0.0
    %1494 = vmatpush2.msra.mxu0 0.0
    %1495 = vmatprep.subr.mxu0 0.0
    %1496 = vmatpush2.msra.mxu0 0.0
    %1497 = vmatprep.subr.mxu0 0.0
    %1498 = vmatpush2.msra.mxu0 0.0
    %1499 = vmatprep.subr.mxu0 0.0
    %1500 = vmatpush2.msra.mxu0 0.0
    %1501 = vmatprep.subr.mxu0 0.0
    %1502 = vmatpush2.msra.mxu0 0.0
    %1503 = vmatprep.subr.mxu0 0.0
    %1504 = vmatpush2.msra.mxu0 0.0
    %1505 = vmatprep.subr.mxu0 0.0
    %1506 = vmatpush2.msra.mxu0 0.0
    %1507 = vmatprep.subr.mxu0 0.0
    %1508 = vmatpush2.msra.mxu0 0.0
    %1509 = vmatprep.subr.mxu0 0.0
    %1510 = vmatpush2.msra.mxu0 0.0
    %1511 = vmatprep.subr.mxu0 0.0
    %1512 = vmatpush2.msra.mxu0 0.0
    %1513 = vmatprep.mubr.f32.mxu0 0.0
    %1514 = vmatmul.mubr.f32.gmra.mxu0 %v1293
    %v1515 = vpop.f32.mrf.mxu0
    %v1516 = vadd.f32 0.0, %v1515
    %v1517 = vpop.f32.mrf.mxu0
    %1518 = vdwg.mxu0
    %v1519 = vadd.f32 %v1178, %v1516
    %v1520 = vtanh.pop %v1519
    %1521 = vmatprep.subr.mxu0 0.0
    %1522 = vmatpush1.msra.mxu0 0.0
    %1523 = vmatprep.subr.mxu0 0.0
    %1524 = vmatpush1.msra.mxu0 0.0
    %1525 = vmatprep.subr.mxu0 0.0
    %1526 = vmatpush1.msra.mxu0 0.0
    %1527 = vmatprep.subr.mxu0 0.0
    %1528 = vmatpush1.msra.mxu0 0.0
    %1529 = vmatprep.subr.mxu0 0.0
    %1530 = vmatpush1.msra.mxu0 0.0
    %1531 = vmatprep.subr.mxu0 0.0
    %1532 = vmatpush1.msra.mxu0 0.0
    %1533 = vmatprep.subr.mxu0 0.0
    %1534 = vmatpush1.msra.mxu0 0.0
    %1535 = vmatprep.subr.mxu0 0.0
    %1536 = vmatpush1.msra.mxu0 0.0
    %1537 = vmatprep.subr.mxu0 0.0
    %1538 = vmatpush1.msra.mxu0 0.0
    %1539 = vmatprep.subr.mxu0 0.0
    %1540 = vmatpush1.msra.mxu0 0.0
    %1541 = vmatprep.subr.mxu0 0.0
    %1542 = vmatpush1.msra.mxu0 0.0
    %1543 = vmatprep.subr.mxu0 0.0
    %1544 = vmatpush1.msra.mxu0 0.0
    %1545 = vmatprep.subr.mxu0 0.0
    %1546 = vmatpush1.msra.mxu0 %v1290
    %1547 = vmatprep.subr.mxu0 0.0
    %1548 = vmatpush1.msra.mxu0 %v1289
    %1549 = vmatprep.subr.mxu0 0.0
    %1550 = vmatpush1.msra.mxu0 %v1288
    %1551 = vmatprep.subr.mxu0 0.0
    %1552 = vmatpush1.msra.mxu0 %v1287
    %1553 = vmatprep.subr.mxu0 0.0
    %1554 = vmatpush2.msra.mxu0 0.0
    %1555 = vmatprep.subr.mxu0 0.0
    %1556 = vmatpush2.msra.mxu0 0.0
    %1557 = vmatprep.subr.mxu0 0.0
    %1558 = vmatpush2.msra.mxu0 0.0
    %1559 = vmatprep.subr.mxu0 0.0
    %1560 = vmatpush2.msra.mxu0 0.0
    %1561 = vmatprep.subr.mxu0 0.0
    %1562 = vmatpush2.msra.mxu0 0.0
    %1563 = vmatprep.subr.mxu0 0.0
    %1564 = vmatpush2.msra.mxu0 0.0
    %1565 = vmatprep.subr.mxu0 0.0
    %1566 = vmatpush2.msra.mxu0 0.0
    %1567 = vmatprep.subr.mxu0 0.0
    %1568 = vmatpush2.msra.mxu0 0.0
    %1569 = vmatprep.subr.mxu0 0.0
    %1570 = vmatpush2.msra.mxu0 0.0
    %1571 = vmatprep.subr.mxu0 0.0
    %1572 = vmatpush2.msra.mxu0 0.0
    %1573 = vmatprep.subr.mxu0 0.0
    %1574 = vmatpush2.msra.mxu0 0.0
    %1575 = vmatprep.subr.mxu0 0.0
    %1576 = vmatpush2.msra.mxu0 0.0
    %1577 = vmatprep.subr.mxu0 0.0
    %1578 = vmatpush2.msra.mxu0 0.0
    %1579 = vmatprep.subr.mxu0 0.0
    %1580 = vmatpush2.msra.mxu0 0.0
    %1581 = vmatprep.subr.mxu0 0.0
    %1582 = vmatpush2.msra.mxu0 0.0
    %1583 = vmatprep.subr.mxu0 0.0
    %1584 = vmatpush2.msra.mxu0 0.0
    %1585 = vmatprep.mubr.f32.mxu0 0.0
    %1586 = vmatmul.mubr.f32.gmra.mxu0 %v1293
    %v1587 = vpop.f32.mrf.mxu0
    %v1588 = vadd.f32 0.0, %v1587
    %v1589 = vpop.f32.mrf.mxu0
    %1590 = vdwg.mxu0
    %v1591 = vadd.f32 %v1264, %v1588
    %v1592 = vxor.u32 %v1591, 2147483648
    %v1593 = vmul.f32 %v1592, 1.442695
    %v1594 = vpow.pop %v1593
    %v1595 = vadd.f32 %v1594, 1.0
    %v1596 = vrcp.pop %v1595
    %v1597 = vmul.f32 1.0, %v1596
    %v1598 = vmul.f32 %v1448, 0.0
    %v1599 = vmul.f32 %v1371, %v1520
    %v1600 = vadd.f32 %v1598, %v1599
    %v1601 = vtanh.pop %v1600
    %v1602 = vmul.f32 %v1597, %v1601
    %v1604 = vsel %vm1291, %v1602, 0
    %1606 = vmatprep.subr.mxu0 0.0
    %1607 = vmatpush1.msra.mxu0 0.0
    %1608 = vmatprep.subr.mxu0 0.0
    %1609 = vmatpush1.msra.mxu0 0.0
    %1610 = vmatprep.subr.mxu0 0.0
    %1611 = vmatpush1.msra.mxu0 0.0
    %1612 = vmatprep.subr.mxu0 0.0
    %1613 = vmatpush1.msra.mxu0 0.0
    %1614 = vmatprep.subr.mxu0 0.0
    %1615 = vmatpush1.msra.mxu0 0.0
    %1616 = vmatprep.subr.mxu0 0.0
    %1617 = vmatpush1.msra.mxu0 0.0
    %1618 = vmatprep.subr.mxu0 0.0
    %1619 = vmatpush1.msra.mxu0 0.0
    %1620 = vmatprep.subr.mxu0 0.0
    %1621 = vmatpush1.msra.mxu0 0.0
    %1622 = vmatprep.subr.mxu0 0.0
    %1623 = vmatpush1.msra.mxu0 0.0
    %1624 = vmatprep.subr.mxu0 0.0
    %1625 = vmatpush1.msra.mxu0 0.0
    %1626 = vmatprep.subr.mxu0 0.0
    %1627 = vmatpush1.msra.mxu0 0.0
    %1628 = vmatprep.subr.mxu0 0.0
    %1629 = vmatpush1.msra.mxu0 0.0
    %1630 = vmatprep.subr.mxu0 0.0
    %1631 = vmatpush1.msra.mxu0 %v1275
    %1632 = vmatprep.subr.mxu0 0.0
    %1633 = vmatpush1.msra.mxu0 %v1274
    %1634 = vmatprep.subr.mxu0 0.0
    %1635 = vmatpush1.msra.mxu0 %v1273
    %1636 = vmatprep.subr.mxu0 0.0
    %1637 = vmatpush1.msra.mxu0 %v1272
    %1638 = vmatprep.subr.mxu0 0.0
    %1639 = vmatpush2.msra.mxu0 0.0
    %1640 = vmatprep.subr.mxu0 0.0
    %1641 = vmatpush2.msra.mxu0 0.0
    %1642 = vmatprep.subr.mxu0 0.0
    %1643 = vmatpush2.msra.mxu0 0.0
    %1644 = vmatprep.subr.mxu0 0.0
    %1645 = vmatpush2.msra.mxu0 0.0
    %1646 = vmatprep.subr.mxu0 0.0
    %1647 = vmatpush2.msra.mxu0 0.0
    %1648 = vmatprep.subr.mxu0 0.0
    %1649 = vmatpush2.msra.mxu0 0.0
    %1650 = vmatprep.subr.mxu0 0.0
    %1651 = vmatpush2.msra.mxu0 0.0
    %1652 = vmatprep.subr.mxu0 0.0
    %1653 = vmatpush2.msra.mxu0 0.0
    %1654 = vmatprep.subr.mxu0 0.0
    %1655 = vmatpush2.msra.mxu0 0.0
    %1656 = vmatprep.subr.mxu0 0.0
    %1657 = vmatpush2.msra.mxu0 0.0
    %1658 = vmatprep.subr.mxu0 0.0
    %1659 = vmatpush2.msra.mxu0 0.0
    %1660 = vmatprep.subr.mxu0 0.0
    %1661 = vmatpush2.msra.mxu0 0.0
    %1662 = vmatprep.subr.mxu0 0.0
    %1663 = vmatpush2.msra.mxu0 0.0
    %1664 = vmatprep.subr.mxu0 0.0
    %1665 = vmatpush2.msra.mxu0 0.0
    %1666 = vmatprep.subr.mxu0 0.0
    %1667 = vmatpush2.msra.mxu0 0.0
    %1668 = vmatprep.subr.mxu0 0.0
    %1669 = vmatpush2.msra.mxu0 0.0
    %1670 = vmatprep.mubr.f32.mxu0 0.0
    %1671 = vmatmul.mubr.f32.gmra.mxu0 %v1604
    %v1672 = vpop.f32.mrf.mxu0
    %v1673 = vadd.f32 0.0, %v1672
    %v1674 = vpop.f32.mrf.mxu0
    %1675 = vdwg.mxu0
    %v1677 = vrot.slane %v1673, 6
    %v1679 = vadd.f32 %v1006, %v1677
    %v1680 = vxor.u32 %v1679, 2147483648
    %v1681 = vmul.f32 %v1680, 1.442695
    %v1682 = vpow.pop %v1681
    %v1683 = vadd.f32 %v1682, 1.0
    %v1684 = vrcp.pop %v1683
    %v1685 = vmul.f32 1.0, %v1684
    %1686 = vmatprep.subr.mxu0 0.0
    %1687 = vmatpush1.msra.mxu0 0.0
    %1688 = vmatprep.subr.mxu0 0.0
    %1689 = vmatpush1.msra.mxu0 0.0
    %1690 = vmatprep.subr.mxu0 0.0
    %1691 = vmatpush1.msra.mxu0 0.0
    %1692 = vmatprep.subr.mxu0 0.0
    %1693 = vmatpush1.msra.mxu0 0.0
    %1694 = vmatprep.subr.mxu0 0.0
    %1695 = vmatpush1.msra.mxu0 0.0
    %1696 = vmatprep.subr.mxu0 0.0
    %1697 = vmatpush1.msra.mxu0 0.0
    %1698 = vmatprep.subr.mxu0 0.0
    %1699 = vmatpush1.msra.mxu0 0.0
    %1700 = vmatprep.subr.mxu0 0.0
    %1701 = vmatpush1.msra.mxu0 0.0
    %1702 = vmatprep.subr.mxu0 0.0
    %1703 = vmatpush1.msra.mxu0 0.0
    %1704 = vmatprep.subr.mxu0 0.0
    %1705 = vmatpush1.msra.mxu0 0.0
    %1706 = vmatprep.subr.mxu0 0.0
    %1707 = vmatpush1.msra.mxu0 0.0
    %1708 = vmatprep.subr.mxu0 0.0
    %1709 = vmatpush1.msra.mxu0 0.0
    %1710 = vmatprep.subr.mxu0 0.0
    %1711 = vmatpush1.msra.mxu0 %v1280
    %1712 = vmatprep.subr.mxu0 0.0
    %1713 = vmatpush1.msra.mxu0 %v1279
    %1714 = vmatprep.subr.mxu0 0.0
    %1715 = vmatpush1.msra.mxu0 %v1278
    %1716 = vmatprep.subr.mxu0 0.0
    %1717 = vmatpush1.msra.mxu0 %v1277
    %1718 = vmatprep.subr.mxu0 0.0
    %1719 = vmatpush2.msra.mxu0 0.0
    %1720 = vmatprep.subr.mxu0 0.0
    %1721 = vmatpush2.msra.mxu0 0.0
    %1722 = vmatprep.subr.mxu0 0.0
    %1723 = vmatpush2.msra.mxu0 0.0
    %1724 = vmatprep.subr.mxu0 0.0
    %1725 = vmatpush2.msra.mxu0 0.0
    %1726 = vmatprep.subr.mxu0 0.0
    %1727 = vmatpush2.msra.mxu0 0.0
    %1728 = vmatprep.subr.mxu0 0.0
    %1729 = vmatpush2.msra.mxu0 0.0
    %1730 = vmatprep.subr.mxu0 0.0
    %1731 = vmatpush2.msra.mxu0 0.0
    %1732 = vmatprep.subr.mxu0 0.0
    %1733 = vmatpush2.msra.mxu0 0.0
    %1734 = vmatprep.subr.mxu0 0.0
    %1735 = vmatpush2.msra.mxu0 0.0
    %1736 = vmatprep.subr.mxu0 0.0
    %1737 = vmatpush2.msra.mxu0 0.0
    %1738 = vmatprep.subr.mxu0 0.0
    %1739 = vmatpush2.msra.mxu0 0.0
    %1740 = vmatprep.subr.mxu0 0.0
    %1741 = vmatpush2.msra.mxu0 0.0
    %1742 = vmatprep.subr.mxu0 0.0
    %1743 = vmatpush2.msra.mxu0 0.0
    %1744 = vmatprep.subr.mxu0 0.0
    %1745 = vmatpush2.msra.mxu0 0.0
    %1746 = vmatprep.subr.mxu0 0.0
    %1747 = vmatpush2.msra.mxu0 0.0
    %1748 = vmatprep.subr.mxu0 0.0
    %1749 = vmatpush2.msra.mxu0 0.0
    %1750 = vmatprep.mubr.f32.mxu0 0.0
    %1751 = vmatmul.mubr.f32.gmra.mxu0 %v1604
    %v1752 = vpop.f32.mrf.mxu0
    %v1753 = vadd.f32 0.0, %v1752
    %v1754 = vpop.f32.mrf.mxu0
    %1755 = vdwg.mxu0
    %v1757 = vrot.slane %v1753, 6
    %v1759 = vadd.f32 %v1092, %v1757
    %v1760 = vxor.u32 %v1759, 2147483648
    %v1761 = vmul.f32 %v1760, 1.442695
    %v1762 = vpow.pop %v1761
    %v1763 = vadd.f32 %v1762, 1.0
    %v1764 = vrcp.pop %v1763
    %v1765 = vmul.f32 1.0, %v1764
    %1766 = vmatprep.subr.mxu0 0.0
    %1767 = vmatpush1.msra.mxu0 0.0
    %1768 = vmatprep.subr.mxu0 0.0
    %1769 = vmatpush1.msra.mxu0 0.0
    %1770 = vmatprep.subr.mxu0 0.0
    %1771 = vmatpush1.msra.mxu0 0.0
    %1772 = vmatprep.subr.mxu0 0.0
    %1773 = vmatpush1.msra.mxu0 0.0
    %1774 = vmatprep.subr.mxu0 0.0
    %1775 = vmatpush1.msra.mxu0 0.0
    %1776 = vmatprep.subr.mxu0 0.0
    %1777 = vmatpush1.msra.mxu0 0.0
    %1778 = vmatprep.subr.mxu0 0.0
    %1779 = vmatpush1.msra.mxu0 0.0
    %1780 = vmatprep.subr.mxu0 0.0
    %1781 = vmatpush1.msra.mxu0 0.0
    %1782 = vmatprep.subr.mxu0 0.0
    %1783 = vmatpush1.msra.mxu0 0.0
    %1784 = vmatprep.subr.mxu0 0.0
    %1785 = vmatpush1.msra.mxu0 0.0
    %1786 = vmatprep.subr.mxu0 0.0
    %1787 = vmatpush1.msra.mxu0 0.0
    %1788 = vmatprep.subr.mxu0 0.0
    %1789 = vmatpush1.msra.mxu0 0.0
    %1790 = vmatprep.subr.mxu0 0.0
    %1791 = vmatpush1.msra.mxu0 %v1285
    %1792 = vmatprep.subr.mxu0 0.0
    %1793 = vmatpush1.msra.mxu0 %v1284
    %1794 = vmatprep.subr.mxu0 0.0
    %1795 = vmatpush1.msra.mxu0 %v1283
    %1796 = vmatprep.subr.mxu0 0.0
    %1797 = vmatpush1.msra.mxu0 %v1282
    %1798 = vmatprep.subr.mxu0 0.0
    %1799 = vmatpush2.msra.mxu0 0.0
    %1800 = vmatprep.subr.mxu0 0.0
    %1801 = vmatpush2.msra.mxu0 0.0
    %1802 = vmatprep.subr.mxu0 0.0
    %1803 = vmatpush2.msra.mxu0 0.0
    %1804 = vmatprep.subr.mxu0 0.0
    %1805 = vmatpush2.msra.mxu0 0.0
    %1806 = vmatprep.subr.mxu0 0.0
    %1807 = vmatpush2.msra.mxu0 0.0
    %1808 = vmatprep.subr.mxu0 0.0
    %1809 = vmatpush2.msra.mxu0 0.0
    %1810 = vmatprep.subr.mxu0 0.0
    %1811 = vmatpush2.msra.mxu0 0.0
    %1812 = vmatprep.subr.mxu0 0.0
    %1813 = vmatpush2.msra.mxu0 0.0
    %1814 = vmatprep.subr.mxu0 0.0
    %1815 = vmatpush2.msra.mxu0 0.0
    %1816 = vmatprep.subr.mxu0 0.0
    %1817 = vmatpush2.msra.mxu0 0.0
    %1818 = vmatprep.subr.mxu0 0.0
    %1819 = vmatpush2.msra.mxu0 0.0
    %1820 = vmatprep.subr.mxu0 0.0
    %1821 = vmatpush2.msra.mxu0 0.0
    %1822 = vmatprep.subr.mxu0 0.0
    %1823 = vmatpush2.msra.mxu0 0.0
    %1824 = vmatprep.subr.mxu0 0.0
    %1825 = vmatpush2.msra.mxu0 0.0
    %1826 = vmatprep.subr.mxu0 0.0
    %1827 = vmatpush2.msra.mxu0 0.0
    %1828 = vmatprep.subr.mxu0 0.0
    %1829 = vmatpush2.msra.mxu0 0.0
    %1830 = vmatprep.mubr.f32.mxu0 0.0
    %1831 = vmatmul.mubr.f32.gmra.mxu0 %v1604
    %v1832 = vpop.f32.mrf.mxu0
    %v1833 = vadd.f32 0.0, %v1832
    %v1834 = vpop.f32.mrf.mxu0
    %1835 = vdwg.mxu0
    %v1837 = vrot.slane %v1833, 6
    %v1839 = vadd.f32 %v1178, %v1837
    %v1840 = vtanh.pop %v1839
    %1841 = vmatprep.subr.mxu0 0.0
    %1842 = vmatpush1.msra.mxu0 0.0
    %1843 = vmatprep.subr.mxu0 0.0
    %1844 = vmatpush1.msra.mxu0 0.0
    %1845 = vmatprep.subr.mxu0 0.0
    %1846 = vmatpush1.msra.mxu0 0.0
    %1847 = vmatprep.subr.mxu0 0.0
    %1848 = vmatpush1.msra.mxu0 0.0
    %1849 = vmatprep.subr.mxu0 0.0
    %1850 = vmatpush1.msra.mxu0 0.0
    %1851 = vmatprep.subr.mxu0 0.0
    %1852 = vmatpush1.msra.mxu0 0.0
    %1853 = vmatprep.subr.mxu0 0.0
    %1854 = vmatpush1.msra.mxu0 0.0
    %1855 = vmatprep.subr.mxu0 0.0
    %1856 = vmatpush1.msra.mxu0 0.0
    %1857 = vmatprep.subr.mxu0 0.0
    %1858 = vmatpush1.msra.mxu0 0.0
    %1859 = vmatprep.subr.mxu0 0.0
    %1860 = vmatpush1.msra.mxu0 0.0
    %1861 = vmatprep.subr.mxu0 0.0
    %1862 = vmatpush1.msra.mxu0 0.0
    %1863 = vmatprep.subr.mxu0 0.0
    %1864 = vmatpush1.msra.mxu0 0.0
    %1865 = vmatprep.subr.mxu0 0.0
    %1866 = vmatpush1.msra.mxu0 %v1290
    %1867 = vmatprep.subr.mxu0 0.0
    %1868 = vmatpush1.msra.mxu0 %v1289
    %1869 = vmatprep.subr.mxu0 0.0
    %1870 = vmatpush1.msra.mxu0 %v1288
    %1871 = vmatprep.subr.mxu0 0.0
    %1872 = vmatpush1.msra.mxu0 %v1287
    %1873 = vmatprep.subr.mxu0 0.0
    %1874 = vmatpush2.msra.mxu0 0.0
    %1875 = vmatprep.subr.mxu0 0.0
    %1876 = vmatpush2.msra.mxu0 0.0
    %1877 = vmatprep.subr.mxu0 0.0
    %1878 = vmatpush2.msra.mxu0 0.0
    %1879 = vmatprep.subr.mxu0 0.0
    %1880 = vmatpush2.msra.mxu0 0.0
    %1881 = vmatprep.subr.mxu0 0.0
    %1882 = vmatpush2.msra.mxu0 0.0
    %1883 = vmatprep.subr.mxu0 0.0
    %1884 = vmatpush2.msra.mxu0 0.0
    %1885 = vmatprep.subr.mxu0 0.0
    %1886 = vmatpush2.msra.mxu0 0.0
    %1887 = vmatprep.subr.mxu0 0.0
    %1888 = vmatpush2.msra.mxu0 0.0
    %1889 = vmatprep.subr.mxu0 0.0
    %1890 = vmatpush2.msra.mxu0 0.0
    %1891 = vmatprep.subr.mxu0 0.0
    %1892 = vmatpush2.msra.mxu0 0.0
    %1893 = vmatprep.subr.mxu0 0.0
    %1894 = vmatpush2.msra.mxu0 0.0
    %1895 = vmatprep.subr.mxu0 0.0
    %1896 = vmatpush2.msra.mxu0 0.0
    %1897 = vmatprep.subr.mxu0 0.0
    %1898 = vmatpush2.msra.mxu0 0.0
    %1899 = vmatprep.subr.mxu0 0.0
    %1900 = vmatpush2.msra.mxu0 0.0
    %1901 = vmatprep.subr.mxu0 0.0
    %1902 = vmatpush2.msra.mxu0 0.0
    %1903 = vmatprep.subr.mxu0 0.0
    %1904 = vmatpush2.msra.mxu0 0.0
    %1905 = vmatprep.mubr.f32.mxu0 0.0
    %1906 = vmatmul.mubr.f32.gmra.mxu0 %v1604
    %v1907 = vpop.f32.mrf.mxu0
    %v1908 = vadd.f32 0.0, %v1907
    %v1909 = vpop.f32.mrf.mxu0
    %1910 = vdwg.mxu0
    %v1912 = vrot.slane %v1908, 6
    %v1914 = vadd.f32 %v1264, %v1912
    %v1915 = vxor.u32 %v1914, 2147483648
    %v1916 = vmul.f32 %v1915, 1.442695
    %v1917 = vpow.pop %v1916
    %v1918 = vadd.f32 %v1917, 1.0
    %v1919 = vrcp.pop %v1918
    %v1920 = vmul.f32 1.0, %v1919
    %v1922 = vrot.slane %v1600, 6
    %v1924 = vmul.f32 %v1765, %v1922
    %v1925 = vmul.f32 %v1685, %v1840
    %v1926 = vadd.f32 %v1924, %v1925
    %v1927 = vtanh.pop %v1926
    %v1928 = vmul.f32 %v1920, %v1927
    %v1930 = vrot.slane %v1928, 2
    %v1931 = vsel %vm1291, %v1930, 0
    %1933 = vmatprep.subr.mxu0 0.0
    %1934 = vmatpush1.msra.mxu0 0.0
    %1935 = vmatprep.subr.mxu0 0.0
    %1936 = vmatpush1.msra.mxu0 0.0
    %1937 = vmatprep.subr.mxu0 0.0
    %1938 = vmatpush1.msra.mxu0 0.0
    %1939 = vmatprep.subr.mxu0 0.0
    %1940 = vmatpush1.msra.mxu0 0.0
    %1941 = vmatprep.subr.mxu0 0.0
    %1942 = vmatpush1.msra.mxu0 0.0
    %1943 = vmatprep.subr.mxu0 0.0
    %1944 = vmatpush1.msra.mxu0 0.0
    %1945 = vmatprep.subr.mxu0 0.0
    %1946 = vmatpush1.msra.mxu0 0.0
    %1947 = vmatprep.subr.mxu0 0.0
    %1948 = vmatpush1.msra.mxu0 0.0
    %1949 = vmatprep.subr.mxu0 0.0
    %1950 = vmatpush1.msra.mxu0 0.0
    %1951 = vmatprep.subr.mxu0 0.0
    %1952 = vmatpush1.msra.mxu0 0.0
    %1953 = vmatprep.subr.mxu0 0.0
    %1954 = vmatpush1.msra.mxu0 0.0
    %1955 = vmatprep.subr.mxu0 0.0
    %1956 = vmatpush1.msra.mxu0 0.0
    %1957 = vmatprep.subr.mxu0 0.0
    %1958 = vmatpush1.msra.mxu0 %v1275
    %1959 = vmatprep.subr.mxu0 0.0
    %1960 = vmatpush1.msra.mxu0 %v1274
    %1961 = vmatprep.subr.mxu0 0.0
    %1962 = vmatpush1.msra.mxu0 %v1273
    %1963 = vmatprep.subr.mxu0 0.0
    %1964 = vmatpush1.msra.mxu0 %v1272
    %1965 = vmatprep.subr.mxu0 0.0
    %1966 = vmatpush2.msra.mxu0 0.0
    %1967 = vmatprep.subr.mxu0 0.0
    %1968 = vmatpush2.msra.mxu0 0.0
    %1969 = vmatprep.subr.mxu0 0.0
    %1970 = vmatpush2.msra.mxu0 0.0
    %1971 = vmatprep.subr.mxu0 0.0
    %1972 = vmatpush2.msra.mxu0 0.0
    %1973 = vmatprep.subr.mxu0 0.0
    %1974 = vmatpush2.msra.mxu0 0.0
    %1975 = vmatprep.subr.mxu0 0.0
    %1976 = vmatpush2.msra.mxu0 0.0
    %1977 = vmatprep.subr.mxu0 0.0
    %1978 = vmatpush2.msra.mxu0 0.0
    %1979 = vmatprep.subr.mxu0 0.0
    %1980 = vmatpush2.msra.mxu0 0.0
    %1981 = vmatprep.subr.mxu0 0.0
    %1982 = vmatpush2.msra.mxu0 0.0
    %1983 = vmatprep.subr.mxu0 0.0
    %1984 = vmatpush2.msra.mxu0 0.0
    %1985 = vmatprep.subr.mxu0 0.0
    %1986 = vmatpush2.msra.mxu0 0.0
    %1987 = vmatprep.subr.mxu0 0.0
    %1988 = vmatpush2.msra.mxu0 0.0
    %1989 = vmatprep.subr.mxu0 0.0
    %1990 = vmatpush2.msra.mxu0 0.0
    %1991 = vmatprep.subr.mxu0 0.0
    %1992 = vmatpush2.msra.mxu0 0.0
    %1993 = vmatprep.subr.mxu0 0.0
    %1994 = vmatpush2.msra.mxu0 0.0
    %1995 = vmatprep.subr.mxu0 0.0
    %1996 = vmatpush2.msra.mxu0 0.0
    %1997 = vmatprep.mubr.f32.mxu0 0.0
    %1998 = vmatmul.mubr.f32.gmra.mxu0 %v1931
    %v1999 = vpop.f32.mrf.mxu0
    %v2000 = vadd.f32 0.0, %v1999
    %v2001 = vpop.f32.mrf.mxu0
    %2002 = vdwg.mxu0
    %v2004 = vrot.slane %v2000, 4
    %v2006 = vadd.f32 %v1006, %v2004
    %v2007 = vxor.u32 %v2006, 2147483648
    %v2008 = vmul.f32 %v2007, 1.442695
    %v2009 = vpow.pop %v2008
    %v2010 = vadd.f32 %v2009, 1.0
    %v2011 = vrcp.pop %v2010
    %v2012 = vmul.f32 1.0, %v2011
    %2013 = vmatprep.subr.mxu0 0.0
    %2014 = vmatpush1.msra.mxu0 0.0
    %2015 = vmatprep.subr.mxu0 0.0
    %2016 = vmatpush1.msra.mxu0 0.0
    %2017 = vmatprep.subr.mxu0 0.0
    %2018 = vmatpush1.msra.mxu0 0.0
    %2019 = vmatprep.subr.mxu0 0.0
    %2020 = vmatpush1.msra.mxu0 0.0
    %2021 = vmatprep.subr.mxu0 0.0
    %2022 = vmatpush1.msra.mxu0 0.0
    %2023 = vmatprep.subr.mxu0 0.0
    %2024 = vmatpush1.msra.mxu0 0.0
    %2025 = vmatprep.subr.mxu0 0.0
    %2026 = vmatpush1.msra.mxu0 0.0
    %2027 = vmatprep.subr.mxu0 0.0
    %2028 = vmatpush1.msra.mxu0 0.0
    %2029 = vmatprep.subr.mxu0 0.0
    %2030 = vmatpush1.msra.mxu0 0.0
    %2031 = vmatprep.subr.mxu0 0.0
    %2032 = vmatpush1.msra.mxu0 0.0
    %2033 = vmatprep.subr.mxu0 0.0
    %2034 = vmatpush1.msra.mxu0 0.0
    %2035 = vmatprep.subr.mxu0 0.0
    %2036 = vmatpush1.msra.mxu0 0.0
    %2037 = vmatprep.subr.mxu0 0.0
    %2038 = vmatpush1.msra.mxu0 %v1280
    %2039 = vmatprep.subr.mxu0 0.0
    %2040 = vmatpush1.msra.mxu0 %v1279
    %2041 = vmatprep.subr.mxu0 0.0
    %2042 = vmatpush1.msra.mxu0 %v1278
    %2043 = vmatprep.subr.mxu0 0.0
    %2044 = vmatpush1.msra.mxu0 %v1277
    %2045 = vmatprep.subr.mxu0 0.0
    %2046 = vmatpush2.msra.mxu0 0.0
    %2047 = vmatprep.subr.mxu0 0.0
    %2048 = vmatpush2.msra.mxu0 0.0
    %2049 = vmatprep.subr.mxu0 0.0
    %2050 = vmatpush2.msra.mxu0 0.0
    %2051 = vmatprep.subr.mxu0 0.0
    %2052 = vmatpush2.msra.mxu0 0.0
    %2053 = vmatprep.subr.mxu0 0.0
    %2054 = vmatpush2.msra.mxu0 0.0
    %2055 = vmatprep.subr.mxu0 0.0
    %2056 = vmatpush2.msra.mxu0 0.0
    %2057 = vmatprep.subr.mxu0 0.0
    %2058 = vmatpush2.msra.mxu0 0.0
    %2059 = vmatprep.subr.mxu0 0.0
    %2060 = vmatpush2.msra.mxu0 0.0
    %2061 = vmatprep.subr.mxu0 0.0
    %2062 = vmatpush2.msra.mxu0 0.0
    %2063 = vmatprep.subr.mxu0 0.0
    %2064 = vmatpush2.msra.mxu0 0.0
    %2065 = vmatprep.subr.mxu0 0.0
    %2066 = vmatpush2.msra.mxu0 0.0
    %2067 = vmatprep.subr.mxu0 0.0
    %2068 = vmatpush2.msra.mxu0 0.0
    %2069 = vmatprep.subr.mxu0 0.0
    %2070 = vmatpush2.msra.mxu0 0.0
    %2071 = vmatprep.subr.mxu0 0.0
    %2072 = vmatpush2.msra.mxu0 0.0
    %2073 = vmatprep.subr.mxu0 0.0
    %2074 = vmatpush2.msra.mxu0 0.0
    %2075 = vmatprep.subr.mxu0 0.0
    %2076 = vmatpush2.msra.mxu0 0.0
    %2077 = vmatprep.mubr.f32.mxu0 0.0
    %2078 = vmatmul.mubr.f32.gmra.mxu0 %v1931
    %v2079 = vpop.f32.mrf.mxu0
    %v2080 = vadd.f32 0.0, %v2079
    %v2081 = vpop.f32.mrf.mxu0
    %2082 = vdwg.mxu0
    %v2084 = vrot.slane %v2080, 4
    %v2086 = vadd.f32 %v1092, %v2084
    %v2087 = vxor.u32 %v2086, 2147483648
    %v2088 = vmul.f32 %v2087, 1.442695
    %v2089 = vpow.pop %v2088
    %v2090 = vadd.f32 %v2089, 1.0
    %v2091 = vrcp.pop %v2090
    %v2092 = vmul.f32 1.0, %v2091
    %2093 = vmatprep.subr.mxu0 0.0
    %2094 = vmatpush1.msra.mxu0 0.0
    %2095 = vmatprep.subr.mxu0 0.0
    %2096 = vmatpush1.msra.mxu0 0.0
    %2097 = vmatprep.subr.mxu0 0.0
    %2098 = vmatpush1.msra.mxu0 0.0
    %2099 = vmatprep.subr.mxu0 0.0
    %2100 = vmatpush1.msra.mxu0 0.0
    %2101 = vmatprep.subr.mxu0 0.0
    %2102 = vmatpush1.msra.mxu0 0.0
    %2103 = vmatprep.subr.mxu0 0.0
    %2104 = vmatpush1.msra.mxu0 0.0
    %2105 = vmatprep.subr.mxu0 0.0
    %2106 = vmatpush1.msra.mxu0 0.0
    %2107 = vmatprep.subr.mxu0 0.0
    %2108 = vmatpush1.msra.mxu0 0.0
    %2109 = vmatprep.subr.mxu0 0.0
    %2110 = vmatpush1.msra.mxu0 0.0
    %2111 = vmatprep.subr.mxu0 0.0
    %2112 = vmatpush1.msra.mxu0 0.0
    %2113 = vmatprep.subr.mxu0 0.0
    %2114 = vmatpush1.msra.mxu0 0.0
    %2115 = vmatprep.subr.mxu0 0.0
    %2116 = vmatpush1.msra.mxu0 0.0
    %2117 = vmatprep.subr.mxu0 0.0
    %2118 = vmatpush1.msra.mxu0 %v1285
    %2119 = vmatprep.subr.mxu0 0.0
    %2120 = vmatpush1.msra.mxu0 %v1284
    %2121 = vmatprep.subr.mxu0 0.0
    %2122 = vmatpush1.msra.mxu0 %v1283
    %2123 = vmatprep.subr.mxu0 0.0
    %2124 = vmatpush1.msra.mxu0 %v1282
    %2125 = vmatprep.subr.mxu0 0.0
    %2126 = vmatpush2.msra.mxu0 0.0
    %2127 = vmatprep.subr.mxu0 0.0
    %2128 = vmatpush2.msra.mxu0 0.0
    %2129 = vmatprep.subr.mxu0 0.0
    %2130 = vmatpush2.msra.mxu0 0.0
    %2131 = vmatprep.subr.mxu0 0.0
    %2132 = vmatpush2.msra.mxu0 0.0
    %2133 = vmatprep.subr.mxu0 0.0
    %2134 = vmatpush2.msra.mxu0 0.0
    %2135 = vmatprep.subr.mxu0 0.0
    %2136 = vmatpush2.msra.mxu0 0.0
    %2137 = vmatprep.subr.mxu0 0.0
    %2138 = vmatpush2.msra.mxu0 0.0
    %2139 = vmatprep.subr.mxu0 0.0
    %2140 = vmatpush2.msra.mxu0 0.0
    %2141 = vmatprep.subr.mxu0 0.0
    %2142 = vmatpush2.msra.mxu0 0.0
    %2143 = vmatprep.subr.mxu0 0.0
    %2144 = vmatpush2.msra.mxu0 0.0
    %2145 = vmatprep.subr.mxu0 0.0
    %2146 = vmatpush2.msra.mxu0 0.0
    %2147 = vmatprep.subr.mxu0 0.0
    %2148 = vmatpush2.msra.mxu0 0.0
    %2149 = vmatprep.subr.mxu0 0.0
    %2150 = vmatpush2.msra.mxu0 0.0
    %2151 = vmatprep.subr.mxu0 0.0
    %2152 = vmatpush2.msra.mxu0 0.0
    %2153 = vmatprep.subr.mxu0 0.0
    %2154 = vmatpush2.msra.mxu0 0.0
    %2155 = vmatprep.subr.mxu0 0.0
    %2156 = vmatpush2.msra.mxu0 0.0
    %2157 = vmatprep.mubr.f32.mxu0 0.0
    %2158 = vmatmul.mubr.f32.gmra.mxu0 %v1931
    %v2159 = vpop.f32.mrf.mxu0
    %v2160 = vadd.f32 0.0, %v2159
    %v2161 = vpop.f32.mrf.mxu0
    %2162 = vdwg.mxu0
    %v2164 = vrot.slane %v2160, 4
    %v2166 = vadd.f32 %v1178, %v2164
    %v2167 = vtanh.pop %v2166
    %2168 = vmatprep.subr.mxu0 0.0
    %2169 = vmatpush1.msra.mxu0 0.0
    %2170 = vmatprep.subr.mxu0 0.0
    %2171 = vmatpush1.msra.mxu0 0.0
    %2172 = vmatprep.subr.mxu0 0.0
    %2173 = vmatpush1.msra.mxu0 0.0
    %2174 = vmatprep.subr.mxu0 0.0
    %2175 = vmatpush1.msra.mxu0 0.0
    %2176 = vmatprep.subr.mxu0 0.0
    %2177 = vmatpush1.msra.mxu0 0.0
    %2178 = vmatprep.subr.mxu0 0.0
    %2179 = vmatpush1.msra.mxu0 0.0
    %2180 = vmatprep.subr.mxu0 0.0
    %2181 = vmatpush1.msra.mxu0 0.0
    %2182 = vmatprep.subr.mxu0 0.0
    %2183 = vmatpush1.msra.mxu0 0.0
    %2184 = vmatprep.subr.mxu0 0.0
    %2185 = vmatpush1.msra.mxu0 0.0
    %2186 = vmatprep.subr.mxu0 0.0
    %2187 = vmatpush1.msra.mxu0 0.0
    %2188 = vmatprep.subr.mxu0 0.0
    %2189 = vmatpush1.msra.mxu0 0.0
    %2190 = vmatprep.subr.mxu0 0.0
    %2191 = vmatpush1.msra.mxu0 0.0
    %2192 = vmatprep.subr.mxu0 0.0
    %2193 = vmatpush1.msra.mxu0 %v1290
    %2194 = vmatprep.subr.mxu0 0.0
    %2195 = vmatpush1.msra.mxu0 %v1289
    %2196 = vmatprep.subr.mxu0 0.0
    %2197 = vmatpush1.msra.mxu0 %v1288
    %2198 = vmatprep.subr.mxu0 0.0
    %2199 = vmatpush1.msra.mxu0 %v1287
    %2200 = vmatprep.subr.mxu0 0.0
    %2201 = vmatpush2.msra.mxu0 0.0
    %2202 = vmatprep.subr.mxu0 0.0
    %2203 = vmatpush2.msra.mxu0 0.0
    %2204 = vmatprep.subr.mxu0 0.0
    %2205 = vmatpush2.msra.mxu0 0.0
    %2206 = vmatprep.subr.mxu0 0.0
    %2207 = vmatpush2.msra.mxu0 0.0
    %2208 = vmatprep.subr.mxu0 0.0
    %2209 = vmatpush2.msra.mxu0 0.0
    %2210 = vmatprep.subr.mxu0 0.0
    %2211 = vmatpush2.msra.mxu0 0.0
    %2212 = vmatprep.subr.mxu0 0.0
    %2213 = vmatpush2.msra.mxu0 0.0
    %2214 = vmatprep.subr.mxu0 0.0
    %2215 = vmatpush2.msra.mxu0 0.0
    %2216 = vmatprep.subr.mxu0 0.0
    %2217 = vmatpush2.msra.mxu0 0.0
    %2218 = vmatprep.subr.mxu0 0.0
    %2219 = vmatpush2.msra.mxu0 0.0
    %2220 = vmatprep.subr.mxu0 0.0
    %2221 = vmatpush2.msra.mxu0 0.0
    %2222 = vmatprep.subr.mxu0 0.0
    %2223 = vmatpush2.msra.mxu0 0.0
    %2224 = vmatprep.subr.mxu0 0.0
    %2225 = vmatpush2.msra.mxu0 0.0
    %2226 = vmatprep.subr.mxu0 0.0
    %2227 = vmatpush2.msra.mxu0 0.0
    %2228 = vmatprep.subr.mxu0 0.0
    %2229 = vmatpush2.msra.mxu0 0.0
    %2230 = vmatprep.subr.mxu0 0.0
    %2231 = vmatpush2.msra.mxu0 0.0
    %2232 = vmatprep.mubr.f32.mxu0 0.0
    %2233 = vmatmul.mubr.f32.gmra.mxu0 %v1931
    %v2234 = vpop.f32.mrf.mxu0
    %v2235 = vadd.f32 0.0, %v2234
    %v2236 = vpop.f32.mrf.mxu0
    %2237 = vdwg.mxu0
    %v2239 = vrot.slane %v2235, 4
    %v2241 = vadd.f32 %v1264, %v2239
    %v2242 = vxor.u32 %v2241, 2147483648
    %v2243 = vmul.f32 %v2242, 1.442695
    %v2244 = vpow.pop %v2243
    %v2245 = vadd.f32 %v2244, 1.0
    %v2246 = vrcp.pop %v2245
    %v2247 = vmul.f32 1.0, %v2246
    %v2249 = vrot.slane %v1926, 6
    %v2251 = vmul.f32 %v2092, %v2249
    %v2252 = vmul.f32 %v2012, %v2167
    %v2253 = vadd.f32 %v2251, %v2252
    %v2254 = vtanh.pop %v2253
    %v2255 = vmul.f32 %v2247, %v2254
    %v2257 = vrot.slane %v2255, 4
    %v2258 = vsel %vm1291, %v2257, 0
    %2260 = vmatprep.subr.mxu0 0.0
    %2261 = vmatpush1.msra.mxu0 0.0
    %2262 = vmatprep.subr.mxu0 0.0
    %2263 = vmatpush1.msra.mxu0 0.0
    %2264 = vmatprep.subr.mxu0 0.0
    %2265 = vmatpush1.msra.mxu0 0.0
    %2266 = vmatprep.subr.mxu0 0.0
    %2267 = vmatpush1.msra.mxu0 0.0
    %2268 = vmatprep.subr.mxu0 0.0
    %2269 = vmatpush1.msra.mxu0 0.0
    %2270 = vmatprep.subr.mxu0 0.0
    %2271 = vmatpush1.msra.mxu0 0.0
    %2272 = vmatprep.subr.mxu0 0.0
    %2273 = vmatpush1.msra.mxu0 0.0
    %2274 = vmatprep.subr.mxu0 0.0
    %2275 = vmatpush1.msra.mxu0 0.0
    %2276 = vmatprep.subr.mxu0 0.0
    %2277 = vmatpush1.msra.mxu0 0.0
    %2278 = vmatprep.subr.mxu0 0.0
    %2279 = vmatpush1.msra.mxu0 0.0
    %2280 = vmatprep.subr.mxu0 0.0
    %2281 = vmatpush1.msra.mxu0 0.0
    %2282 = vmatprep.subr.mxu0 0.0
    %2283 = vmatpush1.msra.mxu0 0.0
    %2284 = vmatprep.subr.mxu0 0.0
    %2285 = vmatpush1.msra.mxu0 %v1275
    %2286 = vmatprep.subr.mxu0 0.0
    %2287 = vmatpush1.msra.mxu0 %v1274
    %2288 = vmatprep.subr.mxu0 0.0
    %2289 = vmatpush1.msra.mxu0 %v1273
    %2290 = vmatprep.subr.mxu0 0.0
    %2291 = vmatpush1.msra.mxu0 %v1272
    %2292 = vmatprep.subr.mxu0 0.0
    %2293 = vmatpush2.msra.mxu0 0.0
    %2294 = vmatprep.subr.mxu0 0.0
    %2295 = vmatpush2.msra.mxu0 0.0
    %2296 = vmatprep.subr.mxu0 0.0
    %2297 = vmatpush2.msra.mxu0 0.0
    %2298 = vmatprep.subr.mxu0 0.0
    %2299 = vmatpush2.msra.mxu0 0.0
    %2300 = vmatprep.subr.mxu0 0.0
    %2301 = vmatpush2.msra.mxu0 0.0
    %2302 = vmatprep.subr.mxu0 0.0
    %2303 = vmatpush2.msra.mxu0 0.0
    %2304 = vmatprep.subr.mxu0 0.0
    %2305 = vmatpush2.msra.mxu0 0.0
    %2306 = vmatprep.subr.mxu0 0.0
    %2307 = vmatpush2.msra.mxu0 0.0
    %2308 = vmatprep.subr.mxu0 0.0
    %2309 = vmatpush2.msra.mxu0 0.0
    %2310 = vmatprep.subr.mxu0 0.0
    %2311 = vmatpush2.msra.mxu0 0.0
    %2312 = vmatprep.subr.mxu0 0.0
    %2313 = vmatpush2.msra.mxu0 0.0
    %2314 = vmatprep.subr.mxu0 0.0
    %2315 = vmatpush2.msra.mxu0 0.0
    %2316 = vmatprep.subr.mxu0 0.0
    %2317 = vmatpush2.msra.mxu0 0.0
    %2318 = vmatprep.subr.mxu0 0.0
    %2319 = vmatpush2.msra.mxu0 0.0
    %2320 = vmatprep.subr.mxu0 0.0
    %2321 = vmatpush2.msra.mxu0 0.0
    %2322 = vmatprep.subr.mxu0 0.0
    %2323 = vmatpush2.msra.mxu0 0.0
    %2324 = vmatprep.mubr.f32.mxu0 0.0
    %2325 = vmatmul.mubr.f32.gmra.mxu0 %v2258
    %v2326 = vpop.f32.mrf.mxu0
    %v2327 = vadd.f32 0.0, %v2326
    %v2328 = vpop.f32.mrf.mxu0
    %2329 = vdwg.mxu0
    %v2331 = vrot.slane %v2327, 2
    %v2333 = vadd.f32 %v1006, %v2331
    %v2334 = vxor.u32 %v2333, 2147483648
    %v2335 = vmul.f32 %v2334, 1.442695
    %v2336 = vpow.pop %v2335
    %v2337 = vadd.f32 %v2336, 1.0
    %v2338 = vrcp.pop %v2337
    %v2339 = vmul.f32 1.0, %v2338
    %2340 = vmatprep.subr.mxu0 0.0
    %2341 = vmatpush1.msra.mxu0 0.0
    %2342 = vmatprep.subr.mxu0 0.0
    %2343 = vmatpush1.msra.mxu0 0.0
    %2344 = vmatprep.subr.mxu0 0.0
    %2345 = vmatpush1.msra.mxu0 0.0
    %2346 = vmatprep.subr.mxu0 0.0
    %2347 = vmatpush1.msra.mxu0 0.0
    %2348 = vmatprep.subr.mxu0 0.0
    %2349 = vmatpush1.msra.mxu0 0.0
    %2350 = vmatprep.subr.mxu0 0.0
    %2351 = vmatpush1.msra.mxu0 0.0
    %2352 = vmatprep.subr.mxu0 0.0
    %2353 = vmatpush1.msra.mxu0 0.0
    %2354 = vmatprep.subr.mxu0 0.0
    %2355 = vmatpush1.msra.mxu0 0.0
    %2356 = vmatprep.subr.mxu0 0.0
    %2357 = vmatpush1.msra.mxu0 0.0
    %2358 = vmatprep.subr.mxu0 0.0
    %2359 = vmatpush1.msra.mxu0 0.0
    %2360 = vmatprep.subr.mxu0 0.0
    %2361 = vmatpush1.msra.mxu0 0.0
    %2362 = vmatprep.subr.mxu0 0.0
    %2363 = vmatpush1.msra.mxu0 0.0
    %2364 = vmatprep.subr.mxu0 0.0
    %2365 = vmatpush1.msra.mxu0 %v1280
    %2366 = vmatprep.subr.mxu0 0.0
    %2367 = vmatpush1.msra.mxu0 %v1279
    %2368 = vmatprep.subr.mxu0 0.0
    %2369 = vmatpush1.msra.mxu0 %v1278
    %2370 = vmatprep.subr.mxu0 0.0
    %2371 = vmatpush1.msra.mxu0 %v1277
    %2372 = vmatprep.subr.mxu0 0.0
    %2373 = vmatpush2.msra.mxu0 0.0
    %2374 = vmatprep.subr.mxu0 0.0
    %2375 = vmatpush2.msra.mxu0 0.0
    %2376 = vmatprep.subr.mxu0 0.0
    %2377 = vmatpush2.msra.mxu0 0.0
    %2378 = vmatprep.subr.mxu0 0.0
    %2379 = vmatpush2.msra.mxu0 0.0
    %2380 = vmatprep.subr.mxu0 0.0
    %2381 = vmatpush2.msra.mxu0 0.0
    %2382 = vmatprep.subr.mxu0 0.0
    %2383 = vmatpush2.msra.mxu0 0.0
    %2384 = vmatprep.subr.mxu0 0.0
    %2385 = vmatpush2.msra.mxu0 0.0
    %2386 = vmatprep.subr.mxu0 0.0
    %2387 = vmatpush2.msra.mxu0 0.0
    %2388 = vmatprep.subr.mxu0 0.0
    %2389 = vmatpush2.msra.mxu0 0.0
    %2390 = vmatprep.subr.mxu0 0.0
    %2391 = vmatpush2.msra.mxu0 0.0
    %2392 = vmatprep.subr.mxu0 0.0
    %2393 = vmatpush2.msra.mxu0 0.0
    %2394 = vmatprep.subr.mxu0 0.0
    %2395 = vmatpush2.msra.mxu0 0.0
    %2396 = vmatprep.subr.mxu0 0.0
    %2397 = vmatpush2.msra.mxu0 0.0
    %2398 = vmatprep.subr.mxu0 0.0
    %2399 = vmatpush2.msra.mxu0 0.0
    %2400 = vmatprep.subr.mxu0 0.0
    %2401 = vmatpush2.msra.mxu0 0.0
    %2402 = vmatprep.subr.mxu0 0.0
    %2403 = vmatpush2.msra.mxu0 0.0
    %2404 = vmatprep.mubr.f32.mxu0 0.0
    %2405 = vmatmul.mubr.f32.gmra.mxu0 %v2258
    %v2406 = vpop.f32.mrf.mxu0
    %v2407 = vadd.f32 0.0, %v2406
    %v2408 = vpop.f32.mrf.mxu0
    %2409 = vdwg.mxu0
    %v2411 = vrot.slane %v2407, 2
    %v2413 = vadd.f32 %v1092, %v2411
    %v2414 = vxor.u32 %v2413, 2147483648
    %v2415 = vmul.f32 %v2414, 1.442695
    %v2416 = vpow.pop %v2415
    %v2417 = vadd.f32 %v2416, 1.0
    %v2418 = vrcp.pop %v2417
    %v2419 = vmul.f32 1.0, %v2418
    %2420 = vmatprep.subr.mxu0 0.0
    %2421 = vmatpush1.msra.mxu0 0.0
    %2422 = vmatprep.subr.mxu0 0.0
    %2423 = vmatpush1.msra.mxu0 0.0
    %2424 = vmatprep.subr.mxu0 0.0
    %2425 = vmatpush1.msra.mxu0 0.0
    %2426 = vmatprep.subr.mxu0 0.0
    %2427 = vmatpush1.msra.mxu0 0.0
    %2428 = vmatprep.subr.mxu0 0.0
    %2429 = vmatpush1.msra.mxu0 0.0
    %2430 = vmatprep.subr.mxu0 0.0
    %2431 = vmatpush1.msra.mxu0 0.0
    %2432 = vmatprep.subr.mxu0 0.0
    %2433 = vmatpush1.msra.mxu0 0.0
    %2434 = vmatprep.subr.mxu0 0.0
    %2435 = vmatpush1.msra.mxu0 0.0
    %2436 = vmatprep.subr.mxu0 0.0
    %2437 = vmatpush1.msra.mxu0 0.0
    %2438 = vmatprep.subr.mxu0 0.0
    %2439 = vmatpush1.msra.mxu0 0.0
    %2440 = vmatprep.subr.mxu0 0.0
    %2441 = vmatpush1.msra.mxu0 0.0
    %2442 = vmatprep.subr.mxu0 0.0
    %2443 = vmatpush1.msra.mxu0 0.0
    %2444 = vmatprep.subr.mxu0 0.0
    %2445 = vmatpush1.msra.mxu0 %v1285
    %2446 = vmatprep.subr.mxu0 0.0
    %2447 = vmatpush1.msra.mxu0 %v1284
    %2448 = vmatprep.subr.mxu0 0.0
    %2449 = vmatpush1.msra.mxu0 %v1283
    %2450 = vmatprep.subr.mxu0 0.0
    %2451 = vmatpush1.msra.mxu0 %v1282
    %2452 = vmatprep.subr.mxu0 0.0
    %2453 = vmatpush2.msra.mxu0 0.0
    %2454 = vmatprep.subr.mxu0 0.0
    %2455 = vmatpush2.msra.mxu0 0.0
    %2456 = vmatprep.subr.mxu0 0.0
    %2457 = vmatpush2.msra.mxu0 0.0
    %2458 = vmatprep.subr.mxu0 0.0
    %2459 = vmatpush2.msra.mxu0 0.0
    %2460 = vmatprep.subr.mxu0 0.0
    %2461 = vmatpush2.msra.mxu0 0.0
    %2462 = vmatprep.subr.mxu0 0.0
    %2463 = vmatpush2.msra.mxu0 0.0
    %2464 = vmatprep.subr.mxu0 0.0
    %2465 = vmatpush2.msra.mxu0 0.0
    %2466 = vmatprep.subr.mxu0 0.0
    %2467 = vmatpush2.msra.mxu0 0.0
    %2468 = vmatprep.subr.mxu0 0.0
    %2469 = vmatpush2.msra.mxu0 0.0
    %2470 = vmatprep.subr.mxu0 0.0
    %2471 = vmatpush2.msra.mxu0 0.0
    %2472 = vmatprep.subr.mxu0 0.0
    %2473 = vmatpush2.msra.mxu0 0.0
    %2474 = vmatprep.subr.mxu0 0.0
    %2475 = vmatpush2.msra.mxu0 0.0
    %2476 = vmatprep.subr.mxu0 0.0
    %2477 = vmatpush2.msra.mxu0 0.0
    %2478 = vmatprep.subr.mxu0 0.0
    %2479 = vmatpush2.msra.mxu0 0.0
    %2480 = vmatprep.subr.mxu0 0.0
    %2481 = vmatpush2.msra.mxu0 0.0
    %2482 = vmatprep.subr.mxu0 0.0
    %2483 = vmatpush2.msra.mxu0 0.0
    %2484 = vmatprep.mubr.f32.mxu0 0.0
    %2485 = vmatmul.mubr.f32.gmra.mxu0 %v2258
    %v2486 = vpop.f32.mrf.mxu0
    %v2487 = vadd.f32 0.0, %v2486
    %v2488 = vpop.f32.mrf.mxu0
    %2489 = vdwg.mxu0
    %v2491 = vrot.slane %v2487, 2
    %v2493 = vadd.f32 %v1178, %v2491
    %v2494 = vtanh.pop %v2493
    %2495 = vmatprep.subr.mxu0 0.0
    %2496 = vmatpush1.msra.mxu0 0.0
    %2497 = vmatprep.subr.mxu0 0.0
    %2498 = vmatpush1.msra.mxu0 0.0
    %2499 = vmatprep.subr.mxu0 0.0
    %2500 = vmatpush1.msra.mxu0 0.0
    %2501 = vmatprep.subr.mxu0 0.0
    %2502 = vmatpush1.msra.mxu0 0.0
    %2503 = vmatprep.subr.mxu0 0.0
    %2504 = vmatpush1.msra.mxu0 0.0
    %2505 = vmatprep.subr.mxu0 0.0
    %2506 = vmatpush1.msra.mxu0 0.0
    %2507 = vmatprep.subr.mxu0 0.0
    %2508 = vmatpush1.msra.mxu0 0.0
    %2509 = vmatprep.subr.mxu0 0.0
    %2510 = vmatpush1.msra.mxu0 0.0
    %2511 = vmatprep.subr.mxu0 0.0
    %2512 = vmatpush1.msra.mxu0 0.0
    %2513 = vmatprep.subr.mxu0 0.0
    %2514 = vmatpush1.msra.mxu0 0.0
    %2515 = vmatprep.subr.mxu0 0.0
    %2516 = vmatpush1.msra.mxu0 0.0
    %2517 = vmatprep.subr.mxu0 0.0
    %2518 = vmatpush1.msra.mxu0 0.0
    %2519 = vmatprep.subr.mxu0 0.0
    %2520 = vmatpush1.msra.mxu0 %v1290
    %2521 = vmatprep.subr.mxu0 0.0
    %2522 = vmatpush1.msra.mxu0 %v1289
    %2523 = vmatprep.subr.mxu0 0.0
    %2524 = vmatpush1.msra.mxu0 %v1288
    %2525 = vmatprep.subr.mxu0 0.0
    %2526 = vmatpush1.msra.mxu0 %v1287
    %2527 = vmatprep.subr.mxu0 0.0
    %2528 = vmatpush2.msra.mxu0 0.0
    %2529 = vmatprep.subr.mxu0 0.0
    %2530 = vmatpush2.msra.mxu0 0.0
    %2531 = vmatprep.subr.mxu0 0.0
    %2532 = vmatpush2.msra.mxu0 0.0
    %2533 = vmatprep.subr.mxu0 0.0
    %2534 = vmatpush2.msra.mxu0 0.0
    %2535 = vmatprep.subr.mxu0 0.0
    %2536 = vmatpush2.msra.mxu0 0.0
    %2537 = vmatprep.subr.mxu0 0.0
    %2538 = vmatpush2.msra.mxu0 0.0
    %2539 = vmatprep.subr.mxu0 0.0
    %2540 = vmatpush2.msra.mxu0 0.0
    %2541 = vmatprep.subr.mxu0 0.0
    %2542 = vmatpush2.msra.mxu0 0.0
    %2543 = vmatprep.subr.mxu0 0.0
    %2544 = vmatpush2.msra.mxu0 0.0
    %2545 = vmatprep.subr.mxu0 0.0
    %2546 = vmatpush2.msra.mxu0 0.0
    %2547 = vmatprep.subr.mxu0 0.0
    %2548 = vmatpush2.msra.mxu0 0.0
    %2549 = vmatprep.subr.mxu0 0.0
    %2550 = vmatpush2.msra.mxu0 0.0
    %2551 = vmatprep.subr.mxu0 0.0
    %2552 = vmatpush2.msra.mxu0 0.0
    %2553 = vmatprep.subr.mxu0 0.0
    %2554 = vmatpush2.msra.mxu0 0.0
    %2555 = vmatprep.subr.mxu0 0.0
    %2556 = vmatpush2.msra.mxu0 0.0
    %2557 = vmatprep.subr.mxu0 0.0
    %2558 = vmatpush2.msra.mxu0 0.0
    %2559 = vmatprep.mubr.f32.mxu0 0.0
    %2560 = vmatmul.mubr.f32.gmra.mxu0 %v2258
    %v2561 = vpop.f32.mrf.mxu0
    %v2562 = vadd.f32 0.0, %v2561
    %v2563 = vpop.f32.mrf.mxu0
    %2564 = vdwg.mxu0
    %v2566 = vrot.slane %v2562, 2
    %v2568 = vadd.f32 %v1264, %v2566
    %v2569 = vxor.u32 %v2568, 2147483648
    %v2570 = vmul.f32 %v2569, 1.442695
    %v2571 = vpow.pop %v2570
    %v2572 = vadd.f32 %v2571, 1.0
    %v2573 = vrcp.pop %v2572
    %v2574 = vmul.f32 1.0, %v2573
    %v2576 = vrot.slane %v2253, 6
    %v2578 = vmul.f32 %v2419, %v2576
    %v2579 = vmul.f32 %v2339, %v2494
    %v2580 = vadd.f32 %v2578, %v2579
    %v2581 = vtanh.pop %v2580
    %v2582 = vmul.f32 %v2574, %v2581
    %v2584 = vrot.slane %v2582, 6
    %v2585 = vsel %vm1291, %v2584, 0
    %2587 = vmatprep.subr.mxu0 0.0
    %2588 = vmatpush1.msra.mxu0 0.0
    %2589 = vmatprep.subr.mxu0 0.0
    %2590 = vmatpush1.msra.mxu0 0.0
    %2591 = vmatprep.subr.mxu0 0.0
    %2592 = vmatpush1.msra.mxu0 0.0
    %2593 = vmatprep.subr.mxu0 0.0
    %2594 = vmatpush1.msra.mxu0 0.0
    %2595 = vmatprep.subr.mxu0 0.0
    %2596 = vmatpush1.msra.mxu0 0.0
    %2597 = vmatprep.subr.mxu0 0.0
    %2598 = vmatpush1.msra.mxu0 0.0
    %2599 = vmatprep.subr.mxu0 0.0
    %2600 = vmatpush1.msra.mxu0 0.0
    %2601 = vmatprep.subr.mxu0 0.0
    %2602 = vmatpush1.msra.mxu0 0.0
    %2603 = vmatprep.subr.mxu0 0.0
    %2604 = vmatpush1.msra.mxu0 0.0
    %2605 = vmatprep.subr.mxu0 0.0
    %2606 = vmatpush1.msra.mxu0 0.0
    %2607 = vmatprep.subr.mxu0 0.0
    %2608 = vmatpush1.msra.mxu0 0.0
    %2609 = vmatprep.subr.mxu0 0.0
    %2610 = vmatpush1.msra.mxu0 0.0
    %2611 = vmatprep.subr.mxu0 0.0
    %2612 = vmatpush1.msra.mxu0 %v1275
    %2613 = vmatprep.subr.mxu0 0.0
    %2614 = vmatpush1.msra.mxu0 %v1274
    %2615 = vmatprep.subr.mxu0 0.0
    %2616 = vmatpush1.msra.mxu0 %v1273
    %2617 = vmatprep.subr.mxu0 0.0
    %2618 = vmatpush1.msra.mxu0 %v1272
    %2619 = vmatprep.subr.mxu0 0.0
    %2620 = vmatpush2.msra.mxu0 0.0
    %2621 = vmatprep.subr.mxu0 0.0
    %2622 = vmatpush2.msra.mxu0 0.0
    %2623 = vmatprep.subr.mxu0 0.0
    %2624 = vmatpush2.msra.mxu0 0.0
    %2625 = vmatprep.subr.mxu0 0.0
    %2626 = vmatpush2.msra.mxu0 0.0
    %2627 = vmatprep.subr.mxu0 0.0
    %2628 = vmatpush2.msra.mxu0 0.0
    %2629 = vmatprep.subr.mxu0 0.0
    %2630 = vmatpush2.msra.mxu0 0.0
    %2631 = vmatprep.subr.mxu0 0.0
    %2632 = vmatpush2.msra.mxu0 0.0
    %2633 = vmatprep.subr.mxu0 0.0
    %2634 = vmatpush2.msra.mxu0 0.0
    %2635 = vmatprep.subr.mxu0 0.0
    %2636 = vmatpush2.msra.mxu0 0.0
    %2637 = vmatprep.subr.mxu0 0.0
    %2638 = vmatpush2.msra.mxu0 0.0
    %2639 = vmatprep.subr.mxu0 0.0
    %2640 = vmatpush2.msra.mxu0 0.0
    %2641 = vmatprep.subr.mxu0 0.0
    %2642 = vmatpush2.msra.mxu0 0.0
    %2643 = vmatprep.subr.mxu0 0.0
    %2644 = vmatpush2.msra.mxu0 0.0
    %2645 = vmatprep.subr.mxu0 0.0
    %2646 = vmatpush2.msra.mxu0 0.0
    %2647 = vmatprep.subr.mxu0 0.0
    %2648 = vmatpush2.msra.mxu0 0.0
    %2649 = vmatprep.subr.mxu0 0.0
    %2650 = vmatpush2.msra.mxu0 0.0
    %2651 = vmatprep.mubr.f32.mxu0 0.0
    %2652 = vmatmul.mubr.f32.gmra.mxu0 %v2585
    %v2653 = vpop.f32.mrf.mxu0
    %v2654 = vadd.f32 0.0, %v2653
    %v2655 = vpop.f32.mrf.mxu0
    %2656 = vdwg.mxu0
    %v2657 = vadd.f32 %v1011, %v2654
    %v2658 = vxor.u32 %v2657, 2147483648
    %v2659 = vmul.f32 %v2658, 1.442695
    %v2660 = vpow.pop %v2659
    %v2661 = vadd.f32 %v2660, 1.0
    %v2662 = vrcp.pop %v2661
    %v2663 = vmul.f32 1.0, %v2662
    %2664 = vmatprep.subr.mxu0 0.0
    %2665 = vmatpush1.msra.mxu0 0.0
    %2666 = vmatprep.subr.mxu0 0.0
    %2667 = vmatpush1.msra.mxu0 0.0
    %2668 = vmatprep.subr.mxu0 0.0
    %2669 = vmatpush1.msra.mxu0 0.0
    %2670 = vmatprep.subr.mxu0 0.0
    %2671 = vmatpush1.msra.mxu0 0.0
    %2672 = vmatprep.subr.mxu0 0.0
    %2673 = vmatpush1.msra.mxu0 0.0
    %2674 = vmatprep.subr.mxu0 0.0
    %2675 = vmatpush1.msra.mxu0 0.0
    %2676 = vmatprep.subr.mxu0 0.0
    %2677 = vmatpush1.msra.mxu0 0.0
    %2678 = vmatprep.subr.mxu0 0.0
    %2679 = vmatpush1.msra.mxu0 0.0
    %2680 = vmatprep.subr.mxu0 0.0
    %2681 = vmatpush1.msra.mxu0 0.0
    %2682 = vmatprep.subr.mxu0 0.0
    %2683 = vmatpush1.msra.mxu0 0.0
    %2684 = vmatprep.subr.mxu0 0.0
    %2685 = vmatpush1.msra.mxu0 0.0
    %2686 = vmatprep.subr.mxu0 0.0
    %2687 = vmatpush1.msra.mxu0 0.0
    %2688 = vmatprep.subr.mxu0 0.0
    %2689 = vmatpush1.msra.mxu0 %v1280
    %2690 = vmatprep.subr.mxu0 0.0
    %2691 = vmatpush1.msra.mxu0 %v1279
    %2692 = vmatprep.subr.mxu0 0.0
    %2693 = vmatpush1.msra.mxu0 %v1278
    %2694 = vmatprep.subr.mxu0 0.0
    %2695 = vmatpush1.msra.mxu0 %v1277
    %2696 = vmatprep.subr.mxu0 0.0
    %2697 = vmatpush2.msra.mxu0 0.0
    %2698 = vmatprep.subr.mxu0 0.0
    %2699 = vmatpush2.msra.mxu0 0.0
    %2700 = vmatprep.subr.mxu0 0.0
    %2701 = vmatpush2.msra.mxu0 0.0
    %2702 = vmatprep.subr.mxu0 0.0
    %2703 = vmatpush2.msra.mxu0 0.0
    %2704 = vmatprep.subr.mxu0 0.0
    %2705 = vmatpush2.msra.mxu0 0.0
    %2706 = vmatprep.subr.mxu0 0.0
    %2707 = vmatpush2.msra.mxu0 0.0
    %2708 = vmatprep.subr.mxu0 0.0
    %2709 = vmatpush2.msra.mxu0 0.0
    %2710 = vmatprep.subr.mxu0 0.0
    %2711 = vmatpush2.msra.mxu0 0.0
    %2712 = vmatprep.subr.mxu0 0.0
    %2713 = vmatpush2.msra.mxu0 0.0
    %2714 = vmatprep.subr.mxu0 0.0
    %2715 = vmatpush2.msra.mxu0 0.0
    %2716 = vmatprep.subr.mxu0 0.0
    %2717 = vmatpush2.msra.mxu0 0.0
    %2718 = vmatprep.subr.mxu0 0.0
    %2719 = vmatpush2.msra.mxu0 0.0
    %2720 = vmatprep.subr.mxu0 0.0
    %2721 = vmatpush2.msra.mxu0 0.0
    %2722 = vmatprep.subr.mxu0 0.0
    %2723 = vmatpush2.msra.mxu0 0.0
    %2724 = vmatprep.subr.mxu0 0.0
    %2725 = vmatpush2.msra.mxu0 0.0
    %2726 = vmatprep.subr.mxu0 0.0
    %2727 = vmatpush2.msra.mxu0 0.0
    %2728 = vmatprep.mubr.f32.mxu0 0.0
    %2729 = vmatmul.mubr.f32.gmra.mxu0 %v2585
    %v2730 = vpop.f32.mrf.mxu0
    %v2731 = vadd.f32 0.0, %v2730
    %v2732 = vpop.f32.mrf.mxu0
    %2733 = vdwg.mxu0
    %v2734 = vadd.f32 %v1097, %v2731
    %v2735 = vxor.u32 %v2734, 2147483648
    %v2736 = vmul.f32 %v2735, 1.442695
    %v2737 = vpow.pop %v2736
    %v2738 = vadd.f32 %v2737, 1.0
    %v2739 = vrcp.pop %v2738
    %v2740 = vmul.f32 1.0, %v2739
    %2741 = vmatprep.subr.mxu0 0.0
    %2742 = vmatpush1.msra.mxu0 0.0
    %2743 = vmatprep.subr.mxu0 0.0
    %2744 = vmatpush1.msra.mxu0 0.0
    %2745 = vmatprep.subr.mxu0 0.0
    %2746 = vmatpush1.msra.mxu0 0.0
    %2747 = vmatprep.subr.mxu0 0.0
    %2748 = vmatpush1.msra.mxu0 0.0
    %2749 = vmatprep.subr.mxu0 0.0
    %2750 = vmatpush1.msra.mxu0 0.0
    %2751 = vmatprep.subr.mxu0 0.0
    %2752 = vmatpush1.msra.mxu0 0.0
    %2753 = vmatprep.subr.mxu0 0.0
    %2754 = vmatpush1.msra.mxu0 0.0
    %2755 = vmatprep.subr.mxu0 0.0
    %2756 = vmatpush1.msra.mxu0 0.0
    %2757 = vmatprep.subr.mxu0 0.0
    %2758 = vmatpush1.msra.mxu0 0.0
    %2759 = vmatprep.subr.mxu0 0.0
    %2760 = vmatpush1.msra.mxu0 0.0
    %2761 = vmatprep.subr.mxu0 0.0
    %2762 = vmatpush1.msra.mxu0 0.0
    %2763 = vmatprep.subr.mxu0 0.0
    %2764 = vmatpush1.msra.mxu0 0.0
    %2765 = vmatprep.subr.mxu0 0.0
    %2766 = vmatpush1.msra.mxu0 %v1285
    %2767 = vmatprep.subr.mxu0 0.0
    %2768 = vmatpush1.msra.mxu0 %v1284
    %2769 = vmatprep.subr.mxu0 0.0
    %2770 = vmatpush1.msra.mxu0 %v1283
    %2771 = vmatprep.subr.mxu0 0.0
    %2772 = vmatpush1.msra.mxu0 %v1282
    %2773 = vmatprep.subr.mxu0 0.0
    %2774 = vmatpush2.msra.mxu0 0.0
    %2775 = vmatprep.subr.mxu0 0.0
    %2776 = vmatpush2.msra.mxu0 0.0
    %2777 = vmatprep.subr.mxu0 0.0
    %2778 = vmatpush2.msra.mxu0 0.0
    %2779 = vmatprep.subr.mxu0 0.0
    %2780 = vmatpush2.msra.mxu0 0.0
    %2781 = vmatprep.subr.mxu0 0.0
    %2782 = vmatpush2.msra.mxu0 0.0
    %2783 = vmatprep.subr.mxu0 0.0
    %2784 = vmatpush2.msra.mxu0 0.0
    %2785 = vmatprep.subr.mxu0 0.0
    %2786 = vmatpush2.msra.mxu0 0.0
    %2787 = vmatprep.subr.mxu0 0.0
    %2788 = vmatpush2.msra.mxu0 0.0
    %2789 = vmatprep.subr.mxu0 0.0
    %2790 = vmatpush2.msra.mxu0 0.0
    %2791 = vmatprep.subr.mxu0 0.0
    %2792 = vmatpush2.msra.mxu0 0.0
    %2793 = vmatprep.subr.mxu0 0.0
    %2794 = vmatpush2.msra.mxu0 0.0
    %2795 = vmatprep.subr.mxu0 0.0
    %2796 = vmatpush2.msra.mxu0 0.0
    %2797 = vmatprep.subr.mxu0 0.0
    %2798 = vmatpush2.msra.mxu0 0.0
    %2799 = vmatprep.subr.mxu0 0.0
    %2800 = vmatpush2.msra.mxu0 0.0
    %2801 = vmatprep.subr.mxu0 0.0
    %2802 = vmatpush2.msra.mxu0 0.0
    %2803 = vmatprep.subr.mxu0 0.0
    %2804 = vmatpush2.msra.mxu0 0.0
    %2805 = vmatprep.mubr.f32.mxu0 0.0
    %2806 = vmatmul.mubr.f32.gmra.mxu0 %v2585
    %v2807 = vpop.f32.mrf.mxu0
    %v2808 = vadd.f32 0.0, %v2807
    %v2809 = vpop.f32.mrf.mxu0
    %2810 = vdwg.mxu0
    %v2811 = vadd.f32 %v1183, %v2808
    %v2812 = vtanh.pop %v2811
    %2813 = vmatprep.subr.mxu0 0.0
    %2814 = vmatpush1.msra.mxu0 0.0
    %2815 = vmatprep.subr.mxu0 0.0
    %2816 = vmatpush1.msra.mxu0 0.0
    %2817 = vmatprep.subr.mxu0 0.0
    %2818 = vmatpush1.msra.mxu0 0.0
    %2819 = vmatprep.subr.mxu0 0.0
    %2820 = vmatpush1.msra.mxu0 0.0
    %2821 = vmatprep.subr.mxu0 0.0
    %2822 = vmatpush1.msra.mxu0 0.0
    %2823 = vmatprep.subr.mxu0 0.0
    %2824 = vmatpush1.msra.mxu0 0.0
    %2825 = vmatprep.subr.mxu0 0.0
    %2826 = vmatpush1.msra.mxu0 0.0
    %2827 = vmatprep.subr.mxu0 0.0
    %2828 = vmatpush1.msra.mxu0 0.0
    %2829 = vmatprep.subr.mxu0 0.0
    %2830 = vmatpush1.msra.mxu0 0.0
    %2831 = vmatprep.subr.mxu0 0.0
    %2832 = vmatpush1.msra.mxu0 0.0
    %2833 = vmatprep.subr.mxu0 0.0
    %2834 = vmatpush1.msra.mxu0 0.0
    %2835 = vmatprep.subr.mxu0 0.0
    %2836 = vmatpush1.msra.mxu0 0.0
    %2837 = vmatprep.subr.mxu0 0.0
    %2838 = vmatpush1.msra.mxu0 %v1290
    %2839 = vmatprep.subr.mxu0 0.0
    %2840 = vmatpush1.msra.mxu0 %v1289
    %2841 = vmatprep.subr.mxu0 0.0
    %2842 = vmatpush1.msra.mxu0 %v1288
    %2843 = vmatprep.subr.mxu0 0.0
    %2844 = vmatpush1.msra.mxu0 %v1287
    %2845 = vmatprep.subr.mxu0 0.0
    %2846 = vmatpush2.msra.mxu0 0.0
    %2847 = vmatprep.subr.mxu0 0.0
    %2848 = vmatpush2.msra.mxu0 0.0
    %2849 = vmatprep.subr.mxu0 0.0
    %2850 = vmatpush2.msra.mxu0 0.0
    %2851 = vmatprep.subr.mxu0 0.0
    %2852 = vmatpush2.msra.mxu0 0.0
    %2853 = vmatprep.subr.mxu0 0.0
    %2854 = vmatpush2.msra.mxu0 0.0
    %2855 = vmatprep.subr.mxu0 0.0
    %2856 = vmatpush2.msra.mxu0 0.0
    %2857 = vmatprep.subr.mxu0 0.0
    %2858 = vmatpush2.msra.mxu0 0.0
    %2859 = vmatprep.subr.mxu0 0.0
    %2860 = vmatpush2.msra.mxu0 0.0
    %2861 = vmatprep.subr.mxu0 0.0
    %2862 = vmatpush2.msra.mxu0 0.0
    %2863 = vmatprep.subr.mxu0 0.0
    %2864 = vmatpush2.msra.mxu0 0.0
    %2865 = vmatprep.subr.mxu0 0.0
    %2866 = vmatpush2.msra.mxu0 0.0
    %2867 = vmatprep.subr.mxu0 0.0
    %2868 = vmatpush2.msra.mxu0 0.0
    %2869 = vmatprep.subr.mxu0 0.0
    %2870 = vmatpush2.msra.mxu0 0.0
    %2871 = vmatprep.subr.mxu0 0.0
    %2872 = vmatpush2.msra.mxu0 0.0
    %2873 = vmatprep.subr.mxu0 0.0
    %2874 = vmatpush2.msra.mxu0 0.0
    %2875 = vmatprep.subr.mxu0 0.0
    %2876 = vmatpush2.msra.mxu0 0.0
    %2877 = vmatprep.mubr.f32.mxu0 0.0
    %2878 = vmatmul.mubr.f32.gmra.mxu0 %v2585
    %v2879 = vpop.f32.mrf.mxu0
    %v2880 = vadd.f32 0.0, %v2879
    %v2881 = vpop.f32.mrf.mxu0
    %2882 = vdwg.mxu0
    %v2883 = vadd.f32 %v1269, %v2880
    %v2884 = vxor.u32 %v2883, 2147483648
    %v2885 = vmul.f32 %v2884, 1.442695
    %v2886 = vpow.pop %v2885
    %v2887 = vadd.f32 %v2886, 1.0
    %v2888 = vrcp.pop %v2887
    %v2889 = vmul.f32 1.0, %v2888
    %v2891 = vrot.slane %v2580, 6
    %v2893 = vmul.f32 %v2740, %v2891
    %v2894 = vmul.f32 %v2663, %v2812
    %v2895 = vadd.f32 %v2893, %v2894
    %v2896 = vtanh.pop %v2895
    %v2897 = vmul.f32 %v2889, %v2896
    %v2899 = vsel %vm1291, %v2897, 0
    %2901 = vmatprep.subr.mxu0 0.0
    %2902 = vmatpush1.msra.mxu0 0.0
    %2903 = vmatprep.subr.mxu0 0.0
    %2904 = vmatpush1.msra.mxu0 0.0
    %2905 = vmatprep.subr.mxu0 0.0
    %2906 = vmatpush1.msra.mxu0 0.0
    %2907 = vmatprep.subr.mxu0 0.0
    %2908 = vmatpush1.msra.mxu0 0.0
    %2909 = vmatprep.subr.mxu0 0.0
    %2910 = vmatpush1.msra.mxu0 0.0
    %2911 = vmatprep.subr.mxu0 0.0
    %2912 = vmatpush1.msra.mxu0 0.0
    %2913 = vmatprep.subr.mxu0 0.0
    %2914 = vmatpush1.msra.mxu0 0.0
    %2915 = vmatprep.subr.mxu0 0.0
    %2916 = vmatpush1.msra.mxu0 0.0
    %2917 = vmatprep.subr.mxu0 0.0
    %2918 = vmatpush1.msra.mxu0 0.0
    %2919 = vmatprep.subr.mxu0 0.0
    %2920 = vmatpush1.msra.mxu0 0.0
    %2921 = vmatprep.subr.mxu0 0.0
    %2922 = vmatpush1.msra.mxu0 0.0
    %2923 = vmatprep.subr.mxu0 0.0
    %2924 = vmatpush1.msra.mxu0 0.0
    %2925 = vmatprep.subr.mxu0 0.0
    %2926 = vmatpush1.msra.mxu0 %v1275
    %2927 = vmatprep.subr.mxu0 0.0
    %2928 = vmatpush1.msra.mxu0 %v1274
    %2929 = vmatprep.subr.mxu0 0.0
    %2930 = vmatpush1.msra.mxu0 %v1273
    %2931 = vmatprep.subr.mxu0 0.0
    %2932 = vmatpush1.msra.mxu0 %v1272
    %2933 = vmatprep.subr.mxu0 0.0
    %2934 = vmatpush2.msra.mxu0 0.0
    %2935 = vmatprep.subr.mxu0 0.0
    %2936 = vmatpush2.msra.mxu0 0.0
    %2937 = vmatprep.subr.mxu0 0.0
    %2938 = vmatpush2.msra.mxu0 0.0
    %2939 = vmatprep.subr.mxu0 0.0
    %2940 = vmatpush2.msra.mxu0 0.0
    %2941 = vmatprep.subr.mxu0 0.0
    %2942 = vmatpush2.msra.mxu0 0.0
    %2943 = vmatprep.subr.mxu0 0.0
    %2944 = vmatpush2.msra.mxu0 0.0
    %2945 = vmatprep.subr.mxu0 0.0
    %2946 = vmatpush2.msra.mxu0 0.0
    %2947 = vmatprep.subr.mxu0 0.0
    %2948 = vmatpush2.msra.mxu0 0.0
    %2949 = vmatprep.subr.mxu0 0.0
    %2950 = vmatpush2.msra.mxu0 0.0
    %2951 = vmatprep.subr.mxu0 0.0
    %2952 = vmatpush2.msra.mxu0 0.0
    %2953 = vmatprep.subr.mxu0 0.0
    %2954 = vmatpush2.msra.mxu0 0.0
    %2955 = vmatprep.subr.mxu0 0.0
    %2956 = vmatpush2.msra.mxu0 0.0
    %2957 = vmatprep.subr.mxu0 0.0
    %2958 = vmatpush2.msra.mxu0 0.0
    %2959 = vmatprep.subr.mxu0 0.0
    %2960 = vmatpush2.msra.mxu0 0.0
    %2961 = vmatprep.subr.mxu0 0.0
    %2962 = vmatpush2.msra.mxu0 0.0
    %2963 = vmatprep.subr.mxu0 0.0
    %2964 = vmatpush2.msra.mxu0 0.0
    %2965 = vmatprep.mubr.f32.mxu0 0.0
    %2966 = vmatmul.mubr.f32.gmra.mxu0 %v2899
    %v2967 = vpop.f32.mrf.mxu0
    %v2968 = vadd.f32 0.0, %v2967
    %v2969 = vpop.f32.mrf.mxu0
    %2970 = vdwg.mxu0
    %v2972 = vrot.slane %v2968, 6
    %v2974 = vadd.f32 %v1011, %v2972
    %v2975 = vxor.u32 %v2974, 2147483648
    %v2976 = vmul.f32 %v2975, 1.442695
    %v2977 = vpow.pop %v2976
    %v2978 = vadd.f32 %v2977, 1.0
    %v2979 = vrcp.pop %v2978
    %v2980 = vmul.f32 1.0, %v2979
    %2981 = vmatprep.subr.mxu0 0.0
    %2982 = vmatpush1.msra.mxu0 0.0
    %2983 = vmatprep.subr.mxu0 0.0
    %2984 = vmatpush1.msra.mxu0 0.0
    %2985 = vmatprep.subr.mxu0 0.0
    %2986 = vmatpush1.msra.mxu0 0.0
    %2987 = vmatprep.subr.mxu0 0.0
    %2988 = vmatpush1.msra.mxu0 0.0
    %2989 = vmatprep.subr.mxu0 0.0
    %2990 = vmatpush1.msra.mxu0 0.0
    %2991 = vmatprep.subr.mxu0 0.0
    %2992 = vmatpush1.msra.mxu0 0.0
    %2993 = vmatprep.subr.mxu0 0.0
    %2994 = vmatpush1.msra.mxu0 0.0
    %2995 = vmatprep.subr.mxu0 0.0
    %2996 = vmatpush1.msra.mxu0 0.0
    %2997 = vmatprep.subr.mxu0 0.0
    %2998 = vmatpush1.msra.mxu0 0.0
    %2999 = vmatprep.subr.mxu0 0.0
    %3000 = vmatpush1.msra.mxu0 0.0
    %3001 = vmatprep.subr.mxu0 0.0
    %3002 = vmatpush1.msra.mxu0 0.0
    %3003 = vmatprep.subr.mxu0 0.0
    %3004 = vmatpush1.msra.mxu0 0.0
    %3005 = vmatprep.subr.mxu0 0.0
    %3006 = vmatpush1.msra.mxu0 %v1280
    %3007 = vmatprep.subr.mxu0 0.0
    %3008 = vmatpush1.msra.mxu0 %v1279
    %3009 = vmatprep.subr.mxu0 0.0
    %3010 = vmatpush1.msra.mxu0 %v1278
    %3011 = vmatprep.subr.mxu0 0.0
    %3012 = vmatpush1.msra.mxu0 %v1277
    %3013 = vmatprep.subr.mxu0 0.0
    %3014 = vmatpush2.msra.mxu0 0.0
    %3015 = vmatprep.subr.mxu0 0.0
    %3016 = vmatpush2.msra.mxu0 0.0
    %3017 = vmatprep.subr.mxu0 0.0
    %3018 = vmatpush2.msra.mxu0 0.0
    %3019 = vmatprep.subr.mxu0 0.0
    %3020 = vmatpush2.msra.mxu0 0.0
    %3021 = vmatprep.subr.mxu0 0.0
    %3022 = vmatpush2.msra.mxu0 0.0
    %3023 = vmatprep.subr.mxu0 0.0
    %3024 = vmatpush2.msra.mxu0 0.0
    %3025 = vmatprep.subr.mxu0 0.0
    %3026 = vmatpush2.msra.mxu0 0.0
    %3027 = vmatprep.subr.mxu0 0.0
    %3028 = vmatpush2.msra.mxu0 0.0
    %3029 = vmatprep.subr.mxu0 0.0
    %3030 = vmatpush2.msra.mxu0 0.0
    %3031 = vmatprep.subr.mxu0 0.0
    %3032 = vmatpush2.msra.mxu0 0.0
    %3033 = vmatprep.subr.mxu0 0.0
    %3034 = vmatpush2.msra.mxu0 0.0
    %3035 = vmatprep.subr.mxu0 0.0
    %3036 = vmatpush2.msra.mxu0 0.0
    %3037 = vmatprep.subr.mxu0 0.0
    %3038 = vmatpush2.msra.mxu0 0.0
    %3039 = vmatprep.subr.mxu0 0.0
    %3040 = vmatpush2.msra.mxu0 0.0
    %3041 = vmatprep.subr.mxu0 0.0
    %3042 = vmatpush2.msra.mxu0 0.0
    %3043 = vmatprep.subr.mxu0 0.0
    %3044 = vmatpush2.msra.mxu0 0.0
    %3045 = vmatprep.mubr.f32.mxu0 0.0
    %3046 = vmatmul.mubr.f32.gmra.mxu0 %v2899
    %v3047 = vpop.f32.mrf.mxu0
    %v3048 = vadd.f32 0.0, %v3047
    %v3049 = vpop.f32.mrf.mxu0
    %3050 = vdwg.mxu0
    %v3052 = vrot.slane %v3048, 6
    %v3054 = vadd.f32 %v1097, %v3052
    %v3055 = vxor.u32 %v3054, 2147483648
    %v3056 = vmul.f32 %v3055, 1.442695
    %v3057 = vpow.pop %v3056
    %v3058 = vadd.f32 %v3057, 1.0
    %v3059 = vrcp.pop %v3058
    %v3060 = vmul.f32 1.0, %v3059
    %3061 = vmatprep.subr.mxu0 0.0
    %3062 = vmatpush1.msra.mxu0 0.0
    %3063 = vmatprep.subr.mxu0 0.0
    %3064 = vmatpush1.msra.mxu0 0.0
    %3065 = vmatprep.subr.mxu0 0.0
    %3066 = vmatpush1.msra.mxu0 0.0
    %3067 = vmatprep.subr.mxu0 0.0
    %3068 = vmatpush1.msra.mxu0 0.0
    %3069 = vmatprep.subr.mxu0 0.0
    %3070 = vmatpush1.msra.mxu0 0.0
    %3071 = vmatprep.subr.mxu0 0.0
    %3072 = vmatpush1.msra.mxu0 0.0
    %3073 = vmatprep.subr.mxu0 0.0
    %3074 = vmatpush1.msra.mxu0 0.0
    %3075 = vmatprep.subr.mxu0 0.0
    %3076 = vmatpush1.msra.mxu0 0.0
    %3077 = vmatprep.subr.mxu0 0.0
    %3078 = vmatpush1.msra.mxu0 0.0
    %3079 = vmatprep.subr.mxu0 0.0
    %3080 = vmatpush1.msra.mxu0 0.0
    %3081 = vmatprep.subr.mxu0 0.0
    %3082 = vmatpush1.msra.mxu0 0.0
    %3083 = vmatprep.subr.mxu0 0.0
    %3084 = vmatpush1.msra.mxu0 0.0
    %3085 = vmatprep.subr.mxu0 0.0
    %3086 = vmatpush1.msra.mxu0 %v1285
    %3087 = vmatprep.subr.mxu0 0.0
    %3088 = vmatpush1.msra.mxu0 %v1284
    %3089 = vmatprep.subr.mxu0 0.0
    %3090 = vmatpush1.msra.mxu0 %v1283
    %3091 = vmatprep.subr.mxu0 0.0
    %3092 = vmatpush1.msra.mxu0 %v1282
    %3093 = vmatprep.subr.mxu0 0.0
    %3094 = vmatpush2.msra.mxu0 0.0
    %3095 = vmatprep.subr.mxu0 0.0
    %3096 = vmatpush2.msra.mxu0 0.0
    %3097 = vmatprep.subr.mxu0 0.0
    %3098 = vmatpush2.msra.mxu0 0.0
    %3099 = vmatprep.subr.mxu0 0.0
    %3100 = vmatpush2.msra.mxu0 0.0
    %3101 = vmatprep.subr.mxu0 0.0
    %3102 = vmatpush2.msra.mxu0 0.0
    %3103 = vmatprep.subr.mxu0 0.0
    %3104 = vmatpush2.msra.mxu0 0.0
    %3105 = vmatprep.subr.mxu0 0.0
    %3106 = vmatpush2.msra.mxu0 0.0
    %3107 = vmatprep.subr.mxu0 0.0
    %3108 = vmatpush2.msra.mxu0 0.0
    %3109 = vmatprep.subr.mxu0 0.0
    %3110 = vmatpush2.msra.mxu0 0.0
    %3111 = vmatprep.subr.mxu0 0.0
    %3112 = vmatpush2.msra.mxu0 0.0
    %3113 = vmatprep.subr.mxu0 0.0
    %3114 = vmatpush2.msra.mxu0 0.0
    %3115 = vmatprep.subr.mxu0 0.0
    %3116 = vmatpush2.msra.mxu0 0.0
    %3117 = vmatprep.subr.mxu0 0.0
    %3118 = vmatpush2.msra.mxu0 0.0
    %3119 = vmatprep.subr.mxu0 0.0
    %3120 = vmatpush2.msra.mxu0 0.0
    %3121 = vmatprep.subr.mxu0 0.0
    %3122 = vmatpush2.msra.mxu0 0.0
    %3123 = vmatprep.subr.mxu0 0.0
    %3124 = vmatpush2.msra.mxu0 0.0
    %3125 = vmatprep.mubr.f32.mxu0 0.0
    %3126 = vmatmul.mubr.f32.gmra.mxu0 %v2899
    %v3127 = vpop.f32.mrf.mxu0
    %v3128 = vadd.f32 0.0, %v3127
    %v3129 = vpop.f32.mrf.mxu0
    %3130 = vdwg.mxu0
    %v3132 = vrot.slane %v3128, 6
    %v3134 = vadd.f32 %v1183, %v3132
    %v3135 = vtanh.pop %v3134
    %3136 = vmatprep.subr.mxu0 0.0
    %3137 = vmatpush1.msra.mxu0 0.0
    %3138 = vmatprep.subr.mxu0 0.0
    %3139 = vmatpush1.msra.mxu0 0.0
    %3140 = vmatprep.subr.mxu0 0.0
    %3141 = vmatpush1.msra.mxu0 0.0
    %3142 = vmatprep.subr.mxu0 0.0
    %3143 = vmatpush1.msra.mxu0 0.0
    %3144 = vmatprep.subr.mxu0 0.0
    %3145 = vmatpush1.msra.mxu0 0.0
    %3146 = vmatprep.subr.mxu0 0.0
    %3147 = vmatpush1.msra.mxu0 0.0
    %3148 = vmatprep.subr.mxu0 0.0
    %3149 = vmatpush1.msra.mxu0 0.0
    %3150 = vmatprep.subr.mxu0 0.0
    %3151 = vmatpush1.msra.mxu0 0.0
    %3152 = vmatprep.subr.mxu0 0.0
    %3153 = vmatpush1.msra.mxu0 0.0
    %3154 = vmatprep.subr.mxu0 0.0
    %3155 = vmatpush1.msra.mxu0 0.0
    %3156 = vmatprep.subr.mxu0 0.0
    %3157 = vmatpush1.msra.mxu0 0.0
    %3158 = vmatprep.subr.mxu0 0.0
    %3159 = vmatpush1.msra.mxu0 0.0
    %3160 = vmatprep.subr.mxu0 0.0
    %3161 = vmatpush1.msra.mxu0 %v1290
    %3162 = vmatprep.subr.mxu0 0.0
    %3163 = vmatpush1.msra.mxu0 %v1289
    %3164 = vmatprep.subr.mxu0 0.0
    %3165 = vmatpush1.msra.mxu0 %v1288
    %3166 = vmatprep.subr.mxu0 0.0
    %3167 = vmatpush1.msra.mxu0 %v1287
    %3168 = vmatprep.subr.mxu0 0.0
    %3169 = vmatpush2.msra.mxu0 0.0
    %3170 = vmatprep.subr.mxu0 0.0
    %3171 = vmatpush2.msra.mxu0 0.0
    %3172 = vmatprep.subr.mxu0 0.0
    %3173 = vmatpush2.msra.mxu0 0.0
    %3174 = vmatprep.subr.mxu0 0.0
    %3175 = vmatpush2.msra.mxu0 0.0
    %3176 = vmatprep.subr.mxu0 0.0
    %3177 = vmatpush2.msra.mxu0 0.0
    %3178 = vmatprep.subr.mxu0 0.0
    %3179 = vmatpush2.msra.mxu0 0.0
    %3180 = vmatprep.subr.mxu0 0.0
    %3181 = vmatpush2.msra.mxu0 0.0
    %3182 = vmatprep.subr.mxu0 0.0
    %3183 = vmatpush2.msra.mxu0 0.0
    %3184 = vmatprep.subr.mxu0 0.0
    %3185 = vmatpush2.msra.mxu0 0.0
    %3186 = vmatprep.subr.mxu0 0.0
    %3187 = vmatpush2.msra.mxu0 0.0
    %3188 = vmatprep.subr.mxu0 0.0
    %3189 = vmatpush2.msra.mxu0 0.0
    %3190 = vmatprep.subr.mxu0 0.0
    %3191 = vmatpush2.msra.mxu0 0.0
    %3192 = vmatprep.subr.mxu0 0.0
    %3193 = vmatpush2.msra.mxu0 0.0
    %3194 = vmatprep.subr.mxu0 0.0
    %3195 = vmatpush2.msra.mxu0 0.0
    %3196 = vmatprep.subr.mxu0 0.0
    %3197 = vmatpush2.msra.mxu0 0.0
    %3198 = vmatprep.subr.mxu0 0.0
    %3199 = vmatpush2.msra.mxu0 0.0
    %3200 = vmatprep.mubr.f32.mxu0 0.0
    %3201 = vmatmul.mubr.f32.gmra.mxu0 %v2899
    %v3202 = vpop.f32.mrf.mxu0
    %v3203 = vadd.f32 0.0, %v3202
    %v3204 = vpop.f32.mrf.mxu0
    %3205 = vdwg.mxu0
    %v3207 = vrot.slane %v3203, 6
    %v3209 = vadd.f32 %v1269, %v3207
    %v3210 = vxor.u32 %v3209, 2147483648
    %v3211 = vmul.f32 %v3210, 1.442695
    %v3212 = vpow.pop %v3211
    %v3213 = vadd.f32 %v3212, 1.0
    %v3214 = vrcp.pop %v3213
    %v3215 = vmul.f32 1.0, %v3214
    %v3217 = vrot.slane %v2895, 6
    %v3219 = vmul.f32 %v3060, %v3217
    %v3220 = vmul.f32 %v2980, %v3135
    %v3221 = vadd.f32 %v3219, %v3220
    %v3222 = vtanh.pop %v3221
    %v3223 = vmul.f32 %v3215, %v3222
    %v3225 = vrot.slane %v3223, 2
    %v3226 = vsel %vm1291, %v3225, 0
    %3228 = vmatprep.subr.mxu0 0.0
    %3229 = vmatpush1.msra.mxu0 0.0
    %3230 = vmatprep.subr.mxu0 0.0
    %3231 = vmatpush1.msra.mxu0 0.0
    %3232 = vmatprep.subr.mxu0 0.0
    %3233 = vmatpush1.msra.mxu0 0.0
    %3234 = vmatprep.subr.mxu0 0.0
    %3235 = vmatpush1.msra.mxu0 0.0
    %3236 = vmatprep.subr.mxu0 0.0
    %3237 = vmatpush1.msra.mxu0 0.0
    %3238 = vmatprep.subr.mxu0 0.0
    %3239 = vmatpush1.msra.mxu0 0.0
    %3240 = vmatprep.subr.mxu0 0.0
    %3241 = vmatpush1.msra.mxu0 0.0
    %3242 = vmatprep.subr.mxu0 0.0
    %3243 = vmatpush1.msra.mxu0 0.0
    %3244 = vmatprep.subr.mxu0 0.0
    %3245 = vmatpush1.msra.mxu0 0.0
    %3246 = vmatprep.subr.mxu0 0.0
    %3247 = vmatpush1.msra.mxu0 0.0
    %3248 = vmatprep.subr.mxu0 0.0
    %3249 = vmatpush1.msra.mxu0 0.0
    %3250 = vmatprep.subr.mxu0 0.0
    %3251 = vmatpush1.msra.mxu0 0.0
    %3252 = vmatprep.subr.mxu0 0.0
    %3253 = vmatpush1.msra.mxu0 %v1275
    %3254 = vmatprep.subr.mxu0 0.0
    %3255 = vmatpush1.msra.mxu0 %v1274
    %3256 = vmatprep.subr.mxu0 0.0
    %3257 = vmatpush1.msra.mxu0 %v1273
    %3258 = vmatprep.subr.mxu0 0.0
    %3259 = vmatpush1.msra.mxu0 %v1272
    %3260 = vmatprep.subr.mxu0 0.0
    %3261 = vmatpush2.msra.mxu0 0.0
    %3262 = vmatprep.subr.mxu0 0.0
    %3263 = vmatpush2.msra.mxu0 0.0
    %3264 = vmatprep.subr.mxu0 0.0
    %3265 = vmatpush2.msra.mxu0 0.0
    %3266 = vmatprep.subr.mxu0 0.0
    %3267 = vmatpush2.msra.mxu0 0.0
    %3268 = vmatprep.subr.mxu0 0.0
    %3269 = vmatpush2.msra.mxu0 0.0
    %3270 = vmatprep.subr.mxu0 0.0
    %3271 = vmatpush2.msra.mxu0 0.0
    %3272 = vmatprep.subr.mxu0 0.0
    %3273 = vmatpush2.msra.mxu0 0.0
    %3274 = vmatprep.subr.mxu0 0.0
    %3275 = vmatpush2.msra.mxu0 0.0
    %3276 = vmatprep.subr.mxu0 0.0
    %3277 = vmatpush2.msra.mxu0 0.0
    %3278 = vmatprep.subr.mxu0 0.0
    %3279 = vmatpush2.msra.mxu0 0.0
    %3280 = vmatprep.subr.mxu0 0.0
    %3281 = vmatpush2.msra.mxu0 0.0
    %3282 = vmatprep.subr.mxu0 0.0
    %3283 = vmatpush2.msra.mxu0 0.0
    %3284 = vmatprep.subr.mxu0 0.0
    %3285 = vmatpush2.msra.mxu0 0.0
    %3286 = vmatprep.subr.mxu0 0.0
    %3287 = vmatpush2.msra.mxu0 0.0
    %3288 = vmatprep.subr.mxu0 0.0
    %3289 = vmatpush2.msra.mxu0 0.0
    %3290 = vmatprep.subr.mxu0 0.0
    %3291 = vmatpush2.msra.mxu0 0.0
    %3292 = vmatprep.mubr.f32.mxu0 0.0
    %3293 = vmatmul.mubr.f32.gmra.mxu0 %v3226
    %v3294 = vpop.f32.mrf.mxu0
    %v3295 = vadd.f32 0.0, %v3294
    %v3296 = vpop.f32.mrf.mxu0
    %3297 = vdwg.mxu0
    %v3299 = vrot.slane %v3295, 4
    %v3301 = vadd.f32 %v1011, %v3299
    %v3302 = vxor.u32 %v3301, 2147483648
    %v3303 = vmul.f32 %v3302, 1.442695
    %v3304 = vpow.pop %v3303
    %v3305 = vadd.f32 %v3304, 1.0
    %v3306 = vrcp.pop %v3305
    %v3307 = vmul.f32 1.0, %v3306
    %3308 = vmatprep.subr.mxu0 0.0
    %3309 = vmatpush1.msra.mxu0 0.0
    %3310 = vmatprep.subr.mxu0 0.0
    %3311 = vmatpush1.msra.mxu0 0.0
    %3312 = vmatprep.subr.mxu0 0.0
    %3313 = vmatpush1.msra.mxu0 0.0
    %3314 = vmatprep.subr.mxu0 0.0
    %3315 = vmatpush1.msra.mxu0 0.0
    %3316 = vmatprep.subr.mxu0 0.0
    %3317 = vmatpush1.msra.mxu0 0.0
    %3318 = vmatprep.subr.mxu0 0.0
    %3319 = vmatpush1.msra.mxu0 0.0
    %3320 = vmatprep.subr.mxu0 0.0
    %3321 = vmatpush1.msra.mxu0 0.0
    %3322 = vmatprep.subr.mxu0 0.0
    %3323 = vmatpush1.msra.mxu0 0.0
    %3324 = vmatprep.subr.mxu0 0.0
    %3325 = vmatpush1.msra.mxu0 0.0
    %3326 = vmatprep.subr.mxu0 0.0
    %3327 = vmatpush1.msra.mxu0 0.0
    %3328 = vmatprep.subr.mxu0 0.0
    %3329 = vmatpush1.msra.mxu0 0.0
    %3330 = vmatprep.subr.mxu0 0.0
    %3331 = vmatpush1.msra.mxu0 0.0
    %3332 = vmatprep.subr.mxu0 0.0
    %3333 = vmatpush1.msra.mxu0 %v1280
    %3334 = vmatprep.subr.mxu0 0.0
    %3335 = vmatpush1.msra.mxu0 %v1279
    %3336 = vmatprep.subr.mxu0 0.0
    %3337 = vmatpush1.msra.mxu0 %v1278
    %3338 = vmatprep.subr.mxu0 0.0
    %3339 = vmatpush1.msra.mxu0 %v1277
    %3340 = vmatprep.subr.mxu0 0.0
    %3341 = vmatpush2.msra.mxu0 0.0
    %3342 = vmatprep.subr.mxu0 0.0
    %3343 = vmatpush2.msra.mxu0 0.0
    %3344 = vmatprep.subr.mxu0 0.0
    %3345 = vmatpush2.msra.mxu0 0.0
    %3346 = vmatprep.subr.mxu0 0.0
    %3347 = vmatpush2.msra.mxu0 0.0
    %3348 = vmatprep.subr.mxu0 0.0
    %3349 = vmatpush2.msra.mxu0 0.0
    %3350 = vmatprep.subr.mxu0 0.0
    %3351 = vmatpush2.msra.mxu0 0.0
    %3352 = vmatprep.subr.mxu0 0.0
    %3353 = vmatpush2.msra.mxu0 0.0
    %3354 = vmatprep.subr.mxu0 0.0
    %3355 = vmatpush2.msra.mxu0 0.0
    %3356 = vmatprep.subr.mxu0 0.0
    %3357 = vmatpush2.msra.mxu0 0.0
    %3358 = vmatprep.subr.mxu0 0.0
    %3359 = vmatpush2.msra.mxu0 0.0
    %3360 = vmatprep.subr.mxu0 0.0
    %3361 = vmatpush2.msra.mxu0 0.0
    %3362 = vmatprep.subr.mxu0 0.0
    %3363 = vmatpush2.msra.mxu0 0.0
    %3364 = vmatprep.subr.mxu0 0.0
    %3365 = vmatpush2.msra.mxu0 0.0
    %3366 = vmatprep.subr.mxu0 0.0
    %3367 = vmatpush2.msra.mxu0 0.0
    %3368 = vmatprep.subr.mxu0 0.0
    %3369 = vmatpush2.msra.mxu0 0.0
    %3370 = vmatprep.subr.mxu0 0.0
    %3371 = vmatpush2.msra.mxu0 0.0
    %3372 = vmatprep.mubr.f32.mxu0 0.0
    %3373 = vmatmul.mubr.f32.gmra.mxu0 %v3226
    %v3374 = vpop.f32.mrf.mxu0
    %v3375 = vadd.f32 0.0, %v3374
    %v3376 = vpop.f32.mrf.mxu0
    %3377 = vdwg.mxu0
    %v3379 = vrot.slane %v3375, 4
    %v3381 = vadd.f32 %v1097, %v3379
    %v3382 = vxor.u32 %v3381, 2147483648
    %v3383 = vmul.f32 %v3382, 1.442695
    %v3384 = vpow.pop %v3383
    %v3385 = vadd.f32 %v3384, 1.0
    %v3386 = vrcp.pop %v3385
    %v3387 = vmul.f32 1.0, %v3386
    %3388 = vmatprep.subr.mxu0 0.0
    %3389 = vmatpush1.msra.mxu0 0.0
    %3390 = vmatprep.subr.mxu0 0.0
    %3391 = vmatpush1.msra.mxu0 0.0
    %3392 = vmatprep.subr.mxu0 0.0
    %3393 = vmatpush1.msra.mxu0 0.0
    %3394 = vmatprep.subr.mxu0 0.0
    %3395 = vmatpush1.msra.mxu0 0.0
    %3396 = vmatprep.subr.mxu0 0.0
    %3397 = vmatpush1.msra.mxu0 0.0
    %3398 = vmatprep.subr.mxu0 0.0
    %3399 = vmatpush1.msra.mxu0 0.0
    %3400 = vmatprep.subr.mxu0 0.0
    %3401 = vmatpush1.msra.mxu0 0.0
    %3402 = vmatprep.subr.mxu0 0.0
    %3403 = vmatpush1.msra.mxu0 0.0
    %3404 = vmatprep.subr.mxu0 0.0
    %3405 = vmatpush1.msra.mxu0 0.0
    %3406 = vmatprep.subr.mxu0 0.0
    %3407 = vmatpush1.msra.mxu0 0.0
    %3408 = vmatprep.subr.mxu0 0.0
    %3409 = vmatpush1.msra.mxu0 0.0
    %3410 = vmatprep.subr.mxu0 0.0
    %3411 = vmatpush1.msra.mxu0 0.0
    %3412 = vmatprep.subr.mxu0 0.0
    %3413 = vmatpush1.msra.mxu0 %v1285
    %3414 = vmatprep.subr.mxu0 0.0
    %3415 = vmatpush1.msra.mxu0 %v1284
    %3416 = vmatprep.subr.mxu0 0.0
    %3417 = vmatpush1.msra.mxu0 %v1283
    %3418 = vmatprep.subr.mxu0 0.0
    %3419 = vmatpush1.msra.mxu0 %v1282
    %3420 = vmatprep.subr.mxu0 0.0
    %3421 = vmatpush2.msra.mxu0 0.0
    %3422 = vmatprep.subr.mxu0 0.0
    %3423 = vmatpush2.msra.mxu0 0.0
    %3424 = vmatprep.subr.mxu0 0.0
    %3425 = vmatpush2.msra.mxu0 0.0
    %3426 = vmatprep.subr.mxu0 0.0
    %3427 = vmatpush2.msra.mxu0 0.0
    %3428 = vmatprep.subr.mxu0 0.0
    %3429 = vmatpush2.msra.mxu0 0.0
    %3430 = vmatprep.subr.mxu0 0.0
    %3431 = vmatpush2.msra.mxu0 0.0
    %3432 = vmatprep.subr.mxu0 0.0
    %3433 = vmatpush2.msra.mxu0 0.0
    %3434 = vmatprep.subr.mxu0 0.0
    %3435 = vmatpush2.msra.mxu0 0.0
    %3436 = vmatprep.subr.mxu0 0.0
    %3437 = vmatpush2.msra.mxu0 0.0
    %3438 = vmatprep.subr.mxu0 0.0
    %3439 = vmatpush2.msra.mxu0 0.0
    %3440 = vmatprep.subr.mxu0 0.0
    %3441 = vmatpush2.msra.mxu0 0.0
    %3442 = vmatprep.subr.mxu0 0.0
    %3443 = vmatpush2.msra.mxu0 0.0
    %3444 = vmatprep.subr.mxu0 0.0
    %3445 = vmatpush2.msra.mxu0 0.0
    %3446 = vmatprep.subr.mxu0 0.0
    %3447 = vmatpush2.msra.mxu0 0.0
    %3448 = vmatprep.subr.mxu0 0.0
    %3449 = vmatpush2.msra.mxu0 0.0
    %3450 = vmatprep.subr.mxu0 0.0
    %3451 = vmatpush2.msra.mxu0 0.0
    %3452 = vmatprep.mubr.f32.mxu0 0.0
    %3453 = vmatmul.mubr.f32.gmra.mxu0 %v3226
    %v3454 = vpop.f32.mrf.mxu0
    %v3455 = vadd.f32 0.0, %v3454
    %v3456 = vpop.f32.mrf.mxu0
    %3457 = vdwg.mxu0
    %v3459 = vrot.slane %v3455, 4
    %v3461 = vadd.f32 %v1183, %v3459
    %v3462 = vtanh.pop %v3461
    %3463 = vmatprep.subr.mxu0 0.0
    %3464 = vmatpush1.msra.mxu0 0.0
    %3465 = vmatprep.subr.mxu0 0.0
    %3466 = vmatpush1.msra.mxu0 0.0
    %3467 = vmatprep.subr.mxu0 0.0
    %3468 = vmatpush1.msra.mxu0 0.0
    %3469 = vmatprep.subr.mxu0 0.0
    %3470 = vmatpush1.msra.mxu0 0.0
    %3471 = vmatprep.subr.mxu0 0.0
    %3472 = vmatpush1.msra.mxu0 0.0
    %3473 = vmatprep.subr.mxu0 0.0
    %3474 = vmatpush1.msra.mxu0 0.0
    %3475 = vmatprep.subr.mxu0 0.0
    %3476 = vmatpush1.msra.mxu0 0.0
    %3477 = vmatprep.subr.mxu0 0.0
    %3478 = vmatpush1.msra.mxu0 0.0
    %3479 = vmatprep.subr.mxu0 0.0
    %3480 = vmatpush1.msra.mxu0 0.0
    %3481 = vmatprep.subr.mxu0 0.0
    %3482 = vmatpush1.msra.mxu0 0.0
    %3483 = vmatprep.subr.mxu0 0.0
    %3484 = vmatpush1.msra.mxu0 0.0
    %3485 = vmatprep.subr.mxu0 0.0
    %3486 = vmatpush1.msra.mxu0 0.0
    %3487 = vmatprep.subr.mxu0 0.0
    %3488 = vmatpush1.msra.mxu0 %v1290
    %3489 = vmatprep.subr.mxu0 0.0
    %3490 = vmatpush1.msra.mxu0 %v1289
    %3491 = vmatprep.subr.mxu0 0.0
    %3492 = vmatpush1.msra.mxu0 %v1288
    %3493 = vmatprep.subr.mxu0 0.0
    %3494 = vmatpush1.msra.mxu0 %v1287
    %3495 = vmatprep.subr.mxu0 0.0
    %3496 = vmatpush2.msra.mxu0 0.0
    %3497 = vmatprep.subr.mxu0 0.0
    %3498 = vmatpush2.msra.mxu0 0.0
    %3499 = vmatprep.subr.mxu0 0.0
    %3500 = vmatpush2.msra.mxu0 0.0
    %3501 = vmatprep.subr.mxu0 0.0
    %3502 = vmatpush2.msra.mxu0 0.0
    %3503 = vmatprep.subr.mxu0 0.0
    %3504 = vmatpush2.msra.mxu0 0.0
    %3505 = vmatprep.subr.mxu0 0.0
    %3506 = vmatpush2.msra.mxu0 0.0
    %3507 = vmatprep.subr.mxu0 0.0
    %3508 = vmatpush2.msra.mxu0 0.0
    %3509 = vmatprep.subr.mxu0 0.0
    %3510 = vmatpush2.msra.mxu0 0.0
    %3511 = vmatprep.subr.mxu0 0.0
    %3512 = vmatpush2.msra.mxu0 0.0
    %3513 = vmatprep.subr.mxu0 0.0
    %3514 = vmatpush2.msra.mxu0 0.0
    %3515 = vmatprep.subr.mxu0 0.0
    %3516 = vmatpush2.msra.mxu0 0.0
    %3517 = vmatprep.subr.mxu0 0.0
    %3518 = vmatpush2.msra.mxu0 0.0
    %3519 = vmatprep.subr.mxu0 0.0
    %3520 = vmatpush2.msra.mxu0 0.0
    %3521 = vmatprep.subr.mxu0 0.0
    %3522 = vmatpush2.msra.mxu0 0.0
    %3523 = vmatprep.subr.mxu0 0.0
    %3524 = vmatpush2.msra.mxu0 0.0
    %3525 = vmatprep.subr.mxu0 0.0
    %3526 = vmatpush2.msra.mxu0 0.0
    %3527 = vmatprep.mubr.f32.mxu0 0.0
    %3528 = vmatmul.mubr.f32.gmra.mxu0 %v3226
    %v3529 = vpop.f32.mrf.mxu0
    %v3530 = vadd.f32 0.0, %v3529
    %v3531 = vpop.f32.mrf.mxu0
    %3532 = vdwg.mxu0
    %v3534 = vrot.slane %v3530, 4
    %v3536 = vadd.f32 %v1269, %v3534
    %v3537 = vxor.u32 %v3536, 2147483648
    %v3538 = vmul.f32 %v3537, 1.442695
    %v3539 = vpow.pop %v3538
    %v3540 = vadd.f32 %v3539, 1.0
    %v3541 = vrcp.pop %v3540
    %v3542 = vmul.f32 1.0, %v3541
    %v3544 = vrot.slane %v3221, 6
    %v3546 = vmul.f32 %v3387, %v3544
    %v3547 = vmul.f32 %v3307, %v3462
    %v3548 = vadd.f32 %v3546, %v3547
    %v3549 = vtanh.pop %v3548
    %v3550 = vmul.f32 %v3542, %v3549
    %v3552 = vrot.slane %v3550, 4
    %v3553 = vsel %vm1291, %v3552, 0
    %3555 = vmatprep.subr.mxu0 0.0
    %3556 = vmatpush1.msra.mxu0 0.0
    %3557 = vmatprep.subr.mxu0 0.0
    %3558 = vmatpush1.msra.mxu0 0.0
    %3559 = vmatprep.subr.mxu0 0.0
    %3560 = vmatpush1.msra.mxu0 0.0
    %3561 = vmatprep.subr.mxu0 0.0
    %3562 = vmatpush1.msra.mxu0 0.0
    %3563 = vmatprep.subr.mxu0 0.0
    %3564 = vmatpush1.msra.mxu0 0.0
    %3565 = vmatprep.subr.mxu0 0.0
    %3566 = vmatpush1.msra.mxu0 0.0
    %3567 = vmatprep.subr.mxu0 0.0
    %3568 = vmatpush1.msra.mxu0 0.0
    %3569 = vmatprep.subr.mxu0 0.0
    %3570 = vmatpush1.msra.mxu0 0.0
    %3571 = vmatprep.subr.mxu0 0.0
    %3572 = vmatpush1.msra.mxu0 0.0
    %3573 = vmatprep.subr.mxu0 0.0
    %3574 = vmatpush1.msra.mxu0 0.0
    %3575 = vmatprep.subr.mxu0 0.0
    %3576 = vmatpush1.msra.mxu0 0.0
    %3577 = vmatprep.subr.mxu0 0.0
    %3578 = vmatpush1.msra.mxu0 0.0
    %3579 = vmatprep.subr.mxu0 0.0
    %3580 = vmatpush1.msra.mxu0 %v1275
    %3581 = vmatprep.subr.mxu0 0.0
    %3582 = vmatpush1.msra.mxu0 %v1274
    %3583 = vmatprep.subr.mxu0 0.0
    %3584 = vmatpush1.msra.mxu0 %v1273
    %3585 = vmatprep.subr.mxu0 0.0
    %3586 = vmatpush1.msra.mxu0 %v1272
    %3587 = vmatprep.subr.mxu0 0.0
    %3588 = vmatpush2.msra.mxu0 0.0
    %3589 = vmatprep.subr.mxu0 0.0
    %3590 = vmatpush2.msra.mxu0 0.0
    %3591 = vmatprep.subr.mxu0 0.0
    %3592 = vmatpush2.msra.mxu0 0.0
    %3593 = vmatprep.subr.mxu0 0.0
    %3594 = vmatpush2.msra.mxu0 0.0
    %3595 = vmatprep.subr.mxu0 0.0
    %3596 = vmatpush2.msra.mxu0 0.0
    %3597 = vmatprep.subr.mxu0 0.0
    %3598 = vmatpush2.msra.mxu0 0.0
    %3599 = vmatprep.subr.mxu0 0.0
    %3600 = vmatpush2.msra.mxu0 0.0
    %3601 = vmatprep.subr.mxu0 0.0
    %3602 = vmatpush2.msra.mxu0 0.0
    %3603 = vmatprep.subr.mxu0 0.0
    %3604 = vmatpush2.msra.mxu0 0.0
    %3605 = vmatprep.subr.mxu0 0.0
    %3606 = vmatpush2.msra.mxu0 0.0
    %3607 = vmatprep.subr.mxu0 0.0
    %3608 = vmatpush2.msra.mxu0 0.0
    %3609 = vmatprep.subr.mxu0 0.0
    %3610 = vmatpush2.msra.mxu0 0.0
    %3611 = vmatprep.subr.mxu0 0.0
    %3612 = vmatpush2.msra.mxu0 0.0
    %3613 = vmatprep.subr.mxu0 0.0
    %3614 = vmatpush2.msra.mxu0 0.0
    %3615 = vmatprep.subr.mxu0 0.0
    %3616 = vmatpush2.msra.mxu0 0.0
    %3617 = vmatprep.subr.mxu0 0.0
    %3618 = vmatpush2.msra.mxu0 0.0
    %3619 = vmatprep.mubr.f32.mxu0 0.0
    %3620 = vmatmul.mubr.f32.gmra.mxu0 %v3553
    %v3621 = vpop.f32.mrf.mxu0
    %v3622 = vadd.f32 0.0, %v3621
    %v3623 = vpop.f32.mrf.mxu0
    %3624 = vdwg.mxu0
    %v3626 = vrot.slane %v3622, 2
    %v3628 = vadd.f32 %v1011, %v3626
    %v3629 = vxor.u32 %v3628, 2147483648
    %v3630 = vmul.f32 %v3629, 1.442695
    %v3631 = vpow.pop %v3630
    %v3632 = vadd.f32 %v3631, 1.0
    %v3633 = vrcp.pop %v3632
    %v3634 = vmul.f32 1.0, %v3633
    %3635 = vmatprep.subr.mxu0 0.0
    %3636 = vmatpush1.msra.mxu0 0.0
    %3637 = vmatprep.subr.mxu0 0.0
    %3638 = vmatpush1.msra.mxu0 0.0
    %3639 = vmatprep.subr.mxu0 0.0
    %3640 = vmatpush1.msra.mxu0 0.0
    %3641 = vmatprep.subr.mxu0 0.0
    %3642 = vmatpush1.msra.mxu0 0.0
    %3643 = vmatprep.subr.mxu0 0.0
    %3644 = vmatpush1.msra.mxu0 0.0
    %3645 = vmatprep.subr.mxu0 0.0
    %3646 = vmatpush1.msra.mxu0 0.0
    %3647 = vmatprep.subr.mxu0 0.0
    %3648 = vmatpush1.msra.mxu0 0.0
    %3649 = vmatprep.subr.mxu0 0.0
    %3650 = vmatpush1.msra.mxu0 0.0
    %3651 = vmatprep.subr.mxu0 0.0
    %3652 = vmatpush1.msra.mxu0 0.0
    %3653 = vmatprep.subr.mxu0 0.0
    %3654 = vmatpush1.msra.mxu0 0.0
    %3655 = vmatprep.subr.mxu0 0.0
    %3656 = vmatpush1.msra.mxu0 0.0
    %3657 = vmatprep.subr.mxu0 0.0
    %3658 = vmatpush1.msra.mxu0 0.0
    %3659 = vmatprep.subr.mxu0 0.0
    %3660 = vmatpush1.msra.mxu0 %v1280
    %3661 = vmatprep.subr.mxu0 0.0
    %3662 = vmatpush1.msra.mxu0 %v1279
    %3663 = vmatprep.subr.mxu0 0.0
    %3664 = vmatpush1.msra.mxu0 %v1278
    %3665 = vmatprep.subr.mxu0 0.0
    %3666 = vmatpush1.msra.mxu0 %v1277
    %3667 = vmatprep.subr.mxu0 0.0
    %3668 = vmatpush2.msra.mxu0 0.0
    %3669 = vmatprep.subr.mxu0 0.0
    %3670 = vmatpush2.msra.mxu0 0.0
    %3671 = vmatprep.subr.mxu0 0.0
    %3672 = vmatpush2.msra.mxu0 0.0
    %3673 = vmatprep.subr.mxu0 0.0
    %3674 = vmatpush2.msra.mxu0 0.0
    %3675 = vmatprep.subr.mxu0 0.0
    %3676 = vmatpush2.msra.mxu0 0.0
    %3677 = vmatprep.subr.mxu0 0.0
    %3678 = vmatpush2.msra.mxu0 0.0
    %3679 = vmatprep.subr.mxu0 0.0
    %3680 = vmatpush2.msra.mxu0 0.0
    %3681 = vmatprep.subr.mxu0 0.0
    %3682 = vmatpush2.msra.mxu0 0.0
    %3683 = vmatprep.subr.mxu0 0.0
    %3684 = vmatpush2.msra.mxu0 0.0
    %3685 = vmatprep.subr.mxu0 0.0
    %3686 = vmatpush2.msra.mxu0 0.0
    %3687 = vmatprep.subr.mxu0 0.0
    %3688 = vmatpush2.msra.mxu0 0.0
    %3689 = vmatprep.subr.mxu0 0.0
    %3690 = vmatpush2.msra.mxu0 0.0
    %3691 = vmatprep.subr.mxu0 0.0
    %3692 = vmatpush2.msra.mxu0 0.0
    %3693 = vmatprep.subr.mxu0 0.0
    %3694 = vmatpush2.msra.mxu0 0.0
    %3695 = vmatprep.subr.mxu0 0.0
    %3696 = vmatpush2.msra.mxu0 0.0
    %3697 = vmatprep.subr.mxu0 0.0
    %3698 = vmatpush2.msra.mxu0 0.0
    %3699 = vmatprep.mubr.f32.mxu0 0.0
    %3700 = vmatmul.mubr.f32.gmra.mxu0 %v3553
    %v3701 = vpop.f32.mrf.mxu0
    %v3702 = vadd.f32 0.0, %v3701
    %v3703 = vpop.f32.mrf.mxu0
    %3704 = vdwg.mxu0
    %v3706 = vrot.slane %v3702, 2
    %v3708 = vadd.f32 %v1097, %v3706
    %v3709 = vxor.u32 %v3708, 2147483648
    %v3710 = vmul.f32 %v3709, 1.442695
    %v3711 = vpow.pop %v3710
    %v3712 = vadd.f32 %v3711, 1.0
    %v3713 = vrcp.pop %v3712
    %v3714 = vmul.f32 1.0, %v3713
    %3715 = vmatprep.subr.mxu0 0.0
    %3716 = vmatpush1.msra.mxu0 0.0
    %3717 = vmatprep.subr.mxu0 0.0
    %3718 = vmatpush1.msra.mxu0 0.0
    %3719 = vmatprep.subr.mxu0 0.0
    %3720 = vmatpush1.msra.mxu0 0.0
    %3721 = vmatprep.subr.mxu0 0.0
    %3722 = vmatpush1.msra.mxu0 0.0
    %3723 = vmatprep.subr.mxu0 0.0
    %3724 = vmatpush1.msra.mxu0 0.0
    %3725 = vmatprep.subr.mxu0 0.0
    %3726 = vmatpush1.msra.mxu0 0.0
    %3727 = vmatprep.subr.mxu0 0.0
    %3728 = vmatpush1.msra.mxu0 0.0
    %3729 = vmatprep.subr.mxu0 0.0
    %3730 = vmatpush1.msra.mxu0 0.0
    %3731 = vmatprep.subr.mxu0 0.0
    %3732 = vmatpush1.msra.mxu0 0.0
    %3733 = vmatprep.subr.mxu0 0.0
    %3734 = vmatpush1.msra.mxu0 0.0
    %3735 = vmatprep.subr.mxu0 0.0
    %3736 = vmatpush1.msra.mxu0 0.0
    %3737 = vmatprep.subr.mxu0 0.0
    %3738 = vmatpush1.msra.mxu0 0.0
    %3739 = vmatprep.subr.mxu0 0.0
    %3740 = vmatpush1.msra.mxu0 %v1285
    %3741 = vmatprep.subr.mxu0 0.0
    %3742 = vmatpush1.msra.mxu0 %v1284
    %3743 = vmatprep.subr.mxu0 0.0
    %3744 = vmatpush1.msra.mxu0 %v1283
    %3745 = vmatprep.subr.mxu0 0.0
    %3746 = vmatpush1.msra.mxu0 %v1282
    %3747 = vmatprep.subr.mxu0 0.0
    %3748 = vmatpush2.msra.mxu0 0.0
    %3749 = vmatprep.subr.mxu0 0.0
    %3750 = vmatpush2.msra.mxu0 0.0
    %3751 = vmatprep.subr.mxu0 0.0
    %3752 = vmatpush2.msra.mxu0 0.0
    %3753 = vmatprep.subr.mxu0 0.0
    %3754 = vmatpush2.msra.mxu0 0.0
    %3755 = vmatprep.subr.mxu0 0.0
    %3756 = vmatpush2.msra.mxu0 0.0
    %3757 = vmatprep.subr.mxu0 0.0
    %3758 = vmatpush2.msra.mxu0 0.0
    %3759 = vmatprep.subr.mxu0 0.0
    %3760 = vmatpush2.msra.mxu0 0.0
    %3761 = vmatprep.subr.mxu0 0.0
    %3762 = vmatpush2.msra.mxu0 0.0
    %3763 = vmatprep.subr.mxu0 0.0
    %3764 = vmatpush2.msra.mxu0 0.0
    %3765 = vmatprep.subr.mxu0 0.0
    %3766 = vmatpush2.msra.mxu0 0.0
    %3767 = vmatprep.subr.mxu0 0.0
    %3768 = vmatpush2.msra.mxu0 0.0
    %3769 = vmatprep.subr.mxu0 0.0
    %3770 = vmatpush2.msra.mxu0 0.0
    %3771 = vmatprep.subr.mxu0 0.0
    %3772 = vmatpush2.msra.mxu0 0.0
    %3773 = vmatprep.subr.mxu0 0.0
    %3774 = vmatpush2.msra.mxu0 0.0
    %3775 = vmatprep.subr.mxu0 0.0
    %3776 = vmatpush2.msra.mxu0 0.0
    %3777 = vmatprep.subr.mxu0 0.0
    %3778 = vmatpush2.msra.mxu0 0.0
    %3779 = vmatprep.mubr.f32.mxu0 0.0
    %3780 = vmatmul.mubr.f32.gmra.mxu0 %v3553
    %v3781 = vpop.f32.mrf.mxu0
    %v3782 = vadd.f32 0.0, %v3781
    %v3783 = vpop.f32.mrf.mxu0
    %3784 = vdwg.mxu0
    %v3786 = vrot.slane %v3782, 2
    %v3788 = vadd.f32 %v1183, %v3786
    %v3789 = vtanh.pop %v3788
    %3790 = vmatprep.subr.mxu0 0.0
    %3791 = vmatpush1.msra.mxu0 0.0
    %3792 = vmatprep.subr.mxu0 0.0
    %3793 = vmatpush1.msra.mxu0 0.0
    %3794 = vmatprep.subr.mxu0 0.0
    %3795 = vmatpush1.msra.mxu0 0.0
    %3796 = vmatprep.subr.mxu0 0.0
    %3797 = vmatpush1.msra.mxu0 0.0
    %3798 = vmatprep.subr.mxu0 0.0
    %3799 = vmatpush1.msra.mxu0 0.0
    %3800 = vmatprep.subr.mxu0 0.0
    %3801 = vmatpush1.msra.mxu0 0.0
    %3802 = vmatprep.subr.mxu0 0.0
    %3803 = vmatpush1.msra.mxu0 0.0
    %3804 = vmatprep.subr.mxu0 0.0
    %3805 = vmatpush1.msra.mxu0 0.0
    %3806 = vmatprep.subr.mxu0 0.0
    %3807 = vmatpush1.msra.mxu0 0.0
    %3808 = vmatprep.subr.mxu0 0.0
    %3809 = vmatpush1.msra.mxu0 0.0
    %3810 = vmatprep.subr.mxu0 0.0
    %3811 = vmatpush1.msra.mxu0 0.0
    %3812 = vmatprep.subr.mxu0 0.0
    %3813 = vmatpush1.msra.mxu0 0.0
    %3814 = vmatprep.subr.mxu0 0.0
    %3815 = vmatpush1.msra.mxu0 %v1290
    %3816 = vmatprep.subr.mxu0 0.0
    %3817 = vmatpush1.msra.mxu0 %v1289
    %3818 = vmatprep.subr.mxu0 0.0
    %3819 = vmatpush1.msra.mxu0 %v1288
    %3820 = vmatprep.subr.mxu0 0.0
    %3821 = vmatpush1.msra.mxu0 %v1287
    %3822 = vmatprep.subr.mxu0 0.0
    %3823 = vmatpush2.msra.mxu0 0.0
    %3824 = vmatprep.subr.mxu0 0.0
    %3825 = vmatpush2.msra.mxu0 0.0
    %3826 = vmatprep.subr.mxu0 0.0
    %3827 = vmatpush2.msra.mxu0 0.0
    %3828 = vmatprep.subr.mxu0 0.0
    %3829 = vmatpush2.msra.mxu0 0.0
    %3830 = vmatprep.subr.mxu0 0.0
    %3831 = vmatpush2.msra.mxu0 0.0
    %3832 = vmatprep.subr.mxu0 0.0
    %3833 = vmatpush2.msra.mxu0 0.0
    %3834 = vmatprep.subr.mxu0 0.0
    %3835 = vmatpush2.msra.mxu0 0.0
    %3836 = vmatprep.subr.mxu0 0.0
    %3837 = vmatpush2.msra.mxu0 0.0
    %3838 = vmatprep.subr.mxu0 0.0
    %3839 = vmatpush2.msra.mxu0 0.0
    %3840 = vmatprep.subr.mxu0 0.0
    %3841 = vmatpush2.msra.mxu0 0.0
    %3842 = vmatprep.subr.mxu0 0.0
    %3843 = vmatpush2.msra.mxu0 0.0
    %3844 = vmatprep.subr.mxu0 0.0
    %3845 = vmatpush2.msra.mxu0 0.0
    %3846 = vmatprep.subr.mxu0 0.0
    %3847 = vmatpush2.msra.mxu0 0.0
    %3848 = vmatprep.subr.mxu0 0.0
    %3849 = vmatpush2.msra.mxu0 0.0
    %3850 = vmatprep.subr.mxu0 0.0
    %3851 = vmatpush2.msra.mxu0 0.0
    %3852 = vmatprep.subr.mxu0 0.0
    %3853 = vmatpush2.msra.mxu0 0.0
    %3854 = vmatprep.mubr.f32.mxu0 0.0
    %3855 = vmatmul.mubr.f32.gmra.mxu0 %v3553
    %v3856 = vpop.f32.mrf.mxu0
    %v3857 = vadd.f32 0.0, %v3856
    %v3858 = vpop.f32.mrf.mxu0
    %3859 = vdwg.mxu0
    %v3861 = vrot.slane %v3857, 2
    %v3863 = vadd.f32 %v1269, %v3861
    %v3864 = vxor.u32 %v3863, 2147483648
    %v3865 = vmul.f32 %v3864, 1.442695
    %v3866 = vpow.pop %v3865
    %v3867 = vadd.f32 %v3866, 1.0
    %v3868 = vrcp.pop %v3867
    %v3869 = vmul.f32 1.0, %v3868
    %v3871 = vrot.slane %v3548, 6
    %v3873 = vmul.f32 %v3714, %v3871
    %v3874 = vmul.f32 %v3634, %v3789
    %v3875 = vadd.f32 %v3873, %v3874
    %v3876 = vtanh.pop %v3875
    %v3877 = vmul.f32 %v3869, %v3876
    %vm3878 = vcmask 261126
    %3879 = vst.msk [vmem:[#allocation14 - $0x6] sm:$0xc0] %vm3878, %v3877
    %3880 = vst.msk [vmem:[#allocation15 - $0x6] sm:$0xc0] %vm3878, %v3875
    %vm3881 = vcmask 1041408
    %v3882 = vsel %vm3881, %v1602, %v1928
    %vm3883 = vcmask 1043456
    %v3884 = vsel %vm3883, %v3882, %v2255
    %vm3885 = vcmask 1045504
    %v3886 = vsel %vm3885, %v3884, %v2582
    %v3887 = vsel %vm3881, %v2897, %v3223
    %v3888 = vsel %vm3883, %v3887, %v3550
    %v3889 = vsel %vm3885, %v3888, %v3877
    %v3890 = vld [vmem:[#allocation11] sm:$0xff]
    %v3891 = vld [vmem:[#allocation11 + $0x8] sm:$0xff]
    %v3892 = vld [vmem:[#allocation11 + $0x10] sm:$0xff]
    %v3893 = vld [vmem:[#allocation11 + $0x18] sm:$0xff]
    %v3894 = vld [vmem:[%s7] sm:$0x1]
    %v3896 = vlaneseq
    %v3897 = vshrl.u32 %v3896, 7
    %v3898 = vsub.s32 0, %v3897
    %v3899 = vrot.slane %v3894, %v3898
    %v3902 = vsel %vm1291, %v3886, 0
    %v3905 = vsel %vm1291, %v3889, 0
    %3907 = vmatprep.subr.mxu0 0.0
    %3908 = vmatpush1.msra.mxu0 0.0
    %3909 = vmatprep.subr.mxu0 0.0
    %3910 = vmatpush1.msra.mxu0 0.0
    %3911 = vmatprep.subr.mxu0 0.0
    %3912 = vmatpush1.msra.mxu0 0.0
    %3913 = vmatprep.subr.mxu0 0.0
    %3914 = vmatpush1.msra.mxu0 0.0
    %3915 = vmatprep.subr.mxu0 0.0
    %3916 = vmatpush1.msra.mxu0 0.0
    %3917 = vmatprep.subr.mxu0 0.0
    %3918 = vmatpush1.msra.mxu0 0.0
    %3919 = vmatprep.subr.mxu0 0.0
    %3920 = vmatpush1.msra.mxu0 0.0
    %3921 = vmatprep.subr.mxu0 0.0
    %3922 = vmatpush1.msra.mxu0 0.0
    %3923 = vmatprep.subr.mxu0 0.0
    %3924 = vmatpush1.msra.mxu0 0.0
    %3925 = vmatprep.subr.mxu0 0.0
    %3926 = vmatpush1.msra.mxu0 0.0
    %3927 = vmatprep.subr.mxu0 0.0
    %3928 = vmatpush1.msra.mxu0 0.0
    %3929 = vmatprep.subr.mxu0 0.0
    %3930 = vmatpush1.msra.mxu0 0.0
    %3931 = vmatprep.subr.mxu0 0.0
    %3932 = vmatpush1.msra.mxu0 %v3893
    %3933 = vmatprep.subr.mxu0 0.0
    %3934 = vmatpush1.msra.mxu0 %v3892
    %3935 = vmatprep.subr.mxu0 0.0
    %3936 = vmatpush1.msra.mxu0 %v3891
    %3937 = vmatprep.subr.mxu0 0.0
    %3938 = vmatpush1.msra.mxu0 %v3890
    %3939 = vmatprep.subr.mxu0 0.0
    %3940 = vmatpush2.msra.mxu0 0.0
    %3941 = vmatprep.subr.mxu0 0.0
    %3942 = vmatpush2.msra.mxu0 0.0
    %3943 = vmatprep.subr.mxu0 0.0
    %3944 = vmatpush2.msra.mxu0 0.0
    %3945 = vmatprep.subr.mxu0 0.0
    %3946 = vmatpush2.msra.mxu0 0.0
    %3947 = vmatprep.subr.mxu0 0.0
    %3948 = vmatpush2.msra.mxu0 0.0
    %3949 = vmatprep.subr.mxu0 0.0
    %3950 = vmatpush2.msra.mxu0 0.0
    %3951 = vmatprep.subr.mxu0 0.0
    %3952 = vmatpush2.msra.mxu0 0.0
    %3953 = vmatprep.subr.mxu0 0.0
    %3954 = vmatpush2.msra.mxu0 0.0
    %3955 = vmatprep.subr.mxu0 0.0
    %3956 = vmatpush2.msra.mxu0 0.0
    %3957 = vmatprep.subr.mxu0 0.0
    %3958 = vmatpush2.msra.mxu0 0.0
    %3959 = vmatprep.subr.mxu0 0.0
    %3960 = vmatpush2.msra.mxu0 0.0
    %3961 = vmatprep.subr.mxu0 0.0
    %3962 = vmatpush2.msra.mxu0 0.0
    %3963 = vmatprep.subr.mxu0 0.0
    %3964 = vmatpush2.msra.mxu0 0.0
    %3965 = vmatprep.subr.mxu0 0.0
    %3966 = vmatpush2.msra.mxu0 0.0
    %3967 = vmatprep.subr.mxu0 0.0
    %3968 = vmatpush2.msra.mxu0 0.0
    %3969 = vmatprep.subr.mxu0 0.0
    %3970 = vmatpush2.msra.mxu0 0.0
    %3971 = vmatprep.mubr.f32.mxu0 0.0
    %3972 = vmatmul.mubr.f32.gmra.mxu0 %v3902
    %v3973 = vpop.f32.mrf.mxu0
    %v3974 = vadd.f32 %v3899, %v3973
    %v3975 = vpop.f32.mrf.mxu0
    %3976 = vmatprep.mubr.f32.mxu0 0.0
    %3977 = vmatmul.mubr.f32.gmra.mxu0 %v3905
    %v3978 = vpop.f32.mrf.mxu0
    %v3979 = vadd.f32 %v3899, %v3978
    %v3980 = vpop.f32.mrf.mxu0
    %3981 = vdwg.mxu0
    %s3982 = scalar_lea.vmem [#allocation11], 32
    %v3983 = vld [vmem:[%s3982] sm:$0xff]
    %v3984 = vld [vmem:[%s3982 + $0x8] sm:$0xff]
    %v3985 = vld [vmem:[%s3982 + $0x10] sm:$0xff]
    %v3986 = vld [vmem:[%s3982 + $0x18] sm:$0xff]
    %s3987 = scalar_lea.vmem %s7, 1
    %v3988 = vld [vmem:[%s3987] sm:$0x1]
    %v3990 = vlaneseq
    %v3991 = vshrl.u32 %v3990, 7
    %v3992 = vsub.s32 0, %v3991
    %v3993 = vrot.slane %v3988, %v3992
    %3995 = vmatprep.subr.mxu0 0.0
    %3996 = vmatpush1.msra.mxu0 0.0
    %3997 = vmatprep.subr.mxu0 0.0
    %3998 = vmatpush1.msra.mxu0 0.0
    %3999 = vmatprep.subr.mxu0 0.0
    %4000 = vmatpush1.msra.mxu0 0.0
    %4001 = vmatprep.subr.mxu0 0.0
    %4002 = vmatpush1.msra.mxu0 0.0
    %4003 = vmatprep.subr.mxu0 0.0
    %4004 = vmatpush1.msra.mxu0 0.0
    %4005 = vmatprep.subr.mxu0 0.0
    %4006 = vmatpush1.msra.mxu0 0.0
    %4007 = vmatprep.subr.mxu0 0.0
    %4008 = vmatpush1.msra.mxu0 0.0
    %4009 = vmatprep.subr.mxu0 0.0
    %4010 = vmatpush1.msra.mxu0 0.0
    %4011 = vmatprep.subr.mxu0 0.0
    %4012 = vmatpush1.msra.mxu0 0.0
    %4013 = vmatprep.subr.mxu0 0.0
    %4014 = vmatpush1.msra.mxu0 0.0
    %4015 = vmatprep.subr.mxu0 0.0
    %4016 = vmatpush1.msra.mxu0 0.0
    %4017 = vmatprep.subr.mxu0 0.0
    %4018 = vmatpush1.msra.mxu0 0.0
    %4019 = vmatprep.subr.mxu0 0.0
    %4020 = vmatpush1.msra.mxu0 %v3986
    %4021 = vmatprep.subr.mxu0 0.0
    %4022 = vmatpush1.msra.mxu0 %v3985
    %4023 = vmatprep.subr.mxu0 0.0
    %4024 = vmatpush1.msra.mxu0 %v3984
    %4025 = vmatprep.subr.mxu0 0.0
    %4026 = vmatpush1.msra.mxu0 %v3983
    %4027 = vmatprep.subr.mxu0 0.0
    %4028 = vmatpush2.msra.mxu0 0.0
    %4029 = vmatprep.subr.mxu0 0.0
    %4030 = vmatpush2.msra.mxu0 0.0
    %4031 = vmatprep.subr.mxu0 0.0
    %4032 = vmatpush2.msra.mxu0 0.0
    %4033 = vmatprep.subr.mxu0 0.0
    %4034 = vmatpush2.msra.mxu0 0.0
    %4035 = vmatprep.subr.mxu0 0.0
    %4036 = vmatpush2.msra.mxu0 0.0
    %4037 = vmatprep.subr.mxu0 0.0
    %4038 = vmatpush2.msra.mxu0 0.0
    %4039 = vmatprep.subr.mxu0 0.0
    %4040 = vmatpush2.msra.mxu0 0.0
    %4041 = vmatprep.subr.mxu0 0.0
    %4042 = vmatpush2.msra.mxu0 0.0
    %4043 = vmatprep.subr.mxu0 0.0
    %4044 = vmatpush2.msra.mxu0 0.0
    %4045 = vmatprep.subr.mxu0 0.0
    %4046 = vmatpush2.msra.mxu0 0.0
    %4047 = vmatprep.subr.mxu0 0.0
    %4048 = vmatpush2.msra.mxu0 0.0
    %4049 = vmatprep.subr.mxu0 0.0
    %4050 = vmatpush2.msra.mxu0 0.0
    %4051 = vmatprep.subr.mxu0 0.0
    %4052 = vmatpush2.msra.mxu0 0.0
    %4053 = vmatprep.subr.mxu0 0.0
    %4054 = vmatpush2.msra.mxu0 0.0
    %4055 = vmatprep.subr.mxu0 0.0
    %4056 = vmatpush2.msra.mxu0 0.0
    %4057 = vmatprep.subr.mxu0 0.0
    %4058 = vmatpush2.msra.mxu0 0.0
    %4059 = vmatprep.mubr.f32.mxu0 0.0
    %4060 = vmatmul.mubr.f32.gmra.mxu0 %v3902
    %v4061 = vpop.f32.mrf.mxu0
    %v4062 = vadd.f32 %v3993, %v4061
    %v4063 = vpop.f32.mrf.mxu0
    %4064 = vmatprep.mubr.f32.mxu0 0.0
    %4065 = vmatmul.mubr.f32.gmra.mxu0 %v3905
    %v4066 = vpop.f32.mrf.mxu0
    %v4067 = vadd.f32 %v3993, %v4066
    %v4068 = vpop.f32.mrf.mxu0
    %4069 = vdwg.mxu0
    %s4070 = scalar_lea.vmem [#allocation11], 64
    %v4071 = vld [vmem:[%s4070] sm:$0xff]
    %v4072 = vld [vmem:[%s4070 + $0x8] sm:$0xff]
    %v4073 = vld [vmem:[%s4070 + $0x10] sm:$0xff]
    %v4074 = vld [vmem:[%s4070 + $0x18] sm:$0xff]
    %s4075 = scalar_lea.vmem %s7, 2
    %v4076 = vld [vmem:[%s4075] sm:$0x1]
    %v4078 = vlaneseq
    %v4079 = vshrl.u32 %v4078, 7
    %v4080 = vsub.s32 0, %v4079
    %v4081 = vrot.slane %v4076, %v4080
    %4083 = vmatprep.subr.mxu0 0.0
    %4084 = vmatpush1.msra.mxu0 0.0
    %4085 = vmatprep.subr.mxu0 0.0
    %4086 = vmatpush1.msra.mxu0 0.0
    %4087 = vmatprep.subr.mxu0 0.0
    %4088 = vmatpush1.msra.mxu0 0.0
    %4089 = vmatprep.subr.mxu0 0.0
    %4090 = vmatpush1.msra.mxu0 0.0
    %4091 = vmatprep.subr.mxu0 0.0
    %4092 = vmatpush1.msra.mxu0 0.0
    %4093 = vmatprep.subr.mxu0 0.0
    %4094 = vmatpush1.msra.mxu0 0.0
    %4095 = vmatprep.subr.mxu0 0.0
    %4096 = vmatpush1.msra.mxu0 0.0
    %4097 = vmatprep.subr.mxu0 0.0
    %4098 = vmatpush1.msra.mxu0 0.0
    %4099 = vmatprep.subr.mxu0 0.0
    %4100 = vmatpush1.msra.mxu0 0.0
    %4101 = vmatprep.subr.mxu0 0.0
    %4102 = vmatpush1.msra.mxu0 0.0
    %4103 = vmatprep.subr.mxu0 0.0
    %4104 = vmatpush1.msra.mxu0 0.0
    %4105 = vmatprep.subr.mxu0 0.0
    %4106 = vmatpush1.msra.mxu0 0.0
    %4107 = vmatprep.subr.mxu0 0.0
    %4108 = vmatpush1.msra.mxu0 %v4074
    %4109 = vmatprep.subr.mxu0 0.0
    %4110 = vmatpush1.msra.mxu0 %v4073
    %4111 = vmatprep.subr.mxu0 0.0
    %4112 = vmatpush1.msra.mxu0 %v4072
    %4113 = vmatprep.subr.mxu0 0.0
    %4114 = vmatpush1.msra.mxu0 %v4071
    %4115 = vmatprep.subr.mxu0 0.0
    %4116 = vmatpush2.msra.mxu0 0.0
    %4117 = vmatprep.subr.mxu0 0.0
    %4118 = vmatpush2.msra.mxu0 0.0
    %4119 = vmatprep.subr.mxu0 0.0
    %4120 = vmatpush2.msra.mxu0 0.0
    %4121 = vmatprep.subr.mxu0 0.0
    %4122 = vmatpush2.msra.mxu0 0.0
    %4123 = vmatprep.subr.mxu0 0.0
    %4124 = vmatpush2.msra.mxu0 0.0
    %4125 = vmatprep.subr.mxu0 0.0
    %4126 = vmatpush2.msra.mxu0 0.0
    %4127 = vmatprep.subr.mxu0 0.0
    %4128 = vmatpush2.msra.mxu0 0.0
    %4129 = vmatprep.subr.mxu0 0.0
    %4130 = vmatpush2.msra.mxu0 0.0
    %4131 = vmatprep.subr.mxu0 0.0
    %4132 = vmatpush2.msra.mxu0 0.0
    %4133 = vmatprep.subr.mxu0 0.0
    %4134 = vmatpush2.msra.mxu0 0.0
    %4135 = vmatprep.subr.mxu0 0.0
    %4136 = vmatpush2.msra.mxu0 0.0
    %4137 = vmatprep.subr.mxu0 0.0
    %4138 = vmatpush2.msra.mxu0 0.0
    %4139 = vmatprep.subr.mxu0 0.0
    %4140 = vmatpush2.msra.mxu0 0.0
    %4141 = vmatprep.subr.mxu0 0.0
    %4142 = vmatpush2.msra.mxu0 0.0
    %4143 = vmatprep.subr.mxu0 0.0
    %4144 = vmatpush2.msra.mxu0 0.0
    %4145 = vmatprep.subr.mxu0 0.0
    %4146 = vmatpush2.msra.mxu0 0.0
    %4147 = vmatprep.mubr.f32.mxu0 0.0
    %4148 = vmatmul.mubr.f32.gmra.mxu0 %v3902
    %v4149 = vpop.f32.mrf.mxu0
    %v4150 = vadd.f32 %v4081, %v4149
    %v4151 = vpop.f32.mrf.mxu0
    %4152 = vmatprep.mubr.f32.mxu0 0.0
    %4153 = vmatmul.mubr.f32.gmra.mxu0 %v3905
    %v4154 = vpop.f32.mrf.mxu0
    %v4155 = vadd.f32 %v4081, %v4154
    %v4156 = vpop.f32.mrf.mxu0
    %4157 = vdwg.mxu0
    %s4158 = scalar_lea.vmem [#allocation11], 96
    %v4159 = vld [vmem:[%s4158] sm:$0xff]
    %v4160 = vld [vmem:[%s4158 + $0x8] sm:$0xff]
    %v4161 = vld [vmem:[%s4158 + $0x10] sm:$0xff]
    %v4162 = vld [vmem:[%s4158 + $0x18] sm:$0xff]
    %s4163 = scalar_lea.vmem %s7, 3
    %v4164 = vld [vmem:[%s4163] sm:$0x1]
    %v4166 = vlaneseq
    %v4167 = vshrl.u32 %v4166, 7
    %v4168 = vsub.s32 0, %v4167
    %v4169 = vrot.slane %v4164, %v4168
    %4171 = vmatprep.subr.mxu0 0.0
    %4172 = vmatpush1.msra.mxu0 0.0
    %4173 = vmatprep.subr.mxu0 0.0
    %4174 = vmatpush1.msra.mxu0 0.0
    %4175 = vmatprep.subr.mxu0 0.0
    %4176 = vmatpush1.msra.mxu0 0.0
    %4177 = vmatprep.subr.mxu0 0.0
    %4178 = vmatpush1.msra.mxu0 0.0
    %4179 = vmatprep.subr.mxu0 0.0
    %4180 = vmatpush1.msra.mxu0 0.0
    %4181 = vmatprep.subr.mxu0 0.0
    %4182 = vmatpush1.msra.mxu0 0.0
    %4183 = vmatprep.subr.mxu0 0.0
    %4184 = vmatpush1.msra.mxu0 0.0
    %4185 = vmatprep.subr.mxu0 0.0
    %4186 = vmatpush1.msra.mxu0 0.0
    %4187 = vmatprep.subr.mxu0 0.0
    %4188 = vmatpush1.msra.mxu0 0.0
    %4189 = vmatprep.subr.mxu0 0.0
    %4190 = vmatpush1.msra.mxu0 0.0
    %4191 = vmatprep.subr.mxu0 0.0
    %4192 = vmatpush1.msra.mxu0 0.0
    %4193 = vmatprep.subr.mxu0 0.0
    %4194 = vmatpush1.msra.mxu0 0.0
    %4195 = vmatprep.subr.mxu0 0.0
    %4196 = vmatpush1.msra.mxu0 %v4162
    %4197 = vmatprep.subr.mxu0 0.0
    %4198 = vmatpush1.msra.mxu0 %v4161
    %4199 = vmatprep.subr.mxu0 0.0
    %4200 = vmatpush1.msra.mxu0 %v4160
    %4201 = vmatprep.subr.mxu0 0.0
    %4202 = vmatpush1.msra.mxu0 %v4159
    %4203 = vmatprep.subr.mxu0 0.0
    %4204 = vmatpush2.msra.mxu0 0.0
    %4205 = vmatprep.subr.mxu0 0.0
    %4206 = vmatpush2.msra.mxu0 0.0
    %4207 = vmatprep.subr.mxu0 0.0
    %4208 = vmatpush2.msra.mxu0 0.0
    %4209 = vmatprep.subr.mxu0 0.0
    %4210 = vmatpush2.msra.mxu0 0.0
    %4211 = vmatprep.subr.mxu0 0.0
    %4212 = vmatpush2.msra.mxu0 0.0
    %4213 = vmatprep.subr.mxu0 0.0
    %4214 = vmatpush2.msra.mxu0 0.0
    %4215 = vmatprep.subr.mxu0 0.0
    %4216 = vmatpush2.msra.mxu0 0.0
    %4217 = vmatprep.subr.mxu0 0.0
    %4218 = vmatpush2.msra.mxu0 0.0
    %4219 = vmatprep.subr.mxu0 0.0
    %4220 = vmatpush2.msra.mxu0 0.0
    %4221 = vmatprep.subr.mxu0 0.0
    %4222 = vmatpush2.msra.mxu0 0.0
    %4223 = vmatprep.subr.mxu0 0.0
    %4224 = vmatpush2.msra.mxu0 0.0
    %4225 = vmatprep.subr.mxu0 0.0
    %4226 = vmatpush2.msra.mxu0 0.0
    %4227 = vmatprep.subr.mxu0 0.0
    %4228 = vmatpush2.msra.mxu0 0.0
    %4229 = vmatprep.subr.mxu0 0.0
    %4230 = vmatpush2.msra.mxu0 0.0
    %4231 = vmatprep.subr.mxu0 0.0
    %4232 = vmatpush2.msra.mxu0 0.0
    %4233 = vmatprep.subr.mxu0 0.0
    %4234 = vmatpush2.msra.mxu0 0.0
    %4235 = vmatprep.mubr.f32.mxu0 0.0
    %4236 = vmatmul.mubr.f32.gmra.mxu0 %v3902
    %v4237 = vpop.f32.mrf.mxu0
    %v4238 = vadd.f32 %v4169, %v4237
    %v4239 = vpop.f32.mrf.mxu0
    %4240 = vmatprep.mubr.f32.mxu0 0.0
    %4241 = vmatmul.mubr.f32.gmra.mxu0 %v3905
    %v4242 = vpop.f32.mrf.mxu0
    %v4243 = vadd.f32 %v4169, %v4242
    %v4244 = vpop.f32.mrf.mxu0
    %4245 = vdwg.mxu0
    %v4246 = vld [vmem:[#allocation12] sm:$0xff]
    %v4247 = vld [vmem:[#allocation12 + $0x8] sm:$0xff]
    %v4248 = vld [vmem:[#allocation12 + $0x10] sm:$0xff]
    %v4249 = vld [vmem:[#allocation12 + $0x18] sm:$0xff]
    %s4250 = scalar_lea.vmem [#allocation12], 32
    %v4251 = vld [vmem:[%s4250] sm:$0xff]
    %v4252 = vld [vmem:[%s4250 + $0x8] sm:$0xff]
    %v4253 = vld [vmem:[%s4250 + $0x10] sm:$0xff]
    %v4254 = vld [vmem:[%s4250 + $0x18] sm:$0xff]
    %s4255 = scalar_lea.vmem [#allocation12], 64
    %v4256 = vld [vmem:[%s4255] sm:$0xff]
    %v4257 = vld [vmem:[%s4255 + $0x8] sm:$0xff]
    %v4258 = vld [vmem:[%s4255 + $0x10] sm:$0xff]
    %v4259 = vld [vmem:[%s4255 + $0x18] sm:$0xff]
    %s4260 = scalar_lea.vmem [#allocation12], 96
    %v4261 = vld [vmem:[%s4260] sm:$0xff]
    %v4262 = vld [vmem:[%s4260 + $0x8] sm:$0xff]
    %v4263 = vld [vmem:[%s4260 + $0x10] sm:$0xff]
    %v4264 = vld [vmem:[%s4260 + $0x18] sm:$0xff]
    %4265 = vmatprep.subr.mxu0 0.0
    %4266 = vmatpush1.msra.mxu0 0.0
    %4267 = vmatprep.subr.mxu0 0.0
    %4268 = vmatpush1.msra.mxu0 0.0
    %4269 = vmatprep.subr.mxu0 0.0
    %4270 = vmatpush1.msra.mxu0 0.0
    %4271 = vmatprep.subr.mxu0 0.0
    %4272 = vmatpush1.msra.mxu0 0.0
    %4273 = vmatprep.subr.mxu0 0.0
    %4274 = vmatpush1.msra.mxu0 0.0
    %4275 = vmatprep.subr.mxu0 0.0
    %4276 = vmatpush1.msra.mxu0 0.0
    %4277 = vmatprep.subr.mxu0 0.0
    %4278 = vmatpush1.msra.mxu0 0.0
    %4279 = vmatprep.subr.mxu0 0.0
    %4280 = vmatpush1.msra.mxu0 0.0
    %4281 = vmatprep.subr.mxu0 0.0
    %4282 = vmatpush1.msra.mxu0 0.0
    %4283 = vmatprep.subr.mxu0 0.0
    %4284 = vmatpush1.msra.mxu0 0.0
    %4285 = vmatprep.subr.mxu0 0.0
    %4286 = vmatpush1.msra.mxu0 0.0
    %4287 = vmatprep.subr.mxu0 0.0
    %4288 = vmatpush1.msra.mxu0 0.0
    %4289 = vmatprep.subr.mxu0 0.0
    %4290 = vmatpush1.msra.mxu0 %v4249
    %4291 = vmatprep.subr.mxu0 0.0
    %4292 = vmatpush1.msra.mxu0 %v4248
    %4293 = vmatprep.subr.mxu0 0.0
    %4294 = vmatpush1.msra.mxu0 %v4247
    %4295 = vmatprep.subr.mxu0 0.0
    %4296 = vmatpush1.msra.mxu0 %v4246
    %4297 = vmatprep.subr.mxu0 0.0
    %4298 = vmatpush2.msra.mxu0 0.0
    %4299 = vmatprep.subr.mxu0 0.0
    %4300 = vmatpush2.msra.mxu0 0.0
    %4301 = vmatprep.subr.mxu0 0.0
    %4302 = vmatpush2.msra.mxu0 0.0
    %4303 = vmatprep.subr.mxu0 0.0
    %4304 = vmatpush2.msra.mxu0 0.0
    %4305 = vmatprep.subr.mxu0 0.0
    %4306 = vmatpush2.msra.mxu0 0.0
    %4307 = vmatprep.subr.mxu0 0.0
    %4308 = vmatpush2.msra.mxu0 0.0
    %4309 = vmatprep.subr.mxu0 0.0
    %4310 = vmatpush2.msra.mxu0 0.0
    %4311 = vmatprep.subr.mxu0 0.0
    %4312 = vmatpush2.msra.mxu0 0.0
    %4313 = vmatprep.subr.mxu0 0.0
    %4314 = vmatpush2.msra.mxu0 0.0
    %4315 = vmatprep.subr.mxu0 0.0
    %4316 = vmatpush2.msra.mxu0 0.0
    %4317 = vmatprep.subr.mxu0 0.0
    %4318 = vmatpush2.msra.mxu0 0.0
    %4319 = vmatprep.subr.mxu0 0.0
    %4320 = vmatpush2.msra.mxu0 0.0
    %4321 = vmatprep.subr.mxu0 0.0
    %4322 = vmatpush2.msra.mxu0 0.0
    %4323 = vmatprep.subr.mxu0 0.0
    %4324 = vmatpush2.msra.mxu0 0.0
    %4325 = vmatprep.subr.mxu0 0.0
    %4326 = vmatpush2.msra.mxu0 0.0
    %4327 = vmatprep.subr.mxu0 0.0
    %4328 = vmatpush2.msra.mxu0 0.0
    %4329 = vmatprep.mubr.f32.mxu0 0.0
    %4330 = vmatmul.mubr.f32.gmra.mxu0 %v1293
    %v4331 = vpop.f32.mrf.mxu0
    %v4332 = vadd.f32 0.0, %v4331
    %v4333 = vpop.f32.mrf.mxu0
    %4334 = vdwg.mxu0
    %v4335 = vadd.f32 %v3974, %v4332
    %v4336 = vxor.u32 %v4335, 2147483648
    %v4337 = vmul.f32 %v4336, 1.442695
    %v4338 = vpow.pop %v4337
    %v4339 = vadd.f32 %v4338, 1.0
    %v4340 = vrcp.pop %v4339
    %v4341 = vmul.f32 1.0, %v4340
    %4342 = vmatprep.subr.mxu0 0.0
    %4343 = vmatpush1.msra.mxu0 0.0
    %4344 = vmatprep.subr.mxu0 0.0
    %4345 = vmatpush1.msra.mxu0 0.0
    %4346 = vmatprep.subr.mxu0 0.0
    %4347 = vmatpush1.msra.mxu0 0.0
    %4348 = vmatprep.subr.mxu0 0.0
    %4349 = vmatpush1.msra.mxu0 0.0
    %4350 = vmatprep.subr.mxu0 0.0
    %4351 = vmatpush1.msra.mxu0 0.0
    %4352 = vmatprep.subr.mxu0 0.0
    %4353 = vmatpush1.msra.mxu0 0.0
    %4354 = vmatprep.subr.mxu0 0.0
    %4355 = vmatpush1.msra.mxu0 0.0
    %4356 = vmatprep.subr.mxu0 0.0
    %4357 = vmatpush1.msra.mxu0 0.0
    %4358 = vmatprep.subr.mxu0 0.0
    %4359 = vmatpush1.msra.mxu0 0.0
    %4360 = vmatprep.subr.mxu0 0.0
    %4361 = vmatpush1.msra.mxu0 0.0
    %4362 = vmatprep.subr.mxu0 0.0
    %4363 = vmatpush1.msra.mxu0 0.0
    %4364 = vmatprep.subr.mxu0 0.0
    %4365 = vmatpush1.msra.mxu0 0.0
    %4366 = vmatprep.subr.mxu0 0.0
    %4367 = vmatpush1.msra.mxu0 %v4254
    %4368 = vmatprep.subr.mxu0 0.0
    %4369 = vmatpush1.msra.mxu0 %v4253
    %4370 = vmatprep.subr.mxu0 0.0
    %4371 = vmatpush1.msra.mxu0 %v4252
    %4372 = vmatprep.subr.mxu0 0.0
    %4373 = vmatpush1.msra.mxu0 %v4251
    %4374 = vmatprep.subr.mxu0 0.0
    %4375 = vmatpush2.msra.mxu0 0.0
    %4376 = vmatprep.subr.mxu0 0.0
    %4377 = vmatpush2.msra.mxu0 0.0
    %4378 = vmatprep.subr.mxu0 0.0
    %4379 = vmatpush2.msra.mxu0 0.0
    %4380 = vmatprep.subr.mxu0 0.0
    %4381 = vmatpush2.msra.mxu0 0.0
    %4382 = vmatprep.subr.mxu0 0.0
    %4383 = vmatpush2.msra.mxu0 0.0
    %4384 = vmatprep.subr.mxu0 0.0
    %4385 = vmatpush2.msra.mxu0 0.0
    %4386 = vmatprep.subr.mxu0 0.0
    %4387 = vmatpush2.msra.mxu0 0.0
    %4388 = vmatprep.subr.mxu0 0.0
    %4389 = vmatpush2.msra.mxu0 0.0
    %4390 = vmatprep.subr.mxu0 0.0
    %4391 = vmatpush2.msra.mxu0 0.0
    %4392 = vmatprep.subr.mxu0 0.0
    %4393 = vmatpush2.msra.mxu0 0.0
    %4394 = vmatprep.subr.mxu0 0.0
    %4395 = vmatpush2.msra.mxu0 0.0
    %4396 = vmatprep.subr.mxu0 0.0
    %4397 = vmatpush2.msra.mxu0 0.0
    %4398 = vmatprep.subr.mxu0 0.0
    %4399 = vmatpush2.msra.mxu0 0.0
    %4400 = vmatprep.subr.mxu0 0.0
    %4401 = vmatpush2.msra.mxu0 0.0
    %4402 = vmatprep.subr.mxu0 0.0
    %4403 = vmatpush2.msra.mxu0 0.0
    %4404 = vmatprep.subr.mxu0 0.0
    %4405 = vmatpush2.msra.mxu0 0.0
    %4406 = vmatprep.mubr.f32.mxu0 0.0
    %4407 = vmatmul.mubr.f32.gmra.mxu0 %v1293
    %v4408 = vpop.f32.mrf.mxu0
    %v4409 = vadd.f32 0.0, %v4408
    %v4410 = vpop.f32.mrf.mxu0
    %4411 = vdwg.mxu0
    %v4412 = vadd.f32 %v4062, %v4409
    %v4413 = vxor.u32 %v4412, 2147483648
    %v4414 = vmul.f32 %v4413, 1.442695
    %v4415 = vpow.pop %v4414
    %v4416 = vadd.f32 %v4415, 1.0
    %v4417 = vrcp.pop %v4416
    %v4418 = vmul.f32 1.0, %v4417
    %4419 = vmatprep.subr.mxu0 0.0
    %4420 = vmatpush1.msra.mxu0 0.0
    %4421 = vmatprep.subr.mxu0 0.0
    %4422 = vmatpush1.msra.mxu0 0.0
    %4423 = vmatprep.subr.mxu0 0.0
    %4424 = vmatpush1.msra.mxu0 0.0
    %4425 = vmatprep.subr.mxu0 0.0
    %4426 = vmatpush1.msra.mxu0 0.0
    %4427 = vmatprep.subr.mxu0 0.0
    %4428 = vmatpush1.msra.mxu0 0.0
    %4429 = vmatprep.subr.mxu0 0.0
    %4430 = vmatpush1.msra.mxu0 0.0
    %4431 = vmatprep.subr.mxu0 0.0
    %4432 = vmatpush1.msra.mxu0 0.0
    %4433 = vmatprep.subr.mxu0 0.0
    %4434 = vmatpush1.msra.mxu0 0.0
    %4435 = vmatprep.subr.mxu0 0.0
    %4436 = vmatpush1.msra.mxu0 0.0
    %4437 = vmatprep.subr.mxu0 0.0
    %4438 = vmatpush1.msra.mxu0 0.0
    %4439 = vmatprep.subr.mxu0 0.0
    %4440 = vmatpush1.msra.mxu0 0.0
    %4441 = vmatprep.subr.mxu0 0.0
    %4442 = vmatpush1.msra.mxu0 0.0
    %4443 = vmatprep.subr.mxu0 0.0
    %4444 = vmatpush1.msra.mxu0 %v4259
    %4445 = vmatprep.subr.mxu0 0.0
    %4446 = vmatpush1.msra.mxu0 %v4258
    %4447 = vmatprep.subr.mxu0 0.0
    %4448 = vmatpush1.msra.mxu0 %v4257
    %4449 = vmatprep.subr.mxu0 0.0
    %4450 = vmatpush1.msra.mxu0 %v4256
    %4451 = vmatprep.subr.mxu0 0.0
    %4452 = vmatpush2.msra.mxu0 0.0
    %4453 = vmatprep.subr.mxu0 0.0
    %4454 = vmatpush2.msra.mxu0 0.0
    %4455 = vmatprep.subr.mxu0 0.0
    %4456 = vmatpush2.msra.mxu0 0.0
    %4457 = vmatprep.subr.mxu0 0.0
    %4458 = vmatpush2.msra.mxu0 0.0
    %4459 = vmatprep.subr.mxu0 0.0
    %4460 = vmatpush2.msra.mxu0 0.0
    %4461 = vmatprep.subr.mxu0 0.0
    %4462 = vmatpush2.msra.mxu0 0.0
    %4463 = vmatprep.subr.mxu0 0.0
    %4464 = vmatpush2.msra.mxu0 0.0
    %4465 = vmatprep.subr.mxu0 0.0
    %4466 = vmatpush2.msra.mxu0 0.0
    %4467 = vmatprep.subr.mxu0 0.0
    %4468 = vmatpush2.msra.mxu0 0.0
    %4469 = vmatprep.subr.mxu0 0.0
    %4470 = vmatpush2.msra.mxu0 0.0
    %4471 = vmatprep.subr.mxu0 0.0
    %4472 = vmatpush2.msra.mxu0 0.0
    %4473 = vmatprep.subr.mxu0 0.0
    %4474 = vmatpush2.msra.mxu0 0.0
    %4475 = vmatprep.subr.mxu0 0.0
    %4476 = vmatpush2.msra.mxu0 0.0
    %4477 = vmatprep.subr.mxu0 0.0
    %4478 = vmatpush2.msra.mxu0 0.0
    %4479 = vmatprep.subr.mxu0 0.0
    %4480 = vmatpush2.msra.mxu0 0.0
    %4481 = vmatprep.subr.mxu0 0.0
    %4482 = vmatpush2.msra.mxu0 0.0
    %4483 = vmatprep.mubr.f32.mxu0 0.0
    %4484 = vmatmul.mubr.f32.gmra.mxu0 %v1293
    %v4485 = vpop.f32.mrf.mxu0
    %v4486 = vadd.f32 0.0, %v4485
    %v4487 = vpop.f32.mrf.mxu0
    %4488 = vdwg.mxu0
    %v4489 = vadd.f32 %v4150, %v4486
    %v4490 = vtanh.pop %v4489
    %4491 = vmatprep.subr.mxu0 0.0
    %4492 = vmatpush1.msra.mxu0 0.0
    %4493 = vmatprep.subr.mxu0 0.0
    %4494 = vmatpush1.msra.mxu0 0.0
    %4495 = vmatprep.subr.mxu0 0.0
    %4496 = vmatpush1.msra.mxu0 0.0
    %4497 = vmatprep.subr.mxu0 0.0
    %4498 = vmatpush1.msra.mxu0 0.0
    %4499 = vmatprep.subr.mxu0 0.0
    %4500 = vmatpush1.msra.mxu0 0.0
    %4501 = vmatprep.subr.mxu0 0.0
    %4502 = vmatpush1.msra.mxu0 0.0
    %4503 = vmatprep.subr.mxu0 0.0
    %4504 = vmatpush1.msra.mxu0 0.0
    %4505 = vmatprep.subr.mxu0 0.0
    %4506 = vmatpush1.msra.mxu0 0.0
    %4507 = vmatprep.subr.mxu0 0.0
    %4508 = vmatpush1.msra.mxu0 0.0
    %4509 = vmatprep.subr.mxu0 0.0
    %4510 = vmatpush1.msra.mxu0 0.0
    %4511 = vmatprep.subr.mxu0 0.0
    %4512 = vmatpush1.msra.mxu0 0.0
    %4513 = vmatprep.subr.mxu0 0.0
    %4514 = vmatpush1.msra.mxu0 0.0
    %4515 = vmatprep.subr.mxu0 0.0
    %4516 = vmatpush1.msra.mxu0 %v4264
    %4517 = vmatprep.subr.mxu0 0.0
    %4518 = vmatpush1.msra.mxu0 %v4263
    %4519 = vmatprep.subr.mxu0 0.0
    %4520 = vmatpush1.msra.mxu0 %v4262
    %4521 = vmatprep.subr.mxu0 0.0
    %4522 = vmatpush1.msra.mxu0 %v4261
    %4523 = vmatprep.subr.mxu0 0.0
    %4524 = vmatpush2.msra.mxu0 0.0
    %4525 = vmatprep.subr.mxu0 0.0
    %4526 = vmatpush2.msra.mxu0 0.0
    %4527 = vmatprep.subr.mxu0 0.0
    %4528 = vmatpush2.msra.mxu0 0.0
    %4529 = vmatprep.subr.mxu0 0.0
    %4530 = vmatpush2.msra.mxu0 0.0
    %4531 = vmatprep.subr.mxu0 0.0
    %4532 = vmatpush2.msra.mxu0 0.0
    %4533 = vmatprep.subr.mxu0 0.0
    %4534 = vmatpush2.msra.mxu0 0.0
    %4535 = vmatprep.subr.mxu0 0.0
    %4536 = vmatpush2.msra.mxu0 0.0
    %4537 = vmatprep.subr.mxu0 0.0
    %4538 = vmatpush2.msra.mxu0 0.0
    %4539 = vmatprep.subr.mxu0 0.0
    %4540 = vmatpush2.msra.mxu0 0.0
    %4541 = vmatprep.subr.mxu0 0.0
    %4542 = vmatpush2.msra.mxu0 0.0
    %4543 = vmatprep.subr.mxu0 0.0
    %4544 = vmatpush2.msra.mxu0 0.0
    %4545 = vmatprep.subr.mxu0 0.0
    %4546 = vmatpush2.msra.mxu0 0.0
    %4547 = vmatprep.subr.mxu0 0.0
    %4548 = vmatpush2.msra.mxu0 0.0
    %4549 = vmatprep.subr.mxu0 0.0
    %4550 = vmatpush2.msra.mxu0 0.0
    %4551 = vmatprep.subr.mxu0 0.0
    %4552 = vmatpush2.msra.mxu0 0.0
    %4553 = vmatprep.subr.mxu0 0.0
    %4554 = vmatpush2.msra.mxu0 0.0
    %4555 = vmatprep.mubr.f32.mxu0 0.0
    %4556 = vmatmul.mubr.f32.gmra.mxu0 %v1293
    %v4557 = vpop.f32.mrf.mxu0
    %v4558 = vadd.f32 0.0, %v4557
    %v4559 = vpop.f32.mrf.mxu0
    %4560 = vdwg.mxu0
    %v4561 = vadd.f32 %v4238, %v4558
    %v4562 = vxor.u32 %v4561, 2147483648
    %v4563 = vmul.f32 %v4562, 1.442695
    %v4564 = vpow.pop %v4563
    %v4565 = vadd.f32 %v4564, 1.0
    %v4566 = vrcp.pop %v4565
    %v4567 = vmul.f32 1.0, %v4566
    %v4568 = vmul.f32 %v4418, 0.0
    %v4569 = vmul.f32 %v4341, %v4490
    %v4570 = vadd.f32 %v4568, %v4569
    %v4571 = vtanh.pop %v4570
    %v4572 = vmul.f32 %v4567, %v4571
    %v4574 = vsel %vm1291, %v4572, 0
    %4576 = vmatprep.subr.mxu0 0.0
    %4577 = vmatpush1.msra.mxu0 0.0
    %4578 = vmatprep.subr.mxu0 0.0
    %4579 = vmatpush1.msra.mxu0 0.0
    %4580 = vmatprep.subr.mxu0 0.0
    %4581 = vmatpush1.msra.mxu0 0.0
    %4582 = vmatprep.subr.mxu0 0.0
    %4583 = vmatpush1.msra.mxu0 0.0
    %4584 = vmatprep.subr.mxu0 0.0
    %4585 = vmatpush1.msra.mxu0 0.0
    %4586 = vmatprep.subr.mxu0 0.0
    %4587 = vmatpush1.msra.mxu0 0.0
    %4588 = vmatprep.subr.mxu0 0.0
    %4589 = vmatpush1.msra.mxu0 0.0
    %4590 = vmatprep.subr.mxu0 0.0
    %4591 = vmatpush1.msra.mxu0 0.0
    %4592 = vmatprep.subr.mxu0 0.0
    %4593 = vmatpush1.msra.mxu0 0.0
    %4594 = vmatprep.subr.mxu0 0.0
    %4595 = vmatpush1.msra.mxu0 0.0
    %4596 = vmatprep.subr.mxu0 0.0
    %4597 = vmatpush1.msra.mxu0 0.0
    %4598 = vmatprep.subr.mxu0 0.0
    %4599 = vmatpush1.msra.mxu0 0.0
    %4600 = vmatprep.subr.mxu0 0.0
    %4601 = vmatpush1.msra.mxu0 %v4249
    %4602 = vmatprep.subr.mxu0 0.0
    %4603 = vmatpush1.msra.mxu0 %v4248
    %4604 = vmatprep.subr.mxu0 0.0
    %4605 = vmatpush1.msra.mxu0 %v4247
    %4606 = vmatprep.subr.mxu0 0.0
    %4607 = vmatpush1.msra.mxu0 %v4246
    %4608 = vmatprep.subr.mxu0 0.0
    %4609 = vmatpush2.msra.mxu0 0.0
    %4610 = vmatprep.subr.mxu0 0.0
    %4611 = vmatpush2.msra.mxu0 0.0
    %4612 = vmatprep.subr.mxu0 0.0
    %4613 = vmatpush2.msra.mxu0 0.0
    %4614 = vmatprep.subr.mxu0 0.0
    %4615 = vmatpush2.msra.mxu0 0.0
    %4616 = vmatprep.subr.mxu0 0.0
    %4617 = vmatpush2.msra.mxu0 0.0
    %4618 = vmatprep.subr.mxu0 0.0
    %4619 = vmatpush2.msra.mxu0 0.0
    %4620 = vmatprep.subr.mxu0 0.0
    %4621 = vmatpush2.msra.mxu0 0.0
    %4622 = vmatprep.subr.mxu0 0.0
    %4623 = vmatpush2.msra.mxu0 0.0
    %4624 = vmatprep.subr.mxu0 0.0
    %4625 = vmatpush2.msra.mxu0 0.0
    %4626 = vmatprep.subr.mxu0 0.0
    %4627 = vmatpush2.msra.mxu0 0.0
    %4628 = vmatprep.subr.mxu0 0.0
    %4629 = vmatpush2.msra.mxu0 0.0
    %4630 = vmatprep.subr.mxu0 0.0
    %4631 = vmatpush2.msra.mxu0 0.0
    %4632 = vmatprep.subr.mxu0 0.0
    %4633 = vmatpush2.msra.mxu0 0.0
    %4634 = vmatprep.subr.mxu0 0.0
    %4635 = vmatpush2.msra.mxu0 0.0
    %4636 = vmatprep.subr.mxu0 0.0
    %4637 = vmatpush2.msra.mxu0 0.0
    %4638 = vmatprep.subr.mxu0 0.0
    %4639 = vmatpush2.msra.mxu0 0.0
    %4640 = vmatprep.mubr.f32.mxu0 0.0
    %4641 = vmatmul.mubr.f32.gmra.mxu0 %v4574
    %v4642 = vpop.f32.mrf.mxu0
    %v4643 = vadd.f32 0.0, %v4642
    %v4644 = vpop.f32.mrf.mxu0
    %4645 = vdwg.mxu0
    %v4647 = vrot.slane %v4643, 6
    %v4649 = vadd.f32 %v3974, %v4647
    %v4650 = vxor.u32 %v4649, 2147483648
    %v4651 = vmul.f32 %v4650, 1.442695
    %v4652 = vpow.pop %v4651
    %v4653 = vadd.f32 %v4652, 1.0
    %v4654 = vrcp.pop %v4653
    %v4655 = vmul.f32 1.0, %v4654
    %4656 = vmatprep.subr.mxu0 0.0
    %4657 = vmatpush1.msra.mxu0 0.0
    %4658 = vmatprep.subr.mxu0 0.0
    %4659 = vmatpush1.msra.mxu0 0.0
    %4660 = vmatprep.subr.mxu0 0.0
    %4661 = vmatpush1.msra.mxu0 0.0
    %4662 = vmatprep.subr.mxu0 0.0
    %4663 = vmatpush1.msra.mxu0 0.0
    %4664 = vmatprep.subr.mxu0 0.0
    %4665 = vmatpush1.msra.mxu0 0.0
    %4666 = vmatprep.subr.mxu0 0.0
    %4667 = vmatpush1.msra.mxu0 0.0
    %4668 = vmatprep.subr.mxu0 0.0
    %4669 = vmatpush1.msra.mxu0 0.0
    %4670 = vmatprep.subr.mxu0 0.0
    %4671 = vmatpush1.msra.mxu0 0.0
    %4672 = vmatprep.subr.mxu0 0.0
    %4673 = vmatpush1.msra.mxu0 0.0
    %4674 = vmatprep.subr.mxu0 0.0
    %4675 = vmatpush1.msra.mxu0 0.0
    %4676 = vmatprep.subr.mxu0 0.0
    %4677 = vmatpush1.msra.mxu0 0.0
    %4678 = vmatprep.subr.mxu0 0.0
    %4679 = vmatpush1.msra.mxu0 0.0
    %4680 = vmatprep.subr.mxu0 0.0
    %4681 = vmatpush1.msra.mxu0 %v4254
    %4682 = vmatprep.subr.mxu0 0.0
    %4683 = vmatpush1.msra.mxu0 %v4253
    %4684 = vmatprep.subr.mxu0 0.0
    %4685 = vmatpush1.msra.mxu0 %v4252
    %4686 = vmatprep.subr.mxu0 0.0
    %4687 = vmatpush1.msra.mxu0 %v4251
    %4688 = vmatprep.subr.mxu0 0.0
    %4689 = vmatpush2.msra.mxu0 0.0
    %4690 = vmatprep.subr.mxu0 0.0
    %4691 = vmatpush2.msra.mxu0 0.0
    %4692 = vmatprep.subr.mxu0 0.0
    %4693 = vmatpush2.msra.mxu0 0.0
    %4694 = vmatprep.subr.mxu0 0.0
    %4695 = vmatpush2.msra.mxu0 0.0
    %4696 = vmatprep.subr.mxu0 0.0
    %4697 = vmatpush2.msra.mxu0 0.0
    %4698 = vmatprep.subr.mxu0 0.0
    %4699 = vmatpush2.msra.mxu0 0.0
    %4700 = vmatprep.subr.mxu0 0.0
    %4701 = vmatpush2.msra.mxu0 0.0
    %4702 = vmatprep.subr.mxu0 0.0
    %4703 = vmatpush2.msra.mxu0 0.0
    %4704 = vmatprep.subr.mxu0 0.0
    %4705 = vmatpush2.msra.mxu0 0.0
    %4706 = vmatprep.subr.mxu0 0.0
    %4707 = vmatpush2.msra.mxu0 0.0
    %4708 = vmatprep.subr.mxu0 0.0
    %4709 = vmatpush2.msra.mxu0 0.0
    %4710 = vmatprep.subr.mxu0 0.0
    %4711 = vmatpush2.msra.mxu0 0.0
    %4712 = vmatprep.subr.mxu0 0.0
    %4713 = vmatpush2.msra.mxu0 0.0
    %4714 = vmatprep.subr.mxu0 0.0
    %4715 = vmatpush2.msra.mxu0 0.0
    %4716 = vmatprep.subr.mxu0 0.0
    %4717 = vmatpush2.msra.mxu0 0.0
    %4718 = vmatprep.subr.mxu0 0.0
    %4719 = vmatpush2.msra.mxu0 0.0
    %4720 = vmatprep.mubr.f32.mxu0 0.0
    %4721 = vmatmul.mubr.f32.gmra.mxu0 %v4574
    %v4722 = vpop.f32.mrf.mxu0
    %v4723 = vadd.f32 0.0, %v4722
    %v4724 = vpop.f32.mrf.mxu0
    %4725 = vdwg.mxu0
    %v4727 = vrot.slane %v4723, 6
    %v4729 = vadd.f32 %v4062, %v4727
    %v4730 = vxor.u32 %v4729, 2147483648
    %v4731 = vmul.f32 %v4730, 1.442695
    %v4732 = vpow.pop %v4731
    %v4733 = vadd.f32 %v4732, 1.0
    %v4734 = vrcp.pop %v4733
    %v4735 = vmul.f32 1.0, %v4734
    %4736 = vmatprep.subr.mxu0 0.0
    %4737 = vmatpush1.msra.mxu0 0.0
    %4738 = vmatprep.subr.mxu0 0.0
    %4739 = vmatpush1.msra.mxu0 0.0
    %4740 = vmatprep.subr.mxu0 0.0
    %4741 = vmatpush1.msra.mxu0 0.0
    %4742 = vmatprep.subr.mxu0 0.0
    %4743 = vmatpush1.msra.mxu0 0.0
    %4744 = vmatprep.subr.mxu0 0.0
    %4745 = vmatpush1.msra.mxu0 0.0
    %4746 = vmatprep.subr.mxu0 0.0
    %4747 = vmatpush1.msra.mxu0 0.0
    %4748 = vmatprep.subr.mxu0 0.0
    %4749 = vmatpush1.msra.mxu0 0.0
    %4750 = vmatprep.subr.mxu0 0.0
    %4751 = vmatpush1.msra.mxu0 0.0
    %4752 = vmatprep.subr.mxu0 0.0
    %4753 = vmatpush1.msra.mxu0 0.0
    %4754 = vmatprep.subr.mxu0 0.0
    %4755 = vmatpush1.msra.mxu0 0.0
    %4756 = vmatprep.subr.mxu0 0.0
    %4757 = vmatpush1.msra.mxu0 0.0
    %4758 = vmatprep.subr.mxu0 0.0
    %4759 = vmatpush1.msra.mxu0 0.0
    %4760 = vmatprep.subr.mxu0 0.0
    %4761 = vmatpush1.msra.mxu0 %v4259
    %4762 = vmatprep.subr.mxu0 0.0
    %4763 = vmatpush1.msra.mxu0 %v4258
    %4764 = vmatprep.subr.mxu0 0.0
    %4765 = vmatpush1.msra.mxu0 %v4257
    %4766 = vmatprep.subr.mxu0 0.0
    %4767 = vmatpush1.msra.mxu0 %v4256
    %4768 = vmatprep.subr.mxu0 0.0
    %4769 = vmatpush2.msra.mxu0 0.0
    %4770 = vmatprep.subr.mxu0 0.0
    %4771 = vmatpush2.msra.mxu0 0.0
    %4772 = vmatprep.subr.mxu0 0.0
    %4773 = vmatpush2.msra.mxu0 0.0
    %4774 = vmatprep.subr.mxu0 0.0
    %4775 = vmatpush2.msra.mxu0 0.0
    %4776 = vmatprep.subr.mxu0 0.0
    %4777 = vmatpush2.msra.mxu0 0.0
    %4778 = vmatprep.subr.mxu0 0.0
    %4779 = vmatpush2.msra.mxu0 0.0
    %4780 = vmatprep.subr.mxu0 0.0
    %4781 = vmatpush2.msra.mxu0 0.0
    %4782 = vmatprep.subr.mxu0 0.0
    %4783 = vmatpush2.msra.mxu0 0.0
    %4784 = vmatprep.subr.mxu0 0.0
    %4785 = vmatpush2.msra.mxu0 0.0
    %4786 = vmatprep.subr.mxu0 0.0
    %4787 = vmatpush2.msra.mxu0 0.0
    %4788 = vmatprep.subr.mxu0 0.0
    %4789 = vmatpush2.msra.mxu0 0.0
    %4790 = vmatprep.subr.mxu0 0.0
    %4791 = vmatpush2.msra.mxu0 0.0
    %4792 = vmatprep.subr.mxu0 0.0
    %4793 = vmatpush2.msra.mxu0 0.0
    %4794 = vmatprep.subr.mxu0 0.0
    %4795 = vmatpush2.msra.mxu0 0.0
    %4796 = vmatprep.subr.mxu0 0.0
    %4797 = vmatpush2.msra.mxu0 0.0
    %4798 = vmatprep.subr.mxu0 0.0
    %4799 = vmatpush2.msra.mxu0 0.0
    %4800 = vmatprep.mubr.f32.mxu0 0.0
    %4801 = vmatmul.mubr.f32.gmra.mxu0 %v4574
    %v4802 = vpop.f32.mrf.mxu0
    %v4803 = vadd.f32 0.0, %v4802
    %v4804 = vpop.f32.mrf.mxu0
    %4805 = vdwg.mxu0
    %v4807 = vrot.slane %v4803, 6
    %v4809 = vadd.f32 %v4150, %v4807
    %v4810 = vtanh.pop %v4809
    %4811 = vmatprep.subr.mxu0 0.0
    %4812 = vmatpush1.msra.mxu0 0.0
    %4813 = vmatprep.subr.mxu0 0.0
    %4814 = vmatpush1.msra.mxu0 0.0
    %4815 = vmatprep.subr.mxu0 0.0
    %4816 = vmatpush1.msra.mxu0 0.0
    %4817 = vmatprep.subr.mxu0 0.0
    %4818 = vmatpush1.msra.mxu0 0.0
    %4819 = vmatprep.subr.mxu0 0.0
    %4820 = vmatpush1.msra.mxu0 0.0
    %4821 = vmatprep.subr.mxu0 0.0
    %4822 = vmatpush1.msra.mxu0 0.0
    %4823 = vmatprep.subr.mxu0 0.0
    %4824 = vmatpush1.msra.mxu0 0.0
    %4825 = vmatprep.subr.mxu0 0.0
    %4826 = vmatpush1.msra.mxu0 0.0
    %4827 = vmatprep.subr.mxu0 0.0
    %4828 = vmatpush1.msra.mxu0 0.0
    %4829 = vmatprep.subr.mxu0 0.0
    %4830 = vmatpush1.msra.mxu0 0.0
    %4831 = vmatprep.subr.mxu0 0.0
    %4832 = vmatpush1.msra.mxu0 0.0
    %4833 = vmatprep.subr.mxu0 0.0
    %4834 = vmatpush1.msra.mxu0 0.0
    %4835 = vmatprep.subr.mxu0 0.0
    %4836 = vmatpush1.msra.mxu0 %v4264
    %4837 = vmatprep.subr.mxu0 0.0
    %4838 = vmatpush1.msra.mxu0 %v4263
    %4839 = vmatprep.subr.mxu0 0.0
    %4840 = vmatpush1.msra.mxu0 %v4262
    %4841 = vmatprep.subr.mxu0 0.0
    %4842 = vmatpush1.msra.mxu0 %v4261
    %4843 = vmatprep.subr.mxu0 0.0
    %4844 = vmatpush2.msra.mxu0 0.0
    %4845 = vmatprep.subr.mxu0 0.0
    %4846 = vmatpush2.msra.mxu0 0.0
    %4847 = vmatprep.subr.mxu0 0.0
    %4848 = vmatpush2.msra.mxu0 0.0
    %4849 = vmatprep.subr.mxu0 0.0
    %4850 = vmatpush2.msra.mxu0 0.0
    %4851 = vmatprep.subr.mxu0 0.0
    %4852 = vmatpush2.msra.mxu0 0.0
    %4853 = vmatprep.subr.mxu0 0.0
    %4854 = vmatpush2.msra.mxu0 0.0
    %4855 = vmatprep.subr.mxu0 0.0
    %4856 = vmatpush2.msra.mxu0 0.0
    %4857 = vmatprep.subr.mxu0 0.0
    %4858 = vmatpush2.msra.mxu0 0.0
    %4859 = vmatprep.subr.mxu0 0.0
    %4860 = vmatpush2.msra.mxu0 0.0
    %4861 = vmatprep.subr.mxu0 0.0
    %4862 = vmatpush2.msra.mxu0 0.0
    %4863 = vmatprep.subr.mxu0 0.0
    %4864 = vmatpush2.msra.mxu0 0.0
    %4865 = vmatprep.subr.mxu0 0.0
    %4866 = vmatpush2.msra.mxu0 0.0
    %4867 = vmatprep.subr.mxu0 0.0
    %4868 = vmatpush2.msra.mxu0 0.0
    %4869 = vmatprep.subr.mxu0 0.0
    %4870 = vmatpush2.msra.mxu0 0.0
    %4871 = vmatprep.subr.mxu0 0.0
    %4872 = vmatpush2.msra.mxu0 0.0
    %4873 = vmatprep.subr.mxu0 0.0
    %4874 = vmatpush2.msra.mxu0 0.0
    %4875 = vmatprep.mubr.f32.mxu0 0.0
    %4876 = vmatmul.mubr.f32.gmra.mxu0 %v4574
    %v4877 = vpop.f32.mrf.mxu0
    %v4878 = vadd.f32 0.0, %v4877
    %v4879 = vpop.f32.mrf.mxu0
    %4880 = vdwg.mxu0
    %v4882 = vrot.slane %v4878, 6
    %v4884 = vadd.f32 %v4238, %v4882
    %v4885 = vxor.u32 %v4884, 2147483648
    %v4886 = vmul.f32 %v4885, 1.442695
    %v4887 = vpow.pop %v4886
    %v4888 = vadd.f32 %v4887, 1.0
    %v4889 = vrcp.pop %v4888
    %v4890 = vmul.f32 1.0, %v4889
    %v4892 = vrot.slane %v4570, 6
    %v4894 = vmul.f32 %v4735, %v4892
    %v4895 = vmul.f32 %v4655, %v4810
    %v4896 = vadd.f32 %v4894, %v4895
    %v4897 = vtanh.pop %v4896
    %v4898 = vmul.f32 %v4890, %v4897
    %v4900 = vrot.slane %v4898, 2
    %v4901 = vsel %vm1291, %v4900, 0
    %4903 = vmatprep.subr.mxu0 0.0
    %4904 = vmatpush1.msra.mxu0 0.0
    %4905 = vmatprep.subr.mxu0 0.0
    %4906 = vmatpush1.msra.mxu0 0.0
    %4907 = vmatprep.subr.mxu0 0.0
    %4908 = vmatpush1.msra.mxu0 0.0
    %4909 = vmatprep.subr.mxu0 0.0
    %4910 = vmatpush1.msra.mxu0 0.0
    %4911 = vmatprep.subr.mxu0 0.0
    %4912 = vmatpush1.msra.mxu0 0.0
    %4913 = vmatprep.subr.mxu0 0.0
    %4914 = vmatpush1.msra.mxu0 0.0
    %4915 = vmatprep.subr.mxu0 0.0
    %4916 = vmatpush1.msra.mxu0 0.0
    %4917 = vmatprep.subr.mxu0 0.0
    %4918 = vmatpush1.msra.mxu0 0.0
    %4919 = vmatprep.subr.mxu0 0.0
    %4920 = vmatpush1.msra.mxu0 0.0
    %4921 = vmatprep.subr.mxu0 0.0
    %4922 = vmatpush1.msra.mxu0 0.0
    %4923 = vmatprep.subr.mxu0 0.0
    %4924 = vmatpush1.msra.mxu0 0.0
    %4925 = vmatprep.subr.mxu0 0.0
    %4926 = vmatpush1.msra.mxu0 0.0
    %4927 = vmatprep.subr.mxu0 0.0
    %4928 = vmatpush1.msra.mxu0 %v4249
    %4929 = vmatprep.subr.mxu0 0.0
    %4930 = vmatpush1.msra.mxu0 %v4248
    %4931 = vmatprep.subr.mxu0 0.0
    %4932 = vmatpush1.msra.mxu0 %v4247
    %4933 = vmatprep.subr.mxu0 0.0
    %4934 = vmatpush1.msra.mxu0 %v4246
    %4935 = vmatprep.subr.mxu0 0.0
    %4936 = vmatpush2.msra.mxu0 0.0
    %4937 = vmatprep.subr.mxu0 0.0
    %4938 = vmatpush2.msra.mxu0 0.0
    %4939 = vmatprep.subr.mxu0 0.0
    %4940 = vmatpush2.msra.mxu0 0.0
    %4941 = vmatprep.subr.mxu0 0.0
    %4942 = vmatpush2.msra.mxu0 0.0
    %4943 = vmatprep.subr.mxu0 0.0
    %4944 = vmatpush2.msra.mxu0 0.0
    %4945 = vmatprep.subr.mxu0 0.0
    %4946 = vmatpush2.msra.mxu0 0.0
    %4947 = vmatprep.subr.mxu0 0.0
    %4948 = vmatpush2.msra.mxu0 0.0
    %4949 = vmatprep.subr.mxu0 0.0
    %4950 = vmatpush2.msra.mxu0 0.0
    %4951 = vmatprep.subr.mxu0 0.0
    %4952 = vmatpush2.msra.mxu0 0.0
    %4953 = vmatprep.subr.mxu0 0.0
    %4954 = vmatpush2.msra.mxu0 0.0
    %4955 = vmatprep.subr.mxu0 0.0
    %4956 = vmatpush2.msra.mxu0 0.0
    %4957 = vmatprep.subr.mxu0 0.0
    %4958 = vmatpush2.msra.mxu0 0.0
    %4959 = vmatprep.subr.mxu0 0.0
    %4960 = vmatpush2.msra.mxu0 0.0
    %4961 = vmatprep.subr.mxu0 0.0
    %4962 = vmatpush2.msra.mxu0 0.0
    %4963 = vmatprep.subr.mxu0 0.0
    %4964 = vmatpush2.msra.mxu0 0.0
    %4965 = vmatprep.subr.mxu0 0.0
    %4966 = vmatpush2.msra.mxu0 0.0
    %4967 = vmatprep.mubr.f32.mxu0 0.0
    %4968 = vmatmul.mubr.f32.gmra.mxu0 %v4901
    %v4969 = vpop.f32.mrf.mxu0
    %v4970 = vadd.f32 0.0, %v4969
    %v4971 = vpop.f32.mrf.mxu0
    %4972 = vdwg.mxu0
    %v4974 = vrot.slane %v4970, 4
    %v4976 = vadd.f32 %v3974, %v4974
    %v4977 = vxor.u32 %v4976, 2147483648
    %v4978 = vmul.f32 %v4977, 1.442695
    %v4979 = vpow.pop %v4978
    %v4980 = vadd.f32 %v4979, 1.0
    %v4981 = vrcp.pop %v4980
    %v4982 = vmul.f32 1.0, %v4981
    %4983 = vmatprep.subr.mxu0 0.0
    %4984 = vmatpush1.msra.mxu0 0.0
    %4985 = vmatprep.subr.mxu0 0.0
    %4986 = vmatpush1.msra.mxu0 0.0
    %4987 = vmatprep.subr.mxu0 0.0
    %4988 = vmatpush1.msra.mxu0 0.0
    %4989 = vmatprep.subr.mxu0 0.0
    %4990 = vmatpush1.msra.mxu0 0.0
    %4991 = vmatprep.subr.mxu0 0.0
    %4992 = vmatpush1.msra.mxu0 0.0
    %4993 = vmatprep.subr.mxu0 0.0
    %4994 = vmatpush1.msra.mxu0 0.0
    %4995 = vmatprep.subr.mxu0 0.0
    %4996 = vmatpush1.msra.mxu0 0.0
    %4997 = vmatprep.subr.mxu0 0.0
    %4998 = vmatpush1.msra.mxu0 0.0
    %4999 = vmatprep.subr.mxu0 0.0
    %5000 = vmatpush1.msra.mxu0 0.0
    %5001 = vmatprep.subr.mxu0 0.0
    %5002 = vmatpush1.msra.mxu0 0.0
    %5003 = vmatprep.subr.mxu0 0.0
    %5004 = vmatpush1.msra.mxu0 0.0
    %5005 = vmatprep.subr.mxu0 0.0
    %5006 = vmatpush1.msra.mxu0 0.0
    %5007 = vmatprep.subr.mxu0 0.0
    %5008 = vmatpush1.msra.mxu0 %v4254
    %5009 = vmatprep.subr.mxu0 0.0
    %5010 = vmatpush1.msra.mxu0 %v4253
    %5011 = vmatprep.subr.mxu0 0.0
    %5012 = vmatpush1.msra.mxu0 %v4252
    %5013 = vmatprep.subr.mxu0 0.0
    %5014 = vmatpush1.msra.mxu0 %v4251
    %5015 = vmatprep.subr.mxu0 0.0
    %5016 = vmatpush2.msra.mxu0 0.0
    %5017 = vmatprep.subr.mxu0 0.0
    %5018 = vmatpush2.msra.mxu0 0.0
    %5019 = vmatprep.subr.mxu0 0.0
    %5020 = vmatpush2.msra.mxu0 0.0
    %5021 = vmatprep.subr.mxu0 0.0
    %5022 = vmatpush2.msra.mxu0 0.0
    %5023 = vmatprep.subr.mxu0 0.0
    %5024 = vmatpush2.msra.mxu0 0.0
    %5025 = vmatprep.subr.mxu0 0.0
    %5026 = vmatpush2.msra.mxu0 0.0
    %5027 = vmatprep.subr.mxu0 0.0
    %5028 = vmatpush2.msra.mxu0 0.0
    %5029 = vmatprep.subr.mxu0 0.0
    %5030 = vmatpush2.msra.mxu0 0.0
    %5031 = vmatprep.subr.mxu0 0.0
    %5032 = vmatpush2.msra.mxu0 0.0
    %5033 = vmatprep.subr.mxu0 0.0
    %5034 = vmatpush2.msra.mxu0 0.0
    %5035 = vmatprep.subr.mxu0 0.0
    %5036 = vmatpush2.msra.mxu0 0.0
    %5037 = vmatprep.subr.mxu0 0.0
    %5038 = vmatpush2.msra.mxu0 0.0
    %5039 = vmatprep.subr.mxu0 0.0
    %5040 = vmatpush2.msra.mxu0 0.0
    %5041 = vmatprep.subr.mxu0 0.0
    %5042 = vmatpush2.msra.mxu0 0.0
    %5043 = vmatprep.subr.mxu0 0.0
    %5044 = vmatpush2.msra.mxu0 0.0
    %5045 = vmatprep.subr.mxu0 0.0
    %5046 = vmatpush2.msra.mxu0 0.0
    %5047 = vmatprep.mubr.f32.mxu0 0.0
    %5048 = vmatmul.mubr.f32.gmra.mxu0 %v4901
    %v5049 = vpop.f32.mrf.mxu0
    %v5050 = vadd.f32 0.0, %v5049
    %v5051 = vpop.f32.mrf.mxu0
    %5052 = vdwg.mxu0
    %v5054 = vrot.slane %v5050, 4
    %v5056 = vadd.f32 %v4062, %v5054
    %v5057 = vxor.u32 %v5056, 2147483648
    %v5058 = vmul.f32 %v5057, 1.442695
    %v5059 = vpow.pop %v5058
    %v5060 = vadd.f32 %v5059, 1.0
    %v5061 = vrcp.pop %v5060
    %v5062 = vmul.f32 1.0, %v5061
    %5063 = vmatprep.subr.mxu0 0.0
    %5064 = vmatpush1.msra.mxu0 0.0
    %5065 = vmatprep.subr.mxu0 0.0
    %5066 = vmatpush1.msra.mxu0 0.0
    %5067 = vmatprep.subr.mxu0 0.0
    %5068 = vmatpush1.msra.mxu0 0.0
    %5069 = vmatprep.subr.mxu0 0.0
    %5070 = vmatpush1.msra.mxu0 0.0
    %5071 = vmatprep.subr.mxu0 0.0
    %5072 = vmatpush1.msra.mxu0 0.0
    %5073 = vmatprep.subr.mxu0 0.0
    %5074 = vmatpush1.msra.mxu0 0.0
    %5075 = vmatprep.subr.mxu0 0.0
    %5076 = vmatpush1.msra.mxu0 0.0
    %5077 = vmatprep.subr.mxu0 0.0
    %5078 = vmatpush1.msra.mxu0 0.0
    %5079 = vmatprep.subr.mxu0 0.0
    %5080 = vmatpush1.msra.mxu0 0.0
    %5081 = vmatprep.subr.mxu0 0.0
    %5082 = vmatpush1.msra.mxu0 0.0
    %5083 = vmatprep.subr.mxu0 0.0
    %5084 = vmatpush1.msra.mxu0 0.0
    %5085 = vmatprep.subr.mxu0 0.0
    %5086 = vmatpush1.msra.mxu0 0.0
    %5087 = vmatprep.subr.mxu0 0.0
    %5088 = vmatpush1.msra.mxu0 %v4259
    %5089 = vmatprep.subr.mxu0 0.0
    %5090 = vmatpush1.msra.mxu0 %v4258
    %5091 = vmatprep.subr.mxu0 0.0
    %5092 = vmatpush1.msra.mxu0 %v4257
    %5093 = vmatprep.subr.mxu0 0.0
    %5094 = vmatpush1.msra.mxu0 %v4256
    %5095 = vmatprep.subr.mxu0 0.0
    %5096 = vmatpush2.msra.mxu0 0.0
    %5097 = vmatprep.subr.mxu0 0.0
    %5098 = vmatpush2.msra.mxu0 0.0
    %5099 = vmatprep.subr.mxu0 0.0
    %5100 = vmatpush2.msra.mxu0 0.0
    %5101 = vmatprep.subr.mxu0 0.0
    %5102 = vmatpush2.msra.mxu0 0.0
    %5103 = vmatprep.subr.mxu0 0.0
    %5104 = vmatpush2.msra.mxu0 0.0
    %5105 = vmatprep.subr.mxu0 0.0
    %5106 = vmatpush2.msra.mxu0 0.0
    %5107 = vmatprep.subr.mxu0 0.0
    %5108 = vmatpush2.msra.mxu0 0.0
    %5109 = vmatprep.subr.mxu0 0.0
    %5110 = vmatpush2.msra.mxu0 0.0
    %5111 = vmatprep.subr.mxu0 0.0
    %5112 = vmatpush2.msra.mxu0 0.0
    %5113 = vmatprep.subr.mxu0 0.0
    %5114 = vmatpush2.msra.mxu0 0.0
    %5115 = vmatprep.subr.mxu0 0.0
    %5116 = vmatpush2.msra.mxu0 0.0
    %5117 = vmatprep.subr.mxu0 0.0
    %5118 = vmatpush2.msra.mxu0 0.0
    %5119 = vmatprep.subr.mxu0 0.0
    %5120 = vmatpush2.msra.mxu0 0.0
    %5121 = vmatprep.subr.mxu0 0.0
    %5122 = vmatpush2.msra.mxu0 0.0
    %5123 = vmatprep.subr.mxu0 0.0
    %5124 = vmatpush2.msra.mxu0 0.0
    %5125 = vmatprep.subr.mxu0 0.0
    %5126 = vmatpush2.msra.mxu0 0.0
    %5127 = vmatprep.mubr.f32.mxu0 0.0
    %5128 = vmatmul.mubr.f32.gmra.mxu0 %v4901
    %v5129 = vpop.f32.mrf.mxu0
    %v5130 = vadd.f32 0.0, %v5129
    %v5131 = vpop.f32.mrf.mxu0
    %5132 = vdwg.mxu0
    %v5134 = vrot.slane %v5130, 4
    %v5136 = vadd.f32 %v4150, %v5134
    %v5137 = vtanh.pop %v5136
    %5138 = vmatprep.subr.mxu0 0.0
    %5139 = vmatpush1.msra.mxu0 0.0
    %5140 = vmatprep.subr.mxu0 0.0
    %5141 = vmatpush1.msra.mxu0 0.0
    %5142 = vmatprep.subr.mxu0 0.0
    %5143 = vmatpush1.msra.mxu0 0.0
    %5144 = vmatprep.subr.mxu0 0.0
    %5145 = vmatpush1.msra.mxu0 0.0
    %5146 = vmatprep.subr.mxu0 0.0
    %5147 = vmatpush1.msra.mxu0 0.0
    %5148 = vmatprep.subr.mxu0 0.0
    %5149 = vmatpush1.msra.mxu0 0.0
    %5150 = vmatprep.subr.mxu0 0.0
    %5151 = vmatpush1.msra.mxu0 0.0
    %5152 = vmatprep.subr.mxu0 0.0
    %5153 = vmatpush1.msra.mxu0 0.0
    %5154 = vmatprep.subr.mxu0 0.0
    %5155 = vmatpush1.msra.mxu0 0.0
    %5156 = vmatprep.subr.mxu0 0.0
    %5157 = vmatpush1.msra.mxu0 0.0
    %5158 = vmatprep.subr.mxu0 0.0
    %5159 = vmatpush1.msra.mxu0 0.0
    %5160 = vmatprep.subr.mxu0 0.0
    %5161 = vmatpush1.msra.mxu0 0.0
    %5162 = vmatprep.subr.mxu0 0.0
    %5163 = vmatpush1.msra.mxu0 %v4264
    %5164 = vmatprep.subr.mxu0 0.0
    %5165 = vmatpush1.msra.mxu0 %v4263
    %5166 = vmatprep.subr.mxu0 0.0
    %5167 = vmatpush1.msra.mxu0 %v4262
    %5168 = vmatprep.subr.mxu0 0.0
    %5169 = vmatpush1.msra.mxu0 %v4261
    %5170 = vmatprep.subr.mxu0 0.0
    %5171 = vmatpush2.msra.mxu0 0.0
    %5172 = vmatprep.subr.mxu0 0.0
    %5173 = vmatpush2.msra.mxu0 0.0
    %5174 = vmatprep.subr.mxu0 0.0
    %5175 = vmatpush2.msra.mxu0 0.0
    %5176 = vmatprep.subr.mxu0 0.0
    %5177 = vmatpush2.msra.mxu0 0.0
    %5178 = vmatprep.subr.mxu0 0.0
    %5179 = vmatpush2.msra.mxu0 0.0
    %5180 = vmatprep.subr.mxu0 0.0
    %5181 = vmatpush2.msra.mxu0 0.0
    %5182 = vmatprep.subr.mxu0 0.0
    %5183 = vmatpush2.msra.mxu0 0.0
    %5184 = vmatprep.subr.mxu0 0.0
    %5185 = vmatpush2.msra.mxu0 0.0
    %5186 = vmatprep.subr.mxu0 0.0
    %5187 = vmatpush2.msra.mxu0 0.0
    %5188 = vmatprep.subr.mxu0 0.0
    %5189 = vmatpush2.msra.mxu0 0.0
    %5190 = vmatprep.subr.mxu0 0.0
    %5191 = vmatpush2.msra.mxu0 0.0
    %5192 = vmatprep.subr.mxu0 0.0
    %5193 = vmatpush2.msra.mxu0 0.0
    %5194 = vmatprep.subr.mxu0 0.0
    %5195 = vmatpush2.msra.mxu0 0.0
    %5196 = vmatprep.subr.mxu0 0.0
    %5197 = vmatpush2.msra.mxu0 0.0
    %5198 = vmatprep.subr.mxu0 0.0
    %5199 = vmatpush2.msra.mxu0 0.0
    %5200 = vmatprep.subr.mxu0 0.0
    %5201 = vmatpush2.msra.mxu0 0.0
    %5202 = vmatprep.mubr.f32.mxu0 0.0
    %5203 = vmatmul.mubr.f32.gmra.mxu0 %v4901
    %v5204 = vpop.f32.mrf.mxu0
    %v5205 = vadd.f32 0.0, %v5204
    %v5206 = vpop.f32.mrf.mxu0
    %5207 = vdwg.mxu0
    %v5209 = vrot.slane %v5205, 4
    %v5211 = vadd.f32 %v4238, %v5209
    %v5212 = vxor.u32 %v5211, 2147483648
    %v5213 = vmul.f32 %v5212, 1.442695
    %v5214 = vpow.pop %v5213
    %v5215 = vadd.f32 %v5214, 1.0
    %v5216 = vrcp.pop %v5215
    %v5217 = vmul.f32 1.0, %v5216
    %v5219 = vrot.slane %v4896, 6
    %v5221 = vmul.f32 %v5062, %v5219
    %v5222 = vmul.f32 %v4982, %v5137
    %v5223 = vadd.f32 %v5221, %v5222
    %v5224 = vtanh.pop %v5223
    %v5225 = vmul.f32 %v5217, %v5224
    %v5227 = vrot.slane %v5225, 4
    %v5228 = vsel %vm1291, %v5227, 0
    %5230 = vmatprep.subr.mxu0 0.0
    %5231 = vmatpush1.msra.mxu0 0.0
    %5232 = vmatprep.subr.mxu0 0.0
    %5233 = vmatpush1.msra.mxu0 0.0
    %5234 = vmatprep.subr.mxu0 0.0
    %5235 = vmatpush1.msra.mxu0 0.0
    %5236 = vmatprep.subr.mxu0 0.0
    %5237 = vmatpush1.msra.mxu0 0.0
    %5238 = vmatprep.subr.mxu0 0.0
    %5239 = vmatpush1.msra.mxu0 0.0
    %5240 = vmatprep.subr.mxu0 0.0
    %5241 = vmatpush1.msra.mxu0 0.0
    %5242 = vmatprep.subr.mxu0 0.0
    %5243 = vmatpush1.msra.mxu0 0.0
    %5244 = vmatprep.subr.mxu0 0.0
    %5245 = vmatpush1.msra.mxu0 0.0
    %5246 = vmatprep.subr.mxu0 0.0
    %5247 = vmatpush1.msra.mxu0 0.0
    %5248 = vmatprep.subr.mxu0 0.0
    %5249 = vmatpush1.msra.mxu0 0.0
    %5250 = vmatprep.subr.mxu0 0.0
    %5251 = vmatpush1.msra.mxu0 0.0
    %5252 = vmatprep.subr.mxu0 0.0
    %5253 = vmatpush1.msra.mxu0 0.0
    %5254 = vmatprep.subr.mxu0 0.0
    %5255 = vmatpush1.msra.mxu0 %v4249
    %5256 = vmatprep.subr.mxu0 0.0
    %5257 = vmatpush1.msra.mxu0 %v4248
    %5258 = vmatprep.subr.mxu0 0.0
    %5259 = vmatpush1.msra.mxu0 %v4247
    %5260 = vmatprep.subr.mxu0 0.0
    %5261 = vmatpush1.msra.mxu0 %v4246
    %5262 = vmatprep.subr.mxu0 0.0
    %5263 = vmatpush2.msra.mxu0 0.0
    %5264 = vmatprep.subr.mxu0 0.0
    %5265 = vmatpush2.msra.mxu0 0.0
    %5266 = vmatprep.subr.mxu0 0.0
    %5267 = vmatpush2.msra.mxu0 0.0
    %5268 = vmatprep.subr.mxu0 0.0
    %5269 = vmatpush2.msra.mxu0 0.0
    %5270 = vmatprep.subr.mxu0 0.0
    %5271 = vmatpush2.msra.mxu0 0.0
    %5272 = vmatprep.subr.mxu0 0.0
    %5273 = vmatpush2.msra.mxu0 0.0
    %5274 = vmatprep.subr.mxu0 0.0
    %5275 = vmatpush2.msra.mxu0 0.0
    %5276 = vmatprep.subr.mxu0 0.0
    %5277 = vmatpush2.msra.mxu0 0.0
    %5278 = vmatprep.subr.mxu0 0.0
    %5279 = vmatpush2.msra.mxu0 0.0
    %5280 = vmatprep.subr.mxu0 0.0
    %5281 = vmatpush2.msra.mxu0 0.0
    %5282 = vmatprep.subr.mxu0 0.0
    %5283 = vmatpush2.msra.mxu0 0.0
    %5284 = vmatprep.subr.mxu0 0.0
    %5285 = vmatpush2.msra.mxu0 0.0
    %5286 = vmatprep.subr.mxu0 0.0
    %5287 = vmatpush2.msra.mxu0 0.0
    %5288 = vmatprep.subr.mxu0 0.0
    %5289 = vmatpush2.msra.mxu0 0.0
    %5290 = vmatprep.subr.mxu0 0.0
    %5291 = vmatpush2.msra.mxu0 0.0
    %5292 = vmatprep.subr.mxu0 0.0
    %5293 = vmatpush2.msra.mxu0 0.0
    %5294 = vmatprep.mubr.f32.mxu0 0.0
    %5295 = vmatmul.mubr.f32.gmra.mxu0 %v5228
    %v5296 = vpop.f32.mrf.mxu0
    %v5297 = vadd.f32 0.0, %v5296
    %v5298 = vpop.f32.mrf.mxu0
    %5299 = vdwg.mxu0
    %v5301 = vrot.slane %v5297, 2
    %v5303 = vadd.f32 %v3974, %v5301
    %v5304 = vxor.u32 %v5303, 2147483648
    %v5305 = vmul.f32 %v5304, 1.442695
    %v5306 = vpow.pop %v5305
    %v5307 = vadd.f32 %v5306, 1.0
    %v5308 = vrcp.pop %v5307
    %v5309 = vmul.f32 1.0, %v5308
    %5310 = vmatprep.subr.mxu0 0.0
    %5311 = vmatpush1.msra.mxu0 0.0
    %5312 = vmatprep.subr.mxu0 0.0
    %5313 = vmatpush1.msra.mxu0 0.0
    %5314 = vmatprep.subr.mxu0 0.0
    %5315 = vmatpush1.msra.mxu0 0.0
    %5316 = vmatprep.subr.mxu0 0.0
    %5317 = vmatpush1.msra.mxu0 0.0
    %5318 = vmatprep.subr.mxu0 0.0
    %5319 = vmatpush1.msra.mxu0 0.0
    %5320 = vmatprep.subr.mxu0 0.0
    %5321 = vmatpush1.msra.mxu0 0.0
    %5322 = vmatprep.subr.mxu0 0.0
    %5323 = vmatpush1.msra.mxu0 0.0
    %5324 = vmatprep.subr.mxu0 0.0
    %5325 = vmatpush1.msra.mxu0 0.0
    %5326 = vmatprep.subr.mxu0 0.0
    %5327 = vmatpush1.msra.mxu0 0.0
    %5328 = vmatprep.subr.mxu0 0.0
    %5329 = vmatpush1.msra.mxu0 0.0
    %5330 = vmatprep.subr.mxu0 0.0
    %5331 = vmatpush1.msra.mxu0 0.0
    %5332 = vmatprep.subr.mxu0 0.0
    %5333 = vmatpush1.msra.mxu0 0.0
    %5334 = vmatprep.subr.mxu0 0.0
    %5335 = vmatpush1.msra.mxu0 %v4254
    %5336 = vmatprep.subr.mxu0 0.0
    %5337 = vmatpush1.msra.mxu0 %v4253
    %5338 = vmatprep.subr.mxu0 0.0
    %5339 = vmatpush1.msra.mxu0 %v4252
    %5340 = vmatprep.subr.mxu0 0.0
    %5341 = vmatpush1.msra.mxu0 %v4251
    %5342 = vmatprep.subr.mxu0 0.0
    %5343 = vmatpush2.msra.mxu0 0.0
    %5344 = vmatprep.subr.mxu0 0.0
    %5345 = vmatpush2.msra.mxu0 0.0
    %5346 = vmatprep.subr.mxu0 0.0
    %5347 = vmatpush2.msra.mxu0 0.0
    %5348 = vmatprep.subr.mxu0 0.0
    %5349 = vmatpush2.msra.mxu0 0.0
    %5350 = vmatprep.subr.mxu0 0.0
    %5351 = vmatpush2.msra.mxu0 0.0
    %5352 = vmatprep.subr.mxu0 0.0
    %5353 = vmatpush2.msra.mxu0 0.0
    %5354 = vmatprep.subr.mxu0 0.0
    %5355 = vmatpush2.msra.mxu0 0.0
    %5356 = vmatprep.subr.mxu0 0.0
    %5357 = vmatpush2.msra.mxu0 0.0
    %5358 = vmatprep.subr.mxu0 0.0
    %5359 = vmatpush2.msra.mxu0 0.0
    %5360 = vmatprep.subr.mxu0 0.0
    %5361 = vmatpush2.msra.mxu0 0.0
    %5362 = vmatprep.subr.mxu0 0.0
    %5363 = vmatpush2.msra.mxu0 0.0
    %5364 = vmatprep.subr.mxu0 0.0
    %5365 = vmatpush2.msra.mxu0 0.0
    %5366 = vmatprep.subr.mxu0 0.0
    %5367 = vmatpush2.msra.mxu0 0.0
    %5368 = vmatprep.subr.mxu0 0.0
    %5369 = vmatpush2.msra.mxu0 0.0
    %5370 = vmatprep.subr.mxu0 0.0
    %5371 = vmatpush2.msra.mxu0 0.0
    %5372 = vmatprep.subr.mxu0 0.0
    %5373 = vmatpush2.msra.mxu0 0.0
    %5374 = vmatprep.mubr.f32.mxu0 0.0
    %5375 = vmatmul.mubr.f32.gmra.mxu0 %v5228
    %v5376 = vpop.f32.mrf.mxu0
    %v5377 = vadd.f32 0.0, %v5376
    %v5378 = vpop.f32.mrf.mxu0
    %5379 = vdwg.mxu0
    %v5381 = vrot.slane %v5377, 2
    %v5383 = vadd.f32 %v4062, %v5381
    %v5384 = vxor.u32 %v5383, 2147483648
    %v5385 = vmul.f32 %v5384, 1.442695
    %v5386 = vpow.pop %v5385
    %v5387 = vadd.f32 %v5386, 1.0
    %v5388 = vrcp.pop %v5387
    %v5389 = vmul.f32 1.0, %v5388
    %5390 = vmatprep.subr.mxu0 0.0
    %5391 = vmatpush1.msra.mxu0 0.0
    %5392 = vmatprep.subr.mxu0 0.0
    %5393 = vmatpush1.msra.mxu0 0.0
    %5394 = vmatprep.subr.mxu0 0.0
    %5395 = vmatpush1.msra.mxu0 0.0
    %5396 = vmatprep.subr.mxu0 0.0
    %5397 = vmatpush1.msra.mxu0 0.0
    %5398 = vmatprep.subr.mxu0 0.0
    %5399 = vmatpush1.msra.mxu0 0.0
    %5400 = vmatprep.subr.mxu0 0.0
    %5401 = vmatpush1.msra.mxu0 0.0
    %5402 = vmatprep.subr.mxu0 0.0
    %5403 = vmatpush1.msra.mxu0 0.0
    %5404 = vmatprep.subr.mxu0 0.0
    %5405 = vmatpush1.msra.mxu0 0.0
    %5406 = vmatprep.subr.mxu0 0.0
    %5407 = vmatpush1.msra.mxu0 0.0
    %5408 = vmatprep.subr.mxu0 0.0
    %5409 = vmatpush1.msra.mxu0 0.0
    %5410 = vmatprep.subr.mxu0 0.0
    %5411 = vmatpush1.msra.mxu0 0.0
    %5412 = vmatprep.subr.mxu0 0.0
    %5413 = vmatpush1.msra.mxu0 0.0
    %5414 = vmatprep.subr.mxu0 0.0
    %5415 = vmatpush1.msra.mxu0 %v4259
    %5416 = vmatprep.subr.mxu0 0.0
    %5417 = vmatpush1.msra.mxu0 %v4258
    %5418 = vmatprep.subr.mxu0 0.0
    %5419 = vmatpush1.msra.mxu0 %v4257
    %5420 = vmatprep.subr.mxu0 0.0
    %5421 = vmatpush1.msra.mxu0 %v4256
    %5422 = vmatprep.subr.mxu0 0.0
    %5423 = vmatpush2.msra.mxu0 0.0
    %5424 = vmatprep.subr.mxu0 0.0
    %5425 = vmatpush2.msra.mxu0 0.0
    %5426 = vmatprep.subr.mxu0 0.0
    %5427 = vmatpush2.msra.mxu0 0.0
    %5428 = vmatprep.subr.mxu0 0.0
    %5429 = vmatpush2.msra.mxu0 0.0
    %5430 = vmatprep.subr.mxu0 0.0
    %5431 = vmatpush2.msra.mxu0 0.0
    %5432 = vmatprep.subr.mxu0 0.0
    %5433 = vmatpush2.msra.mxu0 0.0
    %5434 = vmatprep.subr.mxu0 0.0
    %5435 = vmatpush2.msra.mxu0 0.0
    %5436 = vmatprep.subr.mxu0 0.0
    %5437 = vmatpush2.msra.mxu0 0.0
    %5438 = vmatprep.subr.mxu0 0.0
    %5439 = vmatpush2.msra.mxu0 0.0
    %5440 = vmatprep.subr.mxu0 0.0
    %5441 = vmatpush2.msra.mxu0 0.0
    %5442 = vmatprep.subr.mxu0 0.0
    %5443 = vmatpush2.msra.mxu0 0.0
    %5444 = vmatprep.subr.mxu0 0.0
    %5445 = vmatpush2.msra.mxu0 0.0
    %5446 = vmatprep.subr.mxu0 0.0
    %5447 = vmatpush2.msra.mxu0 0.0
    %5448 = vmatprep.subr.mxu0 0.0
    %5449 = vmatpush2.msra.mxu0 0.0
    %5450 = vmatprep.subr.mxu0 0.0
    %5451 = vmatpush2.msra.mxu0 0.0
    %5452 = vmatprep.subr.mxu0 0.0
    %5453 = vmatpush2.msra.mxu0 0.0
    %5454 = vmatprep.mubr.f32.mxu0 0.0
    %5455 = vmatmul.mubr.f32.gmra.mxu0 %v5228
    %v5456 = vpop.f32.mrf.mxu0
    %v5457 = vadd.f32 0.0, %v5456
    %v5458 = vpop.f32.mrf.mxu0
    %5459 = vdwg.mxu0
    %v5461 = vrot.slane %v5457, 2
    %v5463 = vadd.f32 %v4150, %v5461
    %v5464 = vtanh.pop %v5463
    %5465 = vmatprep.subr.mxu0 0.0
    %5466 = vmatpush1.msra.mxu0 0.0
    %5467 = vmatprep.subr.mxu0 0.0
    %5468 = vmatpush1.msra.mxu0 0.0
    %5469 = vmatprep.subr.mxu0 0.0
    %5470 = vmatpush1.msra.mxu0 0.0
    %5471 = vmatprep.subr.mxu0 0.0
    %5472 = vmatpush1.msra.mxu0 0.0
    %5473 = vmatprep.subr.mxu0 0.0
    %5474 = vmatpush1.msra.mxu0 0.0
    %5475 = vmatprep.subr.mxu0 0.0
    %5476 = vmatpush1.msra.mxu0 0.0
    %5477 = vmatprep.subr.mxu0 0.0
    %5478 = vmatpush1.msra.mxu0 0.0
    %5479 = vmatprep.subr.mxu0 0.0
    %5480 = vmatpush1.msra.mxu0 0.0
    %5481 = vmatprep.subr.mxu0 0.0
    %5482 = vmatpush1.msra.mxu0 0.0
    %5483 = vmatprep.subr.mxu0 0.0
    %5484 = vmatpush1.msra.mxu0 0.0
    %5485 = vmatprep.subr.mxu0 0.0
    %5486 = vmatpush1.msra.mxu0 0.0
    %5487 = vmatprep.subr.mxu0 0.0
    %5488 = vmatpush1.msra.mxu0 0.0
    %5489 = vmatprep.subr.mxu0 0.0
    %5490 = vmatpush1.msra.mxu0 %v4264
    %5491 = vmatprep.subr.mxu0 0.0
    %5492 = vmatpush1.msra.mxu0 %v4263
    %5493 = vmatprep.subr.mxu0 0.0
    %5494 = vmatpush1.msra.mxu0 %v4262
    %5495 = vmatprep.subr.mxu0 0.0
    %5496 = vmatpush1.msra.mxu0 %v4261
    %5497 = vmatprep.subr.mxu0 0.0
    %5498 = vmatpush2.msra.mxu0 0.0
    %5499 = vmatprep.subr.mxu0 0.0
    %5500 = vmatpush2.msra.mxu0 0.0
    %5501 = vmatprep.subr.mxu0 0.0
    %5502 = vmatpush2.msra.mxu0 0.0
    %5503 = vmatprep.subr.mxu0 0.0
    %5504 = vmatpush2.msra.mxu0 0.0
    %5505 = vmatprep.subr.mxu0 0.0
    %5506 = vmatpush2.msra.mxu0 0.0
    %5507 = vmatprep.subr.mxu0 0.0
    %5508 = vmatpush2.msra.mxu0 0.0
    %5509 = vmatprep.subr.mxu0 0.0
    %5510 = vmatpush2.msra.mxu0 0.0
    %5511 = vmatprep.subr.mxu0 0.0
    %5512 = vmatpush2.msra.mxu0 0.0
    %5513 = vmatprep.subr.mxu0 0.0
    %5514 = vmatpush2.msra.mxu0 0.0
    %5515 = vmatprep.subr.mxu0 0.0
    %5516 = vmatpush2.msra.mxu0 0.0
    %5517 = vmatprep.subr.mxu0 0.0
    %5518 = vmatpush2.msra.mxu0 0.0
    %5519 = vmatprep.subr.mxu0 0.0
    %5520 = vmatpush2.msra.mxu0 0.0
    %5521 = vmatprep.subr.mxu0 0.0
    %5522 = vmatpush2.msra.mxu0 0.0
    %5523 = vmatprep.subr.mxu0 0.0
    %5524 = vmatpush2.msra.mxu0 0.0
    %5525 = vmatprep.subr.mxu0 0.0
    %5526 = vmatpush2.msra.mxu0 0.0
    %5527 = vmatprep.subr.mxu0 0.0
    %5528 = vmatpush2.msra.mxu0 0.0
    %5529 = vmatprep.mubr.f32.mxu0 0.0
    %5530 = vmatmul.mubr.f32.gmra.mxu0 %v5228
    %v5531 = vpop.f32.mrf.mxu0
    %v5532 = vadd.f32 0.0, %v5531
    %v5533 = vpop.f32.mrf.mxu0
    %5534 = vdwg.mxu0
    %v5536 = vrot.slane %v5532, 2
    %v5538 = vadd.f32 %v4238, %v5536
    %v5539 = vxor.u32 %v5538, 2147483648
    %v5540 = vmul.f32 %v5539, 1.442695
    %v5541 = vpow.pop %v5540
    %v5542 = vadd.f32 %v5541, 1.0
    %v5543 = vrcp.pop %v5542
    %v5544 = vmul.f32 1.0, %v5543
    %v5546 = vrot.slane %v5223, 6
    %v5548 = vmul.f32 %v5389, %v5546
    %v5549 = vmul.f32 %v5309, %v5464
    %v5550 = vadd.f32 %v5548, %v5549
    %v5551 = vtanh.pop %v5550
    %v5552 = vmul.f32 %v5544, %v5551
    %v5554 = vrot.slane %v5552, 6
    %v5555 = vsel %vm1291, %v5554, 0
    %5557 = vmatprep.subr.mxu0 0.0
    %5558 = vmatpush1.msra.mxu0 0.0
    %5559 = vmatprep.subr.mxu0 0.0
    %5560 = vmatpush1.msra.mxu0 0.0
    %5561 = vmatprep.subr.mxu0 0.0
    %5562 = vmatpush1.msra.mxu0 0.0
    %5563 = vmatprep.subr.mxu0 0.0
    %5564 = vmatpush1.msra.mxu0 0.0
    %5565 = vmatprep.subr.mxu0 0.0
    %5566 = vmatpush1.msra.mxu0 0.0
    %5567 = vmatprep.subr.mxu0 0.0
    %5568 = vmatpush1.msra.mxu0 0.0
    %5569 = vmatprep.subr.mxu0 0.0
    %5570 = vmatpush1.msra.mxu0 0.0
    %5571 = vmatprep.subr.mxu0 0.0
    %5572 = vmatpush1.msra.mxu0 0.0
    %5573 = vmatprep.subr.mxu0 0.0
    %5574 = vmatpush1.msra.mxu0 0.0
    %5575 = vmatprep.subr.mxu0 0.0
    %5576 = vmatpush1.msra.mxu0 0.0
    %5577 = vmatprep.subr.mxu0 0.0
    %5578 = vmatpush1.msra.mxu0 0.0
    %5579 = vmatprep.subr.mxu0 0.0
    %5580 = vmatpush1.msra.mxu0 0.0
    %5581 = vmatprep.subr.mxu0 0.0
    %5582 = vmatpush1.msra.mxu0 %v4249
    %5583 = vmatprep.subr.mxu0 0.0
    %5584 = vmatpush1.msra.mxu0 %v4248
    %5585 = vmatprep.subr.mxu0 0.0
    %5586 = vmatpush1.msra.mxu0 %v4247
    %5587 = vmatprep.subr.mxu0 0.0
    %5588 = vmatpush1.msra.mxu0 %v4246
    %5589 = vmatprep.subr.mxu0 0.0
    %5590 = vmatpush2.msra.mxu0 0.0
    %5591 = vmatprep.subr.mxu0 0.0
    %5592 = vmatpush2.msra.mxu0 0.0
    %5593 = vmatprep.subr.mxu0 0.0
    %5594 = vmatpush2.msra.mxu0 0.0
    %5595 = vmatprep.subr.mxu0 0.0
    %5596 = vmatpush2.msra.mxu0 0.0
    %5597 = vmatprep.subr.mxu0 0.0
    %5598 = vmatpush2.msra.mxu0 0.0
    %5599 = vmatprep.subr.mxu0 0.0
    %5600 = vmatpush2.msra.mxu0 0.0
    %5601 = vmatprep.subr.mxu0 0.0
    %5602 = vmatpush2.msra.mxu0 0.0
    %5603 = vmatprep.subr.mxu0 0.0
    %5604 = vmatpush2.msra.mxu0 0.0
    %5605 = vmatprep.subr.mxu0 0.0
    %5606 = vmatpush2.msra.mxu0 0.0
    %5607 = vmatprep.subr.mxu0 0.0
    %5608 = vmatpush2.msra.mxu0 0.0
    %5609 = vmatprep.subr.mxu0 0.0
    %5610 = vmatpush2.msra.mxu0 0.0
    %5611 = vmatprep.subr.mxu0 0.0
    %5612 = vmatpush2.msra.mxu0 0.0
    %5613 = vmatprep.subr.mxu0 0.0
    %5614 = vmatpush2.msra.mxu0 0.0
    %5615 = vmatprep.subr.mxu0 0.0
    %5616 = vmatpush2.msra.mxu0 0.0
    %5617 = vmatprep.subr.mxu0 0.0
    %5618 = vmatpush2.msra.mxu0 0.0
    %5619 = vmatprep.subr.mxu0 0.0
    %5620 = vmatpush2.msra.mxu0 0.0
    %5621 = vmatprep.mubr.f32.mxu0 0.0
    %5622 = vmatmul.mubr.f32.gmra.mxu0 %v5555
    %v5623 = vpop.f32.mrf.mxu0
    %v5624 = vadd.f32 0.0, %v5623
    %v5625 = vpop.f32.mrf.mxu0
    %5626 = vdwg.mxu0
    %v5627 = vadd.f32 %v3979, %v5624
    %v5628 = vxor.u32 %v5627, 2147483648
    %v5629 = vmul.f32 %v5628, 1.442695
    %v5630 = vpow.pop %v5629
    %v5631 = vadd.f32 %v5630, 1.0
    %v5632 = vrcp.pop %v5631
    %v5633 = vmul.f32 1.0, %v5632
    %5634 = vmatprep.subr.mxu0 0.0
    %5635 = vmatpush1.msra.mxu0 0.0
    %5636 = vmatprep.subr.mxu0 0.0
    %5637 = vmatpush1.msra.mxu0 0.0
    %5638 = vmatprep.subr.mxu0 0.0
    %5639 = vmatpush1.msra.mxu0 0.0
    %5640 = vmatprep.subr.mxu0 0.0
    %5641 = vmatpush1.msra.mxu0 0.0
    %5642 = vmatprep.subr.mxu0 0.0
    %5643 = vmatpush1.msra.mxu0 0.0
    %5644 = vmatprep.subr.mxu0 0.0
    %5645 = vmatpush1.msra.mxu0 0.0
    %5646 = vmatprep.subr.mxu0 0.0
    %5647 = vmatpush1.msra.mxu0 0.0
    %5648 = vmatprep.subr.mxu0 0.0
    %5649 = vmatpush1.msra.mxu0 0.0
    %5650 = vmatprep.subr.mxu0 0.0
    %5651 = vmatpush1.msra.mxu0 0.0
    %5652 = vmatprep.subr.mxu0 0.0
    %5653 = vmatpush1.msra.mxu0 0.0
    %5654 = vmatprep.subr.mxu0 0.0
    %5655 = vmatpush1.msra.mxu0 0.0
    %5656 = vmatprep.subr.mxu0 0.0
    %5657 = vmatpush1.msra.mxu0 0.0
    %5658 = vmatprep.subr.mxu0 0.0
    %5659 = vmatpush1.msra.mxu0 %v4254
    %5660 = vmatprep.subr.mxu0 0.0
    %5661 = vmatpush1.msra.mxu0 %v4253
    %5662 = vmatprep.subr.mxu0 0.0
    %5663 = vmatpush1.msra.mxu0 %v4252
    %5664 = vmatprep.subr.mxu0 0.0
    %5665 = vmatpush1.msra.mxu0 %v4251
    %5666 = vmatprep.subr.mxu0 0.0
    %5667 = vmatpush2.msra.mxu0 0.0
    %5668 = vmatprep.subr.mxu0 0.0
    %5669 = vmatpush2.msra.mxu0 0.0
    %5670 = vmatprep.subr.mxu0 0.0
    %5671 = vmatpush2.msra.mxu0 0.0
    %5672 = vmatprep.subr.mxu0 0.0
    %5673 = vmatpush2.msra.mxu0 0.0
    %5674 = vmatprep.subr.mxu0 0.0
    %5675 = vmatpush2.msra.mxu0 0.0
    %5676 = vmatprep.subr.mxu0 0.0
    %5677 = vmatpush2.msra.mxu0 0.0
    %5678 = vmatprep.subr.mxu0 0.0
    %5679 = vmatpush2.msra.mxu0 0.0
    %5680 = vmatprep.subr.mxu0 0.0
    %5681 = vmatpush2.msra.mxu0 0.0
    %5682 = vmatprep.subr.mxu0 0.0
    %5683 = vmatpush2.msra.mxu0 0.0
    %5684 = vmatprep.subr.mxu0 0.0
    %5685 = vmatpush2.msra.mxu0 0.0
    %5686 = vmatprep.subr.mxu0 0.0
    %5687 = vmatpush2.msra.mxu0 0.0
    %5688 = vmatprep.subr.mxu0 0.0
    %5689 = vmatpush2.msra.mxu0 0.0
    %5690 = vmatprep.subr.mxu0 0.0
    %5691 = vmatpush2.msra.mxu0 0.0
    %5692 = vmatprep.subr.mxu0 0.0
    %5693 = vmatpush2.msra.mxu0 0.0
    %5694 = vmatprep.subr.mxu0 0.0
    %5695 = vmatpush2.msra.mxu0 0.0
    %5696 = vmatprep.subr.mxu0 0.0
    %5697 = vmatpush2.msra.mxu0 0.0
    %5698 = vmatprep.mubr.f32.mxu0 0.0
    %5699 = vmatmul.mubr.f32.gmra.mxu0 %v5555
    %v5700 = vpop.f32.mrf.mxu0
    %v5701 = vadd.f32 0.0, %v5700
    %v5702 = vpop.f32.mrf.mxu0
    %5703 = vdwg.mxu0
    %v5704 = vadd.f32 %v4067, %v5701
    %v5705 = vxor.u32 %v5704, 2147483648
    %v5706 = vmul.f32 %v5705, 1.442695
    %v5707 = vpow.pop %v5706
    %v5708 = vadd.f32 %v5707, 1.0
    %v5709 = vrcp.pop %v5708
    %v5710 = vmul.f32 1.0, %v5709
    %5711 = vmatprep.subr.mxu0 0.0
    %5712 = vmatpush1.msra.mxu0 0.0
    %5713 = vmatprep.subr.mxu0 0.0
    %5714 = vmatpush1.msra.mxu0 0.0
    %5715 = vmatprep.subr.mxu0 0.0
    %5716 = vmatpush1.msra.mxu0 0.0
    %5717 = vmatprep.subr.mxu0 0.0
    %5718 = vmatpush1.msra.mxu0 0.0
    %5719 = vmatprep.subr.mxu0 0.0
    %5720 = vmatpush1.msra.mxu0 0.0
    %5721 = vmatprep.subr.mxu0 0.0
    %5722 = vmatpush1.msra.mxu0 0.0
    %5723 = vmatprep.subr.mxu0 0.0
    %5724 = vmatpush1.msra.mxu0 0.0
    %5725 = vmatprep.subr.mxu0 0.0
    %5726 = vmatpush1.msra.mxu0 0.0
    %5727 = vmatprep.subr.mxu0 0.0
    %5728 = vmatpush1.msra.mxu0 0.0
    %5729 = vmatprep.subr.mxu0 0.0
    %5730 = vmatpush1.msra.mxu0 0.0
    %5731 = vmatprep.subr.mxu0 0.0
    %5732 = vmatpush1.msra.mxu0 0.0
    %5733 = vmatprep.subr.mxu0 0.0
    %5734 = vmatpush1.msra.mxu0 0.0
    %5735 = vmatprep.subr.mxu0 0.0
    %5736 = vmatpush1.msra.mxu0 %v4259
    %5737 = vmatprep.subr.mxu0 0.0
    %5738 = vmatpush1.msra.mxu0 %v4258
    %5739 = vmatprep.subr.mxu0 0.0
    %5740 = vmatpush1.msra.mxu0 %v4257
    %5741 = vmatprep.subr.mxu0 0.0
    %5742 = vmatpush1.msra.mxu0 %v4256
    %5743 = vmatprep.subr.mxu0 0.0
    %5744 = vmatpush2.msra.mxu0 0.0
    %5745 = vmatprep.subr.mxu0 0.0
    %5746 = vmatpush2.msra.mxu0 0.0
    %5747 = vmatprep.subr.mxu0 0.0
    %5748 = vmatpush2.msra.mxu0 0.0
    %5749 = vmatprep.subr.mxu0 0.0
    %5750 = vmatpush2.msra.mxu0 0.0
    %5751 = vmatprep.subr.mxu0 0.0
    %5752 = vmatpush2.msra.mxu0 0.0
    %5753 = vmatprep.subr.mxu0 0.0
    %5754 = vmatpush2.msra.mxu0 0.0
    %5755 = vmatprep.subr.mxu0 0.0
    %5756 = vmatpush2.msra.mxu0 0.0
    %5757 = vmatprep.subr.mxu0 0.0
    %5758 = vmatpush2.msra.mxu0 0.0
    %5759 = vmatprep.subr.mxu0 0.0
    %5760 = vmatpush2.msra.mxu0 0.0
    %5761 = vmatprep.subr.mxu0 0.0
    %5762 = vmatpush2.msra.mxu0 0.0
    %5763 = vmatprep.subr.mxu0 0.0
    %5764 = vmatpush2.msra.mxu0 0.0
    %5765 = vmatprep.subr.mxu0 0.0
    %5766 = vmatpush2.msra.mxu0 0.0
    %5767 = vmatprep.subr.mxu0 0.0
    %5768 = vmatpush2.msra.mxu0 0.0
    %5769 = vmatprep.subr.mxu0 0.0
    %5770 = vmatpush2.msra.mxu0 0.0
    %5771 = vmatprep.subr.mxu0 0.0
    %5772 = vmatpush2.msra.mxu0 0.0
    %5773 = vmatprep.subr.mxu0 0.0
    %5774 = vmatpush2.msra.mxu0 0.0
    %5775 = vmatprep.mubr.f32.mxu0 0.0
    %5776 = vmatmul.mubr.f32.gmra.mxu0 %v5555
    %v5777 = vpop.f32.mrf.mxu0
    %v5778 = vadd.f32 0.0, %v5777
    %v5779 = vpop.f32.mrf.mxu0
    %5780 = vdwg.mxu0
    %v5781 = vadd.f32 %v4155, %v5778
    %v5782 = vtanh.pop %v5781
    %5783 = vmatprep.subr.mxu0 0.0
    %5784 = vmatpush1.msra.mxu0 0.0
    %5785 = vmatprep.subr.mxu0 0.0
    %5786 = vmatpush1.msra.mxu0 0.0
    %5787 = vmatprep.subr.mxu0 0.0
    %5788 = vmatpush1.msra.mxu0 0.0
    %5789 = vmatprep.subr.mxu0 0.0
    %5790 = vmatpush1.msra.mxu0 0.0
    %5791 = vmatprep.subr.mxu0 0.0
    %5792 = vmatpush1.msra.mxu0 0.0
    %5793 = vmatprep.subr.mxu0 0.0
    %5794 = vmatpush1.msra.mxu0 0.0
    %5795 = vmatprep.subr.mxu0 0.0
    %5796 = vmatpush1.msra.mxu0 0.0
    %5797 = vmatprep.subr.mxu0 0.0
    %5798 = vmatpush1.msra.mxu0 0.0
    %5799 = vmatprep.subr.mxu0 0.0
    %5800 = vmatpush1.msra.mxu0 0.0
    %5801 = vmatprep.subr.mxu0 0.0
    %5802 = vmatpush1.msra.mxu0 0.0
    %5803 = vmatprep.subr.mxu0 0.0
    %5804 = vmatpush1.msra.mxu0 0.0
    %5805 = vmatprep.subr.mxu0 0.0
    %5806 = vmatpush1.msra.mxu0 0.0
    %5807 = vmatprep.subr.mxu0 0.0
    %5808 = vmatpush1.msra.mxu0 %v4264
    %5809 = vmatprep.subr.mxu0 0.0
    %5810 = vmatpush1.msra.mxu0 %v4263
    %5811 = vmatprep.subr.mxu0 0.0
    %5812 = vmatpush1.msra.mxu0 %v4262
    %5813 = vmatprep.subr.mxu0 0.0
    %5814 = vmatpush1.msra.mxu0 %v4261
    %5815 = vmatprep.subr.mxu0 0.0
    %5816 = vmatpush2.msra.mxu0 0.0
    %5817 = vmatprep.subr.mxu0 0.0
    %5818 = vmatpush2.msra.mxu0 0.0
    %5819 = vmatprep.subr.mxu0 0.0
    %5820 = vmatpush2.msra.mxu0 0.0
    %5821 = vmatprep.subr.mxu0 0.0
    %5822 = vmatpush2.msra.mxu0 0.0
    %5823 = vmatprep.subr.mxu0 0.0
    %5824 = vmatpush2.msra.mxu0 0.0
    %5825 = vmatprep.subr.mxu0 0.0
    %5826 = vmatpush2.msra.mxu0 0.0
    %5827 = vmatprep.subr.mxu0 0.0
    %5828 = vmatpush2.msra.mxu0 0.0
    %5829 = vmatprep.subr.mxu0 0.0
    %5830 = vmatpush2.msra.mxu0 0.0
    %5831 = vmatprep.subr.mxu0 0.0
    %5832 = vmatpush2.msra.mxu0 0.0
    %5833 = vmatprep.subr.mxu0 0.0
    %5834 = vmatpush2.msra.mxu0 0.0
    %5835 = vmatprep.subr.mxu0 0.0
    %5836 = vmatpush2.msra.mxu0 0.0
    %5837 = vmatprep.subr.mxu0 0.0
    %5838 = vmatpush2.msra.mxu0 0.0
    %5839 = vmatprep.subr.mxu0 0.0
    %5840 = vmatpush2.msra.mxu0 0.0
    %5841 = vmatprep.subr.mxu0 0.0
    %5842 = vmatpush2.msra.mxu0 0.0
    %5843 = vmatprep.subr.mxu0 0.0
    %5844 = vmatpush2.msra.mxu0 0.0
    %5845 = vmatprep.subr.mxu0 0.0
    %5846 = vmatpush2.msra.mxu0 0.0
    %5847 = vmatprep.mubr.f32.mxu0 0.0
    %5848 = vmatmul.mubr.f32.gmra.mxu0 %v5555
    %v5849 = vpop.f32.mrf.mxu0
    %v5850 = vadd.f32 0.0, %v5849
    %v5851 = vpop.f32.mrf.mxu0
    %5852 = vdwg.mxu0
    %v5853 = vadd.f32 %v4243, %v5850
    %v5854 = vxor.u32 %v5853, 2147483648
    %v5855 = vmul.f32 %v5854, 1.442695
    %v5856 = vpow.pop %v5855
    %v5857 = vadd.f32 %v5856, 1.0
    %v5858 = vrcp.pop %v5857
    %v5859 = vmul.f32 1.0, %v5858
    %v5861 = vrot.slane %v5550, 6
    %v5863 = vmul.f32 %v5710, %v5861
    %v5864 = vmul.f32 %v5633, %v5782
    %v5865 = vadd.f32 %v5863, %v5864
    %v5866 = vtanh.pop %v5865
    %v5867 = vmul.f32 %v5859, %v5866
    %v5869 = vsel %vm1291, %v5867, 0
    %5871 = vmatprep.subr.mxu0 0.0
    %5872 = vmatpush1.msra.mxu0 0.0
    %5873 = vmatprep.subr.mxu0 0.0
    %5874 = vmatpush1.msra.mxu0 0.0
    %5875 = vmatprep.subr.mxu0 0.0
    %5876 = vmatpush1.msra.mxu0 0.0
    %5877 = vmatprep.subr.mxu0 0.0
    %5878 = vmatpush1.msra.mxu0 0.0
    %5879 = vmatprep.subr.mxu0 0.0
    %5880 = vmatpush1.msra.mxu0 0.0
    %5881 = vmatprep.subr.mxu0 0.0
    %5882 = vmatpush1.msra.mxu0 0.0
    %5883 = vmatprep.subr.mxu0 0.0
    %5884 = vmatpush1.msra.mxu0 0.0
    %5885 = vmatprep.subr.mxu0 0.0
    %5886 = vmatpush1.msra.mxu0 0.0
    %5887 = vmatprep.subr.mxu0 0.0
    %5888 = vmatpush1.msra.mxu0 0.0
    %5889 = vmatprep.subr.mxu0 0.0
    %5890 = vmatpush1.msra.mxu0 0.0
    %5891 = vmatprep.subr.mxu0 0.0
    %5892 = vmatpush1.msra.mxu0 0.0
    %5893 = vmatprep.subr.mxu0 0.0
    %5894 = vmatpush1.msra.mxu0 0.0
    %5895 = vmatprep.subr.mxu0 0.0
    %5896 = vmatpush1.msra.mxu0 %v4249
    %5897 = vmatprep.subr.mxu0 0.0
    %5898 = vmatpush1.msra.mxu0 %v4248
    %5899 = vmatprep.subr.mxu0 0.0
    %5900 = vmatpush1.msra.mxu0 %v4247
    %5901 = vmatprep.subr.mxu0 0.0
    %5902 = vmatpush1.msra.mxu0 %v4246
    %5903 = vmatprep.subr.mxu0 0.0
    %5904 = vmatpush2.msra.mxu0 0.0
    %5905 = vmatprep.subr.mxu0 0.0
    %5906 = vmatpush2.msra.mxu0 0.0
    %5907 = vmatprep.subr.mxu0 0.0
    %5908 = vmatpush2.msra.mxu0 0.0
    %5909 = vmatprep.subr.mxu0 0.0
    %5910 = vmatpush2.msra.mxu0 0.0
    %5911 = vmatprep.subr.mxu0 0.0
    %5912 = vmatpush2.msra.mxu0 0.0
    %5913 = vmatprep.subr.mxu0 0.0
    %5914 = vmatpush2.msra.mxu0 0.0
    %5915 = vmatprep.subr.mxu0 0.0
    %5916 = vmatpush2.msra.mxu0 0.0
    %5917 = vmatprep.subr.mxu0 0.0
    %5918 = vmatpush2.msra.mxu0 0.0
    %5919 = vmatprep.subr.mxu0 0.0
    %5920 = vmatpush2.msra.mxu0 0.0
    %5921 = vmatprep.subr.mxu0 0.0
    %5922 = vmatpush2.msra.mxu0 0.0
    %5923 = vmatprep.subr.mxu0 0.0
    %5924 = vmatpush2.msra.mxu0 0.0
    %5925 = vmatprep.subr.mxu0 0.0
    %5926 = vmatpush2.msra.mxu0 0.0
    %5927 = vmatprep.subr.mxu0 0.0
    %5928 = vmatpush2.msra.mxu0 0.0
    %5929 = vmatprep.subr.mxu0 0.0
    %5930 = vmatpush2.msra.mxu0 0.0
    %5931 = vmatprep.subr.mxu0 0.0
    %5932 = vmatpush2.msra.mxu0 0.0
    %5933 = vmatprep.subr.mxu0 0.0
    %5934 = vmatpush2.msra.mxu0 0.0
    %5935 = vmatprep.mubr.f32.mxu0 0.0
    %5936 = vmatmul.mubr.f32.gmra.mxu0 %v5869
    %v5937 = vpop.f32.mrf.mxu0
    %v5938 = vadd.f32 0.0, %v5937
    %v5939 = vpop.f32.mrf.mxu0
    %5940 = vdwg.mxu0
    %v5942 = vrot.slane %v5938, 6
    %v5944 = vadd.f32 %v3979, %v5942
    %v5945 = vxor.u32 %v5944, 2147483648
    %v5946 = vmul.f32 %v5945, 1.442695
    %v5947 = vpow.pop %v5946
    %v5948 = vadd.f32 %v5947, 1.0
    %v5949 = vrcp.pop %v5948
    %v5950 = vmul.f32 1.0, %v5949
    %5951 = vmatprep.subr.mxu0 0.0
    %5952 = vmatpush1.msra.mxu0 0.0
    %5953 = vmatprep.subr.mxu0 0.0
    %5954 = vmatpush1.msra.mxu0 0.0
    %5955 = vmatprep.subr.mxu0 0.0
    %5956 = vmatpush1.msra.mxu0 0.0
    %5957 = vmatprep.subr.mxu0 0.0
    %5958 = vmatpush1.msra.mxu0 0.0
    %5959 = vmatprep.subr.mxu0 0.0
    %5960 = vmatpush1.msra.mxu0 0.0
    %5961 = vmatprep.subr.mxu0 0.0
    %5962 = vmatpush1.msra.mxu0 0.0
    %5963 = vmatprep.subr.mxu0 0.0
    %5964 = vmatpush1.msra.mxu0 0.0
    %5965 = vmatprep.subr.mxu0 0.0
    %5966 = vmatpush1.msra.mxu0 0.0
    %5967 = vmatprep.subr.mxu0 0.0
    %5968 = vmatpush1.msra.mxu0 0.0
    %5969 = vmatprep.subr.mxu0 0.0
    %5970 = vmatpush1.msra.mxu0 0.0
    %5971 = vmatprep.subr.mxu0 0.0
    %5972 = vmatpush1.msra.mxu0 0.0
    %5973 = vmatprep.subr.mxu0 0.0
    %5974 = vmatpush1.msra.mxu0 0.0
    %5975 = vmatprep.subr.mxu0 0.0
    %5976 = vmatpush1.msra.mxu0 %v4254
    %5977 = vmatprep.subr.mxu0 0.0
    %5978 = vmatpush1.msra.mxu0 %v4253
    %5979 = vmatprep.subr.mxu0 0.0
    %5980 = vmatpush1.msra.mxu0 %v4252
    %5981 = vmatprep.subr.mxu0 0.0
    %5982 = vmatpush1.msra.mxu0 %v4251
    %5983 = vmatprep.subr.mxu0 0.0
    %5984 = vmatpush2.msra.mxu0 0.0
    %5985 = vmatprep.subr.mxu0 0.0
    %5986 = vmatpush2.msra.mxu0 0.0
    %5987 = vmatprep.subr.mxu0 0.0
    %5988 = vmatpush2.msra.mxu0 0.0
    %5989 = vmatprep.subr.mxu0 0.0
    %5990 = vmatpush2.msra.mxu0 0.0
    %5991 = vmatprep.subr.mxu0 0.0
    %5992 = vmatpush2.msra.mxu0 0.0
    %5993 = vmatprep.subr.mxu0 0.0
    %5994 = vmatpush2.msra.mxu0 0.0
    %5995 = vmatprep.subr.mxu0 0.0
    %5996 = vmatpush2.msra.mxu0 0.0
    %5997 = vmatprep.subr.mxu0 0.0
    %5998 = vmatpush2.msra.mxu0 0.0
    %5999 = vmatprep.subr.mxu0 0.0
    %6000 = vmatpush2.msra.mxu0 0.0
    %6001 = vmatprep.subr.mxu0 0.0
    %6002 = vmatpush2.msra.mxu0 0.0
    %6003 = vmatprep.subr.mxu0 0.0
    %6004 = vmatpush2.msra.mxu0 0.0
    %6005 = vmatprep.subr.mxu0 0.0
    %6006 = vmatpush2.msra.mxu0 0.0
    %6007 = vmatprep.subr.mxu0 0.0
    %6008 = vmatpush2.msra.mxu0 0.0
    %6009 = vmatprep.subr.mxu0 0.0
    %6010 = vmatpush2.msra.mxu0 0.0
    %6011 = vmatprep.subr.mxu0 0.0
    %6012 = vmatpush2.msra.mxu0 0.0
    %6013 = vmatprep.subr.mxu0 0.0
    %6014 = vmatpush2.msra.mxu0 0.0
    %6015 = vmatprep.mubr.f32.mxu0 0.0
    %6016 = vmatmul.mubr.f32.gmra.mxu0 %v5869
    %v6017 = vpop.f32.mrf.mxu0
    %v6018 = vadd.f32 0.0, %v6017
    %v6019 = vpop.f32.mrf.mxu0
    %6020 = vdwg.mxu0
    %v6022 = vrot.slane %v6018, 6
    %v6024 = vadd.f32 %v4067, %v6022
    %v6025 = vxor.u32 %v6024, 2147483648
    %v6026 = vmul.f32 %v6025, 1.442695
    %v6027 = vpow.pop %v6026
    %v6028 = vadd.f32 %v6027, 1.0
    %v6029 = vrcp.pop %v6028
    %v6030 = vmul.f32 1.0, %v6029
    %6031 = vmatprep.subr.mxu0 0.0
    %6032 = vmatpush1.msra.mxu0 0.0
    %6033 = vmatprep.subr.mxu0 0.0
    %6034 = vmatpush1.msra.mxu0 0.0
    %6035 = vmatprep.subr.mxu0 0.0
    %6036 = vmatpush1.msra.mxu0 0.0
    %6037 = vmatprep.subr.mxu0 0.0
    %6038 = vmatpush1.msra.mxu0 0.0
    %6039 = vmatprep.subr.mxu0 0.0
    %6040 = vmatpush1.msra.mxu0 0.0
    %6041 = vmatprep.subr.mxu0 0.0
    %6042 = vmatpush1.msra.mxu0 0.0
    %6043 = vmatprep.subr.mxu0 0.0
    %6044 = vmatpush1.msra.mxu0 0.0
    %6045 = vmatprep.subr.mxu0 0.0
    %6046 = vmatpush1.msra.mxu0 0.0
    %6047 = vmatprep.subr.mxu0 0.0
    %6048 = vmatpush1.msra.mxu0 0.0
    %6049 = vmatprep.subr.mxu0 0.0
    %6050 = vmatpush1.msra.mxu0 0.0
    %6051 = vmatprep.subr.mxu0 0.0
    %6052 = vmatpush1.msra.mxu0 0.0
    %6053 = vmatprep.subr.mxu0 0.0
    %6054 = vmatpush1.msra.mxu0 0.0
    %6055 = vmatprep.subr.mxu0 0.0
    %6056 = vmatpush1.msra.mxu0 %v4259
    %6057 = vmatprep.subr.mxu0 0.0
    %6058 = vmatpush1.msra.mxu0 %v4258
    %6059 = vmatprep.subr.mxu0 0.0
    %6060 = vmatpush1.msra.mxu0 %v4257
    %6061 = vmatprep.subr.mxu0 0.0
    %6062 = vmatpush1.msra.mxu0 %v4256
    %6063 = vmatprep.subr.mxu0 0.0
    %6064 = vmatpush2.msra.mxu0 0.0
    %6065 = vmatprep.subr.mxu0 0.0
    %6066 = vmatpush2.msra.mxu0 0.0
    %6067 = vmatprep.subr.mxu0 0.0
    %6068 = vmatpush2.msra.mxu0 0.0
    %6069 = vmatprep.subr.mxu0 0.0
    %6070 = vmatpush2.msra.mxu0 0.0
    %6071 = vmatprep.subr.mxu0 0.0
    %6072 = vmatpush2.msra.mxu0 0.0
    %6073 = vmatprep.subr.mxu0 0.0
    %6074 = vmatpush2.msra.mxu0 0.0
    %6075 = vmatprep.subr.mxu0 0.0
    %6076 = vmatpush2.msra.mxu0 0.0
    %6077 = vmatprep.subr.mxu0 0.0
    %6078 = vmatpush2.msra.mxu0 0.0
    %6079 = vmatprep.subr.mxu0 0.0
    %6080 = vmatpush2.msra.mxu0 0.0
    %6081 = vmatprep.subr.mxu0 0.0
    %6082 = vmatpush2.msra.mxu0 0.0
    %6083 = vmatprep.subr.mxu0 0.0
    %6084 = vmatpush2.msra.mxu0 0.0
    %6085 = vmatprep.subr.mxu0 0.0
    %6086 = vmatpush2.msra.mxu0 0.0
    %6087 = vmatprep.subr.mxu0 0.0
    %6088 = vmatpush2.msra.mxu0 0.0
    %6089 = vmatprep.subr.mxu0 0.0
    %6090 = vmatpush2.msra.mxu0 0.0
    %6091 = vmatprep.subr.mxu0 0.0
    %6092 = vmatpush2.msra.mxu0 0.0
    %6093 = vmatprep.subr.mxu0 0.0
    %6094 = vmatpush2.msra.mxu0 0.0
    %6095 = vmatprep.mubr.f32.mxu0 0.0
    %6096 = vmatmul.mubr.f32.gmra.mxu0 %v5869
    %v6097 = vpop.f32.mrf.mxu0
    %v6098 = vadd.f32 0.0, %v6097
    %v6099 = vpop.f32.mrf.mxu0
    %6100 = vdwg.mxu0
    %v6102 = vrot.slane %v6098, 6
    %v6104 = vadd.f32 %v4155, %v6102
    %v6105 = vtanh.pop %v6104
    %6106 = vmatprep.subr.mxu0 0.0
    %6107 = vmatpush1.msra.mxu0 0.0
    %6108 = vmatprep.subr.mxu0 0.0
    %6109 = vmatpush1.msra.mxu0 0.0
    %6110 = vmatprep.subr.mxu0 0.0
    %6111 = vmatpush1.msra.mxu0 0.0
    %6112 = vmatprep.subr.mxu0 0.0
    %6113 = vmatpush1.msra.mxu0 0.0
    %6114 = vmatprep.subr.mxu0 0.0
    %6115 = vmatpush1.msra.mxu0 0.0
    %6116 = vmatprep.subr.mxu0 0.0
    %6117 = vmatpush1.msra.mxu0 0.0
    %6118 = vmatprep.subr.mxu0 0.0
    %6119 = vmatpush1.msra.mxu0 0.0
    %6120 = vmatprep.subr.mxu0 0.0
    %6121 = vmatpush1.msra.mxu0 0.0
    %6122 = vmatprep.subr.mxu0 0.0
    %6123 = vmatpush1.msra.mxu0 0.0
    %6124 = vmatprep.subr.mxu0 0.0
    %6125 = vmatpush1.msra.mxu0 0.0
    %6126 = vmatprep.subr.mxu0 0.0
    %6127 = vmatpush1.msra.mxu0 0.0
    %6128 = vmatprep.subr.mxu0 0.0
    %6129 = vmatpush1.msra.mxu0 0.0
    %6130 = vmatprep.subr.mxu0 0.0
    %6131 = vmatpush1.msra.mxu0 %v4264
    %6132 = vmatprep.subr.mxu0 0.0
    %6133 = vmatpush1.msra.mxu0 %v4263
    %6134 = vmatprep.subr.mxu0 0.0
    %6135 = vmatpush1.msra.mxu0 %v4262
    %6136 = vmatprep.subr.mxu0 0.0
    %6137 = vmatpush1.msra.mxu0 %v4261
    %6138 = vmatprep.subr.mxu0 0.0
    %6139 = vmatpush2.msra.mxu0 0.0
    %6140 = vmatprep.subr.mxu0 0.0
    %6141 = vmatpush2.msra.mxu0 0.0
    %6142 = vmatprep.subr.mxu0 0.0
    %6143 = vmatpush2.msra.mxu0 0.0
    %6144 = vmatprep.subr.mxu0 0.0
    %6145 = vmatpush2.msra.mxu0 0.0
    %6146 = vmatprep.subr.mxu0 0.0
    %6147 = vmatpush2.msra.mxu0 0.0
    %6148 = vmatprep.subr.mxu0 0.0
    %6149 = vmatpush2.msra.mxu0 0.0
    %6150 = vmatprep.subr.mxu0 0.0
    %6151 = vmatpush2.msra.mxu0 0.0
    %6152 = vmatprep.subr.mxu0 0.0
    %6153 = vmatpush2.msra.mxu0 0.0
    %6154 = vmatprep.subr.mxu0 0.0
    %6155 = vmatpush2.msra.mxu0 0.0
    %6156 = vmatprep.subr.mxu0 0.0
    %6157 = vmatpush2.msra.mxu0 0.0
    %6158 = vmatprep.subr.mxu0 0.0
    %6159 = vmatpush2.msra.mxu0 0.0
    %6160 = vmatprep.subr.mxu0 0.0
    %6161 = vmatpush2.msra.mxu0 0.0
    %6162 = vmatprep.subr.mxu0 0.0
    %6163 = vmatpush2.msra.mxu0 0.0
    %6164 = vmatprep.subr.mxu0 0.0
    %6165 = vmatpush2.msra.mxu0 0.0
    %6166 = vmatprep.subr.mxu0 0.0
    %6167 = vmatpush2.msra.mxu0 0.0
    %6168 = vmatprep.subr.mxu0 0.0
    %6169 = vmatpush2.msra.mxu0 0.0
    %6170 = vmatprep.mubr.f32.mxu0 0.0
    %6171 = vmatmul.mubr.f32.gmra.mxu0 %v5869
    %v6172 = vpop.f32.mrf.mxu0
    %v6173 = vadd.f32 0.0, %v6172
    %v6174 = vpop.f32.mrf.mxu0
    %6175 = vdwg.mxu0
    %v6177 = vrot.slane %v6173, 6
    %v6179 = vadd.f32 %v4243, %v6177
    %v6180 = vxor.u32 %v6179, 2147483648
    %v6181 = vmul.f32 %v6180, 1.442695
    %v6182 = vpow.pop %v6181
    %v6183 = vadd.f32 %v6182, 1.0
    %v6184 = vrcp.pop %v6183
    %v6185 = vmul.f32 1.0, %v6184
    %v6187 = vrot.slane %v5865, 6
    %v6189 = vmul.f32 %v6030, %v6187
    %v6190 = vmul.f32 %v5950, %v6105
    %v6191 = vadd.f32 %v6189, %v6190
    %v6192 = vtanh.pop %v6191
    %v6193 = vmul.f32 %v6185, %v6192
    %v6195 = vrot.slane %v6193, 2
    %v6196 = vsel %vm1291, %v6195, 0
    %6198 = vmatprep.subr.mxu0 0.0
    %6199 = vmatpush1.msra.mxu0 0.0
    %6200 = vmatprep.subr.mxu0 0.0
    %6201 = vmatpush1.msra.mxu0 0.0
    %6202 = vmatprep.subr.mxu0 0.0
    %6203 = vmatpush1.msra.mxu0 0.0
    %6204 = vmatprep.subr.mxu0 0.0
    %6205 = vmatpush1.msra.mxu0 0.0
    %6206 = vmatprep.subr.mxu0 0.0
    %6207 = vmatpush1.msra.mxu0 0.0
    %6208 = vmatprep.subr.mxu0 0.0
    %6209 = vmatpush1.msra.mxu0 0.0
    %6210 = vmatprep.subr.mxu0 0.0
    %6211 = vmatpush1.msra.mxu0 0.0
    %6212 = vmatprep.subr.mxu0 0.0
    %6213 = vmatpush1.msra.mxu0 0.0
    %6214 = vmatprep.subr.mxu0 0.0
    %6215 = vmatpush1.msra.mxu0 0.0
    %6216 = vmatprep.subr.mxu0 0.0
    %6217 = vmatpush1.msra.mxu0 0.0
    %6218 = vmatprep.subr.mxu0 0.0
    %6219 = vmatpush1.msra.mxu0 0.0
    %6220 = vmatprep.subr.mxu0 0.0
    %6221 = vmatpush1.msra.mxu0 0.0
    %6222 = vmatprep.subr.mxu0 0.0
    %6223 = vmatpush1.msra.mxu0 %v4249
    %6224 = vmatprep.subr.mxu0 0.0
    %6225 = vmatpush1.msra.mxu0 %v4248
    %6226 = vmatprep.subr.mxu0 0.0
    %6227 = vmatpush1.msra.mxu0 %v4247
    %6228 = vmatprep.subr.mxu0 0.0
    %6229 = vmatpush1.msra.mxu0 %v4246
    %6230 = vmatprep.subr.mxu0 0.0
    %6231 = vmatpush2.msra.mxu0 0.0
    %6232 = vmatprep.subr.mxu0 0.0
    %6233 = vmatpush2.msra.mxu0 0.0
    %6234 = vmatprep.subr.mxu0 0.0
    %6235 = vmatpush2.msra.mxu0 0.0
    %6236 = vmatprep.subr.mxu0 0.0
    %6237 = vmatpush2.msra.mxu0 0.0
    %6238 = vmatprep.subr.mxu0 0.0
    %6239 = vmatpush2.msra.mxu0 0.0
    %6240 = vmatprep.subr.mxu0 0.0
    %6241 = vmatpush2.msra.mxu0 0.0
    %6242 = vmatprep.subr.mxu0 0.0
    %6243 = vmatpush2.msra.mxu0 0.0
    %6244 = vmatprep.subr.mxu0 0.0
    %6245 = vmatpush2.msra.mxu0 0.0
    %6246 = vmatprep.subr.mxu0 0.0
    %6247 = vmatpush2.msra.mxu0 0.0
    %6248 = vmatprep.subr.mxu0 0.0
    %6249 = vmatpush2.msra.mxu0 0.0
    %6250 = vmatprep.subr.mxu0 0.0
    %6251 = vmatpush2.msra.mxu0 0.0
    %6252 = vmatprep.subr.mxu0 0.0
    %6253 = vmatpush2.msra.mxu0 0.0
    %6254 = vmatprep.subr.mxu0 0.0
    %6255 = vmatpush2.msra.mxu0 0.0
    %6256 = vmatprep.subr.mxu0 0.0
    %6257 = vmatpush2.msra.mxu0 0.0
    %6258 = vmatprep.subr.mxu0 0.0
    %6259 = vmatpush2.msra.mxu0 0.0
    %6260 = vmatprep.subr.mxu0 0.0
    %6261 = vmatpush2.msra.mxu0 0.0
    %6262 = vmatprep.mubr.f32.mxu0 0.0
    %6263 = vmatmul.mubr.f32.gmra.mxu0 %v6196
    %v6264 = vpop.f32.mrf.mxu0
    %v6265 = vadd.f32 0.0, %v6264
    %v6266 = vpop.f32.mrf.mxu0
    %6267 = vdwg.mxu0
    %v6269 = vrot.slane %v6265, 4
    %v6271 = vadd.f32 %v3979, %v6269
    %v6272 = vxor.u32 %v6271, 2147483648
    %v6273 = vmul.f32 %v6272, 1.442695
    %v6274 = vpow.pop %v6273
    %v6275 = vadd.f32 %v6274, 1.0
    %v6276 = vrcp.pop %v6275
    %v6277 = vmul.f32 1.0, %v6276
    %6278 = vmatprep.subr.mxu0 0.0
    %6279 = vmatpush1.msra.mxu0 0.0
    %6280 = vmatprep.subr.mxu0 0.0
    %6281 = vmatpush1.msra.mxu0 0.0
    %6282 = vmatprep.subr.mxu0 0.0
    %6283 = vmatpush1.msra.mxu0 0.0
    %6284 = vmatprep.subr.mxu0 0.0
    %6285 = vmatpush1.msra.mxu0 0.0
    %6286 = vmatprep.subr.mxu0 0.0
    %6287 = vmatpush1.msra.mxu0 0.0
    %6288 = vmatprep.subr.mxu0 0.0
    %6289 = vmatpush1.msra.mxu0 0.0
    %6290 = vmatprep.subr.mxu0 0.0
    %6291 = vmatpush1.msra.mxu0 0.0
    %6292 = vmatprep.subr.mxu0 0.0
    %6293 = vmatpush1.msra.mxu0 0.0
    %6294 = vmatprep.subr.mxu0 0.0
    %6295 = vmatpush1.msra.mxu0 0.0
    %6296 = vmatprep.subr.mxu0 0.0
    %6297 = vmatpush1.msra.mxu0 0.0
    %6298 = vmatprep.subr.mxu0 0.0
    %6299 = vmatpush1.msra.mxu0 0.0
    %6300 = vmatprep.subr.mxu0 0.0
    %6301 = vmatpush1.msra.mxu0 0.0
    %6302 = vmatprep.subr.mxu0 0.0
    %6303 = vmatpush1.msra.mxu0 %v4254
    %6304 = vmatprep.subr.mxu0 0.0
    %6305 = vmatpush1.msra.mxu0 %v4253
    %6306 = vmatprep.subr.mxu0 0.0
    %6307 = vmatpush1.msra.mxu0 %v4252
    %6308 = vmatprep.subr.mxu0 0.0
    %6309 = vmatpush1.msra.mxu0 %v4251
    %6310 = vmatprep.subr.mxu0 0.0
    %6311 = vmatpush2.msra.mxu0 0.0
    %6312 = vmatprep.subr.mxu0 0.0
    %6313 = vmatpush2.msra.mxu0 0.0
    %6314 = vmatprep.subr.mxu0 0.0
    %6315 = vmatpush2.msra.mxu0 0.0
    %6316 = vmatprep.subr.mxu0 0.0
    %6317 = vmatpush2.msra.mxu0 0.0
    %6318 = vmatprep.subr.mxu0 0.0
    %6319 = vmatpush2.msra.mxu0 0.0
    %6320 = vmatprep.subr.mxu0 0.0
    %6321 = vmatpush2.msra.mxu0 0.0
    %6322 = vmatprep.subr.mxu0 0.0
    %6323 = vmatpush2.msra.mxu0 0.0
    %6324 = vmatprep.subr.mxu0 0.0
    %6325 = vmatpush2.msra.mxu0 0.0
    %6326 = vmatprep.subr.mxu0 0.0
    %6327 = vmatpush2.msra.mxu0 0.0
    %6328 = vmatprep.subr.mxu0 0.0
    %6329 = vmatpush2.msra.mxu0 0.0
    %6330 = vmatprep.subr.mxu0 0.0
    %6331 = vmatpush2.msra.mxu0 0.0
    %6332 = vmatprep.subr.mxu0 0.0
    %6333 = vmatpush2.msra.mxu0 0.0
    %6334 = vmatprep.subr.mxu0 0.0
    %6335 = vmatpush2.msra.mxu0 0.0
    %6336 = vmatprep.subr.mxu0 0.0
    %6337 = vmatpush2.msra.mxu0 0.0
    %6338 = vmatprep.subr.mxu0 0.0
    %6339 = vmatpush2.msra.mxu0 0.0
    %6340 = vmatprep.subr.mxu0 0.0
    %6341 = vmatpush2.msra.mxu0 0.0
    %6342 = vmatprep.mubr.f32.mxu0 0.0
    %6343 = vmatmul.mubr.f32.gmra.mxu0 %v6196
    %v6344 = vpop.f32.mrf.mxu0
    %v6345 = vadd.f32 0.0, %v6344
    %v6346 = vpop.f32.mrf.mxu0
    %6347 = vdwg.mxu0
    %v6349 = vrot.slane %v6345, 4
    %v6351 = vadd.f32 %v4067, %v6349
    %v6352 = vxor.u32 %v6351, 2147483648
    %v6353 = vmul.f32 %v6352, 1.442695
    %v6354 = vpow.pop %v6353
    %v6355 = vadd.f32 %v6354, 1.0
    %v6356 = vrcp.pop %v6355
    %v6357 = vmul.f32 1.0, %v6356
    %6358 = vmatprep.subr.mxu0 0.0
    %6359 = vmatpush1.msra.mxu0 0.0
    %6360 = vmatprep.subr.mxu0 0.0
    %6361 = vmatpush1.msra.mxu0 0.0
    %6362 = vmatprep.subr.mxu0 0.0
    %6363 = vmatpush1.msra.mxu0 0.0
    %6364 = vmatprep.subr.mxu0 0.0
    %6365 = vmatpush1.msra.mxu0 0.0
    %6366 = vmatprep.subr.mxu0 0.0
    %6367 = vmatpush1.msra.mxu0 0.0
    %6368 = vmatprep.subr.mxu0 0.0
    %6369 = vmatpush1.msra.mxu0 0.0
    %6370 = vmatprep.subr.mxu0 0.0
    %6371 = vmatpush1.msra.mxu0 0.0
    %6372 = vmatprep.subr.mxu0 0.0
    %6373 = vmatpush1.msra.mxu0 0.0
    %6374 = vmatprep.subr.mxu0 0.0
    %6375 = vmatpush1.msra.mxu0 0.0
    %6376 = vmatprep.subr.mxu0 0.0
    %6377 = vmatpush1.msra.mxu0 0.0
    %6378 = vmatprep.subr.mxu0 0.0
    %6379 = vmatpush1.msra.mxu0 0.0
    %6380 = vmatprep.subr.mxu0 0.0
    %6381 = vmatpush1.msra.mxu0 0.0
    %6382 = vmatprep.subr.mxu0 0.0
    %6383 = vmatpush1.msra.mxu0 %v4259
    %6384 = vmatprep.subr.mxu0 0.0
    %6385 = vmatpush1.msra.mxu0 %v4258
    %6386 = vmatprep.subr.mxu0 0.0
    %6387 = vmatpush1.msra.mxu0 %v4257
    %6388 = vmatprep.subr.mxu0 0.0
    %6389 = vmatpush1.msra.mxu0 %v4256
    %6390 = vmatprep.subr.mxu0 0.0
    %6391 = vmatpush2.msra.mxu0 0.0
    %6392 = vmatprep.subr.mxu0 0.0
    %6393 = vmatpush2.msra.mxu0 0.0
    %6394 = vmatprep.subr.mxu0 0.0
    %6395 = vmatpush2.msra.mxu0 0.0
    %6396 = vmatprep.subr.mxu0 0.0
    %6397 = vmatpush2.msra.mxu0 0.0
    %6398 = vmatprep.subr.mxu0 0.0
    %6399 = vmatpush2.msra.mxu0 0.0
    %6400 = vmatprep.subr.mxu0 0.0
    %6401 = vmatpush2.msra.mxu0 0.0
    %6402 = vmatprep.subr.mxu0 0.0
    %6403 = vmatpush2.msra.mxu0 0.0
    %6404 = vmatprep.subr.mxu0 0.0
    %6405 = vmatpush2.msra.mxu0 0.0
    %6406 = vmatprep.subr.mxu0 0.0
    %6407 = vmatpush2.msra.mxu0 0.0
    %6408 = vmatprep.subr.mxu0 0.0
    %6409 = vmatpush2.msra.mxu0 0.0
    %6410 = vmatprep.subr.mxu0 0.0
    %6411 = vmatpush2.msra.mxu0 0.0
    %6412 = vmatprep.subr.mxu0 0.0
    %6413 = vmatpush2.msra.mxu0 0.0
    %6414 = vmatprep.subr.mxu0 0.0
    %6415 = vmatpush2.msra.mxu0 0.0
    %6416 = vmatprep.subr.mxu0 0.0
    %6417 = vmatpush2.msra.mxu0 0.0
    %6418 = vmatprep.subr.mxu0 0.0
    %6419 = vmatpush2.msra.mxu0 0.0
    %6420 = vmatprep.subr.mxu0 0.0
    %6421 = vmatpush2.msra.mxu0 0.0
    %6422 = vmatprep.mubr.f32.mxu0 0.0
    %6423 = vmatmul.mubr.f32.gmra.mxu0 %v6196
    %v6424 = vpop.f32.mrf.mxu0
    %v6425 = vadd.f32 0.0, %v6424
    %v6426 = vpop.f32.mrf.mxu0
    %6427 = vdwg.mxu0
    %v6429 = vrot.slane %v6425, 4
    %v6431 = vadd.f32 %v4155, %v6429
    %v6432 = vtanh.pop %v6431
    %6433 = vmatprep.subr.mxu0 0.0
    %6434 = vmatpush1.msra.mxu0 0.0
    %6435 = vmatprep.subr.mxu0 0.0
    %6436 = vmatpush1.msra.mxu0 0.0
    %6437 = vmatprep.subr.mxu0 0.0
    %6438 = vmatpush1.msra.mxu0 0.0
    %6439 = vmatprep.subr.mxu0 0.0
    %6440 = vmatpush1.msra.mxu0 0.0
    %6441 = vmatprep.subr.mxu0 0.0
    %6442 = vmatpush1.msra.mxu0 0.0
    %6443 = vmatprep.subr.mxu0 0.0
    %6444 = vmatpush1.msra.mxu0 0.0
    %6445 = vmatprep.subr.mxu0 0.0
    %6446 = vmatpush1.msra.mxu0 0.0
    %6447 = vmatprep.subr.mxu0 0.0
    %6448 = vmatpush1.msra.mxu0 0.0
    %6449 = vmatprep.subr.mxu0 0.0
    %6450 = vmatpush1.msra.mxu0 0.0
    %6451 = vmatprep.subr.mxu0 0.0
    %6452 = vmatpush1.msra.mxu0 0.0
    %6453 = vmatprep.subr.mxu0 0.0
    %6454 = vmatpush1.msra.mxu0 0.0
    %6455 = vmatprep.subr.mxu0 0.0
    %6456 = vmatpush1.msra.mxu0 0.0
    %6457 = vmatprep.subr.mxu0 0.0
    %6458 = vmatpush1.msra.mxu0 %v4264
    %6459 = vmatprep.subr.mxu0 0.0
    %6460 = vmatpush1.msra.mxu0 %v4263
    %6461 = vmatprep.subr.mxu0 0.0
    %6462 = vmatpush1.msra.mxu0 %v4262
    %6463 = vmatprep.subr.mxu0 0.0
    %6464 = vmatpush1.msra.mxu0 %v4261
    %6465 = vmatprep.subr.mxu0 0.0
    %6466 = vmatpush2.msra.mxu0 0.0
    %6467 = vmatprep.subr.mxu0 0.0
    %6468 = vmatpush2.msra.mxu0 0.0
    %6469 = vmatprep.subr.mxu0 0.0
    %6470 = vmatpush2.msra.mxu0 0.0
    %6471 = vmatprep.subr.mxu0 0.0
    %6472 = vmatpush2.msra.mxu0 0.0
    %6473 = vmatprep.subr.mxu0 0.0
    %6474 = vmatpush2.msra.mxu0 0.0
    %6475 = vmatprep.subr.mxu0 0.0
    %6476 = vmatpush2.msra.mxu0 0.0
    %6477 = vmatprep.subr.mxu0 0.0
    %6478 = vmatpush2.msra.mxu0 0.0
    %6479 = vmatprep.subr.mxu0 0.0
    %6480 = vmatpush2.msra.mxu0 0.0
    %6481 = vmatprep.subr.mxu0 0.0
    %6482 = vmatpush2.msra.mxu0 0.0
    %6483 = vmatprep.subr.mxu0 0.0
    %6484 = vmatpush2.msra.mxu0 0.0
    %6485 = vmatprep.subr.mxu0 0.0
    %6486 = vmatpush2.msra.mxu0 0.0
    %6487 = vmatprep.subr.mxu0 0.0
    %6488 = vmatpush2.msra.mxu0 0.0
    %6489 = vmatprep.subr.mxu0 0.0
    %6490 = vmatpush2.msra.mxu0 0.0
    %6491 = vmatprep.subr.mxu0 0.0
    %6492 = vmatpush2.msra.mxu0 0.0
    %6493 = vmatprep.subr.mxu0 0.0
    %6494 = vmatpush2.msra.mxu0 0.0
    %6495 = vmatprep.subr.mxu0 0.0
    %6496 = vmatpush2.msra.mxu0 0.0
    %6497 = vmatprep.mubr.f32.mxu0 0.0
    %6498 = vmatmul.mubr.f32.gmra.mxu0 %v6196
    %v6499 = vpop.f32.mrf.mxu0
    %v6500 = vadd.f32 0.0, %v6499
    %v6501 = vpop.f32.mrf.mxu0
    %6502 = vdwg.mxu0
    %v6504 = vrot.slane %v6500, 4
    %v6506 = vadd.f32 %v4243, %v6504
    %v6507 = vxor.u32 %v6506, 2147483648
    %v6508 = vmul.f32 %v6507, 1.442695
    %v6509 = vpow.pop %v6508
    %v6510 = vadd.f32 %v6509, 1.0
    %v6511 = vrcp.pop %v6510
    %v6512 = vmul.f32 1.0, %v6511
    %v6514 = vrot.slane %v6191, 6
    %v6516 = vmul.f32 %v6357, %v6514
    %v6517 = vmul.f32 %v6277, %v6432
    %v6518 = vadd.f32 %v6516, %v6517
    %v6519 = vtanh.pop %v6518
    %v6520 = vmul.f32 %v6512, %v6519
    %v6522 = vrot.slane %v6520, 4
    %v6523 = vsel %vm1291, %v6522, 0
    %6525 = vmatprep.subr.mxu0 0.0
    %6526 = vmatpush1.msra.mxu0 0.0
    %6527 = vmatprep.subr.mxu0 0.0
    %6528 = vmatpush1.msra.mxu0 0.0
    %6529 = vmatprep.subr.mxu0 0.0
    %6530 = vmatpush1.msra.mxu0 0.0
    %6531 = vmatprep.subr.mxu0 0.0
    %6532 = vmatpush1.msra.mxu0 0.0
    %6533 = vmatprep.subr.mxu0 0.0
    %6534 = vmatpush1.msra.mxu0 0.0
    %6535 = vmatprep.subr.mxu0 0.0
    %6536 = vmatpush1.msra.mxu0 0.0
    %6537 = vmatprep.subr.mxu0 0.0
    %6538 = vmatpush1.msra.mxu0 0.0
    %6539 = vmatprep.subr.mxu0 0.0
    %6540 = vmatpush1.msra.mxu0 0.0
    %6541 = vmatprep.subr.mxu0 0.0
    %6542 = vmatpush1.msra.mxu0 0.0
    %6543 = vmatprep.subr.mxu0 0.0
    %6544 = vmatpush1.msra.mxu0 0.0
    %6545 = vmatprep.subr.mxu0 0.0
    %6546 = vmatpush1.msra.mxu0 0.0
    %6547 = vmatprep.subr.mxu0 0.0
    %6548 = vmatpush1.msra.mxu0 0.0
    %6549 = vmatprep.subr.mxu0 0.0
    %6550 = vmatpush1.msra.mxu0 %v4249
    %6551 = vmatprep.subr.mxu0 0.0
    %6552 = vmatpush1.msra.mxu0 %v4248
    %6553 = vmatprep.subr.mxu0 0.0
    %6554 = vmatpush1.msra.mxu0 %v4247
    %6555 = vmatprep.subr.mxu0 0.0
    %6556 = vmatpush1.msra.mxu0 %v4246
    %6557 = vmatprep.subr.mxu0 0.0
    %6558 = vmatpush2.msra.mxu0 0.0
    %6559 = vmatprep.subr.mxu0 0.0
    %6560 = vmatpush2.msra.mxu0 0.0
    %6561 = vmatprep.subr.mxu0 0.0
    %6562 = vmatpush2.msra.mxu0 0.0
    %6563 = vmatprep.subr.mxu0 0.0
    %6564 = vmatpush2.msra.mxu0 0.0
    %6565 = vmatprep.subr.mxu0 0.0
    %6566 = vmatpush2.msra.mxu0 0.0
    %6567 = vmatprep.subr.mxu0 0.0
    %6568 = vmatpush2.msra.mxu0 0.0
    %6569 = vmatprep.subr.mxu0 0.0
    %6570 = vmatpush2.msra.mxu0 0.0
    %6571 = vmatprep.subr.mxu0 0.0
    %6572 = vmatpush2.msra.mxu0 0.0
    %6573 = vmatprep.subr.mxu0 0.0
    %6574 = vmatpush2.msra.mxu0 0.0
    %6575 = vmatprep.subr.mxu0 0.0
    %6576 = vmatpush2.msra.mxu0 0.0
    %6577 = vmatprep.subr.mxu0 0.0
    %6578 = vmatpush2.msra.mxu0 0.0
    %6579 = vmatprep.subr.mxu0 0.0
    %6580 = vmatpush2.msra.mxu0 0.0
    %6581 = vmatprep.subr.mxu0 0.0
    %6582 = vmatpush2.msra.mxu0 0.0
    %6583 = vmatprep.subr.mxu0 0.0
    %6584 = vmatpush2.msra.mxu0 0.0
    %6585 = vmatprep.subr.mxu0 0.0
    %6586 = vmatpush2.msra.mxu0 0.0
    %6587 = vmatprep.subr.mxu0 0.0
    %6588 = vmatpush2.msra.mxu0 0.0
    %6589 = vmatprep.mubr.f32.mxu0 0.0
    %6590 = vmatmul.mubr.f32.gmra.mxu0 %v6523
    %v6591 = vpop.f32.mrf.mxu0
    %v6592 = vadd.f32 0.0, %v6591
    %v6593 = vpop.f32.mrf.mxu0
    %6594 = vdwg.mxu0
    %v6596 = vrot.slane %v6592, 2
    %v6598 = vadd.f32 %v3979, %v6596
    %v6599 = vxor.u32 %v6598, 2147483648
    %v6600 = vmul.f32 %v6599, 1.442695
    %v6601 = vpow.pop %v6600
    %v6602 = vadd.f32 %v6601, 1.0
    %v6603 = vrcp.pop %v6602
    %v6604 = vmul.f32 1.0, %v6603
    %6605 = vmatprep.subr.mxu0 0.0
    %6606 = vmatpush1.msra.mxu0 0.0
    %6607 = vmatprep.subr.mxu0 0.0
    %6608 = vmatpush1.msra.mxu0 0.0
    %6609 = vmatprep.subr.mxu0 0.0
    %6610 = vmatpush1.msra.mxu0 0.0
    %6611 = vmatprep.subr.mxu0 0.0
    %6612 = vmatpush1.msra.mxu0 0.0
    %6613 = vmatprep.subr.mxu0 0.0
    %6614 = vmatpush1.msra.mxu0 0.0
    %6615 = vmatprep.subr.mxu0 0.0
    %6616 = vmatpush1.msra.mxu0 0.0
    %6617 = vmatprep.subr.mxu0 0.0
    %6618 = vmatpush1.msra.mxu0 0.0
    %6619 = vmatprep.subr.mxu0 0.0
    %6620 = vmatpush1.msra.mxu0 0.0
    %6621 = vmatprep.subr.mxu0 0.0
    %6622 = vmatpush1.msra.mxu0 0.0
    %6623 = vmatprep.subr.mxu0 0.0
    %6624 = vmatpush1.msra.mxu0 0.0
    %6625 = vmatprep.subr.mxu0 0.0
    %6626 = vmatpush1.msra.mxu0 0.0
    %6627 = vmatprep.subr.mxu0 0.0
    %6628 = vmatpush1.msra.mxu0 0.0
    %6629 = vmatprep.subr.mxu0 0.0
    %6630 = vmatpush1.msra.mxu0 %v4254
    %6631 = vmatprep.subr.mxu0 0.0
    %6632 = vmatpush1.msra.mxu0 %v4253
    %6633 = vmatprep.subr.mxu0 0.0
    %6634 = vmatpush1.msra.mxu0 %v4252
    %6635 = vmatprep.subr.mxu0 0.0
    %6636 = vmatpush1.msra.mxu0 %v4251
    %6637 = vmatprep.subr.mxu0 0.0
    %6638 = vmatpush2.msra.mxu0 0.0
    %6639 = vmatprep.subr.mxu0 0.0
    %6640 = vmatpush2.msra.mxu0 0.0
    %6641 = vmatprep.subr.mxu0 0.0
    %6642 = vmatpush2.msra.mxu0 0.0
    %6643 = vmatprep.subr.mxu0 0.0
    %6644 = vmatpush2.msra.mxu0 0.0
    %6645 = vmatprep.subr.mxu0 0.0
    %6646 = vmatpush2.msra.mxu0 0.0
    %6647 = vmatprep.subr.mxu0 0.0
    %6648 = vmatpush2.msra.mxu0 0.0
    %6649 = vmatprep.subr.mxu0 0.0
    %6650 = vmatpush2.msra.mxu0 0.0
    %6651 = vmatprep.subr.mxu0 0.0
    %6652 = vmatpush2.msra.mxu0 0.0
    %6653 = vmatprep.subr.mxu0 0.0
    %6654 = vmatpush2.msra.mxu0 0.0
    %6655 = vmatprep.subr.mxu0 0.0
    %6656 = vmatpush2.msra.mxu0 0.0
    %6657 = vmatprep.subr.mxu0 0.0
    %6658 = vmatpush2.msra.mxu0 0.0
    %6659 = vmatprep.subr.mxu0 0.0
    %6660 = vmatpush2.msra.mxu0 0.0
    %6661 = vmatprep.subr.mxu0 0.0
    %6662 = vmatpush2.msra.mxu0 0.0
    %6663 = vmatprep.subr.mxu0 0.0
    %6664 = vmatpush2.msra.mxu0 0.0
    %6665 = vmatprep.subr.mxu0 0.0
    %6666 = vmatpush2.msra.mxu0 0.0
    %6667 = vmatprep.subr.mxu0 0.0
    %6668 = vmatpush2.msra.mxu0 0.0
    %6669 = vmatprep.mubr.f32.mxu0 0.0
    %6670 = vmatmul.mubr.f32.gmra.mxu0 %v6523
    %v6671 = vpop.f32.mrf.mxu0
    %v6672 = vadd.f32 0.0, %v6671
    %v6673 = vpop.f32.mrf.mxu0
    %6674 = vdwg.mxu0
    %v6676 = vrot.slane %v6672, 2
    %v6678 = vadd.f32 %v4067, %v6676
    %v6679 = vxor.u32 %v6678, 2147483648
    %v6680 = vmul.f32 %v6679, 1.442695
    %v6681 = vpow.pop %v6680
    %v6682 = vadd.f32 %v6681, 1.0
    %v6683 = vrcp.pop %v6682
    %v6684 = vmul.f32 1.0, %v6683
    %6685 = vmatprep.subr.mxu0 0.0
    %6686 = vmatpush1.msra.mxu0 0.0
    %6687 = vmatprep.subr.mxu0 0.0
    %6688 = vmatpush1.msra.mxu0 0.0
    %6689 = vmatprep.subr.mxu0 0.0
    %6690 = vmatpush1.msra.mxu0 0.0
    %6691 = vmatprep.subr.mxu0 0.0
    %6692 = vmatpush1.msra.mxu0 0.0
    %6693 = vmatprep.subr.mxu0 0.0
    %6694 = vmatpush1.msra.mxu0 0.0
    %6695 = vmatprep.subr.mxu0 0.0
    %6696 = vmatpush1.msra.mxu0 0.0
    %6697 = vmatprep.subr.mxu0 0.0
    %6698 = vmatpush1.msra.mxu0 0.0
    %6699 = vmatprep.subr.mxu0 0.0
    %6700 = vmatpush1.msra.mxu0 0.0
    %6701 = vmatprep.subr.mxu0 0.0
    %6702 = vmatpush1.msra.mxu0 0.0
    %6703 = vmatprep.subr.mxu0 0.0
    %6704 = vmatpush1.msra.mxu0 0.0
    %6705 = vmatprep.subr.mxu0 0.0
    %6706 = vmatpush1.msra.mxu0 0.0
    %6707 = vmatprep.subr.mxu0 0.0
    %6708 = vmatpush1.msra.mxu0 0.0
    %6709 = vmatprep.subr.mxu0 0.0
    %6710 = vmatpush1.msra.mxu0 %v4259
    %6711 = vmatprep.subr.mxu0 0.0
    %6712 = vmatpush1.msra.mxu0 %v4258
    %6713 = vmatprep.subr.mxu0 0.0
    %6714 = vmatpush1.msra.mxu0 %v4257
    %6715 = vmatprep.subr.mxu0 0.0
    %6716 = vmatpush1.msra.mxu0 %v4256
    %6717 = vmatprep.subr.mxu0 0.0
    %6718 = vmatpush2.msra.mxu0 0.0
    %6719 = vmatprep.subr.mxu0 0.0
    %6720 = vmatpush2.msra.mxu0 0.0
    %6721 = vmatprep.subr.mxu0 0.0
    %6722 = vmatpush2.msra.mxu0 0.0
    %6723 = vmatprep.subr.mxu0 0.0
    %6724 = vmatpush2.msra.mxu0 0.0
    %6725 = vmatprep.subr.mxu0 0.0
    %6726 = vmatpush2.msra.mxu0 0.0
    %6727 = vmatprep.subr.mxu0 0.0
    %6728 = vmatpush2.msra.mxu0 0.0
    %6729 = vmatprep.subr.mxu0 0.0
    %6730 = vmatpush2.msra.mxu0 0.0
    %6731 = vmatprep.subr.mxu0 0.0
    %6732 = vmatpush2.msra.mxu0 0.0
    %6733 = vmatprep.subr.mxu0 0.0
    %6734 = vmatpush2.msra.mxu0 0.0
    %6735 = vmatprep.subr.mxu0 0.0
    %6736 = vmatpush2.msra.mxu0 0.0
    %6737 = vmatprep.subr.mxu0 0.0
    %6738 = vmatpush2.msra.mxu0 0.0
    %6739 = vmatprep.subr.mxu0 0.0
    %6740 = vmatpush2.msra.mxu0 0.0
    %6741 = vmatprep.subr.mxu0 0.0
    %6742 = vmatpush2.msra.mxu0 0.0
    %6743 = vmatprep.subr.mxu0 0.0
    %6744 = vmatpush2.msra.mxu0 0.0
    %6745 = vmatprep.subr.mxu0 0.0
    %6746 = vmatpush2.msra.mxu0 0.0
    %6747 = vmatprep.subr.mxu0 0.0
    %6748 = vmatpush2.msra.mxu0 0.0
    %6749 = vmatprep.mubr.f32.mxu0 0.0
    %6750 = vmatmul.mubr.f32.gmra.mxu0 %v6523
    %v6751 = vpop.f32.mrf.mxu0
    %v6752 = vadd.f32 0.0, %v6751
    %v6753 = vpop.f32.mrf.mxu0
    %6754 = vdwg.mxu0
    %v6756 = vrot.slane %v6752, 2
    %v6758 = vadd.f32 %v4155, %v6756
    %v6759 = vtanh.pop %v6758
    %6760 = vmatprep.subr.mxu0 0.0
    %6761 = vmatpush1.msra.mxu0 0.0
    %6762 = vmatprep.subr.mxu0 0.0
    %6763 = vmatpush1.msra.mxu0 0.0
    %6764 = vmatprep.subr.mxu0 0.0
    %6765 = vmatpush1.msra.mxu0 0.0
    %6766 = vmatprep.subr.mxu0 0.0
    %6767 = vmatpush1.msra.mxu0 0.0
    %6768 = vmatprep.subr.mxu0 0.0
    %6769 = vmatpush1.msra.mxu0 0.0
    %6770 = vmatprep.subr.mxu0 0.0
    %6771 = vmatpush1.msra.mxu0 0.0
    %6772 = vmatprep.subr.mxu0 0.0
    %6773 = vmatpush1.msra.mxu0 0.0
    %6774 = vmatprep.subr.mxu0 0.0
    %6775 = vmatpush1.msra.mxu0 0.0
    %6776 = vmatprep.subr.mxu0 0.0
    %6777 = vmatpush1.msra.mxu0 0.0
    %6778 = vmatprep.subr.mxu0 0.0
    %6779 = vmatpush1.msra.mxu0 0.0
    %6780 = vmatprep.subr.mxu0 0.0
    %6781 = vmatpush1.msra.mxu0 0.0
    %6782 = vmatprep.subr.mxu0 0.0
    %6783 = vmatpush1.msra.mxu0 0.0
    %6784 = vmatprep.subr.mxu0 0.0
    %6785 = vmatpush1.msra.mxu0 %v4264
    %6786 = vmatprep.subr.mxu0 0.0
    %6787 = vmatpush1.msra.mxu0 %v4263
    %6788 = vmatprep.subr.mxu0 0.0
    %6789 = vmatpush1.msra.mxu0 %v4262
    %6790 = vmatprep.subr.mxu0 0.0
    %6791 = vmatpush1.msra.mxu0 %v4261
    %6792 = vmatprep.subr.mxu0 0.0
    %6793 = vmatpush2.msra.mxu0 0.0
    %6794 = vmatprep.subr.mxu0 0.0
    %6795 = vmatpush2.msra.mxu0 0.0
    %6796 = vmatprep.subr.mxu0 0.0
    %6797 = vmatpush2.msra.mxu0 0.0
    %6798 = vmatprep.subr.mxu0 0.0
    %6799 = vmatpush2.msra.mxu0 0.0
    %6800 = vmatprep.subr.mxu0 0.0
    %6801 = vmatpush2.msra.mxu0 0.0
    %6802 = vmatprep.subr.mxu0 0.0
    %6803 = vmatpush2.msra.mxu0 0.0
    %6804 = vmatprep.subr.mxu0 0.0
    %6805 = vmatpush2.msra.mxu0 0.0
    %6806 = vmatprep.subr.mxu0 0.0
    %6807 = vmatpush2.msra.mxu0 0.0
    %6808 = vmatprep.subr.mxu0 0.0
    %6809 = vmatpush2.msra.mxu0 0.0
    %6810 = vmatprep.subr.mxu0 0.0
    %6811 = vmatpush2.msra.mxu0 0.0
    %6812 = vmatprep.subr.mxu0 0.0
    %6813 = vmatpush2.msra.mxu0 0.0
    %6814 = vmatprep.subr.mxu0 0.0
    %6815 = vmatpush2.msra.mxu0 0.0
    %6816 = vmatprep.subr.mxu0 0.0
    %6817 = vmatpush2.msra.mxu0 0.0
    %6818 = vmatprep.subr.mxu0 0.0
    %6819 = vmatpush2.msra.mxu0 0.0
    %6820 = vmatprep.subr.mxu0 0.0
    %6821 = vmatpush2.msra.mxu0 0.0
    %6822 = vmatprep.subr.mxu0 0.0
    %6823 = vmatpush2.msra.mxu0 0.0
    %6824 = vmatprep.mubr.f32.mxu0 0.0
    %6825 = vmatmul.mubr.f32.gmra.mxu0 %v6523
    %v6826 = vpop.f32.mrf.mxu0
    %v6827 = vadd.f32 0.0, %v6826
    %v6828 = vpop.f32.mrf.mxu0
    %6829 = vdwg.mxu0
    %v6831 = vrot.slane %v6827, 2
    %v6833 = vadd.f32 %v4243, %v6831
    %v6834 = vxor.u32 %v6833, 2147483648
    %v6835 = vmul.f32 %v6834, 1.442695
    %v6836 = vpow.pop %v6835
    %v6837 = vadd.f32 %v6836, 1.0
    %v6838 = vrcp.pop %v6837
    %v6839 = vmul.f32 1.0, %v6838
    %v6841 = vrot.slane %v6518, 6
    %v6843 = vmul.f32 %v6684, %v6841
    %v6844 = vmul.f32 %v6604, %v6759
    %v6845 = vadd.f32 %v6843, %v6844
    %v6846 = vtanh.pop %v6845
    %v6847 = vmul.f32 %v6839, %v6846
    %s6848 = scalar_lea.vmem [#allocation14], 2
    %6849 = vst.msk [vmem:[%s6848 - $0x6] sm:$0xc0] %vm3878, %v6847
    %s6850 = scalar_lea.vmem [#allocation15], 2
    %6851 = vst.msk [vmem:[%s6850 - $0x6] sm:$0xc0] %vm3878, %v6845
    // Predicated region
    $region522: #{tpu_custom_call.1} parent=1 // pred_check
      _
    $region523: #{tpu_custom_call.1} parent=1 // pred_check_branch
      %6853 = sbr.rel (0) target = $region525
    $region524: #{tpu_custom_call.1} parent=1 // pred_region
      %s6855 = ssub.s32 64, 64
      %6856 = vsyncadd [#allocation8], %s6855
      %s6857 = sshll.u32 [#allocation14], 4
      %s6858 = int_to_ptr.vmem [resolvable:$true] %s6857
      %6863 = dma.vmem_to_hbm [thread:$0]  %s6858, 64, %s8, [#allocation8], 32, 32, 2
    $region525: #{tpu_custom_call.1} parent=1 // pred_fallthru
      _
    // Predicated region
    $region526: #{tpu_custom_call.1} parent=1 // pred_check
      _
    $region527: #{tpu_custom_call.1} parent=1 // pred_check_branch
      %6865 = sbr.rel (0) target = $region529
    $region528: #{tpu_custom_call.1} parent=1 // pred_region
      %s6867 = ssub.s32 64, 64
      %6868 = vsyncadd [#allocation16], %s6867
      %s6869 = sshll.u32 [#allocation15], 4
      %s6870 = int_to_ptr.vmem [resolvable:$true] %s6869
      %6875 = dma.vmem_to_hbm [thread:$0]  %s6870, 64, %s9, [#allocation16], 32, 32, 2
    $region529: #{tpu_custom_call.1} parent=1 // pred_fallthru
      _
    // Predicated region
    $region530: #{tpu_custom_call.1} parent=1 // pred_check
      _
    $region531: #{tpu_custom_call.1} parent=1 // pred_check_branch
      %6877 = sbr.rel (0) target = $region533
    $region532: #{tpu_custom_call.1} parent=1 // pred_region
      %6878 = dma.done [#allocation8], 64
    $region533: #{tpu_custom_call.1} parent=1 // pred_fallthru
      _
    // Predicated region
    $region534: #{tpu_custom_call.1} parent=1 // pred_check
      _
    $region535: #{tpu_custom_call.1} parent=1 // pred_check_branch
      %6880 = sbr.rel (0) target = $region537
    $region536: #{tpu_custom_call.1} parent=1 // pred_region
      %6881 = dma.done [#allocation16], 64
    $region537: #{tpu_custom_call.1} parent=1 // pred_fallthru
      _
    %6882 = vsyncpa [#allocation7], 1
    %6883 = vsyncpa [#allocation10], 1
    %6884 = vsyncpa [#allocation13], 1
    %6885 = vsyncpa [#allocation8], 1
    %6886 = vsyncpa [#allocation16], 1
  %6887 = vsyncmov [#allocation3]
  %s6888 = vpop.sfrf %6887
  %p6889 = scmp.eq.s32.totalorder %s6888, 0
  %p6890 = pneg %p6889
  %6892 = shalt.err (%p6890)
  %s6893 = scalar_lea.sflag [#allocation3], 1
  %6894 = vsyncmov %s6893
  %s6895 = vpop.sfrf %6894
  %p6896 = scmp.eq.s32.totalorder %s6895, 0
  %p6897 = pneg %p6896
  %6899 = shalt.err (%p6897)
  %s6900 = scalar_lea.sflag [#allocation3], 2
  %6901 = vsyncmov %s6900
  %s6902 = vpop.sfrf %6901
  %p6903 = scmp.eq.s32.totalorder %s6902, 0
  %p6904 = pneg %p6903
  %6906 = shalt.err (%p6904)
  %s6907 = scalar_lea.sflag [#allocation3], 3
  %6908 = vsyncmov %s6907
  %s6909 = vpop.sfrf %6908
  %p6910 = scmp.eq.s32.totalorder %s6909, 0
  %p6911 = pneg %p6910
  %6913 = shalt.err (%p6911)
  %s6914 = scalar_lea.sflag [#allocation3], 4
  %6915 = vsyncmov %s6914
  %s6916 = vpop.sfrf %6915
  %p6917 = scmp.eq.s32.totalorder %s6916, 0
  %p6918 = pneg %p6917
  %6920 = shalt.err (%p6918)
  %s6921 = scalar_lea.sflag [#allocation3], 5
  %6922 = vsyncmov %s6921
  %s6923 = vpop.sfrf %6922
  %p6924 = scmp.eq.s32.totalorder %s6923, 0
  %p6925 = pneg %p6924
  %6927 = shalt.err (%p6925)
  %s6928 = scalar_lea.sflag [#allocation3], 6
  %6929 = vsyncmov %s6928
  %s6930 = vpop.sfrf %6929
  %p6931 = scmp.eq.s32.totalorder %s6930, 0
  %p6932 = pneg %p6931
  %6934 = shalt.err (%p6932)
  %s6935 = scalar_lea.sflag [#allocation3], 7
  %6936 = vsyncmov %s6935
  %s6937 = vpop.sfrf %6936
  %p6938 = scmp.eq.s32.totalorder %s6937, 0
  %p6939 = pneg %p6938
  %6941 = shalt.err (%p6939)
  %s6942 = scalar_lea.sflag [#allocation3], 8
  %6943 = vsyncmov %s6942
  %s6944 = vpop.sfrf %6943
  %p6945 = scmp.eq.s32.totalorder %s6944, 0
  %p6946 = pneg %p6945
  %6948 = shalt.err (%p6946)
  %s6949 = scalar_lea.sflag [#allocation3], 9
  %6950 = vsyncmov %s6949
  %s6951 = vpop.sfrf %6950
  %p6952 = scmp.eq.s32.totalorder %s6951, 0
  %p6953 = pneg %p6952
  %6955 = shalt.err (%p6953)
  %s6956 = scalar_lea.sflag [#allocation3], 10
  %6957 = vsyncmov %s6956
  %s6958 = vpop.sfrf %6957
  %p6959 = scmp.eq.s32.totalorder %s6958, 0
  %p6960 = pneg %p6959
  %6962 = shalt.err (%p6960)
  %s6963 = scalar_lea.sflag [#allocation3], 11
  %6964 = vsyncmov %s6963
  %s6965 = vpop.sfrf %6964
  %p6966 = scmp.eq.s32.totalorder %s6965, 0
  %p6967 = pneg %p6966
  %6969 = shalt.err (%p6967)
  %s6970 = scalar_lea.sflag [#allocation3], 12
  %6971 = vsyncmov %s6970
  %s6972 = vpop.sfrf %6971
  %p6973 = scmp.eq.s32.totalorder %s6972, 0
  %p6974 = pneg %p6973
  %6976 = shalt.err (%p6974)
  %s6977 = scalar_lea.sflag [#allocation3], 13
  %6978 = vsyncmov %s6977
  %s6979 = vpop.sfrf %6978
  %p6980 = scmp.eq.s32.totalorder %s6979, 0
  %p6981 = pneg %p6980
  %6983 = shalt.err (%p6981)
  %s6984 = scalar_lea.sflag [#allocation3], 14
  %6985 = vsyncmov %s6984
  %s6986 = vpop.sfrf %6985
  %p6987 = scmp.eq.s32.totalorder %s6986, 0
  %p6988 = pneg %p6987
  %6990 = shalt.err (%p6988)
  %s6991 = scalar_lea.sflag [#allocation3], 15
  %6992 = vsyncmov %s6991
  %s6993 = vpop.sfrf %6992
  %p6994 = scmp.eq.s32.totalorder %s6993, 0
  %p6995 = pneg %p6994
  %6997 = shalt.err (%p6995)

</llo_original>
